<compile_context>
chip_gen: v7x
topology: tpu7x:2x2x1
jax: 0.10.0
libtpu: 0.0.40
codegen_flags: <defaults>
</compile_context>

<pallas_src>
import jax
import jax.numpy as jnp
import numpy as np
from jax.experimental import pallas as pl
from jax.experimental.pallas import tpu as pltpu

N_OUT = 4096          # 8*8*8*8 candidate moves
TN = 2048             # fc3 N-tile; grid = N_OUT // TN = 2 steps
assert N_OUT % TN == 0


# ----------------------------------------------------------------------------
# Small helpers used inside the kernel
# ----------------------------------------------------------------------------
def _mm(a, b):
    """MXU matmul: bf16 operands, f32 accumulation."""
    return jnp.dot(a.astype(jnp.bfloat16), b.astype(jnp.bfloat16),
                   preferred_element_type=jnp.float32)


# ----------------------------------------------------------------------------
# The fused network kernel
# ----------------------------------------------------------------------------
def _net_kernel(p0_ref, s8_ref, m1_ref, s4_ref, m2_ref, fsel_ref,
                w1_ref, b1_ref, w2_ref, b2_ref, w3_ref, b3_ref,
                wf1_ref, bf1_ref, wf2_ref, bf2_ref, wf3_ref, bf3_ref,
                o_ref, h2_ref):
    j = pl.program_id(0)
    n_blk = pl.num_programs(0)

    # ------------------------------------------------------------------
    # Step 0: conv stack + fc1 + fc2, result (B, 256) parked in VMEM scratch.
    # While this runs, Pallas prefetches the next fc3 weight block.
    # ------------------------------------------------------------------
    @pl.when(j == 0)
    def _front_end():
        # conv1: input was im2col'ed in the wrapper -> (B*64, 9) @ (9, 32)
        h = jnp.maximum(_mm(p0_ref[...], w1_ref[...]) + b1_ref[...], 0.0)

        # conv2: relu(sum_t (S_t @ h) @ W2_t + b2)  -- in-kernel im2col via
        # 0/1 shift matrices; patches never materialize in HBM.
        acc = _mm(_mm(s8_ref[0], h), w2_ref[0])
        for t in range(1, 9):
            acc = acc + _mm(_mm(s8_ref[t], h), w2_ref[t])
        h = jnp.maximum(acc + b2_ref[...], 0.0)                 # (B*64, 64)

        # maxpool 2x2: elementwise max over 4 corner-selection gathers.
        p = _mm(m1_ref[0], h)
        for k in range(1, 4):
            p = jnp.maximum(p, _mm(m1_ref[k], h))               # (B*16, 64)

        # conv3
        acc = _mm(_mm(s4_ref[0], p), w3_ref[0])
        for t in range(1, 9):
            acc = acc + _mm(_mm(s4_ref[t], p), w3_ref[t])
        h = jnp.maximum(acc + b3_ref[...], 0.0)                 # (B*16, 128)

        # maxpool 2x2
        q = _mm(m2_ref[0], h)
        for k in range(1, 4):
            q = jnp.maximum(q, _mm(m2_ref[k], h))               # (B*4, 128)

        # nn.Flatten (PyTorch C,H,W order is folded into the pre-permuted fc1
        # weight) + fc1.  fsel_s gathers the batch rows of spatial slot s.
        acc = _mm(_mm(fsel_ref[0], q), wf1_ref[0])
        for s in range(1, 4):
            acc = acc + _mm(_mm(fsel_ref[s], q), wf1_ref[s])
        h1 = jnp.maximum(acc + bf1_ref[...], 0.0)               # (B, 512)
        # nn.Dropout(0.5): eval-mode identity.
        # TODO(synk): training-mode stochastic dropout masking not reproduced.

        # fc2
        h2 = jnp.maximum(_mm(h1, wf2_ref[...]) + bf2_ref[...], 0.0)  # (B, 256)
        h2_ref[...] = h2.astype(h2_ref.dtype)

    # ------------------------------------------------------------------
    # fc3, one (256, TN) weight block per grid step (DMA double-buffered by
    # Pallas).  Logit blocks land in the VMEM-resident output.
    # ------------------------------------------------------------------
    z = _mm(h2_ref[...], wf3_ref[...]) + bf3_ref[...]           # (B, TN) f32
    for t in range(N_OUT // TN):
        @pl.when(j == t)
        def _store(t=t):
            o_ref[:, t * TN:(t + 1) * TN] = z

    # Softmax over the full 4096-wide row once all logit blocks are resident.
    # Exact f32 division (NOT the approximate EUP reciprocal) so each row sums
    # to 1 within float32 rounding.
    @pl.when(j == n_blk - 1)
    def _softmax():
        logits = o_ref[...]
        m = jnp.max(logits, axis=-1, keepdims=True)
        e = jnp.exp(logits - m)
        denom = jnp.sum(e, axis=-1, keepdims=True)
        o_ref[...] = e / denom


# ----------------------------------------------------------------------------
# Structural (0/1) matrices for in-kernel shift / pool / flatten gathers.
# Built once at trace time with numpy (constants).
# ----------------------------------------------------------------------------
def _shift_mats(B, H, W):
    """S[t, r_out, r_in] = 1 iff r_in is the (dh-1, dw-1)-shifted pixel of r_out."""
    R = B * H * W
    S = np.zeros((9, R, R), np.float32)
    for dh in range(3):
        for dw in range(3):
            t = dh * 3 + dw
            for b in range(B):
                for i in range(H):
                    ii = i + dh - 1
                    if not (0 <= ii < H):
                        continue
                    for jc in range(W):
                        jj = jc + dw - 1
                        if 0 <= jj < W:
                            S[t, b * H * W + i * W + jc,
                                 b * H * W + ii * W + jj] = 1.0
    return S


def _pool_mats(B, H, W):
    """M[k] selects corner k of each 2x2 window (batch-major output rows)."""
    Ho, Wo = H // 2, W // 2
    M = np.zeros((4, B * Ho * Wo, B * H * W), np.float32)
    for k in range(4):
        dh, dw = k // 2, k % 2
        for b in range(B):
            for io in range(Ho):
                for jo in range(Wo):
                    M[k, b * Ho * Wo + io * Wo + jo,
                         b * H * W + (2 * io + dh) * W + (2 * jo + dw)] = 1.0
    return M


def _flatten_sel(B):
    """F[s, b, r] = 1 iff r == b*4 + s  (extracts spatial slot s for each batch)."""
    F = np.zeros((4, B, B * 4), np.float32)
    for s in range(4):
        for b in range(B):
            F[s, b, b * 4 + s] = 1.0
    return F


# ----------------------------------------------------------------------------
# Parameters: PyTorch-layout init + one-time kernel-layout preparation
# ----------------------------------------------------------------------------
def init_params(key):
    ks = jax.random.split(key, 12)

    def w(k, shape, fan_in):
        return jax.random.normal(k, shape, jnp.float32) / jnp.sqrt(float(fan_in))

    return {
        "c1_w": w(ks[0], (32, 1, 3, 3), 1 * 9),    "c1_b": w(ks[1], (32,), 1 * 9),
        "c2_w": w(ks[2], (64, 32, 3, 3), 32 * 9),  "c2_b": w(ks[3], (64,), 32 * 9),
        "c3_w": w(ks[4], (128, 64, 3, 3), 64 * 9), "c3_b": w(ks[5], (128,), 64 * 9),
        "fc1_w": w(ks[6], (512, 512), 512),        "fc1_b": w(ks[7], (512,), 512),
        "fc2_w": w(ks[8], (256, 512), 512),        "fc2_b": w(ks[9], (256,), 512),
        "fc3_w": w(ks[10], (4096, 256), 256),      "fc3_b": w(ks[11], (4096,), 256),
    }


def prepare_params(raw):
    """One-time re-layout: conv weights -> (9, Cin, Cout), fc weights pre-transposed
    to (K, N) in bf16 (flatten permutation folded into fc1); biases (1, N) f32."""
    BF = jnp.bfloat16

    def conv_w(w):
        O, I = w.shape[0], w.shape[1]
        return jnp.transpose(w, (2, 3, 1, 0)).reshape(9, I, O).astype(BF)

    def bias(b):
        return b.reshape(1, -1).astype(jnp.float32)

    return {
        "w1": conv_w(raw["c1_w"]).reshape(9, 32),          "b1": bias(raw["c1_b"]),
        "w2": conv_w(raw["c2_w"]),                          "b2": bias(raw["c2_b"]),
        "w3": conv_w(raw["c3_w"]),                          "b3": bias(raw["c3_b"]),
        # fc1: in-index k = c*4 + s  ->  stored as [s, c, n]
        "wf1": raw["fc1_w"].reshape(512, 128, 4).transpose(2, 1, 0).astype(BF),
        "bf1": bias(raw["fc1_b"]),
        "wf2": raw["fc2_w"].T.astype(BF),                   "bf2": bias(raw["fc2_b"]),
        "wf3": raw["fc3_w"].T.astype(BF),                   "bf3": bias(raw["fc3_b"]),
    }


# ----------------------------------------------------------------------------
# Forward pass (matches the eval-mode nn.Sequential of WhiteChessDoveAI)
# ----------------------------------------------------------------------------
def _estimate_flops(B):
    R1, R2, R3 = B * 64, B * 16, B * 4
    f = 2 * R1 * 9 * 32
    f += 9 * (2 * R1 * R1 * 32 + 2 * R1 * 32 * 64)
    f += 4 * 2 * R2 * R1 * 64
    f += 9 * (2 * R2 * R2 * 64 + 2 * R2 * 64 * 128)
    f += 4 * 2 * R3 * R2 * 128
    f += 4 * (2 * B * R3 * 128 + 2 * B * 128 * 512)
    f += 2 * B * 512 * 256 + 2 * B * 256 * N_OUT
    return int(f)


def _const_spec(shape):
    nd = len(shape)
    return pl.BlockSpec(shape, lambda j, _nd=nd: (0,) * _nd)


def forward(params, x_nchw):
    assert x_nchw.shape[1:] == (1, 8, 8), x_nchw.shape
    B = x_nchw.shape[0]
    BF = jnp.bfloat16
    x = x_nchw.astype(jnp.float32)

    # im2col of the tiny (B,1,8,8) network input (done once, outside the kernel;
    # all later conv patches are built in-kernel).
    xp = jnp.pad(x[:, 0], ((0, 0), (1, 1), (1, 1)))
    cols = [xp[:, dh:dh + 8, dw:dw + 8] for dh in range(3) for dw in range(3)]
    p0 = jnp.stack(cols, axis=-1).reshape(B * 64, 9).astype(BF)

    # Constant structural gather matrices (0/1, exact in bf16).
    s8 = jnp.asarray(_shift_mats(B, 8, 8), BF)
    m1 = jnp.asarray(_pool_mats(B, 8, 8), BF)
    s4 = jnp.asarray(_shift_mats(B, 4, 4), BF)
    m2 = jnp.asarray(_pool_mats(B, 4, 4), BF)
    fsel = jnp.asarray(_flatten_sel(B), BF)

    inputs = (p0, s8, m1, s4, m2, fsel,
              params["w1"], params["b1"], params["w2"], params["b2"],
              params["w3"], params["b3"], params["wf1"], params["bf1"],
              params["wf2"], params["bf2"], params["wf3"], params["bf3"])

    in_specs = [_const_spec(a.shape) for a in inputs[:16]] + [
        pl.BlockSpec((256, TN), lambda j: (0, j)),    # fc3 weight, N-tiled
        pl.BlockSpec((1, TN), lambda j: (0, j)),      # fc3 bias, N-tiled
    ]

    bytes_accessed = int(sum(a.size * a.dtype.itemsize for a in inputs)
                         + B * N_OUT * 4)
    cost = pl.CostEstimate(flops=_estimate_flops(B),
                           transcendentals=int(B * N_OUT),
                           bytes_accessed=bytes_accessed)

    return pl.pallas_call(
        _net_kernel,
        out_shape=jax.ShapeDtypeStruct((B, N_OUT), jnp.float32),
        grid_spec=pltpu.PrefetchScalarGridSpec(
            num_scalar_prefetch=0,
            grid=(N_OUT // TN,),
            in_specs=in_specs,
            out_specs=pl.BlockSpec((B, N_OUT), lambda j: (0, 0)),
            scratch_shapes=[pltpu.VMEM((B, 256), jnp.bfloat16)],
        ),
        compiler_params=pltpu.CompilerParams(
            dimension_semantics=("arbitrary",)),
        cost_estimate=cost,
    )(*inputs)


if __name__ == "__main__":
    key = jax.random.PRNGKey(0)
    k_params, k_x = jax.random.split(key)
    params = prepare_params(init_params(k_params))
    # Chess board input, PyTorch NCHW convention: (batch=2, channels=1, 8, 8).
    x = jax.random.normal(k_x, (2, 1, 8, 8), jnp.float32)

    out = jax.jit(forward)(params, x)
    out = jax.block_until_ready(out)

    assert out.shape == (2, 4096), out.shape
    row_sums = jnp.sum(out, axis=-1)
    assert bool(jnp.all(jnp.abs(row_sums - 1.0) < 1e-3)), row_sums
    assert bool(jnp.all(out >= 0.0))
    print("KERNEL_OK")
</pallas_src>

<mosaic_0001>
module attributes {stable_mosaic.version = 11 : i64} {
  func.func @_net_kernel(%arg0: i32, %arg1: memref<128x9xbf16, #tpu.memory_space<vmem>>, %arg2: memref<9x128x128xbf16, #tpu.memory_space<vmem>>, %arg3: memref<4x32x128xbf16, #tpu.memory_space<vmem>>, %arg4: memref<9x32x32xbf16, #tpu.memory_space<vmem>>, %arg5: memref<4x8x32xbf16, #tpu.memory_space<vmem>>, %arg6: memref<4x2x8xbf16, #tpu.memory_space<vmem>>, %arg7: memref<9x32xbf16, #tpu.memory_space<vmem>>, %arg8: memref<1x32xf32, #tpu.memory_space<vmem>>, %arg9: memref<9x32x64xbf16, #tpu.memory_space<vmem>>, %arg10: memref<1x64xf32, #tpu.memory_space<vmem>>, %arg11: memref<9x64x128xbf16, #tpu.memory_space<vmem>>, %arg12: memref<1x128xf32, #tpu.memory_space<vmem>>, %arg13: memref<4x128x512xbf16, #tpu.memory_space<vmem>>, %arg14: memref<1x512xf32, #tpu.memory_space<vmem>>, %arg15: memref<512x256xbf16, #tpu.memory_space<vmem>>, %arg16: memref<1x256xf32, #tpu.memory_space<vmem>>, %arg17: memref<256x2048xbf16, #tpu.memory_space<vmem>>, %arg18: memref<1x2048xf32, #tpu.memory_space<vmem>>, %arg19: memref<2x4096xf32, #tpu.memory_space<vmem>>, %arg20: memref<2x256xbf16, #tpu.memory_space<vmem>>) attributes {dimension_semantics = [#tpu.dimension_semantics<arbitrary>], iteration_bounds = array<i64: 2>, scalar_prefetch = 0 : i64, scratch_operands = 1 : i64, tpu.core_type = #tpu.core_type<tc>, window_params = [{pipeline_mode = #tpu.pipeline_mode<synchronous>, transform_indices = @transform_0, window_bounds = array<i64: 128, 9>}, {pipeline_mode = #tpu.pipeline_mode<synchronous>, transform_indices = @transform_1, window_bounds = array<i64: 9, 128, 128>}, {pipeline_mode = #tpu.pipeline_mode<synchronous>, transform_indices = @transform_2, window_bounds = array<i64: 4, 32, 128>}, {pipeline_mode = #tpu.pipeline_mode<synchronous>, transform_indices = @transform_3, window_bounds = array<i64: 9, 32, 32>}, {pipeline_mode = #tpu.pipeline_mode<synchronous>, transform_indices = @transform_4, window_bounds = array<i64: 4, 8, 32>}, {pipeline_mode = #tpu.pipeline_mode<synchronous>, transform_indices = @transform_5, window_bounds = array<i64: 4, 2, 8>}, {pipeline_mode = #tpu.pipeline_mode<synchronous>, transform_indices = @transform_6, window_bounds = array<i64: 9, 32>}, {pipeline_mode = #tpu.pipeline_mode<synchronous>, transform_indices = @transform_7, window_bounds = array<i64: 1, 32>}, {pipeline_mode = #tpu.pipeline_mode<synchronous>, transform_indices = @transform_8, window_bounds = array<i64: 9, 32, 64>}, {pipeline_mode = #tpu.pipeline_mode<synchronous>, transform_indices = @transform_9, window_bounds = array<i64: 1, 64>}, {pipeline_mode = #tpu.pipeline_mode<synchronous>, transform_indices = @transform_10, window_bounds = array<i64: 9, 64, 128>}, {pipeline_mode = #tpu.pipeline_mode<synchronous>, transform_indices = @transform_11, window_bounds = array<i64: 1, 128>}, {pipeline_mode = #tpu.pipeline_mode<synchronous>, transform_indices = @transform_12, window_bounds = array<i64: 4, 128, 512>}, {pipeline_mode = #tpu.pipeline_mode<synchronous>, transform_indices = @transform_13, window_bounds = array<i64: 1, 512>}, {pipeline_mode = #tpu.pipeline_mode<synchronous>, transform_indices = @transform_14, window_bounds = array<i64: 512, 256>}, {pipeline_mode = #tpu.pipeline_mode<synchronous>, transform_indices = @transform_15, window_bounds = array<i64: 1, 256>}, {transform_indices = @transform_16, window_bounds = array<i64: 256, 2048>}, {transform_indices = @transform_17, window_bounds = array<i64: 1, 2048>}, {pipeline_mode = #tpu.pipeline_mode<synchronous>, transform_indices = @transform_18, window_bounds = array<i64: 2, 4096>}]} {
    %c0_i32 = arith.constant 0 : i32
    %0 = arith.cmpi eq, %arg0, %c0_i32 : i32
    %1 = arith.extui %0 : i1 to i32
    %c0_i32_0 = arith.constant 0 : i32
    %2 = arith.cmpi ne, %1, %c0_i32_0 : i32
    scf.if %2 {
      %c0_11 = arith.constant 0 : index
      %c0_12 = arith.constant 0 : index
      %18 = vector.load %arg1[%c0_11, %c0_12] : memref<128x9xbf16, #tpu.memory_space<vmem>>, vector<128x9xbf16>
      %c0_13 = arith.constant 0 : index
      %c0_14 = arith.constant 0 : index
      %19 = vector.load %arg7[%c0_13, %c0_14] : memref<9x32xbf16, #tpu.memory_space<vmem>>, vector<9x32xbf16>
      %cst_15 = arith.constant dense<0.000000e+00> : vector<128x32xf32>
      %20 = tpu.matmul %18, %19, %cst_15 {dimension_numbers = #tpu.dot_dimension_numbers<[1], [0], [0], [1], [0, 0, 1, 1], [], []>} : vector<128x9xbf16>, vector<9x32xbf16>, vector<128x32xf32> -> vector<128x32xf32>
      %c0_16 = arith.constant 0 : index
      %c0_17 = arith.constant 0 : index
      %21 = vector.load %arg8[%c0_16, %c0_17] : memref<1x32xf32, #tpu.memory_space<vmem>>, vector<1x32xf32>
      %22 = vector.broadcast %21 : vector<1x32xf32> to vector<128x32xf32>
      %23 = arith.addf %20, %22 : vector<128x32xf32>
      %cst_18 = arith.constant 0.000000e+00 : f32
      %24 = vector.broadcast %cst_18 : f32 to vector<128x32xf32>
      %25 = arith.maximumf %23, %24 : vector<128x32xf32>
      %c0_19 = arith.constant 0 : index
      %c0_20 = arith.constant 0 : index
      %c0_21 = arith.constant 0 : index
      %26 = vector.load %arg2[%c0_19, %c0_20, %c0_21] : memref<9x128x128xbf16, #tpu.memory_space<vmem>>, vector<1x128x128xbf16>
      %27 = vector.shape_cast %26 : vector<1x128x128xbf16> to vector<128x128xbf16>
      %28 = arith.truncf %25 : vector<128x32xf32> to vector<128x32xbf16>
      %cst_22 = arith.constant dense<0.000000e+00> : vector<128x32xf32>
      %29 = tpu.matmul %27, %28, %cst_22 {dimension_numbers = #tpu.dot_dimension_numbers<[1], [0], [0], [1], [0, 0, 1, 1], [], []>} : vector<128x128xbf16>, vector<128x32xbf16>, vector<128x32xf32> -> vector<128x32xf32>
      %c0_23 = arith.constant 0 : index
      %c0_24 = arith.constant 0 : index
      %c0_25 = arith.constant 0 : index
      %30 = vector.load %arg9[%c0_23, %c0_24, %c0_25] : memref<9x32x64xbf16, #tpu.memory_space<vmem>>, vector<1x32x64xbf16>
      %31 = vector.shape_cast %30 : vector<1x32x64xbf16> to vector<32x64xbf16>
      %32 = arith.truncf %29 : vector<128x32xf32> to vector<128x32xbf16>
      %cst_26 = arith.constant dense<0.000000e+00> : vector<128x64xf32>
      %33 = tpu.matmul %32, %31, %cst_26 {dimension_numbers = #tpu.dot_dimension_numbers<[1], [0], [0], [1], [0, 0, 1, 1], [], []>} : vector<128x32xbf16>, vector<32x64xbf16>, vector<128x64xf32> -> vector<128x64xf32>
      %c1 = arith.constant 1 : index
      %c0_27 = arith.constant 0 : index
      %c0_28 = arith.constant 0 : index
      %34 = vector.load %arg2[%c1, %c0_27, %c0_28] : memref<9x128x128xbf16, #tpu.memory_space<vmem>>, vector<1x128x128xbf16>
      %35 = vector.shape_cast %34 : vector<1x128x128xbf16> to vector<128x128xbf16>
      %36 = arith.truncf %25 : vector<128x32xf32> to vector<128x32xbf16>
      %cst_29 = arith.constant dense<0.000000e+00> : vector<128x32xf32>
      %37 = tpu.matmul %35, %36, %cst_29 {dimension_numbers = #tpu.dot_dimension_numbers<[1], [0], [0], [1], [0, 0, 1, 1], [], []>} : vector<128x128xbf16>, vector<128x32xbf16>, vector<128x32xf32> -> vector<128x32xf32>
      %c1_30 = arith.constant 1 : index
      %c0_31 = arith.constant 0 : index
      %c0_32 = arith.constant 0 : index
      %38 = vector.load %arg9[%c1_30, %c0_31, %c0_32] : memref<9x32x64xbf16, #tpu.memory_space<vmem>>, vector<1x32x64xbf16>
      %39 = vector.shape_cast %38 : vector<1x32x64xbf16> to vector<32x64xbf16>
      %40 = arith.truncf %37 : vector<128x32xf32> to vector<128x32xbf16>
      %cst_33 = arith.constant dense<0.000000e+00> : vector<128x64xf32>
      %41 = tpu.matmul %40, %39, %cst_33 {dimension_numbers = #tpu.dot_dimension_numbers<[1], [0], [0], [1], [0, 0, 1, 1], [], []>} : vector<128x32xbf16>, vector<32x64xbf16>, vector<128x64xf32> -> vector<128x64xf32>
      %42 = arith.addf %33, %41 : vector<128x64xf32>
      %c2 = arith.constant 2 : index
      %c0_34 = arith.constant 0 : index
      %c0_35 = arith.constant 0 : index
      %43 = vector.load %arg2[%c2, %c0_34, %c0_35] : memref<9x128x128xbf16, #tpu.memory_space<vmem>>, vector<1x128x128xbf16>
      %44 = vector.shape_cast %43 : vector<1x128x128xbf16> to vector<128x128xbf16>
      %45 = arith.truncf %25 : vector<128x32xf32> to vector<128x32xbf16>
      %cst_36 = arith.constant dense<0.000000e+00> : vector<128x32xf32>
      %46 = tpu.matmul %44, %45, %cst_36 {dimension_numbers = #tpu.dot_dimension_numbers<[1], [0], [0], [1], [0, 0, 1, 1], [], []>} : vector<128x128xbf16>, vector<128x32xbf16>, vector<128x32xf32> -> vector<128x32xf32>
      %c2_37 = arith.constant 2 : index
      %c0_38 = arith.constant 0 : index
      %c0_39 = arith.constant 0 : index
      %47 = vector.load %arg9[%c2_37, %c0_38, %c0_39] : memref<9x32x64xbf16, #tpu.memory_space<vmem>>, vector<1x32x64xbf16>
      %48 = vector.shape_cast %47 : vector<1x32x64xbf16> to vector<32x64xbf16>
      %49 = arith.truncf %46 : vector<128x32xf32> to vector<128x32xbf16>
      %cst_40 = arith.constant dense<0.000000e+00> : vector<128x64xf32>
      %50 = tpu.matmul %49, %48, %cst_40 {dimension_numbers = #tpu.dot_dimension_numbers<[1], [0], [0], [1], [0, 0, 1, 1], [], []>} : vector<128x32xbf16>, vector<32x64xbf16>, vector<128x64xf32> -> vector<128x64xf32>
      %51 = arith.addf %42, %50 : vector<128x64xf32>
      %c3 = arith.constant 3 : index
      %c0_41 = arith.constant 0 : index
      %c0_42 = arith.constant 0 : index
      %52 = vector.load %arg2[%c3, %c0_41, %c0_42] : memref<9x128x128xbf16, #tpu.memory_space<vmem>>, vector<1x128x128xbf16>
      %53 = vector.shape_cast %52 : vector<1x128x128xbf16> to vector<128x128xbf16>
      %54 = arith.truncf %25 : vector<128x32xf32> to vector<128x32xbf16>
      %cst_43 = arith.constant dense<0.000000e+00> : vector<128x32xf32>
      %55 = tpu.matmul %53, %54, %cst_43 {dimension_numbers = #tpu.dot_dimension_numbers<[1], [0], [0], [1], [0, 0, 1, 1], [], []>} : vector<128x128xbf16>, vector<128x32xbf16>, vector<128x32xf32> -> vector<128x32xf32>
      %c3_44 = arith.constant 3 : index
      %c0_45 = arith.constant 0 : index
      %c0_46 = arith.constant 0 : index
      %56 = vector.load %arg9[%c3_44, %c0_45, %c0_46] : memref<9x32x64xbf16, #tpu.memory_space<vmem>>, vector<1x32x64xbf16>
      %57 = vector.shape_cast %56 : vector<1x32x64xbf16> to vector<32x64xbf16>
      %58 = arith.truncf %55 : vector<128x32xf32> to vector<128x32xbf16>
      %cst_47 = arith.constant dense<0.000000e+00> : vector<128x64xf32>
      %59 = tpu.matmul %58, %57, %cst_47 {dimension_numbers = #tpu.dot_dimension_numbers<[1], [0], [0], [1], [0, 0, 1, 1], [], []>} : vector<128x32xbf16>, vector<32x64xbf16>, vector<128x64xf32> -> vector<128x64xf32>
      %60 = arith.addf %51, %59 : vector<128x64xf32>
      %c4 = arith.constant 4 : index
      %c0_48 = arith.constant 0 : index
      %c0_49 = arith.constant 0 : index
      %61 = vector.load %arg2[%c4, %c0_48, %c0_49] : memref<9x128x128xbf16, #tpu.memory_space<vmem>>, vector<1x128x128xbf16>
      %62 = vector.shape_cast %61 : vector<1x128x128xbf16> to vector<128x128xbf16>
      %63 = arith.truncf %25 : vector<128x32xf32> to vector<128x32xbf16>
      %cst_50 = arith.constant dense<0.000000e+00> : vector<128x32xf32>
      %64 = tpu.matmul %62, %63, %cst_50 {dimension_numbers = #tpu.dot_dimension_numbers<[1], [0], [0], [1], [0, 0, 1, 1], [], []>} : vector<128x128xbf16>, vector<128x32xbf16>, vector<128x32xf32> -> vector<128x32xf32>
      %c4_51 = arith.constant 4 : index
      %c0_52 = arith.constant 0 : index
      %c0_53 = arith.constant 0 : index
      %65 = vector.load %arg9[%c4_51, %c0_52, %c0_53] : memref<9x32x64xbf16, #tpu.memory_space<vmem>>, vector<1x32x64xbf16>
      %66 = vector.shape_cast %65 : vector<1x32x64xbf16> to vector<32x64xbf16>
      %67 = arith.truncf %64 : vector<128x32xf32> to vector<128x32xbf16>
      %cst_54 = arith.constant dense<0.000000e+00> : vector<128x64xf32>
      %68 = tpu.matmul %67, %66, %cst_54 {dimension_numbers = #tpu.dot_dimension_numbers<[1], [0], [0], [1], [0, 0, 1, 1], [], []>} : vector<128x32xbf16>, vector<32x64xbf16>, vector<128x64xf32> -> vector<128x64xf32>
      %69 = arith.addf %60, %68 : vector<128x64xf32>
      %c5 = arith.constant 5 : index
      %c0_55 = arith.constant 0 : index
      %c0_56 = arith.constant 0 : index
      %70 = vector.load %arg2[%c5, %c0_55, %c0_56] : memref<9x128x128xbf16, #tpu.memory_space<vmem>>, vector<1x128x128xbf16>
      %71 = vector.shape_cast %70 : vector<1x128x128xbf16> to vector<128x128xbf16>
      %72 = arith.truncf %25 : vector<128x32xf32> to vector<128x32xbf16>
      %cst_57 = arith.constant dense<0.000000e+00> : vector<128x32xf32>
      %73 = tpu.matmul %71, %72, %cst_57 {dimension_numbers = #tpu.dot_dimension_numbers<[1], [0], [0], [1], [0, 0, 1, 1], [], []>} : vector<128x128xbf16>, vector<128x32xbf16>, vector<128x32xf32> -> vector<128x32xf32>
      %c5_58 = arith.constant 5 : index
      %c0_59 = arith.constant 0 : index
      %c0_60 = arith.constant 0 : index
      %74 = vector.load %arg9[%c5_58, %c0_59, %c0_60] : memref<9x32x64xbf16, #tpu.memory_space<vmem>>, vector<1x32x64xbf16>
      %75 = vector.shape_cast %74 : vector<1x32x64xbf16> to vector<32x64xbf16>
      %76 = arith.truncf %73 : vector<128x32xf32> to vector<128x32xbf16>
      %cst_61 = arith.constant dense<0.000000e+00> : vector<128x64xf32>
      %77 = tpu.matmul %76, %75, %cst_61 {dimension_numbers = #tpu.dot_dimension_numbers<[1], [0], [0], [1], [0, 0, 1, 1], [], []>} : vector<128x32xbf16>, vector<32x64xbf16>, vector<128x64xf32> -> vector<128x64xf32>
      %78 = arith.addf %69, %77 : vector<128x64xf32>
      %c6 = arith.constant 6 : index
      %c0_62 = arith.constant 0 : index
      %c0_63 = arith.constant 0 : index
      %79 = vector.load %arg2[%c6, %c0_62, %c0_63] : memref<9x128x128xbf16, #tpu.memory_space<vmem>>, vector<1x128x128xbf16>
      %80 = vector.shape_cast %79 : vector<1x128x128xbf16> to vector<128x128xbf16>
      %81 = arith.truncf %25 : vector<128x32xf32> to vector<128x32xbf16>
      %cst_64 = arith.constant dense<0.000000e+00> : vector<128x32xf32>
      %82 = tpu.matmul %80, %81, %cst_64 {dimension_numbers = #tpu.dot_dimension_numbers<[1], [0], [0], [1], [0, 0, 1, 1], [], []>} : vector<128x128xbf16>, vector<128x32xbf16>, vector<128x32xf32> -> vector<128x32xf32>
      %c6_65 = arith.constant 6 : index
      %c0_66 = arith.constant 0 : index
      %c0_67 = arith.constant 0 : index
      %83 = vector.load %arg9[%c6_65, %c0_66, %c0_67] : memref<9x32x64xbf16, #tpu.memory_space<vmem>>, vector<1x32x64xbf16>
      %84 = vector.shape_cast %83 : vector<1x32x64xbf16> to vector<32x64xbf16>
      %85 = arith.truncf %82 : vector<128x32xf32> to vector<128x32xbf16>
      %cst_68 = arith.constant dense<0.000000e+00> : vector<128x64xf32>
      %86 = tpu.matmul %85, %84, %cst_68 {dimension_numbers = #tpu.dot_dimension_numbers<[1], [0], [0], [1], [0, 0, 1, 1], [], []>} : vector<128x32xbf16>, vector<32x64xbf16>, vector<128x64xf32> -> vector<128x64xf32>
      %87 = arith.addf %78, %86 : vector<128x64xf32>
      %c7 = arith.constant 7 : index
      %c0_69 = arith.constant 0 : index
      %c0_70 = arith.constant 0 : index
      %88 = vector.load %arg2[%c7, %c0_69, %c0_70] : memref<9x128x128xbf16, #tpu.memory_space<vmem>>, vector<1x128x128xbf16>
      %89 = vector.shape_cast %88 : vector<1x128x128xbf16> to vector<128x128xbf16>
      %90 = arith.truncf %25 : vector<128x32xf32> to vector<128x32xbf16>
      %cst_71 = arith.constant dense<0.000000e+00> : vector<128x32xf32>
      %91 = tpu.matmul %89, %90, %cst_71 {dimension_numbers = #tpu.dot_dimension_numbers<[1], [0], [0], [1], [0, 0, 1, 1], [], []>} : vector<128x128xbf16>, vector<128x32xbf16>, vector<128x32xf32> -> vector<128x32xf32>
      %c7_72 = arith.constant 7 : index
      %c0_73 = arith.constant 0 : index
      %c0_74 = arith.constant 0 : index
      %92 = vector.load %arg9[%c7_72, %c0_73, %c0_74] : memref<9x32x64xbf16, #tpu.memory_space<vmem>>, vector<1x32x64xbf16>
      %93 = vector.shape_cast %92 : vector<1x32x64xbf16> to vector<32x64xbf16>
      %94 = arith.truncf %91 : vector<128x32xf32> to vector<128x32xbf16>
      %cst_75 = arith.constant dense<0.000000e+00> : vector<128x64xf32>
      %95 = tpu.matmul %94, %93, %cst_75 {dimension_numbers = #tpu.dot_dimension_numbers<[1], [0], [0], [1], [0, 0, 1, 1], [], []>} : vector<128x32xbf16>, vector<32x64xbf16>, vector<128x64xf32> -> vector<128x64xf32>
      %96 = arith.addf %87, %95 : vector<128x64xf32>
      %c8 = arith.constant 8 : index
      %c0_76 = arith.constant 0 : index
      %c0_77 = arith.constant 0 : index
      %97 = vector.load %arg2[%c8, %c0_76, %c0_77] : memref<9x128x128xbf16, #tpu.memory_space<vmem>>, vector<1x128x128xbf16>
      %98 = vector.shape_cast %97 : vector<1x128x128xbf16> to vector<128x128xbf16>
      %99 = arith.truncf %25 : vector<128x32xf32> to vector<128x32xbf16>
      %cst_78 = arith.constant dense<0.000000e+00> : vector<128x32xf32>
      %100 = tpu.matmul %98, %99, %cst_78 {dimension_numbers = #tpu.dot_dimension_numbers<[1], [0], [0], [1], [0, 0, 1, 1], [], []>} : vector<128x128xbf16>, vector<128x32xbf16>, vector<128x32xf32> -> vector<128x32xf32>
      %c8_79 = arith.constant 8 : index
      %c0_80 = arith.constant 0 : index
      %c0_81 = arith.constant 0 : index
      %101 = vector.load %arg9[%c8_79, %c0_80, %c0_81] : memref<9x32x64xbf16, #tpu.memory_space<vmem>>, vector<1x32x64xbf16>
      %102 = vector.shape_cast %101 : vector<1x32x64xbf16> to vector<32x64xbf16>
      %103 = arith.truncf %100 : vector<128x32xf32> to vector<128x32xbf16>
      %cst_82 = arith.constant dense<0.000000e+00> : vector<128x64xf32>
      %104 = tpu.matmul %103, %102, %cst_82 {dimension_numbers = #tpu.dot_dimension_numbers<[1], [0], [0], [1], [0, 0, 1, 1], [], []>} : vector<128x32xbf16>, vector<32x64xbf16>, vector<128x64xf32> -> vector<128x64xf32>
      %105 = arith.addf %96, %104 : vector<128x64xf32>
      %c0_83 = arith.constant 0 : index
      %c0_84 = arith.constant 0 : index
      %106 = vector.load %arg10[%c0_83, %c0_84] : memref<1x64xf32, #tpu.memory_space<vmem>>, vector<1x64xf32>
      %107 = vector.broadcast %106 : vector<1x64xf32> to vector<128x64xf32>
      %108 = arith.addf %105, %107 : vector<128x64xf32>
      %cst_85 = arith.constant 0.000000e+00 : f32
      %109 = vector.broadcast %cst_85 : f32 to vector<128x64xf32>
      %110 = arith.maximumf %108, %109 : vector<128x64xf32>
      %c0_86 = arith.constant 0 : index
      %c0_87 = arith.constant 0 : index
      %c0_88 = arith.constant 0 : index
      %111 = vector.load %arg3[%c0_86, %c0_87, %c0_88] : memref<4x32x128xbf16, #tpu.memory_space<vmem>>, vector<1x32x128xbf16>
      %112 = vector.shape_cast %111 : vector<1x32x128xbf16> to vector<32x128xbf16>
      %113 = arith.truncf %110 : vector<128x64xf32> to vector<128x64xbf16>
      %cst_89 = arith.constant dense<0.000000e+00> : vector<32x64xf32>
      %114 = tpu.matmul %112, %113, %cst_89 {dimension_numbers = #tpu.dot_dimension_numbers<[1], [0], [0], [1], [0, 0, 1, 1], [], []>} : vector<32x128xbf16>, vector<128x64xbf16>, vector<32x64xf32> -> vector<32x64xf32>
      %c1_90 = arith.constant 1 : index
      %c0_91 = arith.constant 0 : index
      %c0_92 = arith.constant 0 : index
      %115 = vector.load %arg3[%c1_90, %c0_91, %c0_92] : memref<4x32x128xbf16, #tpu.memory_space<vmem>>, vector<1x32x128xbf16>
      %116 = vector.shape_cast %115 : vector<1x32x128xbf16> to vector<32x128xbf16>
      %117 = arith.truncf %110 : vector<128x64xf32> to vector<128x64xbf16>
      %cst_93 = arith.constant dense<0.000000e+00> : vector<32x64xf32>
      %118 = tpu.matmul %116, %117, %cst_93 {dimension_numbers = #tpu.dot_dimension_numbers<[1], [0], [0], [1], [0, 0, 1, 1], [], []>} : vector<32x128xbf16>, vector<128x64xbf16>, vector<32x64xf32> -> vector<32x64xf32>
      %119 = arith.maximumf %114, %118 : vector<32x64xf32>
      %c2_94 = arith.constant 2 : index
      %c0_95 = arith.constant 0 : index
      %c0_96 = arith.constant 0 : index
      %120 = vector.load %arg3[%c2_94, %c0_95, %c0_96] : memref<4x32x128xbf16, #tpu.memory_space<vmem>>, vector<1x32x128xbf16>
      %121 = vector.shape_cast %120 : vector<1x32x128xbf16> to vector<32x128xbf16>
      %122 = arith.truncf %110 : vector<128x64xf32> to vector<128x64xbf16>
      %cst_97 = arith.constant dense<0.000000e+00> : vector<32x64xf32>
      %123 = tpu.matmul %121, %122, %cst_97 {dimension_numbers = #tpu.dot_dimension_numbers<[1], [0], [0], [1], [0, 0, 1, 1], [], []>} : vector<32x128xbf16>, vector<128x64xbf16>, vector<32x64xf32> -> vector<32x64xf32>
      %124 = arith.maximumf %119, %123 : vector<32x64xf32>
      %c3_98 = arith.constant 3 : index
      %c0_99 = arith.constant 0 : index
      %c0_100 = arith.constant 0 : index
      %125 = vector.load %arg3[%c3_98, %c0_99, %c0_100] : memref<4x32x128xbf16, #tpu.memory_space<vmem>>, vector<1x32x128xbf16>
      %126 = vector.shape_cast %125 : vector<1x32x128xbf16> to vector<32x128xbf16>
      %127 = arith.truncf %110 : vector<128x64xf32> to vector<128x64xbf16>
      %cst_101 = arith.constant dense<0.000000e+00> : vector<32x64xf32>
      %128 = tpu.matmul %126, %127, %cst_101 {dimension_numbers = #tpu.dot_dimension_numbers<[1], [0], [0], [1], [0, 0, 1, 1], [], []>} : vector<32x128xbf16>, vector<128x64xbf16>, vector<32x64xf32> -> vector<32x64xf32>
      %129 = arith.maximumf %124, %128 : vector<32x64xf32>
      %c0_102 = arith.constant 0 : index
      %c0_103 = arith.constant 0 : index
      %c0_104 = arith.constant 0 : index
      %130 = vector.load %arg4[%c0_102, %c0_103, %c0_104] : memref<9x32x32xbf16, #tpu.memory_space<vmem>>, vector<1x32x32xbf16>
      %131 = vector.shape_cast %130 : vector<1x32x32xbf16> to vector<32x32xbf16>
      %132 = arith.truncf %129 : vector<32x64xf32> to vector<32x64xbf16>
      %cst_105 = arith.constant dense<0.000000e+00> : vector<32x64xf32>
      %133 = tpu.matmul %131, %132, %cst_105 {dimension_numbers = #tpu.dot_dimension_numbers<[1], [0], [0], [1], [0, 0, 1, 1], [], []>} : vector<32x32xbf16>, vector<32x64xbf16>, vector<32x64xf32> -> vector<32x64xf32>
      %c0_106 = arith.constant 0 : index
      %c0_107 = arith.constant 0 : index
      %c0_108 = arith.constant 0 : index
      %134 = vector.load %arg11[%c0_106, %c0_107, %c0_108] : memref<9x64x128xbf16, #tpu.memory_space<vmem>>, vector<1x64x128xbf16>
      %135 = vector.shape_cast %134 : vector<1x64x128xbf16> to vector<64x128xbf16>
      %136 = arith.truncf %133 : vector<32x64xf32> to vector<32x64xbf16>
      %cst_109 = arith.constant dense<0.000000e+00> : vector<32x128xf32>
      %137 = tpu.matmul %136, %135, %cst_109 {dimension_numbers = #tpu.dot_dimension_numbers<[1], [0], [0], [1], [0, 0, 1, 1], [], []>} : vector<32x64xbf16>, vector<64x128xbf16>, vector<32x128xf32> -> vector<32x128xf32>
      %c1_110 = arith.constant 1 : index
      %c0_111 = arith.constant 0 : index
      %c0_112 = arith.constant 0 : index
      %138 = vector.load %arg4[%c1_110, %c0_111, %c0_112] : memref<9x32x32xbf16, #tpu.memory_space<vmem>>, vector<1x32x32xbf16>
      %139 = vector.shape_cast %138 : vector<1x32x32xbf16> to vector<32x32xbf16>
      %140 = arith.truncf %129 : vector<32x64xf32> to vector<32x64xbf16>
      %cst_113 = arith.constant dense<0.000000e+00> : vector<32x64xf32>
      %141 = tpu.matmul %139, %140, %cst_113 {dimension_numbers = #tpu.dot_dimension_numbers<[1], [0], [0], [1], [0, 0, 1, 1], [], []>} : vector<32x32xbf16>, vector<32x64xbf16>, vector<32x64xf32> -> vector<32x64xf32>
      %c1_114 = arith.constant 1 : index
      %c0_115 = arith.constant 0 : index
      %c0_116 = arith.constant 0 : index
      %142 = vector.load %arg11[%c1_114, %c0_115, %c0_116] : memref<9x64x128xbf16, #tpu.memory_space<vmem>>, vector<1x64x128xbf16>
      %143 = vector.shape_cast %142 : vector<1x64x128xbf16> to vector<64x128xbf16>
      %144 = arith.truncf %141 : vector<32x64xf32> to vector<32x64xbf16>
      %cst_117 = arith.constant dense<0.000000e+00> : vector<32x128xf32>
      %145 = tpu.matmul %144, %143, %cst_117 {dimension_numbers = #tpu.dot_dimension_numbers<[1], [0], [0], [1], [0, 0, 1, 1], [], []>} : vector<32x64xbf16>, vector<64x128xbf16>, vector<32x128xf32> -> vector<32x128xf32>
      %146 = arith.addf %137, %145 : vector<32x128xf32>
      %c2_118 = arith.constant 2 : index
      %c0_119 = arith.constant 0 : index
      %c0_120 = arith.constant 0 : index
      %147 = vector.load %arg4[%c2_118, %c0_119, %c0_120] : memref<9x32x32xbf16, #tpu.memory_space<vmem>>, vector<1x32x32xbf16>
      %148 = vector.shape_cast %147 : vector<1x32x32xbf16> to vector<32x32xbf16>
      %149 = arith.truncf %129 : vector<32x64xf32> to vector<32x64xbf16>
      %cst_121 = arith.constant dense<0.000000e+00> : vector<32x64xf32>
      %150 = tpu.matmul %148, %149, %cst_121 {dimension_numbers = #tpu.dot_dimension_numbers<[1], [0], [0], [1], [0, 0, 1, 1], [], []>} : vector<32x32xbf16>, vector<32x64xbf16>, vector<32x64xf32> -> vector<32x64xf32>
      %c2_122 = arith.constant 2 : index
      %c0_123 = arith.constant 0 : index
      %c0_124 = arith.constant 0 : index
      %151 = vector.load %arg11[%c2_122, %c0_123, %c0_124] : memref<9x64x128xbf16, #tpu.memory_space<vmem>>, vector<1x64x128xbf16>
      %152 = vector.shape_cast %151 : vector<1x64x128xbf16> to vector<64x128xbf16>
      %153 = arith.truncf %150 : vector<32x64xf32> to vector<32x64xbf16>
      %cst_125 = arith.constant dense<0.000000e+00> : vector<32x128xf32>
      %154 = tpu.matmul %153, %152, %cst_125 {dimension_numbers = #tpu.dot_dimension_numbers<[1], [0], [0], [1], [0, 0, 1, 1], [], []>} : vector<32x64xbf16>, vector<64x128xbf16>, vector<32x128xf32> -> vector<32x128xf32>
      %155 = arith.addf %146, %154 : vector<32x128xf32>
      %c3_126 = arith.constant 3 : index
      %c0_127 = arith.constant 0 : index
      %c0_128 = arith.constant 0 : index
      %156 = vector.load %arg4[%c3_126, %c0_127, %c0_128] : memref<9x32x32xbf16, #tpu.memory_space<vmem>>, vector<1x32x32xbf16>
      %157 = vector.shape_cast %156 : vector<1x32x32xbf16> to vector<32x32xbf16>
      %158 = arith.truncf %129 : vector<32x64xf32> to vector<32x64xbf16>
      %cst_129 = arith.constant dense<0.000000e+00> : vector<32x64xf32>
      %159 = tpu.matmul %157, %158, %cst_129 {dimension_numbers = #tpu.dot_dimension_numbers<[1], [0], [0], [1], [0, 0, 1, 1], [], []>} : vector<32x32xbf16>, vector<32x64xbf16>, vector<32x64xf32> -> vector<32x64xf32>
      %c3_130 = arith.constant 3 : index
      %c0_131 = arith.constant 0 : index
      %c0_132 = arith.constant 0 : index
      %160 = vector.load %arg11[%c3_130, %c0_131, %c0_132] : memref<9x64x128xbf16, #tpu.memory_space<vmem>>, vector<1x64x128xbf16>
      %161 = vector.shape_cast %160 : vector<1x64x128xbf16> to vector<64x128xbf16>
      %162 = arith.truncf %159 : vector<32x64xf32> to vector<32x64xbf16>
      %cst_133 = arith.constant dense<0.000000e+00> : vector<32x128xf32>
      %163 = tpu.matmul %162, %161, %cst_133 {dimension_numbers = #tpu.dot_dimension_numbers<[1], [0], [0], [1], [0, 0, 1, 1], [], []>} : vector<32x64xbf16>, vector<64x128xbf16>, vector<32x128xf32> -> vector<32x128xf32>
      %164 = arith.addf %155, %163 : vector<32x128xf32>
      %c4_134 = arith.constant 4 : index
      %c0_135 = arith.constant 0 : index
      %c0_136 = arith.constant 0 : index
      %165 = vector.load %arg4[%c4_134, %c0_135, %c0_136] : memref<9x32x32xbf16, #tpu.memory_space<vmem>>, vector<1x32x32xbf16>
      %166 = vector.shape_cast %165 : vector<1x32x32xbf16> to vector<32x32xbf16>
      %167 = arith.truncf %129 : vector<32x64xf32> to vector<32x64xbf16>
      %cst_137 = arith.constant dense<0.000000e+00> : vector<32x64xf32>
      %168 = tpu.matmul %166, %167, %cst_137 {dimension_numbers = #tpu.dot_dimension_numbers<[1], [0], [0], [1], [0, 0, 1, 1], [], []>} : vector<32x32xbf16>, vector<32x64xbf16>, vector<32x64xf32> -> vector<32x64xf32>
      %c4_138 = arith.constant 4 : index
      %c0_139 = arith.constant 0 : index
      %c0_140 = arith.constant 0 : index
      %169 = vector.load %arg11[%c4_138, %c0_139, %c0_140] : memref<9x64x128xbf16, #tpu.memory_space<vmem>>, vector<1x64x128xbf16>
      %170 = vector.shape_cast %169 : vector<1x64x128xbf16> to vector<64x128xbf16>
      %171 = arith.truncf %168 : vector<32x64xf32> to vector<32x64xbf16>
      %cst_141 = arith.constant dense<0.000000e+00> : vector<32x128xf32>
      %172 = tpu.matmul %171, %170, %cst_141 {dimension_numbers = #tpu.dot_dimension_numbers<[1], [0], [0], [1], [0, 0, 1, 1], [], []>} : vector<32x64xbf16>, vector<64x128xbf16>, vector<32x128xf32> -> vector<32x128xf32>
      %173 = arith.addf %164, %172 : vector<32x128xf32>
      %c5_142 = arith.constant 5 : index
      %c0_143 = arith.constant 0 : index
      %c0_144 = arith.constant 0 : index
      %174 = vector.load %arg4[%c5_142, %c0_143, %c0_144] : memref<9x32x32xbf16, #tpu.memory_space<vmem>>, vector<1x32x32xbf16>
      %175 = vector.shape_cast %174 : vector<1x32x32xbf16> to vector<32x32xbf16>
      %176 = arith.truncf %129 : vector<32x64xf32> to vector<32x64xbf16>
      %cst_145 = arith.constant dense<0.000000e+00> : vector<32x64xf32>
      %177 = tpu.matmul %175, %176, %cst_145 {dimension_numbers = #tpu.dot_dimension_numbers<[1], [0], [0], [1], [0, 0, 1, 1], [], []>} : vector<32x32xbf16>, vector<32x64xbf16>, vector<32x64xf32> -> vector<32x64xf32>
      %c5_146 = arith.constant 5 : index
      %c0_147 = arith.constant 0 : index
      %c0_148 = arith.constant 0 : index
      %178 = vector.load %arg11[%c5_146, %c0_147, %c0_148] : memref<9x64x128xbf16, #tpu.memory_space<vmem>>, vector<1x64x128xbf16>
      %179 = vector.shape_cast %178 : vector<1x64x128xbf16> to vector<64x128xbf16>
      %180 = arith.truncf %177 : vector<32x64xf32> to vector<32x64xbf16>
      %cst_149 = arith.constant dense<0.000000e+00> : vector<32x128xf32>
      %181 = tpu.matmul %180, %179, %cst_149 {dimension_numbers = #tpu.dot_dimension_numbers<[1], [0], [0], [1], [0, 0, 1, 1], [], []>} : vector<32x64xbf16>, vector<64x128xbf16>, vector<32x128xf32> -> vector<32x128xf32>
      %182 = arith.addf %173, %181 : vector<32x128xf32>
      %c6_150 = arith.constant 6 : index
      %c0_151 = arith.constant 0 : index
      %c0_152 = arith.constant 0 : index
      %183 = vector.load %arg4[%c6_150, %c0_151, %c0_152] : memref<9x32x32xbf16, #tpu.memory_space<vmem>>, vector<1x32x32xbf16>
      %184 = vector.shape_cast %183 : vector<1x32x32xbf16> to vector<32x32xbf16>
      %185 = arith.truncf %129 : vector<32x64xf32> to vector<32x64xbf16>
      %cst_153 = arith.constant dense<0.000000e+00> : vector<32x64xf32>
      %186 = tpu.matmul %184, %185, %cst_153 {dimension_numbers = #tpu.dot_dimension_numbers<[1], [0], [0], [1], [0, 0, 1, 1], [], []>} : vector<32x32xbf16>, vector<32x64xbf16>, vector<32x64xf32> -> vector<32x64xf32>
      %c6_154 = arith.constant 6 : index
      %c0_155 = arith.constant 0 : index
      %c0_156 = arith.constant 0 : index
      %187 = vector.load %arg11[%c6_154, %c0_155, %c0_156] : memref<9x64x128xbf16, #tpu.memory_space<vmem>>, vector<1x64x128xbf16>
      %188 = vector.shape_cast %187 : vector<1x64x128xbf16> to vector<64x128xbf16>
      %189 = arith.truncf %186 : vector<32x64xf32> to vector<32x64xbf16>
      %cst_157 = arith.constant dense<0.000000e+00> : vector<32x128xf32>
      %190 = tpu.matmul %189, %188, %cst_157 {dimension_numbers = #tpu.dot_dimension_numbers<[1], [0], [0], [1], [0, 0, 1, 1], [], []>} : vector<32x64xbf16>, vector<64x128xbf16>, vector<32x128xf32> -> vector<32x128xf32>
      %191 = arith.addf %182, %190 : vector<32x128xf32>
      %c7_158 = arith.constant 7 : index
      %c0_159 = arith.constant 0 : index
      %c0_160 = arith.constant 0 : index
      %192 = vector.load %arg4[%c7_158, %c0_159, %c0_160] : memref<9x32x32xbf16, #tpu.memory_space<vmem>>, vector<1x32x32xbf16>
      %193 = vector.shape_cast %192 : vector<1x32x32xbf16> to vector<32x32xbf16>
      %194 = arith.truncf %129 : vector<32x64xf32> to vector<32x64xbf16>
      %cst_161 = arith.constant dense<0.000000e+00> : vector<32x64xf32>
      %195 = tpu.matmul %193, %194, %cst_161 {dimension_numbers = #tpu.dot_dimension_numbers<[1], [0], [0], [1], [0, 0, 1, 1], [], []>} : vector<32x32xbf16>, vector<32x64xbf16>, vector<32x64xf32> -> vector<32x64xf32>
      %c7_162 = arith.constant 7 : index
      %c0_163 = arith.constant 0 : index
      %c0_164 = arith.constant 0 : index
      %196 = vector.load %arg11[%c7_162, %c0_163, %c0_164] : memref<9x64x128xbf16, #tpu.memory_space<vmem>>, vector<1x64x128xbf16>
      %197 = vector.shape_cast %196 : vector<1x64x128xbf16> to vector<64x128xbf16>
      %198 = arith.truncf %195 : vector<32x64xf32> to vector<32x64xbf16>
      %cst_165 = arith.constant dense<0.000000e+00> : vector<32x128xf32>
      %199 = tpu.matmul %198, %197, %cst_165 {dimension_numbers = #tpu.dot_dimension_numbers<[1], [0], [0], [1], [0, 0, 1, 1], [], []>} : vector<32x64xbf16>, vector<64x128xbf16>, vector<32x128xf32> -> vector<32x128xf32>
      %200 = arith.addf %191, %199 : vector<32x128xf32>
      %c8_166 = arith.constant 8 : index
      %c0_167 = arith.constant 0 : index
      %c0_168 = arith.constant 0 : index
      %201 = vector.load %arg4[%c8_166, %c0_167, %c0_168] : memref<9x32x32xbf16, #tpu.memory_space<vmem>>, vector<1x32x32xbf16>
      %202 = vector.shape_cast %201 : vector<1x32x32xbf16> to vector<32x32xbf16>
      %203 = arith.truncf %129 : vector<32x64xf32> to vector<32x64xbf16>
      %cst_169 = arith.constant dense<0.000000e+00> : vector<32x64xf32>
      %204 = tpu.matmul %202, %203, %cst_169 {dimension_numbers = #tpu.dot_dimension_numbers<[1], [0], [0], [1], [0, 0, 1, 1], [], []>} : vector<32x32xbf16>, vector<32x64xbf16>, vector<32x64xf32> -> vector<32x64xf32>
      %c8_170 = arith.constant 8 : index
      %c0_171 = arith.constant 0 : index
      %c0_172 = arith.constant 0 : index
      %205 = vector.load %arg11[%c8_170, %c0_171, %c0_172] : memref<9x64x128xbf16, #tpu.memory_space<vmem>>, vector<1x64x128xbf16>
      %206 = vector.shape_cast %205 : vector<1x64x128xbf16> to vector<64x128xbf16>
      %207 = arith.truncf %204 : vector<32x64xf32> to vector<32x64xbf16>
      %cst_173 = arith.constant dense<0.000000e+00> : vector<32x128xf32>
      %208 = tpu.matmul %207, %206, %cst_173 {dimension_numbers = #tpu.dot_dimension_numbers<[1], [0], [0], [1], [0, 0, 1, 1], [], []>} : vector<32x64xbf16>, vector<64x128xbf16>, vector<32x128xf32> -> vector<32x128xf32>
      %209 = arith.addf %200, %208 : vector<32x128xf32>
      %c0_174 = arith.constant 0 : index
      %c0_175 = arith.constant 0 : index
      %210 = vector.load %arg12[%c0_174, %c0_175] : memref<1x128xf32, #tpu.memory_space<vmem>>, vector<1x128xf32>
      %211 = vector.broadcast %210 : vector<1x128xf32> to vector<32x128xf32>
      %212 = arith.addf %209, %211 : vector<32x128xf32>
      %cst_176 = arith.constant 0.000000e+00 : f32
      %213 = vector.broadcast %cst_176 : f32 to vector<32x128xf32>
      %214 = arith.maximumf %212, %213 : vector<32x128xf32>
      %c0_177 = arith.constant 0 : index
      %c0_178 = arith.constant 0 : index
      %c0_179 = arith.constant 0 : index
      %215 = vector.load %arg5[%c0_177, %c0_178, %c0_179] : memref<4x8x32xbf16, #tpu.memory_space<vmem>>, vector<1x8x32xbf16>
      %216 = vector.shape_cast %215 : vector<1x8x32xbf16> to vector<8x32xbf16>
      %217 = arith.truncf %214 : vector<32x128xf32> to vector<32x128xbf16>
      %cst_180 = arith.constant dense<0.000000e+00> : vector<8x128xf32>
      %218 = tpu.matmul %216, %217, %cst_180 {dimension_numbers = #tpu.dot_dimension_numbers<[1], [0], [0], [1], [0, 0, 1, 1], [], []>} : vector<8x32xbf16>, vector<32x128xbf16>, vector<8x128xf32> -> vector<8x128xf32>
      %c1_181 = arith.constant 1 : index
      %c0_182 = arith.constant 0 : index
      %c0_183 = arith.constant 0 : index
      %219 = vector.load %arg5[%c1_181, %c0_182, %c0_183] : memref<4x8x32xbf16, #tpu.memory_space<vmem>>, vector<1x8x32xbf16>
      %220 = vector.shape_cast %219 : vector<1x8x32xbf16> to vector<8x32xbf16>
      %221 = arith.truncf %214 : vector<32x128xf32> to vector<32x128xbf16>
      %cst_184 = arith.constant dense<0.000000e+00> : vector<8x128xf32>
      %222 = tpu.matmul %220, %221, %cst_184 {dimension_numbers = #tpu.dot_dimension_numbers<[1], [0], [0], [1], [0, 0, 1, 1], [], []>} : vector<8x32xbf16>, vector<32x128xbf16>, vector<8x128xf32> -> vector<8x128xf32>
      %223 = arith.maximumf %218, %222 : vector<8x128xf32>
      %c2_185 = arith.constant 2 : index
      %c0_186 = arith.constant 0 : index
      %c0_187 = arith.constant 0 : index
      %224 = vector.load %arg5[%c2_185, %c0_186, %c0_187] : memref<4x8x32xbf16, #tpu.memory_space<vmem>>, vector<1x8x32xbf16>
      %225 = vector.shape_cast %224 : vector<1x8x32xbf16> to vector<8x32xbf16>
      %226 = arith.truncf %214 : vector<32x128xf32> to vector<32x128xbf16>
      %cst_188 = arith.constant dense<0.000000e+00> : vector<8x128xf32>
      %227 = tpu.matmul %225, %226, %cst_188 {dimension_numbers = #tpu.dot_dimension_numbers<[1], [0], [0], [1], [0, 0, 1, 1], [], []>} : vector<8x32xbf16>, vector<32x128xbf16>, vector<8x128xf32> -> vector<8x128xf32>
      %228 = arith.maximumf %223, %227 : vector<8x128xf32>
      %c3_189 = arith.constant 3 : index
      %c0_190 = arith.constant 0 : index
      %c0_191 = arith.constant 0 : index
      %229 = vector.load %arg5[%c3_189, %c0_190, %c0_191] : memref<4x8x32xbf16, #tpu.memory_space<vmem>>, vector<1x8x32xbf16>
      %230 = vector.shape_cast %229 : vector<1x8x32xbf16> to vector<8x32xbf16>
      %231 = arith.truncf %214 : vector<32x128xf32> to vector<32x128xbf16>
      %cst_192 = arith.constant dense<0.000000e+00> : vector<8x128xf32>
      %232 = tpu.matmul %230, %231, %cst_192 {dimension_numbers = #tpu.dot_dimension_numbers<[1], [0], [0], [1], [0, 0, 1, 1], [], []>} : vector<8x32xbf16>, vector<32x128xbf16>, vector<8x128xf32> -> vector<8x128xf32>
      %233 = arith.maximumf %228, %232 : vector<8x128xf32>
      %c0_193 = arith.constant 0 : index
      %c0_194 = arith.constant 0 : index
      %c0_195 = arith.constant 0 : index
      %234 = vector.load %arg6[%c0_193, %c0_194, %c0_195] : memref<4x2x8xbf16, #tpu.memory_space<vmem>>, vector<1x2x8xbf16>
      %235 = vector.shape_cast %234 : vector<1x2x8xbf16> to vector<2x8xbf16>
      %236 = arith.truncf %233 : vector<8x128xf32> to vector<8x128xbf16>
      %cst_196 = arith.constant dense<0.000000e+00> : vector<2x128xf32>
      %237 = tpu.matmul %235, %236, %cst_196 {dimension_numbers = #tpu.dot_dimension_numbers<[1], [0], [0], [1], [0, 0, 1, 1], [], []>} : vector<2x8xbf16>, vector<8x128xbf16>, vector<2x128xf32> -> vector<2x128xf32>
      %c0_197 = arith.constant 0 : index
      %c0_198 = arith.constant 0 : index
      %c0_199 = arith.constant 0 : index
      %238 = vector.load %arg13[%c0_197, %c0_198, %c0_199] : memref<4x128x512xbf16, #tpu.memory_space<vmem>>, vector<1x128x512xbf16>
      %239 = vector.shape_cast %238 : vector<1x128x512xbf16> to vector<128x512xbf16>
      %240 = arith.truncf %237 : vector<2x128xf32> to vector<2x128xbf16>
      %cst_200 = arith.constant dense<0.000000e+00> : vector<2x512xf32>
      %241 = tpu.matmul %240, %239, %cst_200 {dimension_numbers = #tpu.dot_dimension_numbers<[1], [0], [0], [1], [0, 0, 1, 1], [], []>} : vector<2x128xbf16>, vector<128x512xbf16>, vector<2x512xf32> -> vector<2x512xf32>
      %c1_201 = arith.constant 1 : index
      %c0_202 = arith.constant 0 : index
      %c0_203 = arith.constant 0 : index
      %242 = vector.load %arg6[%c1_201, %c0_202, %c0_203] : memref<4x2x8xbf16, #tpu.memory_space<vmem>>, vector<1x2x8xbf16>
      %243 = vector.shape_cast %242 : vector<1x2x8xbf16> to vector<2x8xbf16>
      %244 = arith.truncf %233 : vector<8x128xf32> to vector<8x128xbf16>
      %cst_204 = arith.constant dense<0.000000e+00> : vector<2x128xf32>
      %245 = tpu.matmul %243, %244, %cst_204 {dimension_numbers = #tpu.dot_dimension_numbers<[1], [0], [0], [1], [0, 0, 1, 1], [], []>} : vector<2x8xbf16>, vector<8x128xbf16>, vector<2x128xf32> -> vector<2x128xf32>
      %c1_205 = arith.constant 1 : index
      %c0_206 = arith.constant 0 : index
      %c0_207 = arith.constant 0 : index
      %246 = vector.load %arg13[%c1_205, %c0_206, %c0_207] : memref<4x128x512xbf16, #tpu.memory_space<vmem>>, vector<1x128x512xbf16>
      %247 = vector.shape_cast %246 : vector<1x128x512xbf16> to vector<128x512xbf16>
      %248 = arith.truncf %245 : vector<2x128xf32> to vector<2x128xbf16>
      %cst_208 = arith.constant dense<0.000000e+00> : vector<2x512xf32>
      %249 = tpu.matmul %248, %247, %cst_208 {dimension_numbers = #tpu.dot_dimension_numbers<[1], [0], [0], [1], [0, 0, 1, 1], [], []>} : vector<2x128xbf16>, vector<128x512xbf16>, vector<2x512xf32> -> vector<2x512xf32>
      %250 = arith.addf %241, %249 : vector<2x512xf32>
      %c2_209 = arith.constant 2 : index
      %c0_210 = arith.constant 0 : index
      %c0_211 = arith.constant 0 : index
      %251 = vector.load %arg6[%c2_209, %c0_210, %c0_211] : memref<4x2x8xbf16, #tpu.memory_space<vmem>>, vector<1x2x8xbf16>
      %252 = vector.shape_cast %251 : vector<1x2x8xbf16> to vector<2x8xbf16>
      %253 = arith.truncf %233 : vector<8x128xf32> to vector<8x128xbf16>
      %cst_212 = arith.constant dense<0.000000e+00> : vector<2x128xf32>
      %254 = tpu.matmul %252, %253, %cst_212 {dimension_numbers = #tpu.dot_dimension_numbers<[1], [0], [0], [1], [0, 0, 1, 1], [], []>} : vector<2x8xbf16>, vector<8x128xbf16>, vector<2x128xf32> -> vector<2x128xf32>
      %c2_213 = arith.constant 2 : index
      %c0_214 = arith.constant 0 : index
      %c0_215 = arith.constant 0 : index
      %255 = vector.load %arg13[%c2_213, %c0_214, %c0_215] : memref<4x128x512xbf16, #tpu.memory_space<vmem>>, vector<1x128x512xbf16>
      %256 = vector.shape_cast %255 : vector<1x128x512xbf16> to vector<128x512xbf16>
      %257 = arith.truncf %254 : vector<2x128xf32> to vector<2x128xbf16>
      %cst_216 = arith.constant dense<0.000000e+00> : vector<2x512xf32>
      %258 = tpu.matmul %257, %256, %cst_216 {dimension_numbers = #tpu.dot_dimension_numbers<[1], [0], [0], [1], [0, 0, 1, 1], [], []>} : vector<2x128xbf16>, vector<128x512xbf16>, vector<2x512xf32> -> vector<2x512xf32>
      %259 = arith.addf %250, %258 : vector<2x512xf32>
      %c3_217 = arith.constant 3 : index
      %c0_218 = arith.constant 0 : index
      %c0_219 = arith.constant 0 : index
      %260 = vector.load %arg6[%c3_217, %c0_218, %c0_219] : memref<4x2x8xbf16, #tpu.memory_space<vmem>>, vector<1x2x8xbf16>
      %261 = vector.shape_cast %260 : vector<1x2x8xbf16> to vector<2x8xbf16>
      %262 = arith.truncf %233 : vector<8x128xf32> to vector<8x128xbf16>
      %cst_220 = arith.constant dense<0.000000e+00> : vector<2x128xf32>
      %263 = tpu.matmul %261, %262, %cst_220 {dimension_numbers = #tpu.dot_dimension_numbers<[1], [0], [0], [1], [0, 0, 1, 1], [], []>} : vector<2x8xbf16>, vector<8x128xbf16>, vector<2x128xf32> -> vector<2x128xf32>
      %c3_221 = arith.constant 3 : index
      %c0_222 = arith.constant 0 : index
      %c0_223 = arith.constant 0 : index
      %264 = vector.load %arg13[%c3_221, %c0_222, %c0_223] : memref<4x128x512xbf16, #tpu.memory_space<vmem>>, vector<1x128x512xbf16>
      %265 = vector.shape_cast %264 : vector<1x128x512xbf16> to vector<128x512xbf16>
      %266 = arith.truncf %263 : vector<2x128xf32> to vector<2x128xbf16>
      %cst_224 = arith.constant dense<0.000000e+00> : vector<2x512xf32>
      %267 = tpu.matmul %266, %265, %cst_224 {dimension_numbers = #tpu.dot_dimension_numbers<[1], [0], [0], [1], [0, 0, 1, 1], [], []>} : vector<2x128xbf16>, vector<128x512xbf16>, vector<2x512xf32> -> vector<2x512xf32>
      %268 = arith.addf %259, %267 : vector<2x512xf32>
      %c0_225 = arith.constant 0 : index
      %c0_226 = arith.constant 0 : index
      %269 = vector.load %arg14[%c0_225, %c0_226] : memref<1x512xf32, #tpu.memory_space<vmem>>, vector<1x512xf32>
      %270 = vector.broadcast %269 : vector<1x512xf32> to vector<2x512xf32>
      %271 = arith.addf %268, %270 : vector<2x512xf32>
      %cst_227 = arith.constant 0.000000e+00 : f32
      %272 = vector.broadcast %cst_227 : f32 to vector<2x512xf32>
      %273 = arith.maximumf %271, %272 : vector<2x512xf32>
      %c0_228 = arith.constant 0 : index
      %c0_229 = arith.constant 0 : index
      %274 = vector.load %arg15[%c0_228, %c0_229] : memref<512x256xbf16, #tpu.memory_space<vmem>>, vector<512x256xbf16>
      %275 = arith.truncf %273 : vector<2x512xf32> to vector<2x512xbf16>
      %cst_230 = arith.constant dense<0.000000e+00> : vector<2x256xf32>
      %276 = tpu.matmul %275, %274, %cst_230 {dimension_numbers = #tpu.dot_dimension_numbers<[1], [0], [0], [1], [0, 0, 1, 1], [], []>} : vector<2x512xbf16>, vector<512x256xbf16>, vector<2x256xf32> -> vector<2x256xf32>
      %c0_231 = arith.constant 0 : index
      %c0_232 = arith.constant 0 : index
      %277 = vector.load %arg16[%c0_231, %c0_232] : memref<1x256xf32, #tpu.memory_space<vmem>>, vector<1x256xf32>
      %278 = vector.broadcast %277 : vector<1x256xf32> to vector<2x256xf32>
      %279 = arith.addf %276, %278 : vector<2x256xf32>
      %cst_233 = arith.constant 0.000000e+00 : f32
      %280 = vector.broadcast %cst_233 : f32 to vector<2x256xf32>
      %281 = arith.maximumf %279, %280 : vector<2x256xf32>
      %282 = arith.truncf %281 : vector<2x256xf32> to vector<2x256xbf16>
      %c0_234 = arith.constant 0 : index
      %c0_235 = arith.constant 0 : index
      %283 = vector.load %arg20[%c0_234, %c0_235] : memref<2x256xbf16, #tpu.memory_space<vmem>>, vector<2x256xbf16>
      tpu.vector_store %arg20[%c0_234, %c0_235], %282 {strides = array<i32>} : memref<2x256xbf16, #tpu.memory_space<vmem>>, vector<2x256xbf16>,
    } else {
    }
    %c0 = arith.constant 0 : index
    %c0_1 = arith.constant 0 : index
    %3 = vector.load %arg20[%c0, %c0_1] : memref<2x256xbf16, #tpu.memory_space<vmem>>, vector<2x256xbf16>
    %c0_2 = arith.constant 0 : index
    %c0_3 = arith.constant 0 : index
    %4 = vector.load %arg17[%c0_2, %c0_3] : memref<256x2048xbf16, #tpu.memory_space<vmem>>, vector<256x2048xbf16>
    %cst = arith.constant dense<0.000000e+00> : vector<2x2048xf32>
    %5 = tpu.matmul %3, %4, %cst {dimension_numbers = #tpu.dot_dimension_numbers<[1], [0], [0], [1], [0, 0, 1, 1], [], []>} : vector<2x256xbf16>, vector<256x2048xbf16>, vector<2x2048xf32> -> vector<2x2048xf32>
    %c0_4 = arith.constant 0 : index
    %c0_5 = arith.constant 0 : index
    %6 = vector.load %arg18[%c0_4, %c0_5] : memref<1x2048xf32, #tpu.memory_space<vmem>>, vector<1x2048xf32>
    %7 = vector.broadcast %6 : vector<1x2048xf32> to vector<2x2048xf32>
    %8 = arith.addf %5, %7 : vector<2x2048xf32>
    %c0_i32_6 = arith.constant 0 : i32
    %9 = arith.cmpi eq, %arg0, %c0_i32_6 : i32
    %10 = arith.extui %9 : i1 to i32
    %c0_i32_7 = arith.constant 0 : i32
    %11 = arith.cmpi ne, %10, %c0_i32_7 : i32
    scf.if %11 {
      %c0_11 = arith.constant 0 : index
      %c0_12 = arith.constant 0 : index
      %18 = vector.load %arg19[%c0_11, %c0_12] : memref<2x4096xf32, #tpu.memory_space<vmem>>, vector<2x2048xf32>
      tpu.vector_store %arg19[%c0_11, %c0_12], %8 {strides = array<i32>} : memref<2x4096xf32, #tpu.memory_space<vmem>>, vector<2x2048xf32>,
    } else {
    }
    %c1_i32 = arith.constant 1 : i32
    %12 = arith.cmpi eq, %arg0, %c1_i32 : i32
    %13 = arith.extui %12 : i1 to i32
    %c0_i32_8 = arith.constant 0 : i32
    %14 = arith.cmpi ne, %13, %c0_i32_8 : i32
    scf.if %14 {
      %c0_11 = arith.constant 0 : index
      %c2048 = arith.constant 2048 : index
      %18 = vector.load %arg19[%c0_11, %c2048] : memref<2x4096xf32, #tpu.memory_space<vmem>>, vector<2x2048xf32>
      tpu.vector_store %arg19[%c0_11, %c2048], %8 {strides = array<i32>} : memref<2x4096xf32, #tpu.memory_space<vmem>>, vector<2x2048xf32>,
    } else {
    }
    %c1_i32_9 = arith.constant 1 : i32
    %15 = arith.cmpi eq, %arg0, %c1_i32_9 : i32
    %16 = arith.extui %15 : i1 to i32
    %c0_i32_10 = arith.constant 0 : i32
    %17 = arith.cmpi ne, %16, %c0_i32_10 : i32
    scf.if %17 {
      %c0_11 = arith.constant 0 : index
      %c0_12 = arith.constant 0 : index
      %18 = vector.load %arg19[%c0_11, %c0_12] : memref<2x4096xf32, #tpu.memory_space<vmem>>, vector<2x4096xf32>
      %cst_13 = arith.constant dense<0xFF800000> : vector<2xf32>
      %19 = vector.multi_reduction <maximumf>, %18, %cst_13 [1] : vector<2x4096xf32> to vector<2xf32>
      %20 = vector.shape_cast %19 : vector<2xf32> to vector<2x1xf32>
      %21 = vector.broadcast %20 : vector<2x1xf32> to vector<2x4096xf32>
      %22 = arith.subf %18, %21 : vector<2x4096xf32>
      %23 = math.exp %22 : vector<2x4096xf32>
      %cst_14 = arith.constant dense<0.000000e+00> : vector<2xf32>
      %24 = vector.multi_reduction <add>, %23, %cst_14 [1] : vector<2x4096xf32> to vector<2xf32>
      %25 = vector.shape_cast %24 : vector<2xf32> to vector<2x1xf32>
      %26 = vector.broadcast %25 : vector<2x1xf32> to vector<2x4096xf32>
      %27 = arith.divf %23, %26 : vector<2x4096xf32>
      %c0_15 = arith.constant 0 : index
      %c0_16 = arith.constant 0 : index
      %28 = vector.load %arg19[%c0_15, %c0_16] : memref<2x4096xf32, #tpu.memory_space<vmem>>, vector<2x4096xf32>
      tpu.vector_store %arg19[%c0_15, %c0_16], %27 {strides = array<i32>} : memref<2x4096xf32, #tpu.memory_space<vmem>>, vector<2x4096xf32>,
    } else {
    }
    return
  }
  func.func @transform_0(%arg0: i32) -> (i32, i32) {
    %c0_i32 = arith.constant 0 : i32
    %c0_i32_0 = arith.constant 0 : i32
    %c0_i32_1 = arith.constant 0 : i32
    return %c0_i32, %c0_i32_0 : i32, i32
  }
  func.func @transform_1(%arg0: i32) -> (i32, i32, i32) {
    %c0_i32 = arith.constant 0 : i32
    %c0_i32_0 = arith.constant 0 : i32
    %c0_i32_1 = arith.constant 0 : i32
    %c0_i32_2 = arith.constant 0 : i32
    return %c0_i32, %c0_i32_0, %c0_i32_1 : i32, i32, i32
  }
  func.func @transform_2(%arg0: i32) -> (i32, i32, i32) {
    %c0_i32 = arith.constant 0 : i32
    %c0_i32_0 = arith.constant 0 : i32
    %c0_i32_1 = arith.constant 0 : i32
    %c0_i32_2 = arith.constant 0 : i32
    return %c0_i32, %c0_i32_0, %c0_i32_1 : i32, i32, i32
  }
  func.func @transform_3(%arg0: i32) -> (i32, i32, i32) {
    %c0_i32 = arith.constant 0 : i32
    %c0_i32_0 = arith.constant 0 : i32
    %c0_i32_1 = arith.constant 0 : i32
    %c0_i32_2 = arith.constant 0 : i32
    return %c0_i32, %c0_i32_0, %c0_i32_1 : i32, i32, i32
  }
  func.func @transform_4(%arg0: i32) -> (i32, i32, i32) {
    %c0_i32 = arith.constant 0 : i32
    %c0_i32_0 = arith.constant 0 : i32
    %c0_i32_1 = arith.constant 0 : i32
    %c0_i32_2 = arith.constant 0 : i32
    return %c0_i32, %c0_i32_0, %c0_i32_1 : i32, i32, i32
  }
  func.func @transform_5(%arg0: i32) -> (i32, i32, i32) {
    %c0_i32 = arith.constant 0 : i32
    %c0_i32_0 = arith.constant 0 : i32
    %c0_i32_1 = arith.constant 0 : i32
    %c0_i32_2 = arith.constant 0 : i32
    return %c0_i32, %c0_i32_0, %c0_i32_1 : i32, i32, i32
  }
  func.func @transform_6(%arg0: i32) -> (i32, i32) {
    %c0_i32 = arith.constant 0 : i32
    %c0_i32_0 = arith.constant 0 : i32
    %c0_i32_1 = arith.constant 0 : i32
    return %c0_i32, %c0_i32_0 : i32, i32
  }
  func.func @transform_7(%arg0: i32) -> (i32, i32) {
    %c0_i32 = arith.constant 0 : i32
    %c0_i32_0 = arith.constant 0 : i32
    %c0_i32_1 = arith.constant 0 : i32
    return %c0_i32, %c0_i32_0 : i32, i32
  }
  func.func @transform_8(%arg0: i32) -> (i32, i32, i32) {
    %c0_i32 = arith.constant 0 : i32
    %c0_i32_0 = arith.constant 0 : i32
    %c0_i32_1 = arith.constant 0 : i32
    %c0_i32_2 = arith.constant 0 : i32
    return %c0_i32, %c0_i32_0, %c0_i32_1 : i32, i32, i32
  }
  func.func @transform_9(%arg0: i32) -> (i32, i32) {
    %c0_i32 = arith.constant 0 : i32
    %c0_i32_0 = arith.constant 0 : i32
    %c0_i32_1 = arith.constant 0 : i32
    return %c0_i32, %c0_i32_0 : i32, i32
  }
  func.func @transform_10(%arg0: i32) -> (i32, i32, i32) {
    %c0_i32 = arith.constant 0 : i32
    %c0_i32_0 = arith.constant 0 : i32
    %c0_i32_1 = arith.constant 0 : i32
    %c0_i32_2 = arith.constant 0 : i32
    return %c0_i32, %c0_i32_0, %c0_i32_1 : i32, i32, i32
  }
  func.func @transform_11(%arg0: i32) -> (i32, i32) {
    %c0_i32 = arith.constant 0 : i32
    %c0_i32_0 = arith.constant 0 : i32
    %c0_i32_1 = arith.constant 0 : i32
    return %c0_i32, %c0_i32_0 : i32, i32
  }
  func.func @transform_12(%arg0: i32) -> (i32, i32, i32) {
    %c0_i32 = arith.constant 0 : i32
    %c0_i32_0 = arith.constant 0 : i32
    %c0_i32_1 = arith.constant 0 : i32
    %c0_i32_2 = arith.constant 0 : i32
    return %c0_i32, %c0_i32_0, %c0_i32_1 : i32, i32, i32
  }
  func.func @transform_13(%arg0: i32) -> (i32, i32) {
    %c0_i32 = arith.constant 0 : i32
    %c0_i32_0 = arith.constant 0 : i32
    %c0_i32_1 = arith.constant 0 : i32
    return %c0_i32, %c0_i32_0 : i32, i32
  }
  func.func @transform_14(%arg0: i32) -> (i32, i32) {
    %c0_i32 = arith.constant 0 : i32
    %c0_i32_0 = arith.constant 0 : i32
    %c0_i32_1 = arith.constant 0 : i32
    return %c0_i32, %c0_i32_0 : i32, i32
  }
  func.func @transform_15(%arg0: i32) -> (i32, i32) {
    %c0_i32 = arith.constant 0 : i32
    %c0_i32_0 = arith.constant 0 : i32
    %c0_i32_1 = arith.constant 0 : i32
    return %c0_i32, %c0_i32_0 : i32, i32
  }
  func.func @transform_16(%arg0: i32) -> (i32, i32) {
    %c0_i32 = arith.constant 0 : i32
    %c0_i32_0 = arith.constant 0 : i32
    return %c0_i32, %arg0 : i32, i32
  }
  func.func @transform_17(%arg0: i32) -> (i32, i32) {
    %c0_i32 = arith.constant 0 : i32
    %c0_i32_0 = arith.constant 0 : i32
    return %c0_i32, %arg0 : i32, i32
  }
  func.func @transform_18(%arg0: i32) -> (i32, i32) {
    %c0_i32 = arith.constant 0 : i32
    %c0_i32_0 = arith.constant 0 : i32
    %c0_i32_1 = arith.constant 0 : i32
    return %c0_i32, %c0_i32_0 : i32, i32
  }
}

</mosaic_0001>

<llo_original>
// kernel: forward.1
$region0: #{forward.1}
  #allocation0 [shape = 'u32[]', space=smem, size = 0x4, offset = 0x4, fixed_abs, tag = 'smem constant byte address 0x4 - core index']
  #allocation1 [shape = 'u32[144,128]{1,0:T(1,128)}', space=vmem, size = 0x12000, scoped, tag = 'internal scratch']
  #allocation2 [shape = 'bf16[2,256]{1,0:T(2,128)(2,1)}', space=vmem, size = 0x400, scoped, tag = 'scratch operand']
  %s0 = inlined_call_operand.vmem [shape: bf16[128,9], index: 0, kind: input, shape index: {}]
  %s1 = inlined_call_operand.hbm [shape: bf16[9,128,128], index: 1, kind: input, shape index: {}]
  %s2 = inlined_call_operand.hbm [shape: bf16[4,32,128], index: 2, kind: input, shape index: {}]
  %s3 = inlined_call_operand.hbm [shape: bf16[9,32,32], index: 3, kind: input, shape index: {}]
  %s4 = inlined_call_operand.hbm [shape: bf16[4,8,32], index: 4, kind: input, shape index: {}]
  %s5 = inlined_call_operand.hbm [shape: bf16[4,2,8], index: 5, kind: input, shape index: {}]
  %s6 = inlined_call_operand.hbm [shape: bf16[9,32], index: 6, kind: input, shape index: {}]
  %s7 = inlined_call_operand.hbm [shape: f32[1,32], index: 7, kind: input, shape index: {}]
  %s8 = inlined_call_operand.hbm [shape: bf16[9,32,64], index: 8, kind: input, shape index: {}]
  %s9 = inlined_call_operand.hbm [shape: f32[1,64], index: 9, kind: input, shape index: {}]
  %s10 = inlined_call_operand.hbm [shape: bf16[9,64,128], index: 10, kind: input, shape index: {}]
  %s11 = inlined_call_operand.hbm [shape: f32[1,128], index: 11, kind: input, shape index: {}]
  %s12 = inlined_call_operand.hbm [shape: bf16[4,128,512], index: 12, kind: input, shape index: {}]
  %s13 = inlined_call_operand.hbm [shape: f32[1,512], index: 13, kind: input, shape index: {}]
  %s14 = inlined_call_operand.hbm [shape: bf16[512,256], index: 14, kind: input, shape index: {}]
  %s15 = inlined_call_operand.hbm [shape: f32[1,256], index: 15, kind: input, shape index: {}]
  %s16 = inlined_call_operand.hbm [shape: bf16[256,4096], index: 16, kind: input, shape index: {}]
  %s17 = inlined_call_operand.hbm [shape: f32[1,4096], index: 17, kind: input, shape index: {}]
  %s18 = inlined_call_operand.hbm [shape: f32[2,4096], index: 18, kind: output, shape index: {}]
  %s19 = sld [smem:[#allocation0]]
  $region185: #{forward.1} parent=0
    _
  %s21 = ssub.s32 1, %s19
  %s22 = scalar_select 0, %s21, %s19
  $region1: #{forward.1} parent=0
    #allocation3 [shape = 'u8[294912]{0}', space=vmem, size = 0x48000, scoped, tag = 'input window, operand 1, single buffered']
    #allocation4 [shape = 's32[2]{0}', space=sflag, size = 0x8, scoped, tag = 'scoped memory for forward.1']
    #allocation5 [shape = 's32[2]{0}', space=sflag, size = 0x8, scoped, tag = 'scoped memory for forward.1']
    #allocation6 [shape = 'u8[32768]{0}', space=vmem, size = 0x8000, scoped, tag = 'input window, operand 2, single buffered']
    #allocation7 [shape = 's32[1]{0}', space=sflag, size = 0x4, scoped, tag = 'scoped memory for forward.1']
    #allocation8 [shape = 'u8[73728]{0}', space=vmem, size = 0x12000, scoped, tag = 'input window, operand 3, single buffered']
    #allocation9 [shape = 'u8[8192]{0}', space=vmem, size = 0x2000, scoped, tag = 'input window, operand 4, single buffered']
    #allocation10 [shape = 's32[1]{0}', space=sflag, size = 0x4, scoped, tag = 'scoped memory for forward.1']
    #allocation11 [shape = 'u8[2048]{0}', space=vmem, size = 0x800, scoped, tag = 'input window, operand 5, single buffered']
    #allocation12 [shape = 'u8[4096]{0}', space=vmem, size = 0x1000, scoped, tag = 'input window, operand 6, single buffered']
    #allocation13 [shape = 's32[1]{0}', space=sflag, size = 0x4, scoped, tag = 'scoped memory for forward.1']
    #allocation14 [shape = 'u8[512]{0}', space=vmem, size = 0x400, scoped, tag = 'input window, operand 7, single buffered']
    #allocation15 [shape = 'u8[73728]{0}', space=vmem, size = 0x12000, scoped, tag = 'input window, operand 8, single buffered']
    #allocation16 [shape = 's32[1]{0}', space=sflag, size = 0x4, scoped, tag = 'scoped memory for forward.1']
    #allocation17 [shape = 'u8[512]{0}', space=vmem, size = 0x400, scoped, tag = 'input window, operand 9, single buffered']
    #allocation18 [shape = 'u8[147456]{0}', space=vmem, size = 0x24000, scoped, tag = 'input window, operand 10, single buffered']
    #allocation19 [shape = 's32[1]{0}', space=sflag, size = 0x4, scoped, tag = 'scoped memory for forward.1']
    #allocation20 [shape = 'u8[512]{0}', space=vmem, size = 0x400, scoped, tag = 'input window, operand 11, single buffered']
    #allocation21 [shape = 'u8[524288]{0}', space=vmem, size = 0x80000, scoped, tag = 'input window, operand 12, single buffered']
    #allocation22 [shape = 's32[1]{0}', space=sflag, size = 0x4, scoped, tag = 'scoped memory for forward.1']
    #allocation23 [shape = 'u8[2048]{0}', space=vmem, size = 0x800, scoped, tag = 'input window, operand 13, single buffered']
    #allocation24 [shape = 'u8[262144]{0}', space=vmem, size = 0x40000, scoped, tag = 'input window, operand 14, single buffered']
    #allocation25 [shape = 's32[1]{0}', space=sflag, size = 0x4, scoped, tag = 'scoped memory for forward.1']
    #allocation26 [shape = 'u8[1024]{0}', space=vmem, size = 0x400, scoped, tag = 'input window, operand 15, single buffered']
    #allocation27 [shape = 'u8[2097152]{0}', space=vmem, size = 0x200000, scoped, tag = 'input window, operand 16']
    #allocation28 [shape = 's32[2]{0}', space=sflag, size = 0x8, scoped, tag = 'scoped memory for forward.1']
    #allocation29 [shape = 'u8[16384]{0}', space=vmem, size = 0x4000, scoped, tag = 'input window, operand 17']
    #allocation30 [shape = 'u8[32768]{0}', space=vmem, size = 0x8000, scoped, tag = 'output window, operand 0, single buffered']
    %23 = vsyncpa [#allocation4], 0
    %24 = vsyncpa [#allocation7], 0
    %25 = vsyncpa [#allocation10], 0
    %26 = vsyncpa [#allocation13], 0
    %27 = vsyncpa [#allocation16], 0
    %28 = vsyncpa [#allocation19], 0
    %29 = vsyncpa [#allocation22], 0
    %30 = vsyncpa [#allocation25], 0
    %31 = vsyncpa [#allocation28], 0
    %s32 = scalar_lea.sflag [#allocation28], 1
    %33 = vsyncpa %s32, 0
    %34 = vsyncpa [#allocation5], 0
    loop: start=0, step=1, limit=4
    $region2: #{forward.1} parent=1 // loop_pre_header
      _
    $region3: #{forward.1} parent=1 // loop_header
      %s36 = sphi 0, %s40
      %p37 = scmp.ge.s32.totalorder %s36, 4
      %s44 = sphi 0, %s44
      %s46 = sphi 0, %s44
      %s47 = sphi 0, %s46
      %s61 = sphi 0, %s47
      %s65 = sphi 0, %s65
      %s67 = sphi 0, %s65
      %s68 = sphi 0, %s67
      %s82 = sphi 0, %s68
      %s86 = sphi 0, %s86
      %s88 = sphi 0, %s86
      %s89 = sphi 0, %s88
      %s103 = sphi 0, %s89
      %s107 = sphi 0, %s107
      %s109 = sphi 0, %s107
      %s110 = sphi 0, %s109
      %s124 = sphi 0, %s110
      %s128 = sphi 0, %s128
      %s130 = sphi 0, %s128
      %s131 = sphi 0, %s130
      %s145 = sphi 0, %s131
      %s149 = sphi 0, %s149
      %s151 = sphi 0, %s149
      %s152 = sphi 0, %s151
      %s166 = sphi 0, %s152
      %s170 = sphi 0, %s170
      %s172 = sphi 0, %s170
      %s173 = sphi 0, %s172
      %s187 = sphi 0, %s173
      %s191 = sphi 0, %s191
      %s193 = sphi 0, %s191
      %s194 = sphi 0, %s193
      %s208 = sphi 0, %s194
      %s212 = sphi 0, %s212
      %s214 = sphi 0, %s212
      %s215 = sphi 0, %s214
      %s229 = sphi 0, %s215
      %s233 = sphi 0, %s233
      %s235 = sphi 0, %s233
      %s236 = sphi 0, %s235
      %s250 = sphi 0, %s236
      %s254 = sphi 0, %s254
      %s256 = sphi 0, %s254
      %s257 = sphi 0, %s256
      %s271 = sphi 0, %s257
      %s275 = sphi 0, %s275
      %s277 = sphi 0, %s275
      %s278 = sphi 0, %s277
      %s292 = sphi 0, %s278
      %s296 = sphi 0, %s296
      %s298 = sphi 0, %s296
      %s299 = sphi 0, %s298
      %s313 = sphi 0, %s299
      %s317 = sphi 0, %s317
      %s319 = sphi 0, %s317
      %s320 = sphi 0, %s319
      %s334 = sphi 0, %s320
      %s338 = sphi 0, %s338
      %s340 = sphi 0, %s338
      %s341 = sphi 0, %s340
      %s355 = sphi 0, %s341
      %s359 = sphi 0, %s359
      %s361 = sphi 0, %s359
      %s362 = sphi 0, %s361
      %s376 = sphi 0, %s362
      %s382 = sphi 0, %s384
      %s385 = sphi 0, %s382
      %s386 = sphi 0, %s385
      %s402 = sphi 0, %s386
      %s408 = sphi 0, %s410
      %s411 = sphi 0, %s408
      %s412 = sphi 0, %s411
      %s428 = sphi 0, %s412
      %s432 = sphi 0, %s432
      %s434 = sphi 0, %s432
      %s435 = sphi 0, %s434
      %s449 = sphi 0, %s435
    $region4: #{forward.1} parent=1 // loop_header_branch
      %39 = sbr.rel (%p37) target = $region8
    $region5: #{forward.1} parent=1 // loop_body
      %s41 = ssub.s32 %s36, 1
      %s42 = ssub.s32 %s36, 2
      %s43 = sadd.s32 %s36, 1
      %s45 = sadd.s32 %s44, 1
      %p48 = scmp.eq.s32.totalorder %s36, 1
      %p49 = scmp.ne.s32.totalorder %s44, %s46
      %p50 = scmp.eq.s32.totalorder %s36, 0
      %p51 = por %p49, %p50
      %p52 = scmp.ne.s32.totalorder %s44, %s46
      %p53 = scmp.eq.s32.totalorder %s41, 1
      %p54 = por %p52, %p53
      %p55 = scmp.ne.s32.totalorder %s46, %s47
      %p56 = scmp.eq.s32.totalorder %s41, 0
      %p57 = por %p55, %p56
      %p58 = scmp.ne.s32.totalorder %s46, %s47
      %p59 = scmp.eq.s32.totalorder %s42, 1
      %p60 = por %p58, %p59
      %p62 = scmp.ne.s32.totalorder %s47, %s61
      %p63 = scmp.eq.s32.totalorder %s42, 0
      %p64 = por %p62, %p63
      %s66 = sadd.s32 %s65, 1
      %p69 = scmp.eq.s32.totalorder %s36, 1
      %p70 = scmp.ne.s32.totalorder %s65, %s67
      %p71 = scmp.eq.s32.totalorder %s36, 0
      %p72 = por %p70, %p71
      %p73 = scmp.ne.s32.totalorder %s65, %s67
      %p74 = scmp.eq.s32.totalorder %s41, 1
      %p75 = por %p73, %p74
      %p76 = scmp.ne.s32.totalorder %s67, %s68
      %p77 = scmp.eq.s32.totalorder %s41, 0
      %p78 = por %p76, %p77
      %p79 = scmp.ne.s32.totalorder %s67, %s68
      %p80 = scmp.eq.s32.totalorder %s42, 1
      %p81 = por %p79, %p80
      %p83 = scmp.ne.s32.totalorder %s68, %s82
      %p84 = scmp.eq.s32.totalorder %s42, 0
      %p85 = por %p83, %p84
      %s87 = sadd.s32 %s86, 1
      %p90 = scmp.eq.s32.totalorder %s36, 1
      %p91 = scmp.ne.s32.totalorder %s86, %s88
      %p92 = scmp.eq.s32.totalorder %s36, 0
      %p93 = por %p91, %p92
      %p94 = scmp.ne.s32.totalorder %s86, %s88
      %p95 = scmp.eq.s32.totalorder %s41, 1
      %p96 = por %p94, %p95
      %p97 = scmp.ne.s32.totalorder %s88, %s89
      %p98 = scmp.eq.s32.totalorder %s41, 0
      %p99 = por %p97, %p98
      %p100 = scmp.ne.s32.totalorder %s88, %s89
      %p101 = scmp.eq.s32.totalorder %s42, 1
      %p102 = por %p100, %p101
      %p104 = scmp.ne.s32.totalorder %s89, %s103
      %p105 = scmp.eq.s32.totalorder %s42, 0
      %p106 = por %p104, %p105
      %s108 = sadd.s32 %s107, 1
      %p111 = scmp.eq.s32.totalorder %s36, 1
      %p112 = scmp.ne.s32.totalorder %s107, %s109
      %p113 = scmp.eq.s32.totalorder %s36, 0
      %p114 = por %p112, %p113
      %p115 = scmp.ne.s32.totalorder %s107, %s109
      %p116 = scmp.eq.s32.totalorder %s41, 1
      %p117 = por %p115, %p116
      %p118 = scmp.ne.s32.totalorder %s109, %s110
      %p119 = scmp.eq.s32.totalorder %s41, 0
      %p120 = por %p118, %p119
      %p121 = scmp.ne.s32.totalorder %s109, %s110
      %p122 = scmp.eq.s32.totalorder %s42, 1
      %p123 = por %p121, %p122
      %p125 = scmp.ne.s32.totalorder %s110, %s124
      %p126 = scmp.eq.s32.totalorder %s42, 0
      %p127 = por %p125, %p126
      %s129 = sadd.s32 %s128, 1
      %p132 = scmp.eq.s32.totalorder %s36, 1
      %p133 = scmp.ne.s32.totalorder %s128, %s130
      %p134 = scmp.eq.s32.totalorder %s36, 0
      %p135 = por %p133, %p134
      %p136 = scmp.ne.s32.totalorder %s128, %s130
      %p137 = scmp.eq.s32.totalorder %s41, 1
      %p138 = por %p136, %p137
      %p139 = scmp.ne.s32.totalorder %s130, %s131
      %p140 = scmp.eq.s32.totalorder %s41, 0
      %p141 = por %p139, %p140
      %p142 = scmp.ne.s32.totalorder %s130, %s131
      %p143 = scmp.eq.s32.totalorder %s42, 1
      %p144 = por %p142, %p143
      %p146 = scmp.ne.s32.totalorder %s131, %s145
      %p147 = scmp.eq.s32.totalorder %s42, 0
      %p148 = por %p146, %p147
      %s150 = sadd.s32 %s149, 1
      %p153 = scmp.eq.s32.totalorder %s36, 1
      %p154 = scmp.ne.s32.totalorder %s149, %s151
      %p155 = scmp.eq.s32.totalorder %s36, 0
      %p156 = por %p154, %p155
      %p157 = scmp.ne.s32.totalorder %s149, %s151
      %p158 = scmp.eq.s32.totalorder %s41, 1
      %p159 = por %p157, %p158
      %p160 = scmp.ne.s32.totalorder %s151, %s152
      %p161 = scmp.eq.s32.totalorder %s41, 0
      %p162 = por %p160, %p161
      %p163 = scmp.ne.s32.totalorder %s151, %s152
      %p164 = scmp.eq.s32.totalorder %s42, 1
      %p165 = por %p163, %p164
      %p167 = scmp.ne.s32.totalorder %s152, %s166
      %p168 = scmp.eq.s32.totalorder %s42, 0
      %p169 = por %p167, %p168
      %s171 = sadd.s32 %s170, 1
      %p174 = scmp.eq.s32.totalorder %s36, 1
      %p175 = scmp.ne.s32.totalorder %s170, %s172
      %p176 = scmp.eq.s32.totalorder %s36, 0
      %p177 = por %p175, %p176
      %p178 = scmp.ne.s32.totalorder %s170, %s172
      %p179 = scmp.eq.s32.totalorder %s41, 1
      %p180 = por %p178, %p179
      %p181 = scmp.ne.s32.totalorder %s172, %s173
      %p182 = scmp.eq.s32.totalorder %s41, 0
      %p183 = por %p181, %p182
      %p184 = scmp.ne.s32.totalorder %s172, %s173
      %p185 = scmp.eq.s32.totalorder %s42, 1
      %p186 = por %p184, %p185
      %p188 = scmp.ne.s32.totalorder %s173, %s187
      %p189 = scmp.eq.s32.totalorder %s42, 0
      %p190 = por %p188, %p189
      %s192 = sadd.s32 %s191, 1
      %p195 = scmp.eq.s32.totalorder %s36, 1
      %p196 = scmp.ne.s32.totalorder %s191, %s193
      %p197 = scmp.eq.s32.totalorder %s36, 0
      %p198 = por %p196, %p197
      %p199 = scmp.ne.s32.totalorder %s191, %s193
      %p200 = scmp.eq.s32.totalorder %s41, 1
      %p201 = por %p199, %p200
      %p202 = scmp.ne.s32.totalorder %s193, %s194
      %p203 = scmp.eq.s32.totalorder %s41, 0
      %p204 = por %p202, %p203
      %p205 = scmp.ne.s32.totalorder %s193, %s194
      %p206 = scmp.eq.s32.totalorder %s42, 1
      %p207 = por %p205, %p206
      %p209 = scmp.ne.s32.totalorder %s194, %s208
      %p210 = scmp.eq.s32.totalorder %s42, 0
      %p211 = por %p209, %p210
      %s213 = sadd.s32 %s212, 1
      %p216 = scmp.eq.s32.totalorder %s36, 1
      %p217 = scmp.ne.s32.totalorder %s212, %s214
      %p218 = scmp.eq.s32.totalorder %s36, 0
      %p219 = por %p217, %p218
      %p220 = scmp.ne.s32.totalorder %s212, %s214
      %p221 = scmp.eq.s32.totalorder %s41, 1
      %p222 = por %p220, %p221
      %p223 = scmp.ne.s32.totalorder %s214, %s215
      %p224 = scmp.eq.s32.totalorder %s41, 0
      %p225 = por %p223, %p224
      %p226 = scmp.ne.s32.totalorder %s214, %s215
      %p227 = scmp.eq.s32.totalorder %s42, 1
      %p228 = por %p226, %p227
      %p230 = scmp.ne.s32.totalorder %s215, %s229
      %p231 = scmp.eq.s32.totalorder %s42, 0
      %p232 = por %p230, %p231
      %s234 = sadd.s32 %s233, 1
      %p237 = scmp.eq.s32.totalorder %s36, 1
      %p238 = scmp.ne.s32.totalorder %s233, %s235
      %p239 = scmp.eq.s32.totalorder %s36, 0
      %p240 = por %p238, %p239
      %p241 = scmp.ne.s32.totalorder %s233, %s235
      %p242 = scmp.eq.s32.totalorder %s41, 1
      %p243 = por %p241, %p242
      %p244 = scmp.ne.s32.totalorder %s235, %s236
      %p245 = scmp.eq.s32.totalorder %s41, 0
      %p246 = por %p244, %p245
      %p247 = scmp.ne.s32.totalorder %s235, %s236
      %p248 = scmp.eq.s32.totalorder %s42, 1
      %p249 = por %p247, %p248
      %p251 = scmp.ne.s32.totalorder %s236, %s250
      %p252 = scmp.eq.s32.totalorder %s42, 0
      %p253 = por %p251, %p252
      %s255 = sadd.s32 %s254, 1
      %p258 = scmp.eq.s32.totalorder %s36, 1
      %p259 = scmp.ne.s32.totalorder %s254, %s256
      %p260 = scmp.eq.s32.totalorder %s36, 0
      %p261 = por %p259, %p260
      %p262 = scmp.ne.s32.totalorder %s254, %s256
      %p263 = scmp.eq.s32.totalorder %s41, 1
      %p264 = por %p262, %p263
      %p265 = scmp.ne.s32.totalorder %s256, %s257
      %p266 = scmp.eq.s32.totalorder %s41, 0
      %p267 = por %p265, %p266
      %p268 = scmp.ne.s32.totalorder %s256, %s257
      %p269 = scmp.eq.s32.totalorder %s42, 1
      %p270 = por %p268, %p269
      %p272 = scmp.ne.s32.totalorder %s257, %s271
      %p273 = scmp.eq.s32.totalorder %s42, 0
      %p274 = por %p272, %p273
      %s276 = sadd.s32 %s275, 1
      %p279 = scmp.eq.s32.totalorder %s36, 1
      %p280 = scmp.ne.s32.totalorder %s275, %s277
      %p281 = scmp.eq.s32.totalorder %s36, 0
      %p282 = por %p280, %p281
      %p283 = scmp.ne.s32.totalorder %s275, %s277
      %p284 = scmp.eq.s32.totalorder %s41, 1
      %p285 = por %p283, %p284
      %p286 = scmp.ne.s32.totalorder %s277, %s278
      %p287 = scmp.eq.s32.totalorder %s41, 0
      %p288 = por %p286, %p287
      %p289 = scmp.ne.s32.totalorder %s277, %s278
      %p290 = scmp.eq.s32.totalorder %s42, 1
      %p291 = por %p289, %p290
      %p293 = scmp.ne.s32.totalorder %s278, %s292
      %p294 = scmp.eq.s32.totalorder %s42, 0
      %p295 = por %p293, %p294
      %s297 = sadd.s32 %s296, 1
      %p300 = scmp.eq.s32.totalorder %s36, 1
      %p301 = scmp.ne.s32.totalorder %s296, %s298
      %p302 = scmp.eq.s32.totalorder %s36, 0
      %p303 = por %p301, %p302
      %p304 = scmp.ne.s32.totalorder %s296, %s298
      %p305 = scmp.eq.s32.totalorder %s41, 1
      %p306 = por %p304, %p305
      %p307 = scmp.ne.s32.totalorder %s298, %s299
      %p308 = scmp.eq.s32.totalorder %s41, 0
      %p309 = por %p307, %p308
      %p310 = scmp.ne.s32.totalorder %s298, %s299
      %p311 = scmp.eq.s32.totalorder %s42, 1
      %p312 = por %p310, %p311
      %p314 = scmp.ne.s32.totalorder %s299, %s313
      %p315 = scmp.eq.s32.totalorder %s42, 0
      %p316 = por %p314, %p315
      %s318 = sadd.s32 %s317, 1
      %p321 = scmp.eq.s32.totalorder %s36, 1
      %p322 = scmp.ne.s32.totalorder %s317, %s319
      %p323 = scmp.eq.s32.totalorder %s36, 0
      %p324 = por %p322, %p323
      %p325 = scmp.ne.s32.totalorder %s317, %s319
      %p326 = scmp.eq.s32.totalorder %s41, 1
      %p327 = por %p325, %p326
      %p328 = scmp.ne.s32.totalorder %s319, %s320
      %p329 = scmp.eq.s32.totalorder %s41, 0
      %p330 = por %p328, %p329
      %p331 = scmp.ne.s32.totalorder %s319, %s320
      %p332 = scmp.eq.s32.totalorder %s42, 1
      %p333 = por %p331, %p332
      %p335 = scmp.ne.s32.totalorder %s320, %s334
      %p336 = scmp.eq.s32.totalorder %s42, 0
      %p337 = por %p335, %p336
      %s339 = sadd.s32 %s338, 1
      %p342 = scmp.eq.s32.totalorder %s36, 1
      %p343 = scmp.ne.s32.totalorder %s338, %s340
      %p344 = scmp.eq.s32.totalorder %s36, 0
      %p345 = por %p343, %p344
      %p346 = scmp.ne.s32.totalorder %s338, %s340
      %p347 = scmp.eq.s32.totalorder %s41, 1
      %p348 = por %p346, %p347
      %p349 = scmp.ne.s32.totalorder %s340, %s341
      %p350 = scmp.eq.s32.totalorder %s41, 0
      %p351 = por %p349, %p350
      %p352 = scmp.ne.s32.totalorder %s340, %s341
      %p353 = scmp.eq.s32.totalorder %s42, 1
      %p354 = por %p352, %p353
      %p356 = scmp.ne.s32.totalorder %s341, %s355
      %p357 = scmp.eq.s32.totalorder %s42, 0
      %p358 = por %p356, %p357
      %s360 = sadd.s32 %s359, 1
      %p363 = scmp.eq.s32.totalorder %s36, 1
      %p364 = scmp.ne.s32.totalorder %s359, %s361
      %p365 = scmp.eq.s32.totalorder %s36, 0
      %p366 = por %p364, %p365
      %p367 = scmp.ne.s32.totalorder %s359, %s361
      %p368 = scmp.eq.s32.totalorder %s41, 1
      %p369 = por %p367, %p368
      %p370 = scmp.ne.s32.totalorder %s361, %s362
      %p371 = scmp.eq.s32.totalorder %s41, 0
      %p372 = por %p370, %p371
      %p373 = scmp.ne.s32.totalorder %s361, %s362
      %p374 = scmp.eq.s32.totalorder %s42, 1
      %p375 = por %p373, %p374
      %p377 = scmp.ne.s32.totalorder %s362, %s376
      %p378 = scmp.eq.s32.totalorder %s42, 0
      %p379 = por %p377, %p378
      %s380 = ssub.s32 %s36, %s43
      %p381 = scmp.eq.s32.totalorder %s380, 0
      %s383 = sadd.s32 %s382, 1
      %s384 = scalar_select %p381, %s382, %s383
      %p387 = pneg %p381
      %p388 = scmp.eq.s32.totalorder %s36, 1
      %p389 = por %p387, %p388
      %p390 = scmp.ne.s32.totalorder %s382, %s385
      %p391 = scmp.eq.s32.totalorder %s36, 0
      %p392 = por %p390, %p391
      %p393 = scmp.ne.s32.totalorder %s382, %s385
      %p394 = scmp.eq.s32.totalorder %s41, 1
      %p395 = por %p393, %p394
      %p396 = scmp.ne.s32.totalorder %s385, %s386
      %p397 = scmp.eq.s32.totalorder %s41, 0
      %p398 = por %p396, %p397
      %p399 = scmp.ne.s32.totalorder %s385, %s386
      %p400 = scmp.eq.s32.totalorder %s42, 1
      %p401 = por %p399, %p400
      %p403 = scmp.ne.s32.totalorder %s386, %s402
      %p404 = scmp.eq.s32.totalorder %s42, 0
      %p405 = por %p403, %p404
      %s406 = ssub.s32 %s36, %s43
      %p407 = scmp.eq.s32.totalorder %s406, 0
      %s409 = sadd.s32 %s408, 1
      %s410 = scalar_select %p407, %s408, %s409
      %p413 = pneg %p407
      %p414 = scmp.eq.s32.totalorder %s36, 1
      %p415 = por %p413, %p414
      %p416 = scmp.ne.s32.totalorder %s408, %s411
      %p417 = scmp.eq.s32.totalorder %s36, 0
      %p418 = por %p416, %p417
      %p419 = scmp.ne.s32.totalorder %s408, %s411
      %p420 = scmp.eq.s32.totalorder %s41, 1
      %p421 = por %p419, %p420
      %p422 = scmp.ne.s32.totalorder %s411, %s412
      %p423 = scmp.eq.s32.totalorder %s41, 0
      %p424 = por %p422, %p423
      %p425 = scmp.ne.s32.totalorder %s411, %s412
      %p426 = scmp.eq.s32.totalorder %s42, 1
      %p427 = por %p425, %p426
      %p429 = scmp.ne.s32.totalorder %s412, %s428
      %p430 = scmp.eq.s32.totalorder %s42, 0
      %p431 = por %p429, %p430
      %s433 = sadd.s32 %s432, 1
      %p436 = scmp.eq.s32.totalorder %s36, 1
      %p437 = scmp.ne.s32.totalorder %s432, %s434
      %p438 = scmp.eq.s32.totalorder %s36, 0
      %p439 = por %p437, %p438
      %p440 = scmp.ne.s32.totalorder %s432, %s434
      %p441 = scmp.eq.s32.totalorder %s41, 1
      %p442 = por %p440, %p441
      %p443 = scmp.ne.s32.totalorder %s434, %s435
      %p444 = scmp.eq.s32.totalorder %s41, 0
      %p445 = por %p443, %p444
      %p446 = scmp.ne.s32.totalorder %s434, %s435
      %p447 = scmp.eq.s32.totalorder %s42, 1
      %p448 = por %p446, %p447
      %p450 = scmp.ne.s32.totalorder %s435, %s449
      %p451 = scmp.eq.s32.totalorder %s42, 0
      %p452 = por %p450, %p451
      %p453 = scmp.le.s32.totalorder 1, %s36
      %p454 = scmp.lt.s32.totalorder %s36, 3
      %p455 = pnand %p453, %p454
      %p456 = pneg %p455
      // Predicated region
      $region9: #{forward.1} parent=5 // pred_check
        _
      $region10: #{forward.1} parent=5 // pred_check_branch
        %458 = sbr.rel (%p455) target = $region12
      $region11: #{forward.1} parent=5 // pred_region
        %s459 = ssub.s32 %s36, 1
        // Predicated region
        $region13: #{forward.1} parent=11 // pred_check
          %p460 = pneg %p57
        $region14: #{forward.1} parent=11 // pred_check_branch
          %462 = sbr.rel (%p460) target = $region16
        $region15: #{forward.1} parent=11 // pred_region
          _
        $region16: #{forward.1} parent=11 // pred_fallthru
          _
        // Predicated region
        $region17: #{forward.1} parent=11 // pred_check
          %p463 = pneg %p78
        $region18: #{forward.1} parent=11 // pred_check_branch
          %465 = sbr.rel (%p463) target = $region20
        $region19: #{forward.1} parent=11 // pred_region
          %s467 = ssub.s32 9216, 9216
          %468 = vsyncadd [#allocation4], %s467
          %s469 = sshll.u32 [#allocation3], 4
          %s470 = int_to_ptr.vmem [resolvable:$true] %s469
          %475 = dma.hbm_to_vmem [thread:$0]  %s1, 9216, %s470, [#allocation4], 64, 64, 4
        $region20: #{forward.1} parent=11 // pred_fallthru
          _
        // Predicated region
        $region21: #{forward.1} parent=11 // pred_check
          %p476 = pneg %p99
        $region22: #{forward.1} parent=11 // pred_check_branch
          %478 = sbr.rel (%p476) target = $region24
        $region23: #{forward.1} parent=11 // pred_region
          %s480 = ssub.s32 1024, 1024
          %481 = vsyncadd [#allocation7], %s480
          %s482 = sshll.u32 [#allocation6], 4
          %s483 = int_to_ptr.vmem [resolvable:$true] %s482
          %488 = dma.hbm_to_vmem [thread:$0]  %s2, 1024, %s483, [#allocation7], 64, 64, 4
        $region24: #{forward.1} parent=11 // pred_fallthru
          _
        // Predicated region
        $region25: #{forward.1} parent=11 // pred_check
          %p489 = pneg %p120
        $region26: #{forward.1} parent=11 // pred_check_branch
          %491 = sbr.rel (%p489) target = $region28
        $region27: #{forward.1} parent=11 // pred_region
          %s493 = ssub.s32 2304, 2304
          %494 = vsyncadd [#allocation7], %s493
          %s495 = sshll.u32 [#allocation8], 4
          %s496 = int_to_ptr.vmem [resolvable:$true] %s495
          %501 = dma.hbm_to_vmem [thread:$0]  %s3, 2304, %s496, [#allocation7], 64, 64, 4
        $region28: #{forward.1} parent=11 // pred_fallthru
          _
        // Predicated region
        $region29: #{forward.1} parent=11 // pred_check
          %p502 = pneg %p141
        $region30: #{forward.1} parent=11 // pred_check_branch
          %504 = sbr.rel (%p502) target = $region32
        $region31: #{forward.1} parent=11 // pred_region
          %s506 = ssub.s32 256, 256
          %507 = vsyncadd [#allocation10], %s506
          %s508 = sshll.u32 [#allocation9], 4
          %s509 = int_to_ptr.vmem [resolvable:$true] %s508
          %514 = dma.hbm_to_vmem [thread:$0]  %s4, 256, %s509, [#allocation10], 64, 64, 4
        $region32: #{forward.1} parent=11 // pred_fallthru
          _
        // Predicated region
        $region33: #{forward.1} parent=11 // pred_check
          %p515 = pneg %p162
        $region34: #{forward.1} parent=11 // pred_check_branch
          %517 = sbr.rel (%p515) target = $region36
        $region35: #{forward.1} parent=11 // pred_region
          %s519 = ssub.s32 64, 64
          %520 = vsyncadd [#allocation10], %s519
          %s521 = sshll.u32 [#allocation11], 4
          %s522 = int_to_ptr.vmem [resolvable:$true] %s521
          %527 = dma.hbm_to_vmem [thread:$0]  %s5, 64, %s522, [#allocation10], 16, 16, 1
        $region36: #{forward.1} parent=11 // pred_fallthru
          _
        // Predicated region
        $region37: #{forward.1} parent=11 // pred_check
          %p528 = pneg %p183
        $region38: #{forward.1} parent=11 // pred_check_branch
          %530 = sbr.rel (%p528) target = $region40
        $region39: #{forward.1} parent=11 // pred_region
          %s532 = ssub.s32 128, 128
          %533 = vsyncadd [#allocation13], %s532
          %s534 = sshll.u32 [#allocation12], 4
          %s535 = int_to_ptr.vmem [resolvable:$true] %s534
          %540 = dma.hbm_to_vmem [thread:$0]  %s6, 128, %s535, [#allocation13], 64, 64, 4
        $region40: #{forward.1} parent=11 // pred_fallthru
          _
        // Predicated region
        $region41: #{forward.1} parent=11 // pred_check
          %p541 = pneg %p204
        $region42: #{forward.1} parent=11 // pred_check_branch
          %543 = sbr.rel (%p541) target = $region44
        $region43: #{forward.1} parent=11 // pred_region
          %s545 = ssub.s32 16, 16
          %546 = vsyncadd [#allocation13], %s545
          %s548 = sshll.u32 [#allocation14], 4
          %s549 = int_to_ptr.vmem [resolvable:$true] %s548
          %551 = dma.hbm_to_vmem [thread:$0]  %s7, 16, %s549, [#allocation13]
        $region44: #{forward.1} parent=11 // pred_fallthru
          _
        // Predicated region
        $region45: #{forward.1} parent=11 // pred_check
          %p552 = pneg %p225
        $region46: #{forward.1} parent=11 // pred_check_branch
          %554 = sbr.rel (%p552) target = $region48
        $region47: #{forward.1} parent=11 // pred_region
          %s556 = ssub.s32 2304, 2304
          %557 = vsyncadd [#allocation16], %s556
          %s558 = sshll.u32 [#allocation15], 4
          %s559 = int_to_ptr.vmem [resolvable:$true] %s558
          %564 = dma.hbm_to_vmem [thread:$0]  %s8, 2304, %s559, [#allocation16], 64, 64, 4
        $region48: #{forward.1} parent=11 // pred_fallthru
          _
        // Predicated region
        $region49: #{forward.1} parent=11 // pred_check
          %p565 = pneg %p246
        $region50: #{forward.1} parent=11 // pred_check_branch
          %567 = sbr.rel (%p565) target = $region52
        $region51: #{forward.1} parent=11 // pred_region
          %s569 = ssub.s32 16, 16
          %570 = vsyncadd [#allocation16], %s569
          %s572 = sshll.u32 [#allocation17], 4
          %s573 = int_to_ptr.vmem [resolvable:$true] %s572
          %575 = dma.hbm_to_vmem [thread:$0]  %s9, 16, %s573, [#allocation16]
        $region52: #{forward.1} parent=11 // pred_fallthru
          _
        // Predicated region
        $region53: #{forward.1} parent=11 // pred_check
          %p576 = pneg %p267
        $region54: #{forward.1} parent=11 // pred_check_branch
          %578 = sbr.rel (%p576) target = $region56
        $region55: #{forward.1} parent=11 // pred_region
          %s580 = ssub.s32 4608, 4608
          %581 = vsyncadd [#allocation19], %s580
          %s582 = sshll.u32 [#allocation18], 4
          %s583 = int_to_ptr.vmem [resolvable:$true] %s582
          %588 = dma.hbm_to_vmem [thread:$0]  %s10, 4608, %s583, [#allocation19], 64, 64, 4
        $region56: #{forward.1} parent=11 // pred_fallthru
          _
        // Predicated region
        $region57: #{forward.1} parent=11 // pred_check
          %p589 = pneg %p288
        $region58: #{forward.1} parent=11 // pred_check_branch
          %591 = sbr.rel (%p589) target = $region60
        $region59: #{forward.1} parent=11 // pred_region
          %s593 = ssub.s32 16, 16
          %594 = vsyncadd [#allocation19], %s593
          %s596 = sshll.u32 [#allocation20], 4
          %s597 = int_to_ptr.vmem [resolvable:$true] %s596
          %599 = dma.hbm_to_vmem [thread:$0]  %s11, 16, %s597, [#allocation19]
        $region60: #{forward.1} parent=11 // pred_fallthru
          _
        // Predicated region
        $region61: #{forward.1} parent=11 // pred_check
          %p600 = pneg %p309
        $region62: #{forward.1} parent=11 // pred_check_branch
          %602 = sbr.rel (%p600) target = $region64
        $region63: #{forward.1} parent=11 // pred_region
          %s604 = ssub.s32 16384, 16384
          %605 = vsyncadd [#allocation22], %s604
          %s606 = sshll.u32 [#allocation21], 4
          %s607 = int_to_ptr.vmem [resolvable:$true] %s606
          %612 = dma.hbm_to_vmem [thread:$0]  %s12, 16384, %s607, [#allocation22], 256, 256, 16
        $region64: #{forward.1} parent=11 // pred_fallthru
          _
        // Predicated region
        $region65: #{forward.1} parent=11 // pred_check
          %p613 = pneg %p330
        $region66: #{forward.1} parent=11 // pred_check_branch
          %615 = sbr.rel (%p613) target = $region68
        $region67: #{forward.1} parent=11 // pred_region
          %s617 = ssub.s32 64, 64
          %618 = vsyncadd [#allocation22], %s617
          %s620 = sshll.u32 [#allocation23], 4
          %s621 = int_to_ptr.vmem [resolvable:$true] %s620
          %623 = dma.hbm_to_vmem [thread:$0]  %s13, 64, %s621, [#allocation22]
        $region68: #{forward.1} parent=11 // pred_fallthru
          _
        // Predicated region
        $region69: #{forward.1} parent=11 // pred_check
          %p624 = pneg %p351
        $region70: #{forward.1} parent=11 // pred_check_branch
          %626 = sbr.rel (%p624) target = $region72
        $region71: #{forward.1} parent=11 // pred_region
          %s628 = ssub.s32 8192, 8192
          %629 = vsyncadd [#allocation25], %s628
          %s630 = sshll.u32 [#allocation24], 4
          %s631 = int_to_ptr.vmem [resolvable:$true] %s630
          %636 = dma.hbm_to_vmem [thread:$0]  %s14, 8192, %s631, [#allocation25], 128, 128, 8
        $region72: #{forward.1} parent=11 // pred_fallthru
          _
        // Predicated region
        $region73: #{forward.1} parent=11 // pred_check
          %p637 = pneg %p372
        $region74: #{forward.1} parent=11 // pred_check_branch
          %639 = sbr.rel (%p637) target = $region76
        $region75: #{forward.1} parent=11 // pred_region
          %s641 = ssub.s32 32, 32
          %642 = vsyncadd [#allocation25], %s641
          %s644 = sshll.u32 [#allocation26], 4
          %s645 = int_to_ptr.vmem [resolvable:$true] %s644
          %647 = dma.hbm_to_vmem [thread:$0]  %s15, 32, %s645, [#allocation25]
        $region76: #{forward.1} parent=11 // pred_fallthru
          _
      $region12: #{forward.1} parent=5 // pred_fallthru
        _
      %p648 = scmp.lt.s32.totalorder %s36, 2
      // Predicated region
      $region77: #{forward.1} parent=5 // pred_check
        %p649 = pneg %p648
      $region78: #{forward.1} parent=5 // pred_check_branch
        %651 = sbr.rel (%p649) target = $region80
      $region79: #{forward.1} parent=5 // pred_region
        // Predicated region
        $region81: #{forward.1} parent=79 // pred_check
          %p652 = pneg %p392
        $region82: #{forward.1} parent=79 // pred_check_branch
          %654 = sbr.rel (%p652) target = $region84
        $region83: #{forward.1} parent=79 // pred_region
          %s655 = sand.u32 %s36, 1
          %s656 = scalar_lea.sflag [#allocation28], %s655
          %s657 = sand.u32 %s382, 1
          %s658 = smul.addr %s657, 2048
          %s659 = scalar_lea.vmem [#allocation27], %s658
          %s660 = smul.u32 16, %s36
          %s662 = ssub.s32 32768, 32768
          %663 = vsyncadd %s656, %s662
          %s664 = smul.addr %s660, 64
          %s665 = scalar_lea.hbm %s16, %s664
          %s666 = sshll.u32 %s659, 4
          %s667 = int_to_ptr.vmem [resolvable:$true] %s666
          %672 = dma.hbm_to_vmem [thread:$0]  %s665, 32768, %s667, %s656, 2048, 1024, 64
        $region84: #{forward.1} parent=79 // pred_fallthru
          _
        // Predicated region
        $region85: #{forward.1} parent=79 // pred_check
          %p673 = pneg %p418
        $region86: #{forward.1} parent=79 // pred_check_branch
          %675 = sbr.rel (%p673) target = $region88
        $region87: #{forward.1} parent=79 // pred_region
          %s676 = sand.u32 %s36, 1
          %s677 = scalar_lea.sflag [#allocation28], %s676
          %s678 = sand.u32 %s408, 1
          %s679 = smul.addr %s678, 16
          %s680 = scalar_lea.vmem [#allocation29], %s679
          %s681 = smul.u32 16, %s36
          %s683 = ssub.s32 256, 256
          %684 = vsyncadd %s677, %s683
          %s685 = smul.addr %s681, 16
          %s686 = scalar_lea.hbm %s17, %s685
          %s688 = sshll.u32 %s680, 4
          %s689 = int_to_ptr.vmem [resolvable:$true] %s688
          %691 = dma.hbm_to_vmem [thread:$0]  %s686, 256, %s689, %s677
        $region88: #{forward.1} parent=79 // pred_fallthru
          _
      $region80: #{forward.1} parent=5 // pred_fallthru
        _
      %p692 = scmp.le.s32.totalorder 1, %s36
      %p693 = scmp.lt.s32.totalorder %s36, 3
      %p694 = pnand %p692, %p693
      %p695 = pneg %p694
      // Predicated region
      $region89: #{forward.1} parent=5 // pred_check
        _
      $region90: #{forward.1} parent=5 // pred_check_branch
        %697 = sbr.rel (%p694) target = $region92
      $region91: #{forward.1} parent=5 // pred_region
        %s698 = ssub.s32 %s36, 1
        // Predicated region
        $region93: #{forward.1} parent=91 // pred_check
          %p699 = pneg %p78
        $region94: #{forward.1} parent=91 // pred_check_branch
          %701 = sbr.rel (%p699) target = $region96
        $region95: #{forward.1} parent=91 // pred_region
          %702 = dma.done [#allocation4], 9216
        $region96: #{forward.1} parent=91 // pred_fallthru
          _
        // Predicated region
        $region97: #{forward.1} parent=91 // pred_check
          %p703 = pneg %p99
        $region98: #{forward.1} parent=91 // pred_check_branch
          %705 = sbr.rel (%p703) target = $region100
        $region99: #{forward.1} parent=91 // pred_region
          %706 = dma.done [#allocation7], 1024
        $region100: #{forward.1} parent=91 // pred_fallthru
          _
        // Predicated region
        $region101: #{forward.1} parent=91 // pred_check
          %p707 = pneg %p120
        $region102: #{forward.1} parent=91 // pred_check_branch
          %709 = sbr.rel (%p707) target = $region104
        $region103: #{forward.1} parent=91 // pred_region
          %710 = dma.done [#allocation7], 2304
        $region104: #{forward.1} parent=91 // pred_fallthru
          _
        // Predicated region
        $region105: #{forward.1} parent=91 // pred_check
          %p711 = pneg %p141
        $region106: #{forward.1} parent=91 // pred_check_branch
          %713 = sbr.rel (%p711) target = $region108
        $region107: #{forward.1} parent=91 // pred_region
          %714 = dma.done [#allocation10], 256
        $region108: #{forward.1} parent=91 // pred_fallthru
          _
        // Predicated region
        $region109: #{forward.1} parent=91 // pred_check
          %p715 = pneg %p162
        $region110: #{forward.1} parent=91 // pred_check_branch
          %717 = sbr.rel (%p715) target = $region112
        $region111: #{forward.1} parent=91 // pred_region
          %718 = dma.done [#allocation10], 64
        $region112: #{forward.1} parent=91 // pred_fallthru
          _
        // Predicated region
        $region113: #{forward.1} parent=91 // pred_check
          %p719 = pneg %p183
        $region114: #{forward.1} parent=91 // pred_check_branch
          %721 = sbr.rel (%p719) target = $region116
        $region115: #{forward.1} parent=91 // pred_region
          %722 = dma.done [#allocation13], 128
        $region116: #{forward.1} parent=91 // pred_fallthru
          _
        // Predicated region
        $region117: #{forward.1} parent=91 // pred_check
          %p723 = pneg %p204
        $region118: #{forward.1} parent=91 // pred_check_branch
          %725 = sbr.rel (%p723) target = $region120
        $region119: #{forward.1} parent=91 // pred_region
          %726 = dma.done [#allocation13], 16
        $region120: #{forward.1} parent=91 // pred_fallthru
          _
        // Predicated region
        $region121: #{forward.1} parent=91 // pred_check
          %p727 = pneg %p225
        $region122: #{forward.1} parent=91 // pred_check_branch
          %729 = sbr.rel (%p727) target = $region124
        $region123: #{forward.1} parent=91 // pred_region
          %730 = dma.done [#allocation16], 2304
        $region124: #{forward.1} parent=91 // pred_fallthru
          _
        // Predicated region
        $region125: #{forward.1} parent=91 // pred_check
          %p731 = pneg %p246
        $region126: #{forward.1} parent=91 // pred_check_branch
          %733 = sbr.rel (%p731) target = $region128
        $region127: #{forward.1} parent=91 // pred_region
          %734 = dma.done [#allocation16], 16
        $region128: #{forward.1} parent=91 // pred_fallthru
          _
        // Predicated region
        $region129: #{forward.1} parent=91 // pred_check
          %p735 = pneg %p267
        $region130: #{forward.1} parent=91 // pred_check_branch
          %737 = sbr.rel (%p735) target = $region132
        $region131: #{forward.1} parent=91 // pred_region
          %738 = dma.done [#allocation19], 4608
        $region132: #{forward.1} parent=91 // pred_fallthru
          _
        // Predicated region
        $region133: #{forward.1} parent=91 // pred_check
          %p739 = pneg %p288
        $region134: #{forward.1} parent=91 // pred_check_branch
          %741 = sbr.rel (%p739) target = $region136
        $region135: #{forward.1} parent=91 // pred_region
          %742 = dma.done [#allocation19], 16
        $region136: #{forward.1} parent=91 // pred_fallthru
          _
        // Predicated region
        $region137: #{forward.1} parent=91 // pred_check
          %p743 = pneg %p309
        $region138: #{forward.1} parent=91 // pred_check_branch
          %745 = sbr.rel (%p743) target = $region140
        $region139: #{forward.1} parent=91 // pred_region
          %746 = dma.done [#allocation22], 16384
        $region140: #{forward.1} parent=91 // pred_fallthru
          _
        // Predicated region
        $region141: #{forward.1} parent=91 // pred_check
          %p747 = pneg %p330
        $region142: #{forward.1} parent=91 // pred_check_branch
          %749 = sbr.rel (%p747) target = $region144
        $region143: #{forward.1} parent=91 // pred_region
          %750 = dma.done [#allocation22], 64
        $region144: #{forward.1} parent=91 // pred_fallthru
          _
        // Predicated region
        $region145: #{forward.1} parent=91 // pred_check
          %p751 = pneg %p351
        $region146: #{forward.1} parent=91 // pred_check_branch
          %753 = sbr.rel (%p751) target = $region148
        $region147: #{forward.1} parent=91 // pred_region
          %754 = dma.done [#allocation25], 8192
        $region148: #{forward.1} parent=91 // pred_fallthru
          _
        // Predicated region
        $region149: #{forward.1} parent=91 // pred_check
          %p755 = pneg %p372
        $region150: #{forward.1} parent=91 // pred_check_branch
          %757 = sbr.rel (%p755) target = $region152
        $region151: #{forward.1} parent=91 // pred_region
          %758 = dma.done [#allocation25], 32
        $region152: #{forward.1} parent=91 // pred_fallthru
          _
        %s759 = sand.u32 %s41, 1
        %s760 = scalar_lea.sflag [#allocation28], %s759
        %s761 = sand.u32 %s385, 1
        %s762 = smul.addr %s761, 2048
        %s763 = scalar_lea.vmem [#allocation27], %s762
        // Predicated region
        $region153: #{forward.1} parent=91 // pred_check
          %p764 = pneg %p398
        $region154: #{forward.1} parent=91 // pred_check_branch
          %766 = sbr.rel (%p764) target = $region156
        $region155: #{forward.1} parent=91 // pred_region
          %767 = dma.done %s760, 32768
        $region156: #{forward.1} parent=91 // pred_fallthru
          _
        %s768 = sand.u32 %s41, 1
        %s769 = scalar_lea.sflag [#allocation28], %s768
        %s770 = sand.u32 %s411, 1
        %s771 = smul.addr %s770, 16
        %s772 = scalar_lea.vmem [#allocation29], %s771
        // Predicated region
        $region157: #{forward.1} parent=91 // pred_check
          %p773 = pneg %p424
        $region158: #{forward.1} parent=91 // pred_check_branch
          %775 = sbr.rel (%p773) target = $region160
        $region159: #{forward.1} parent=91 // pred_region
          %776 = dma.done %s769, 256
        $region160: #{forward.1} parent=91 // pred_fallthru
          _
        %p777 = pneg %p57
        %p778 = pneg %p54
        %p779 = pneg %p78
        %p780 = pneg %p75
        %p781 = pneg %p99
        %p782 = pneg %p96
        %p783 = pneg %p120
        %p784 = pneg %p117
        %p785 = pneg %p141
        %p786 = pneg %p138
        %p787 = pneg %p162
        %p788 = pneg %p159
        %p789 = pneg %p183
        %p790 = pneg %p180
        %p791 = pneg %p204
        %p792 = pneg %p201
        %p793 = pneg %p225
        %p794 = pneg %p222
        %p795 = pneg %p246
        %p796 = pneg %p243
        %p797 = pneg %p267
        %p798 = pneg %p264
        %p799 = pneg %p288
        %p800 = pneg %p285
        %p801 = pneg %p309
        %p802 = pneg %p306
        %p803 = pneg %p330
        %p804 = pneg %p327
        %p805 = pneg %p351
        %p806 = pneg %p348
        %p807 = pneg %p372
        %p808 = pneg %p369
        %s809 = sand.u32 %s41, 1
        %s810 = scalar_lea.sflag [#allocation28], %s809
        %s811 = sand.u32 %s385, 1
        %s812 = smul.addr %s811, 2048
        %s813 = scalar_lea.vmem [#allocation27], %s812
        %p814 = pneg %p398
        %p815 = pneg %p395
        %s816 = sand.u32 %s41, 1
        %s817 = scalar_lea.sflag [#allocation28], %s816
        %s818 = sand.u32 %s411, 1
        %s819 = smul.addr %s818, 16
        %s820 = scalar_lea.vmem [#allocation29], %s819
        %p821 = pneg %p424
        %p822 = pneg %p421
        %p823 = pneg %p445
        %p824 = pneg %p442
        %s825 = smul.u32 16, %s41
        %s826 = smul.u32 16, %s41
        %p828 = scmp.eq.s32.totalorder %s41, 0
        // Predicated region
        $region161: #{forward.1} parent=91 // pred_check
          %p829 = pneg %p828
        $region162: #{forward.1} parent=91 // pred_check_branch
          %831 = sbr.rel (%p829) target = $region164
        $region163: #{forward.1} parent=91 // pred_region
          %v832 = vld [vmem:[%s0] sm:$0xf]
          %v833 = vld [vmem:[%s0 + $0x4] sm:$0xf]
          %v834 = vld [vmem:[%s0 + $0x8] sm:$0xf]
          %v835 = vld [vmem:[%s0 + $0xc] sm:$0xf]
          %v836 = vld [vmem:[%s0 + $0x10] sm:$0xf]
          %v837 = vld [vmem:[%s0 + $0x14] sm:$0xf]
          %v838 = vld [vmem:[%s0 + $0x18] sm:$0xf]
          %v839 = vld [vmem:[%s0 + $0x1c] sm:$0xf]
          %v840 = vld [vmem:[%s0 + $0x20] sm:$0xf]
          %v841 = vld [vmem:[%s0 + $0x24] sm:$0xf]
          %v842 = vld [vmem:[%s0 + $0x28] sm:$0xf]
          %v843 = vld [vmem:[%s0 + $0x2c] sm:$0xf]
          %v844 = vld [vmem:[%s0 + $0x30] sm:$0xf]
          %v845 = vld [vmem:[%s0 + $0x34] sm:$0xf]
          %v846 = vld [vmem:[%s0 + $0x38] sm:$0xf]
          %v847 = vld [vmem:[%s0 + $0x3c] sm:$0xf]
          %v848 = vld [vmem:[#allocation12] sm:$0xf]
          %v849 = vld [vmem:[#allocation12 + $0x4] sm:$0x1]
          %v850 = vld [vmem:[#allocation14] sm:$0x1]
          %v852 = vlaneseq
          %v853 = vshrl.u32 %v852, 7
          %v854 = vsub.s32 0, %v853
          %v855 = vrot.slane %v850, %v854
          %v873 = vunpack.c.l.b16 %v832
          %v874 = vunpack.c.l.b16 %v833
          %v875 = vunpack.c.l.b16 %v834
          %v876 = vunpack.c.l.b16 %v835
          %v877 = vunpack.c.l.b16 %v836
          %v878 = vunpack.c.l.b16 %v837
          %v879 = vunpack.c.l.b16 %v838
          %v880 = vunpack.c.l.b16 %v839
          %v881 = vunpack.c.l.b16 %v840
          %v882 = vunpack.c.l.b16 %v841
          %v883 = vunpack.c.l.b16 %v842
          %v884 = vunpack.c.l.b16 %v843
          %v885 = vunpack.c.l.b16 %v844
          %v886 = vunpack.c.l.b16 %v845
          %v887 = vunpack.c.l.b16 %v846
          %v888 = vunpack.c.l.b16 %v847
          %v889 = vpack.c.b16 %v874, %v873
          %v890 = vpack.c.b16 %v876, %v875
          %v891 = vpack.c.b16 %v878, %v877
          %v892 = vpack.c.b16 %v880, %v879
          %v893 = vpack.c.b16 %v882, %v881
          %v894 = vpack.c.b16 %v884, %v883
          %v895 = vpack.c.b16 %v886, %v885
          %v896 = vpack.c.b16 %v888, %v887
          %v899 = vunpack.c.l.b16 %v848
          %v900 = vunpack.c.l.b16 %v849
          %v901 = vpack.c.b16 %v900, %v899
          %vm902 = vcmask 72704
          %v904 = vsel %vm902, %v889, 0
          %v907 = vsel %vm902, %v890, 0
          %v910 = vsel %vm902, %v891, 0
          %v913 = vsel %vm902, %v892, 0
          %v916 = vsel %vm902, %v893, 0
          %v919 = vsel %vm902, %v894, 0
          %v922 = vsel %vm902, %v895, 0
          %v925 = vsel %vm902, %v896, 0
          %vm927 = vcmask 1043456
          %vm928 = vcmask 1044480
          %v929 = vsel %vm927, 4294967295, 65535
          %v930 = vsel %vm928, %v929, 0
          %v932 = vand.u32 %v901, %v930
          %934 = vmatprep.subr.bf16.mxu0 0
          %935 = vmatpush1.bf16.msra.mxu0 %v932
          %936 = vmatprep.subr.bf16.mxu0 0
          %937 = vmatpush1.bf16.msra.mxu0 0
          %938 = vmatprep.subr.bf16.mxu0 0
          %939 = vmatpush1.bf16.msra.mxu0 0
          %940 = vmatprep.subr.bf16.mxu0 0
          %941 = vmatpush1.bf16.msra.mxu0 0
          %942 = vmatprep.subr.bf16.mxu0 0
          %943 = vmatpush1.bf16.msra.mxu0 0
          %944 = vmatprep.subr.bf16.mxu0 0
          %945 = vmatpush1.bf16.msra.mxu0 0
          %946 = vmatprep.subr.bf16.mxu0 0
          %947 = vmatpush1.bf16.msra.mxu0 0
          %948 = vmatprep.subr.bf16.mxu0 0
          %949 = vmatpush1.bf16.msra.mxu0 0
          %950 = vmatprep.subr.bf16.mxu0 0
          %951 = vmatpush1.bf16.msra.mxu0 0
          %952 = vmatprep.subr.bf16.mxu0 0
          %953 = vmatpush1.bf16.msra.mxu0 0
          %954 = vmatprep.subr.bf16.mxu0 0
          %955 = vmatpush1.bf16.msra.mxu0 0
          %956 = vmatprep.subr.bf16.mxu0 0
          %957 = vmatpush1.bf16.msra.mxu0 0
          %958 = vmatprep.subr.bf16.mxu0 0
          %959 = vmatpush1.bf16.msra.mxu0 0
          %960 = vmatprep.subr.bf16.mxu0 0
          %961 = vmatpush1.bf16.msra.mxu0 0
          %962 = vmatprep.subr.bf16.mxu0 0
          %963 = vmatpush1.bf16.msra.mxu0 0
          %964 = vmatprep.subr.bf16.mxu0 0
          %965 = vmatpush1.bf16.msra.mxu0 0
          %966 = vmatprep.mubr.bf16.mxu0 0
          %967 = vmatmul.mubr.bf16.gmra.mrb[0].mxu0 %v904
          %v968 = vpop.f32.mrb[0].mxu0
          %v969 = vadd.f32 %v855, %v968
          %v970 = vpop.f32.mrb[0].mxu0
          %v971 = vpop.f32.mrb[0].mxu0
          %v972 = vadd.f32 %v855, %v971
          %v973 = vpop.f32.mrb[0].mxu0
          %974 = vmatprep.mubr.bf16.mxu0 0
          %975 = vmatmul.mubr.bf16.gmra.mrb[0].mxu0 %v907
          %v976 = vpop.f32.mrb[0].mxu0
          %v977 = vadd.f32 %v855, %v976
          %v978 = vpop.f32.mrb[0].mxu0
          %v979 = vpop.f32.mrb[0].mxu0
          %v980 = vadd.f32 %v855, %v979
          %v981 = vpop.f32.mrb[0].mxu0
          %982 = vmatprep.mubr.bf16.mxu0 0
          %983 = vmatmul.mubr.bf16.gmra.mrb[0].mxu0 %v910
          %v984 = vpop.f32.mrb[0].mxu0
          %v985 = vadd.f32 %v855, %v984
          %v986 = vpop.f32.mrb[0].mxu0
          %v987 = vpop.f32.mrb[0].mxu0
          %v988 = vadd.f32 %v855, %v987
          %v989 = vpop.f32.mrb[0].mxu0
          %990 = vmatprep.mubr.bf16.mxu0 0
          %991 = vmatmul.mubr.bf16.gmra.mrb[0].mxu0 %v913
          %v992 = vpop.f32.mrb[0].mxu0
          %v993 = vadd.f32 %v855, %v992
          %v994 = vpop.f32.mrb[0].mxu0
          %v995 = vpop.f32.mrb[0].mxu0
          %v996 = vadd.f32 %v855, %v995
          %v997 = vpop.f32.mrb[0].mxu0
          %998 = vmatprep.mubr.bf16.mxu0 0
          %999 = vmatmul.mubr.bf16.gmra.mrb[0].mxu0 %v916
          %v1000 = vpop.f32.mrb[0].mxu0
          %v1001 = vadd.f32 %v855, %v1000
          %v1002 = vpop.f32.mrb[0].mxu0
          %v1003 = vpop.f32.mrb[0].mxu0
          %v1004 = vadd.f32 %v855, %v1003
          %v1005 = vpop.f32.mrb[0].mxu0
          %1006 = vmatprep.mubr.bf16.mxu0 0
          %1007 = vmatmul.mubr.bf16.gmra.mrb[0].mxu0 %v919
          %v1008 = vpop.f32.mrb[0].mxu0
          %v1009 = vadd.f32 %v855, %v1008
          %v1010 = vpop.f32.mrb[0].mxu0
          %v1011 = vpop.f32.mrb[0].mxu0
          %v1012 = vadd.f32 %v855, %v1011
          %v1013 = vpop.f32.mrb[0].mxu0
          %1014 = vmatprep.mubr.bf16.mxu0 0
          %1015 = vmatmul.mubr.bf16.gmra.mrb[0].mxu0 %v922
          %v1016 = vpop.f32.mrb[0].mxu0
          %v1017 = vadd.f32 %v855, %v1016
          %v1018 = vpop.f32.mrb[0].mxu0
          %v1019 = vpop.f32.mrb[0].mxu0
          %v1020 = vadd.f32 %v855, %v1019
          %v1021 = vpop.f32.mrb[0].mxu0
          %1022 = vmatprep.mubr.bf16.mxu0 0
          %1023 = vmatmul.mubr.bf16.gmra.mrb[0].mxu0 %v925
          %v1024 = vpop.f32.mrb[0].mxu0
          %v1025 = vadd.f32 %v855, %v1024
          %v1026 = vpop.f32.mrb[0].mxu0
          %v1027 = vpop.f32.mrb[0].mxu0
          %v1028 = vadd.f32 %v855, %v1027
          %v1029 = vpop.f32.mrb[0].mxu0
          %1030 = vdwg.mxu0
          %v1031 = vmax.f32 %v969, 0.0
          %v1032 = vmax.f32 %v972, 0.0
          %v1033 = vmax.f32 %v977, 0.0
          %v1034 = vmax.f32 %v980, 0.0
          %v1035 = vmax.f32 %v985, 0.0
          %v1036 = vmax.f32 %v988, 0.0
          %v1037 = vmax.f32 %v993, 0.0
          %v1038 = vmax.f32 %v996, 0.0
          %v1039 = vmax.f32 %v1001, 0.0
          %v1040 = vmax.f32 %v1004, 0.0
          %v1041 = vmax.f32 %v1009, 0.0
          %v1042 = vmax.f32 %v1012, 0.0
          %v1043 = vmax.f32 %v1017, 0.0
          %v1044 = vmax.f32 %v1020, 0.0
          %v1045 = vmax.f32 %v1025, 0.0
          %v1046 = vmax.f32 %v1028, 0.0
          %v1047 = vld [vmem:[#allocation3] sm:$0xf]
          %v1048 = vld [vmem:[#allocation3 + $0x4] sm:$0xf]
          %v1049 = vld [vmem:[#allocation3 + $0x8] sm:$0xf]
          %v1050 = vld [vmem:[#allocation3 + $0xc] sm:$0xf]
          %v1051 = vld [vmem:[#allocation3 + $0x10] sm:$0xf]
          %v1052 = vld [vmem:[#allocation3 + $0x14] sm:$0xf]
          %v1053 = vld [vmem:[#allocation3 + $0x18] sm:$0xf]
          %v1054 = vld [vmem:[#allocation3 + $0x1c] sm:$0xf]
          %v1055 = vld [vmem:[#allocation3 + $0x20] sm:$0xf]
          %v1056 = vld [vmem:[#allocation3 + $0x24] sm:$0xf]
          %v1057 = vld [vmem:[#allocation3 + $0x28] sm:$0xf]
          %v1058 = vld [vmem:[#allocation3 + $0x2c] sm:$0xf]
          %v1059 = vld [vmem:[#allocation3 + $0x30] sm:$0xf]
          %v1060 = vld [vmem:[#allocation3 + $0x34] sm:$0xf]
          %v1061 = vld [vmem:[#allocation3 + $0x38] sm:$0xf]
          %v1062 = vld [vmem:[#allocation3 + $0x3c] sm:$0xf]
          %v1063 = vpack.c.bf16 %v1032, %v1031
          %v1064 = vpack.c.bf16 %v1034, %v1033
          %v1065 = vpack.c.bf16 %v1036, %v1035
          %v1066 = vpack.c.bf16 %v1038, %v1037
          %v1067 = vpack.c.bf16 %v1040, %v1039
          %v1068 = vpack.c.bf16 %v1042, %v1041
          %v1069 = vpack.c.bf16 %v1044, %v1043
          %v1070 = vpack.c.bf16 %v1046, %v1045
          %v1087 = vunpack.c.l.b16 %v1047
          %v1088 = vunpack.c.l.b16 %v1048
          %v1089 = vunpack.c.l.b16 %v1049
          %v1090 = vunpack.c.l.b16 %v1050
          %v1091 = vunpack.c.l.b16 %v1051
          %v1092 = vunpack.c.l.b16 %v1052
          %v1093 = vunpack.c.l.b16 %v1053
          %v1094 = vunpack.c.l.b16 %v1054
          %v1095 = vunpack.c.l.b16 %v1055
          %v1096 = vunpack.c.l.b16 %v1056
          %v1097 = vunpack.c.l.b16 %v1057
          %v1098 = vunpack.c.l.b16 %v1058
          %v1099 = vunpack.c.l.b16 %v1059
          %v1100 = vunpack.c.l.b16 %v1060
          %v1101 = vunpack.c.l.b16 %v1061
          %v1102 = vunpack.c.l.b16 %v1062
          %v1103 = vpack.c.b16 %v1088, %v1087
          %v1104 = vpack.c.b16 %v1090, %v1089
          %v1105 = vpack.c.b16 %v1092, %v1091
          %v1106 = vpack.c.b16 %v1094, %v1093
          %v1107 = vpack.c.b16 %v1096, %v1095
          %v1108 = vpack.c.b16 %v1098, %v1097
          %v1109 = vpack.c.b16 %v1100, %v1099
          %v1110 = vpack.c.b16 %v1102, %v1101
          %1119 = vmatprep.subr.bf16.mxu0 0
          %1120 = vmatpush1.bf16.msra.mxu0 %v1063
          %1121 = vmatprep.subr.bf16.mxu0 0
          %1122 = vmatpush1.bf16.msra.mxu0 %v1064
          %1123 = vmatprep.subr.bf16.mxu0 0
          %1124 = vmatpush1.bf16.msra.mxu0 %v1065
          %1125 = vmatprep.subr.bf16.mxu0 0
          %1126 = vmatpush1.bf16.msra.mxu0 %v1066
          %1127 = vmatprep.subr.bf16.mxu0 0
          %1128 = vmatpush1.bf16.msra.mxu0 %v1067
          %1129 = vmatprep.subr.bf16.mxu0 0
          %1130 = vmatpush1.bf16.msra.mxu0 %v1068
          %1131 = vmatprep.subr.bf16.mxu0 0
          %1132 = vmatpush1.bf16.msra.mxu0 %v1069
          %1133 = vmatprep.subr.bf16.mxu0 0
          %1134 = vmatpush1.bf16.msra.mxu0 %v1070
          %1135 = vmatprep.subr.bf16.mxu0 0
          %1136 = vmatpush1.bf16.msra.mxu0 0
          %1137 = vmatprep.subr.bf16.mxu0 0
          %1138 = vmatpush1.bf16.msra.mxu0 0
          %1139 = vmatprep.subr.bf16.mxu0 0
          %1140 = vmatpush1.bf16.msra.mxu0 0
          %1141 = vmatprep.subr.bf16.mxu0 0
          %1142 = vmatpush1.bf16.msra.mxu0 0
          %1143 = vmatprep.subr.bf16.mxu0 0
          %1144 = vmatpush1.bf16.msra.mxu0 0
          %1145 = vmatprep.subr.bf16.mxu0 0
          %1146 = vmatpush1.bf16.msra.mxu0 0
          %1147 = vmatprep.subr.bf16.mxu0 0
          %1148 = vmatpush1.bf16.msra.mxu0 0
          %1149 = vmatprep.subr.bf16.mxu0 0
          %1150 = vmatpush1.bf16.msra.mxu0 0
          %1151 = vmatprep.mubr.bf16.mxu0 0
          %1152 = vmatmul.mubr.bf16.gmra.mrb[0].mxu0 %v1103
          %v1153 = vpop.f32.mrb[0].mxu0
          %v1154 = vadd.f32 0.0, %v1153
          %v1155 = vpop.f32.mrb[0].mxu0
          %v1156 = vpop.f32.mrb[0].mxu0
          %v1157 = vadd.f32 0.0, %v1156
          %v1158 = vpop.f32.mrb[0].mxu0
          %1159 = vmatprep.mubr.bf16.mxu0 0
          %1160 = vmatmul.mubr.bf16.gmra.mrb[0].mxu0 %v1104
          %v1161 = vpop.f32.mrb[0].mxu0
          %v1162 = vadd.f32 0.0, %v1161
          %v1163 = vpop.f32.mrb[0].mxu0
          %v1164 = vpop.f32.mrb[0].mxu0
          %v1165 = vadd.f32 0.0, %v1164
          %v1166 = vpop.f32.mrb[0].mxu0
          %1167 = vmatprep.mubr.bf16.mxu0 0
          %1168 = vmatmul.mubr.bf16.gmra.mrb[0].mxu0 %v1105
          %v1169 = vpop.f32.mrb[0].mxu0
          %v1170 = vadd.f32 0.0, %v1169
          %v1171 = vpop.f32.mrb[0].mxu0
          %v1172 = vpop.f32.mrb[0].mxu0
          %v1173 = vadd.f32 0.0, %v1172
          %v1174 = vpop.f32.mrb[0].mxu0
          %1175 = vmatprep.mubr.bf16.mxu0 0
          %1176 = vmatmul.mubr.bf16.gmra.mrb[0].mxu0 %v1106
          %v1177 = vpop.f32.mrb[0].mxu0
          %v1178 = vadd.f32 0.0, %v1177
          %v1179 = vpop.f32.mrb[0].mxu0
          %v1180 = vpop.f32.mrb[0].mxu0
          %v1181 = vadd.f32 0.0, %v1180
          %v1182 = vpop.f32.mrb[0].mxu0
          %1183 = vmatprep.mubr.bf16.mxu0 0
          %1184 = vmatmul.mubr.bf16.gmra.mrb[0].mxu0 %v1107
          %v1185 = vpop.f32.mrb[0].mxu0
          %v1186 = vadd.f32 0.0, %v1185
          %v1187 = vpop.f32.mrb[0].mxu0
          %v1188 = vpop.f32.mrb[0].mxu0
          %v1189 = vadd.f32 0.0, %v1188
          %v1190 = vpop.f32.mrb[0].mxu0
          %1191 = vmatprep.mubr.bf16.mxu0 0
          %1192 = vmatmul.mubr.bf16.gmra.mrb[0].mxu0 %v1108
          %v1193 = vpop.f32.mrb[0].mxu0
          %v1194 = vadd.f32 0.0, %v1193
          %v1195 = vpop.f32.mrb[0].mxu0
          %v1196 = vpop.f32.mrb[0].mxu0
          %v1197 = vadd.f32 0.0, %v1196
          %v1198 = vpop.f32.mrb[0].mxu0
          %1199 = vmatprep.mubr.bf16.mxu0 0
          %1200 = vmatmul.mubr.bf16.gmra.mrb[0].mxu0 %v1109
          %v1201 = vpop.f32.mrb[0].mxu0
          %v1202 = vadd.f32 0.0, %v1201
          %v1203 = vpop.f32.mrb[0].mxu0
          %v1204 = vpop.f32.mrb[0].mxu0
          %v1205 = vadd.f32 0.0, %v1204
          %v1206 = vpop.f32.mrb[0].mxu0
          %1207 = vmatprep.mubr.bf16.mxu0 0
          %1208 = vmatmul.mubr.bf16.gmra.mrb[0].mxu0 %v1110
          %v1209 = vpop.f32.mrb[0].mxu0
          %v1210 = vadd.f32 0.0, %v1209
          %v1211 = vpop.f32.mrb[0].mxu0
          %v1212 = vpop.f32.mrb[0].mxu0
          %v1213 = vadd.f32 0.0, %v1212
          %v1214 = vpop.f32.mrb[0].mxu0
          %1215 = vdwg.mxu0
          %v1216 = vld [vmem:[#allocation15] sm:$0xf]
          %v1217 = vld [vmem:[#allocation15 + $0x4] sm:$0xf]
          %v1218 = vld [vmem:[#allocation15 + $0x8] sm:$0xf]
          %v1219 = vld [vmem:[#allocation15 + $0xc] sm:$0xf]
          %v1220 = vpack.c.bf16 %v1157, %v1154
          %v1221 = vpack.c.bf16 %v1165, %v1162
          %v1222 = vpack.c.bf16 %v1173, %v1170
          %v1223 = vpack.c.bf16 %v1181, %v1178
          %v1224 = vpack.c.bf16 %v1189, %v1186
          %v1225 = vpack.c.bf16 %v1197, %v1194
          %v1226 = vpack.c.bf16 %v1205, %v1202
          %v1227 = vpack.c.bf16 %v1213, %v1210
          %s1228 = scalar_lea.vmem [#allocation3], 64
          %v1229 = vld [vmem:[%s1228] sm:$0xf]
          %v1230 = vld [vmem:[%s1228 + $0x4] sm:$0xf]
          %v1231 = vld [vmem:[%s1228 + $0x8] sm:$0xf]
          %v1232 = vld [vmem:[%s1228 + $0xc] sm:$0xf]
          %v1233 = vld [vmem:[%s1228 + $0x10] sm:$0xf]
          %v1234 = vld [vmem:[%s1228 + $0x14] sm:$0xf]
          %v1235 = vld [vmem:[%s1228 + $0x18] sm:$0xf]
          %v1236 = vld [vmem:[%s1228 + $0x1c] sm:$0xf]
          %v1237 = vld [vmem:[%s1228 + $0x20] sm:$0xf]
          %v1238 = vld [vmem:[%s1228 + $0x24] sm:$0xf]
          %v1239 = vld [vmem:[%s1228 + $0x28] sm:$0xf]
          %v1240 = vld [vmem:[%s1228 + $0x2c] sm:$0xf]
          %v1241 = vld [vmem:[%s1228 + $0x30] sm:$0xf]
          %v1242 = vld [vmem:[%s1228 + $0x34] sm:$0xf]
          %v1243 = vld [vmem:[%s1228 + $0x38] sm:$0xf]
          %v1244 = vld [vmem:[%s1228 + $0x3c] sm:$0xf]
          %v1261 = vunpack.c.l.b16 %v1229
          %v1262 = vunpack.c.l.b16 %v1230
          %v1263 = vunpack.c.l.b16 %v1231
          %v1264 = vunpack.c.l.b16 %v1232
          %v1265 = vunpack.c.l.b16 %v1233
          %v1266 = vunpack.c.l.b16 %v1234
          %v1267 = vunpack.c.l.b16 %v1235
          %v1268 = vunpack.c.l.b16 %v1236
          %v1269 = vunpack.c.l.b16 %v1237
          %v1270 = vunpack.c.l.b16 %v1238
          %v1271 = vunpack.c.l.b16 %v1239
          %v1272 = vunpack.c.l.b16 %v1240
          %v1273 = vunpack.c.l.b16 %v1241
          %v1274 = vunpack.c.l.b16 %v1242
          %v1275 = vunpack.c.l.b16 %v1243
          %v1276 = vunpack.c.l.b16 %v1244
          %v1277 = vpack.c.b16 %v1262, %v1261
          %v1278 = vpack.c.b16 %v1264, %v1263
          %v1279 = vpack.c.b16 %v1266, %v1265
          %v1280 = vpack.c.b16 %v1268, %v1267
          %v1281 = vpack.c.b16 %v1270, %v1269
          %v1282 = vpack.c.b16 %v1272, %v1271
          %v1283 = vpack.c.b16 %v1274, %v1273
          %v1284 = vpack.c.b16 %v1276, %v1275
          %1293 = vmatprep.subr.bf16.mxu0 0
          %1294 = vmatpush1.bf16.msra.mxu0 %v1063
          %1295 = vmatprep.subr.bf16.mxu0 0
          %1296 = vmatpush1.bf16.msra.mxu0 %v1064
          %1297 = vmatprep.subr.bf16.mxu0 0
          %1298 = vmatpush1.bf16.msra.mxu0 %v1065
          %1299 = vmatprep.subr.bf16.mxu0 0
          %1300 = vmatpush1.bf16.msra.mxu0 %v1066
          %1301 = vmatprep.subr.bf16.mxu0 0
          %1302 = vmatpush1.bf16.msra.mxu0 %v1067
          %1303 = vmatprep.subr.bf16.mxu0 0
          %1304 = vmatpush1.bf16.msra.mxu0 %v1068
          %1305 = vmatprep.subr.bf16.mxu0 0
          %1306 = vmatpush1.bf16.msra.mxu0 %v1069
          %1307 = vmatprep.subr.bf16.mxu0 0
          %1308 = vmatpush1.bf16.msra.mxu0 %v1070
          %1309 = vmatprep.subr.bf16.mxu0 0
          %1310 = vmatpush1.bf16.msra.mxu0 0
          %1311 = vmatprep.subr.bf16.mxu0 0
          %1312 = vmatpush1.bf16.msra.mxu0 0
          %1313 = vmatprep.subr.bf16.mxu0 0
          %1314 = vmatpush1.bf16.msra.mxu0 0
          %1315 = vmatprep.subr.bf16.mxu0 0
          %1316 = vmatpush1.bf16.msra.mxu0 0
          %1317 = vmatprep.subr.bf16.mxu0 0
          %1318 = vmatpush1.bf16.msra.mxu0 0
          %1319 = vmatprep.subr.bf16.mxu0 0
          %1320 = vmatpush1.bf16.msra.mxu0 0
          %1321 = vmatprep.subr.bf16.mxu0 0
          %1322 = vmatpush1.bf16.msra.mxu0 0
          %1323 = vmatprep.subr.bf16.mxu0 0
          %1324 = vmatpush1.bf16.msra.mxu0 0
          %1325 = vmatprep.mubr.bf16.mxu0 0
          %1326 = vmatmul.mubr.bf16.gmra.mrb[0].mxu0 %v1277
          %v1327 = vpop.f32.mrb[0].mxu0
          %v1328 = vadd.f32 0.0, %v1327
          %v1329 = vpop.f32.mrb[0].mxu0
          %v1330 = vpop.f32.mrb[0].mxu0
          %v1331 = vadd.f32 0.0, %v1330
          %v1332 = vpop.f32.mrb[0].mxu0
          %1333 = vmatprep.mubr.bf16.mxu0 0
          %1334 = vmatmul.mubr.bf16.gmra.mrb[0].mxu0 %v1278
          %v1335 = vpop.f32.mrb[0].mxu0
          %v1336 = vadd.f32 0.0, %v1335
          %v1337 = vpop.f32.mrb[0].mxu0
          %v1338 = vpop.f32.mrb[0].mxu0
          %v1339 = vadd.f32 0.0, %v1338
          %v1340 = vpop.f32.mrb[0].mxu0
          %1341 = vmatprep.mubr.bf16.mxu0 0
          %1342 = vmatmul.mubr.bf16.gmra.mrb[0].mxu0 %v1279
          %v1343 = vpop.f32.mrb[0].mxu0
          %v1344 = vadd.f32 0.0, %v1343
          %v1345 = vpop.f32.mrb[0].mxu0
          %v1346 = vpop.f32.mrb[0].mxu0
          %v1347 = vadd.f32 0.0, %v1346
          %v1348 = vpop.f32.mrb[0].mxu0
          %1349 = vmatprep.mubr.bf16.mxu0 0
          %1350 = vmatmul.mubr.bf16.gmra.mrb[0].mxu0 %v1280
          %v1351 = vpop.f32.mrb[0].mxu0
          %v1352 = vadd.f32 0.0, %v1351
          %v1353 = vpop.f32.mrb[0].mxu0
          %v1354 = vpop.f32.mrb[0].mxu0
          %v1355 = vadd.f32 0.0, %v1354
          %v1356 = vpop.f32.mrb[0].mxu0
          %1357 = vmatprep.mubr.bf16.mxu0 0
          %1358 = vmatmul.mubr.bf16.gmra.mrb[0].mxu0 %v1281
          %v1359 = vpop.f32.mrb[0].mxu0
          %v1360 = vadd.f32 0.0, %v1359
          %v1361 = vpop.f32.mrb[0].mxu0
          %v1362 = vpop.f32.mrb[0].mxu0
          %v1363 = vadd.f32 0.0, %v1362
          %v1364 = vpop.f32.mrb[0].mxu0
          %1365 = vmatprep.mubr.bf16.mxu0 0
          %1366 = vmatmul.mubr.bf16.gmra.mrb[0].mxu0 %v1282
          %v1367 = vpop.f32.mrb[0].mxu0
          %v1368 = vadd.f32 0.0, %v1367
          %v1369 = vpop.f32.mrb[0].mxu0
          %v1370 = vpop.f32.mrb[0].mxu0
          %v1371 = vadd.f32 0.0, %v1370
          %v1372 = vpop.f32.mrb[0].mxu0
          %1373 = vmatprep.mubr.bf16.mxu0 0
          %1374 = vmatmul.mubr.bf16.gmra.mrb[0].mxu0 %v1283
          %v1375 = vpop.f32.mrb[0].mxu0
          %v1376 = vadd.f32 0.0, %v1375
          %v1377 = vpop.f32.mrb[0].mxu0
          %v1378 = vpop.f32.mrb[0].mxu0
          %v1379 = vadd.f32 0.0, %v1378
          %v1380 = vpop.f32.mrb[0].mxu0
          %1381 = vmatprep.mubr.bf16.mxu0 0
          %1382 = vmatmul.mubr.bf16.gmra.mrb[0].mxu0 %v1284
          %v1383 = vpop.f32.mrb[0].mxu0
          %v1384 = vadd.f32 0.0, %v1383
          %v1385 = vpop.f32.mrb[0].mxu0
          %v1386 = vpop.f32.mrb[0].mxu0
          %v1387 = vadd.f32 0.0, %v1386
          %v1388 = vpop.f32.mrb[0].mxu0
          %1389 = vdwg.mxu0
          %s1390 = scalar_lea.vmem [#allocation15], 16
          %v1391 = vld [vmem:[%s1390] sm:$0xf]
          %v1392 = vld [vmem:[%s1390 + $0x4] sm:$0xf]
          %v1393 = vld [vmem:[%s1390 + $0x8] sm:$0xf]
          %v1394 = vld [vmem:[%s1390 + $0xc] sm:$0xf]
          %v1395 = vpack.c.bf16 %v1331, %v1328
          %v1396 = vpack.c.bf16 %v1339, %v1336
          %v1397 = vpack.c.bf16 %v1347, %v1344
          %v1398 = vpack.c.bf16 %v1355, %v1352
          %v1399 = vpack.c.bf16 %v1363, %v1360
          %v1400 = vpack.c.bf16 %v1371, %v1368
          %v1401 = vpack.c.bf16 %v1379, %v1376
          %v1402 = vpack.c.bf16 %v1387, %v1384
          %v1407 = vunpack.c.l.b16 %v1391
          %v1408 = vunpack.c.l.b16 %v1392
          %v1409 = vunpack.c.l.b16 %v1393
          %v1410 = vunpack.c.l.b16 %v1394
          %v1411 = vpack.c.b16 %v1408, %v1407
          %v1412 = vpack.c.b16 %v1410, %v1409
          %vm1415 = vcmask 261120
          %v1417 = vsel %vm1415, %v1395, 0
          %v1420 = vsel %vm1415, %v1396, 0
          %v1423 = vsel %vm1415, %v1397, 0
          %v1426 = vsel %vm1415, %v1398, 0
          %v1429 = vsel %vm1415, %v1399, 0
          %v1432 = vsel %vm1415, %v1400, 0
          %v1435 = vsel %vm1415, %v1401, 0
          %v1438 = vsel %vm1415, %v1402, 0
          %1440 = vmatprep.subr.bf16.mxu0 0
          %1441 = vmatpush1.bf16.msra.mxu0 %v1411
          %1442 = vmatprep.subr.bf16.mxu0 0
          %1443 = vmatpush1.bf16.msra.mxu0 %v1412
          %1444 = vmatprep.subr.bf16.mxu0 0
          %1445 = vmatpush1.bf16.msra.mxu0 0
          %1446 = vmatprep.subr.bf16.mxu0 0
          %1447 = vmatpush1.bf16.msra.mxu0 0
          %1448 = vmatprep.subr.bf16.mxu0 0
          %1449 = vmatpush1.bf16.msra.mxu0 0
          %1450 = vmatprep.subr.bf16.mxu0 0
          %1451 = vmatpush1.bf16.msra.mxu0 0
          %1452 = vmatprep.subr.bf16.mxu0 0
          %1453 = vmatpush1.bf16.msra.mxu0 0
          %1454 = vmatprep.subr.bf16.mxu0 0
          %1455 = vmatpush1.bf16.msra.mxu0 0
          %1456 = vmatprep.subr.bf16.mxu0 0
          %1457 = vmatpush1.bf16.msra.mxu0 0
          %1458 = vmatprep.subr.bf16.mxu0 0
          %1459 = vmatpush1.bf16.msra.mxu0 0
          %1460 = vmatprep.subr.bf16.mxu0 0
          %1461 = vmatpush1.bf16.msra.mxu0 0
          %1462 = vmatprep.subr.bf16.mxu0 0
          %1463 = vmatpush1.bf16.msra.mxu0 0
          %1464 = vmatprep.subr.bf16.mxu0 0
          %1465 = vmatpush1.bf16.msra.mxu0 0
          %1466 = vmatprep.subr.bf16.mxu0 0
          %1467 = vmatpush1.bf16.msra.mxu0 0
          %1468 = vmatprep.subr.bf16.mxu0 0
          %1469 = vmatpush1.bf16.msra.mxu0 0
          %1470 = vmatprep.subr.bf16.mxu0 0
          %1471 = vmatpush1.bf16.msra.mxu0 0
          %1472 = vmatprep.mubr.bf16.mxu0 0
          %1473 = vmatmul.mubr.bf16.gmra.mrb[0].mxu0 %v1417
          %v1474 = vpop.f32.mrb[0].mxu0
          %v1475 = vadd.f32 0.0, %v1474
          %v1476 = vpop.f32.mrb[0].mxu0
          %v1477 = vpop.f32.mrb[0].mxu0
          %v1478 = vadd.f32 0.0, %v1477
          %v1479 = vpop.f32.mrb[0].mxu0
          %1480 = vmatprep.mubr.bf16.mxu0 0
          %1481 = vmatmul.mubr.bf16.gmra.mrb[0].mxu0 %v1420
          %v1482 = vpop.f32.mrb[0].mxu0
          %v1483 = vadd.f32 0.0, %v1482
          %v1484 = vpop.f32.mrb[0].mxu0
          %v1485 = vpop.f32.mrb[0].mxu0
          %v1486 = vadd.f32 0.0, %v1485
          %v1487 = vpop.f32.mrb[0].mxu0
          %1488 = vmatprep.mubr.bf16.mxu0 0
          %1489 = vmatmul.mubr.bf16.gmra.mrb[0].mxu0 %v1423
          %v1490 = vpop.f32.mrb[0].mxu0
          %v1491 = vadd.f32 0.0, %v1490
          %v1492 = vpop.f32.mrb[0].mxu0
          %v1493 = vpop.f32.mrb[0].mxu0
          %v1494 = vadd.f32 0.0, %v1493
          %v1495 = vpop.f32.mrb[0].mxu0
          %1496 = vmatprep.mubr.bf16.mxu0 0
          %1497 = vmatmul.mubr.bf16.gmra.mrb[0].mxu0 %v1426
          %v1498 = vpop.f32.mrb[0].mxu0
          %v1499 = vadd.f32 0.0, %v1498
          %v1500 = vpop.f32.mrb[0].mxu0
          %v1501 = vpop.f32.mrb[0].mxu0
          %v1502 = vadd.f32 0.0, %v1501
          %v1503 = vpop.f32.mrb[0].mxu0
          %1504 = vmatprep.mubr.bf16.mxu0 0
          %1505 = vmatmul.mubr.bf16.gmra.mrb[0].mxu0 %v1429
          %v1506 = vpop.f32.mrb[0].mxu0
          %v1507 = vadd.f32 0.0, %v1506
          %v1508 = vpop.f32.mrb[0].mxu0
          %v1509 = vpop.f32.mrb[0].mxu0
          %v1510 = vadd.f32 0.0, %v1509
          %v1511 = vpop.f32.mrb[0].mxu0
          %1512 = vmatprep.mubr.bf16.mxu0 0
          %1513 = vmatmul.mubr.bf16.gmra.mrb[0].mxu0 %v1432
          %v1514 = vpop.f32.mrb[0].mxu0
          %v1515 = vadd.f32 0.0, %v1514
          %v1516 = vpop.f32.mrb[0].mxu0
          %v1517 = vpop.f32.mrb[0].mxu0
          %v1518 = vadd.f32 0.0, %v1517
          %v1519 = vpop.f32.mrb[0].mxu0
          %1520 = vmatprep.mubr.bf16.mxu0 0
          %1521 = vmatmul.mubr.bf16.gmra.mrb[0].mxu0 %v1435
          %v1522 = vpop.f32.mrb[0].mxu0
          %v1523 = vadd.f32 0.0, %v1522
          %v1524 = vpop.f32.mrb[0].mxu0
          %v1525 = vpop.f32.mrb[0].mxu0
          %v1526 = vadd.f32 0.0, %v1525
          %v1527 = vpop.f32.mrb[0].mxu0
          %1528 = vmatprep.mubr.bf16.mxu0 0
          %1529 = vmatmul.mubr.bf16.gmra.mrb[0].mxu0 %v1438
          %v1530 = vpop.f32.mrb[0].mxu0
          %v1531 = vadd.f32 0.0, %v1530
          %v1532 = vpop.f32.mrb[0].mxu0
          %v1533 = vpop.f32.mrb[0].mxu0
          %v1534 = vadd.f32 0.0, %v1533
          %v1535 = vpop.f32.mrb[0].mxu0
          %1536 = vdwg.mxu0
          %v1541 = vunpack.c.l.b16 %v1216
          %v1542 = vunpack.c.l.b16 %v1217
          %v1543 = vunpack.c.l.b16 %v1218
          %v1544 = vunpack.c.l.b16 %v1219
          %v1545 = vpack.c.b16 %v1542, %v1541
          %v1546 = vpack.c.b16 %v1544, %v1543
          %v1550 = vsel %vm1415, %v1220, 0
          %v1553 = vsel %vm1415, %v1221, 0
          %v1556 = vsel %vm1415, %v1222, 0
          %v1559 = vsel %vm1415, %v1223, 0
          %v1562 = vsel %vm1415, %v1224, 0
          %v1565 = vsel %vm1415, %v1225, 0
          %v1568 = vsel %vm1415, %v1226, 0
          %v1571 = vsel %vm1415, %v1227, 0
          %1573 = vmatprep.subr.bf16.mxu0 0
          %1574 = vmatpush1.bf16.msra.mxu0 %v1545
          %1575 = vmatprep.subr.bf16.mxu0 0
          %1576 = vmatpush1.bf16.msra.mxu0 %v1546
          %1577 = vmatprep.subr.bf16.mxu0 0
          %1578 = vmatpush1.bf16.msra.mxu0 0
          %1579 = vmatprep.subr.bf16.mxu0 0
          %1580 = vmatpush1.bf16.msra.mxu0 0
          %1581 = vmatprep.subr.bf16.mxu0 0
          %1582 = vmatpush1.bf16.msra.mxu0 0
          %1583 = vmatprep.subr.bf16.mxu0 0
          %1584 = vmatpush1.bf16.msra.mxu0 0
          %1585 = vmatprep.subr.bf16.mxu0 0
          %1586 = vmatpush1.bf16.msra.mxu0 0
          %1587 = vmatprep.subr.bf16.mxu0 0
          %1588 = vmatpush1.bf16.msra.mxu0 0
          %1589 = vmatprep.subr.bf16.mxu0 0
          %1590 = vmatpush1.bf16.msra.mxu0 0
          %1591 = vmatprep.subr.bf16.mxu0 0
          %1592 = vmatpush1.bf16.msra.mxu0 0
          %1593 = vmatprep.subr.bf16.mxu0 0
          %1594 = vmatpush1.bf16.msra.mxu0 0
          %1595 = vmatprep.subr.bf16.mxu0 0
          %1596 = vmatpush1.bf16.msra.mxu0 0
          %1597 = vmatprep.subr.bf16.mxu0 0
          %1598 = vmatpush1.bf16.msra.mxu0 0
          %1599 = vmatprep.subr.bf16.mxu0 0
          %1600 = vmatpush1.bf16.msra.mxu0 0
          %1601 = vmatprep.subr.bf16.mxu0 0
          %1602 = vmatpush1.bf16.msra.mxu0 0
          %1603 = vmatprep.subr.bf16.mxu0 0
          %1604 = vmatpush1.bf16.msra.mxu0 0
          %1605 = vmatprep.mubr.bf16.mxu0 0
          %1606 = vmatmul.mubr.bf16.gmra.mrb[0].mxu0 %v1550
          %v1607 = vpop.f32.mrb[0].mxu0
          %v1608 = vadd.f32 %v1475, %v1607
          %v1609 = vpop.f32.mrb[0].mxu0
          %v1610 = vpop.f32.mrb[0].mxu0
          %v1611 = vadd.f32 %v1478, %v1610
          %v1612 = vpop.f32.mrb[0].mxu0
          %1613 = vmatprep.mubr.bf16.mxu0 0
          %1614 = vmatmul.mubr.bf16.gmra.mrb[0].mxu0 %v1553
          %v1615 = vpop.f32.mrb[0].mxu0
          %v1616 = vadd.f32 %v1483, %v1615
          %v1617 = vpop.f32.mrb[0].mxu0
          %v1618 = vpop.f32.mrb[0].mxu0
          %v1619 = vadd.f32 %v1486, %v1618
          %v1620 = vpop.f32.mrb[0].mxu0
          %1621 = vmatprep.mubr.bf16.mxu0 0
          %1622 = vmatmul.mubr.bf16.gmra.mrb[0].mxu0 %v1556
          %v1623 = vpop.f32.mrb[0].mxu0
          %v1624 = vadd.f32 %v1491, %v1623
          %v1625 = vpop.f32.mrb[0].mxu0
          %v1626 = vpop.f32.mrb[0].mxu0
          %v1627 = vadd.f32 %v1494, %v1626
          %v1628 = vpop.f32.mrb[0].mxu0
          %1629 = vmatprep.mubr.bf16.mxu0 0
          %1630 = vmatmul.mubr.bf16.gmra.mrb[0].mxu0 %v1559
          %v1631 = vpop.f32.mrb[0].mxu0
          %v1632 = vadd.f32 %v1499, %v1631
          %v1633 = vpop.f32.mrb[0].mxu0
          %v1634 = vpop.f32.mrb[0].mxu0
          %v1635 = vadd.f32 %v1502, %v1634
          %v1636 = vpop.f32.mrb[0].mxu0
          %1637 = vmatprep.mubr.bf16.mxu0 0
          %1638 = vmatmul.mubr.bf16.gmra.mrb[0].mxu0 %v1562
          %v1639 = vpop.f32.mrb[0].mxu0
          %v1640 = vadd.f32 %v1507, %v1639
          %v1641 = vpop.f32.mrb[0].mxu0
          %v1642 = vpop.f32.mrb[0].mxu0
          %v1643 = vadd.f32 %v1510, %v1642
          %v1644 = vpop.f32.mrb[0].mxu0
          %1645 = vmatprep.mubr.bf16.mxu0 0
          %1646 = vmatmul.mubr.bf16.gmra.mrb[0].mxu0 %v1565
          %v1647 = vpop.f32.mrb[0].mxu0
          %v1648 = vadd.f32 %v1515, %v1647
          %v1649 = vpop.f32.mrb[0].mxu0
          %v1650 = vpop.f32.mrb[0].mxu0
          %v1651 = vadd.f32 %v1518, %v1650
          %v1652 = vpop.f32.mrb[0].mxu0
          %1653 = vmatprep.mubr.bf16.mxu0 0
          %1654 = vmatmul.mubr.bf16.gmra.mrb[0].mxu0 %v1568
          %v1655 = vpop.f32.mrb[0].mxu0
          %v1656 = vadd.f32 %v1523, %v1655
          %v1657 = vpop.f32.mrb[0].mxu0
          %v1658 = vpop.f32.mrb[0].mxu0
          %v1659 = vadd.f32 %v1526, %v1658
          %v1660 = vpop.f32.mrb[0].mxu0
          %1661 = vmatprep.mubr.bf16.mxu0 0
          %1662 = vmatmul.mubr.bf16.gmra.mrb[0].mxu0 %v1571
          %v1663 = vpop.f32.mrb[0].mxu0
          %v1664 = vadd.f32 %v1531, %v1663
          %v1665 = vpop.f32.mrb[0].mxu0
          %v1666 = vpop.f32.mrb[0].mxu0
          %v1667 = vadd.f32 %v1534, %v1666
          %v1668 = vpop.f32.mrb[0].mxu0
          %1669 = vdwg.mxu0
          %s1670 = scalar_lea.vmem [#allocation3], 128
          %v1671 = vld [vmem:[%s1670] sm:$0xf]
          %v1672 = vld [vmem:[%s1670 + $0x4] sm:$0xf]
          %v1673 = vld [vmem:[%s1670 + $0x8] sm:$0xf]
          %v1674 = vld [vmem:[%s1670 + $0xc] sm:$0xf]
          %v1675 = vld [vmem:[%s1670 + $0x10] sm:$0xf]
          %v1676 = vld [vmem:[%s1670 + $0x14] sm:$0xf]
          %v1677 = vld [vmem:[%s1670 + $0x18] sm:$0xf]
          %v1678 = vld [vmem:[%s1670 + $0x1c] sm:$0xf]
          %v1679 = vld [vmem:[%s1670 + $0x20] sm:$0xf]
          %v1680 = vld [vmem:[%s1670 + $0x24] sm:$0xf]
          %v1681 = vld [vmem:[%s1670 + $0x28] sm:$0xf]
          %v1682 = vld [vmem:[%s1670 + $0x2c] sm:$0xf]
          %v1683 = vld [vmem:[%s1670 + $0x30] sm:$0xf]
          %v1684 = vld [vmem:[%s1670 + $0x34] sm:$0xf]
          %v1685 = vld [vmem:[%s1670 + $0x38] sm:$0xf]
          %v1686 = vld [vmem:[%s1670 + $0x3c] sm:$0xf]
          %v1703 = vunpack.c.l.b16 %v1671
          %v1704 = vunpack.c.l.b16 %v1672
          %v1705 = vunpack.c.l.b16 %v1673
          %v1706 = vunpack.c.l.b16 %v1674
          %v1707 = vunpack.c.l.b16 %v1675
          %v1708 = vunpack.c.l.b16 %v1676
          %v1709 = vunpack.c.l.b16 %v1677
          %v1710 = vunpack.c.l.b16 %v1678
          %v1711 = vunpack.c.l.b16 %v1679
          %v1712 = vunpack.c.l.b16 %v1680
          %v1713 = vunpack.c.l.b16 %v1681
          %v1714 = vunpack.c.l.b16 %v1682
          %v1715 = vunpack.c.l.b16 %v1683
          %v1716 = vunpack.c.l.b16 %v1684
          %v1717 = vunpack.c.l.b16 %v1685
          %v1718 = vunpack.c.l.b16 %v1686
          %v1719 = vpack.c.b16 %v1704, %v1703
          %v1720 = vpack.c.b16 %v1706, %v1705
          %v1721 = vpack.c.b16 %v1708, %v1707
          %v1722 = vpack.c.b16 %v1710, %v1709
          %v1723 = vpack.c.b16 %v1712, %v1711
          %v1724 = vpack.c.b16 %v1714, %v1713
          %v1725 = vpack.c.b16 %v1716, %v1715
          %v1726 = vpack.c.b16 %v1718, %v1717
          %1735 = vmatprep.subr.bf16.mxu0 0
          %1736 = vmatpush1.bf16.msra.mxu0 %v1063
          %1737 = vmatprep.subr.bf16.mxu0 0
          %1738 = vmatpush1.bf16.msra.mxu0 %v1064
          %1739 = vmatprep.subr.bf16.mxu0 0
          %1740 = vmatpush1.bf16.msra.mxu0 %v1065
          %1741 = vmatprep.subr.bf16.mxu0 0
          %1742 = vmatpush1.bf16.msra.mxu0 %v1066
          %1743 = vmatprep.subr.bf16.mxu0 0
          %1744 = vmatpush1.bf16.msra.mxu0 %v1067
          %1745 = vmatprep.subr.bf16.mxu0 0
          %1746 = vmatpush1.bf16.msra.mxu0 %v1068
          %1747 = vmatprep.subr.bf16.mxu0 0
          %1748 = vmatpush1.bf16.msra.mxu0 %v1069
          %1749 = vmatprep.subr.bf16.mxu0 0
          %1750 = vmatpush1.bf16.msra.mxu0 %v1070
          %1751 = vmatprep.subr.bf16.mxu0 0
          %1752 = vmatpush1.bf16.msra.mxu0 0
          %1753 = vmatprep.subr.bf16.mxu0 0
          %1754 = vmatpush1.bf16.msra.mxu0 0
          %1755 = vmatprep.subr.bf16.mxu0 0
          %1756 = vmatpush1.bf16.msra.mxu0 0
          %1757 = vmatprep.subr.bf16.mxu0 0
          %1758 = vmatpush1.bf16.msra.mxu0 0
          %1759 = vmatprep.subr.bf16.mxu0 0
          %1760 = vmatpush1.bf16.msra.mxu0 0
          %1761 = vmatprep.subr.bf16.mxu0 0
          %1762 = vmatpush1.bf16.msra.mxu0 0
          %1763 = vmatprep.subr.bf16.mxu0 0
          %1764 = vmatpush1.bf16.msra.mxu0 0
          %1765 = vmatprep.subr.bf16.mxu0 0
          %1766 = vmatpush1.bf16.msra.mxu0 0
          %1767 = vmatprep.mubr.bf16.mxu0 0
          %1768 = vmatmul.mubr.bf16.gmra.mrb[0].mxu0 %v1719
          %v1769 = vpop.f32.mrb[0].mxu0
          %v1770 = vadd.f32 0.0, %v1769
          %v1771 = vpop.f32.mrb[0].mxu0
          %v1772 = vpop.f32.mrb[0].mxu0
          %v1773 = vadd.f32 0.0, %v1772
          %v1774 = vpop.f32.mrb[0].mxu0
          %1775 = vmatprep.mubr.bf16.mxu0 0
          %1776 = vmatmul.mubr.bf16.gmra.mrb[0].mxu0 %v1720
          %v1777 = vpop.f32.mrb[0].mxu0
          %v1778 = vadd.f32 0.0, %v1777
          %v1779 = vpop.f32.mrb[0].mxu0
          %v1780 = vpop.f32.mrb[0].mxu0
          %v1781 = vadd.f32 0.0, %v1780
          %v1782 = vpop.f32.mrb[0].mxu0
          %1783 = vmatprep.mubr.bf16.mxu0 0
          %1784 = vmatmul.mubr.bf16.gmra.mrb[0].mxu0 %v1721
          %v1785 = vpop.f32.mrb[0].mxu0
          %v1786 = vadd.f32 0.0, %v1785
          %v1787 = vpop.f32.mrb[0].mxu0
          %v1788 = vpop.f32.mrb[0].mxu0
          %v1789 = vadd.f32 0.0, %v1788
          %v1790 = vpop.f32.mrb[0].mxu0
          %1791 = vmatprep.mubr.bf16.mxu0 0
          %1792 = vmatmul.mubr.bf16.gmra.mrb[0].mxu0 %v1722
          %v1793 = vpop.f32.mrb[0].mxu0
          %v1794 = vadd.f32 0.0, %v1793
          %v1795 = vpop.f32.mrb[0].mxu0
          %v1796 = vpop.f32.mrb[0].mxu0
          %v1797 = vadd.f32 0.0, %v1796
          %v1798 = vpop.f32.mrb[0].mxu0
          %1799 = vmatprep.mubr.bf16.mxu0 0
          %1800 = vmatmul.mubr.bf16.gmra.mrb[0].mxu0 %v1723
          %v1801 = vpop.f32.mrb[0].mxu0
          %v1802 = vadd.f32 0.0, %v1801
          %v1803 = vpop.f32.mrb[0].mxu0
          %v1804 = vpop.f32.mrb[0].mxu0
          %v1805 = vadd.f32 0.0, %v1804
          %v1806 = vpop.f32.mrb[0].mxu0
          %1807 = vmatprep.mubr.bf16.mxu0 0
          %1808 = vmatmul.mubr.bf16.gmra.mrb[0].mxu0 %v1724
          %v1809 = vpop.f32.mrb[0].mxu0
          %v1810 = vadd.f32 0.0, %v1809
          %v1811 = vpop.f32.mrb[0].mxu0
          %v1812 = vpop.f32.mrb[0].mxu0
          %v1813 = vadd.f32 0.0, %v1812
          %v1814 = vpop.f32.mrb[0].mxu0
          %1815 = vmatprep.mubr.bf16.mxu0 0
          %1816 = vmatmul.mubr.bf16.gmra.mrb[0].mxu0 %v1725
          %v1817 = vpop.f32.mrb[0].mxu0
          %v1818 = vadd.f32 0.0, %v1817
          %v1819 = vpop.f32.mrb[0].mxu0
          %v1820 = vpop.f32.mrb[0].mxu0
          %v1821 = vadd.f32 0.0, %v1820
          %v1822 = vpop.f32.mrb[0].mxu0
          %1823 = vmatprep.mubr.bf16.mxu0 0
          %1824 = vmatmul.mubr.bf16.gmra.mrb[0].mxu0 %v1726
          %v1825 = vpop.f32.mrb[0].mxu0
          %v1826 = vadd.f32 0.0, %v1825
          %v1827 = vpop.f32.mrb[0].mxu0
          %v1828 = vpop.f32.mrb[0].mxu0
          %v1829 = vadd.f32 0.0, %v1828
          %v1830 = vpop.f32.mrb[0].mxu0
          %1831 = vdwg.mxu0
          %s1832 = scalar_lea.vmem [#allocation15], 32
          %v1833 = vld [vmem:[%s1832] sm:$0xf]
          %v1834 = vld [vmem:[%s1832 + $0x4] sm:$0xf]
          %v1835 = vld [vmem:[%s1832 + $0x8] sm:$0xf]
          %v1836 = vld [vmem:[%s1832 + $0xc] sm:$0xf]
          %v1837 = vpack.c.bf16 %v1773, %v1770
          %v1838 = vpack.c.bf16 %v1781, %v1778
          %v1839 = vpack.c.bf16 %v1789, %v1786
          %v1840 = vpack.c.bf16 %v1797, %v1794
          %v1841 = vpack.c.bf16 %v1805, %v1802
          %v1842 = vpack.c.bf16 %v1813, %v1810
          %v1843 = vpack.c.bf16 %v1821, %v1818
          %v1844 = vpack.c.bf16 %v1829, %v1826
          %v1849 = vunpack.c.l.b16 %v1833
          %v1850 = vunpack.c.l.b16 %v1834
          %v1851 = vunpack.c.l.b16 %v1835
          %v1852 = vunpack.c.l.b16 %v1836
          %v1853 = vpack.c.b16 %v1850, %v1849
          %v1854 = vpack.c.b16 %v1852, %v1851
          %v1858 = vsel %vm1415, %v1837, 0
          %v1861 = vsel %vm1415, %v1838, 0
          %v1864 = vsel %vm1415, %v1839, 0
          %v1867 = vsel %vm1415, %v1840, 0
          %v1870 = vsel %vm1415, %v1841, 0
          %v1873 = vsel %vm1415, %v1842, 0
          %v1876 = vsel %vm1415, %v1843, 0
          %v1879 = vsel %vm1415, %v1844, 0
          %1881 = vmatprep.subr.bf16.mxu0 0
          %1882 = vmatpush1.bf16.msra.mxu0 %v1853
          %1883 = vmatprep.subr.bf16.mxu0 0
          %1884 = vmatpush1.bf16.msra.mxu0 %v1854
          %1885 = vmatprep.subr.bf16.mxu0 0
          %1886 = vmatpush1.bf16.msra.mxu0 0
          %1887 = vmatprep.subr.bf16.mxu0 0
          %1888 = vmatpush1.bf16.msra.mxu0 0
          %1889 = vmatprep.subr.bf16.mxu0 0
          %1890 = vmatpush1.bf16.msra.mxu0 0
          %1891 = vmatprep.subr.bf16.mxu0 0
          %1892 = vmatpush1.bf16.msra.mxu0 0
          %1893 = vmatprep.subr.bf16.mxu0 0
          %1894 = vmatpush1.bf16.msra.mxu0 0
          %1895 = vmatprep.subr.bf16.mxu0 0
          %1896 = vmatpush1.bf16.msra.mxu0 0
          %1897 = vmatprep.subr.bf16.mxu0 0
          %1898 = vmatpush1.bf16.msra.mxu0 0
          %1899 = vmatprep.subr.bf16.mxu0 0
          %1900 = vmatpush1.bf16.msra.mxu0 0
          %1901 = vmatprep.subr.bf16.mxu0 0
          %1902 = vmatpush1.bf16.msra.mxu0 0
          %1903 = vmatprep.subr.bf16.mxu0 0
          %1904 = vmatpush1.bf16.msra.mxu0 0
          %1905 = vmatprep.subr.bf16.mxu0 0
          %1906 = vmatpush1.bf16.msra.mxu0 0
          %1907 = vmatprep.subr.bf16.mxu0 0
          %1908 = vmatpush1.bf16.msra.mxu0 0
          %1909 = vmatprep.subr.bf16.mxu0 0
          %1910 = vmatpush1.bf16.msra.mxu0 0
          %1911 = vmatprep.subr.bf16.mxu0 0
          %1912 = vmatpush1.bf16.msra.mxu0 0
          %1913 = vmatprep.mubr.bf16.mxu0 0
          %1914 = vmatmul.mubr.bf16.gmra.mrb[0].mxu0 %v1858
          %v1915 = vpop.f32.mrb[0].mxu0
          %v1916 = vadd.f32 0.0, %v1915
          %v1917 = vpop.f32.mrb[0].mxu0
          %v1918 = vpop.f32.mrb[0].mxu0
          %v1919 = vadd.f32 0.0, %v1918
          %v1920 = vpop.f32.mrb[0].mxu0
          %1921 = vmatprep.mubr.bf16.mxu0 0
          %1922 = vmatmul.mubr.bf16.gmra.mrb[0].mxu0 %v1861
          %v1923 = vpop.f32.mrb[0].mxu0
          %v1924 = vadd.f32 0.0, %v1923
          %v1925 = vpop.f32.mrb[0].mxu0
          %v1926 = vpop.f32.mrb[0].mxu0
          %v1927 = vadd.f32 0.0, %v1926
          %v1928 = vpop.f32.mrb[0].mxu0
          %1929 = vmatprep.mubr.bf16.mxu0 0
          %1930 = vmatmul.mubr.bf16.gmra.mrb[0].mxu0 %v1864
          %v1931 = vpop.f32.mrb[0].mxu0
          %v1932 = vadd.f32 0.0, %v1931
          %v1933 = vpop.f32.mrb[0].mxu0
          %v1934 = vpop.f32.mrb[0].mxu0
          %v1935 = vadd.f32 0.0, %v1934
          %v1936 = vpop.f32.mrb[0].mxu0
          %1937 = vmatprep.mubr.bf16.mxu0 0
          %1938 = vmatmul.mubr.bf16.gmra.mrb[0].mxu0 %v1867
          %v1939 = vpop.f32.mrb[0].mxu0
          %v1940 = vadd.f32 0.0, %v1939
          %v1941 = vpop.f32.mrb[0].mxu0
          %v1942 = vpop.f32.mrb[0].mxu0
          %v1943 = vadd.f32 0.0, %v1942
          %v1944 = vpop.f32.mrb[0].mxu0
          %1945 = vmatprep.mubr.bf16.mxu0 0
          %1946 = vmatmul.mubr.bf16.gmra.mrb[0].mxu0 %v1870
          %v1947 = vpop.f32.mrb[0].mxu0
          %v1948 = vadd.f32 0.0, %v1947
          %v1949 = vpop.f32.mrb[0].mxu0
          %v1950 = vpop.f32.mrb[0].mxu0
          %v1951 = vadd.f32 0.0, %v1950
          %v1952 = vpop.f32.mrb[0].mxu0
          %1953 = vmatprep.mubr.bf16.mxu0 0
          %1954 = vmatmul.mubr.bf16.gmra.mrb[0].mxu0 %v1873
          %v1955 = vpop.f32.mrb[0].mxu0
          %v1956 = vadd.f32 0.0, %v1955
          %v1957 = vpop.f32.mrb[0].mxu0
          %v1958 = vpop.f32.mrb[0].mxu0
          %v1959 = vadd.f32 0.0, %v1958
          %v1960 = vpop.f32.mrb[0].mxu0
          %1961 = vmatprep.mubr.bf16.mxu0 0
          %1962 = vmatmul.mubr.bf16.gmra.mrb[0].mxu0 %v1876
          %v1963 = vpop.f32.mrb[0].mxu0
          %v1964 = vadd.f32 0.0, %v1963
          %v1965 = vpop.f32.mrb[0].mxu0
          %v1966 = vpop.f32.mrb[0].mxu0
          %v1967 = vadd.f32 0.0, %v1966
          %v1968 = vpop.f32.mrb[0].mxu0
          %1969 = vmatprep.mubr.bf16.mxu0 0
          %1970 = vmatmul.mubr.bf16.gmra.mrb[0].mxu0 %v1879
          %v1971 = vpop.f32.mrb[0].mxu0
          %v1972 = vadd.f32 0.0, %v1971
          %v1973 = vpop.f32.mrb[0].mxu0
          %v1974 = vpop.f32.mrb[0].mxu0
          %v1975 = vadd.f32 0.0, %v1974
          %v1976 = vpop.f32.mrb[0].mxu0
          %1977 = vdwg.mxu0
          %v1978 = vadd.f32 %v1608, %v1916
          %v1979 = vadd.f32 %v1611, %v1919
          %v1980 = vadd.f32 %v1616, %v1924
          %v1981 = vadd.f32 %v1619, %v1927
          %v1982 = vadd.f32 %v1624, %v1932
          %v1983 = vadd.f32 %v1627, %v1935
          %v1984 = vadd.f32 %v1632, %v1940
          %v1985 = vadd.f32 %v1635, %v1943
          %v1986 = vadd.f32 %v1640, %v1948
          %v1987 = vadd.f32 %v1643, %v1951
          %v1988 = vadd.f32 %v1648, %v1956
          %v1989 = vadd.f32 %v1651, %v1959
          %v1990 = vadd.f32 %v1656, %v1964
          %v1991 = vadd.f32 %v1659, %v1967
          %v1992 = vadd.f32 %v1664, %v1972
          %v1993 = vadd.f32 %v1667, %v1975
          %s1994 = scalar_lea.vmem [#allocation3], 192
          %v1995 = vld [vmem:[%s1994] sm:$0xf]
          %v1996 = vld [vmem:[%s1994 + $0x4] sm:$0xf]
          %v1997 = vld [vmem:[%s1994 + $0x8] sm:$0xf]
          %v1998 = vld [vmem:[%s1994 + $0xc] sm:$0xf]
          %v1999 = vld [vmem:[%s1994 + $0x10] sm:$0xf]
          %v2000 = vld [vmem:[%s1994 + $0x14] sm:$0xf]
          %v2001 = vld [vmem:[%s1994 + $0x18] sm:$0xf]
          %v2002 = vld [vmem:[%s1994 + $0x1c] sm:$0xf]
          %v2003 = vld [vmem:[%s1994 + $0x20] sm:$0xf]
          %v2004 = vld [vmem:[%s1994 + $0x24] sm:$0xf]
          %v2005 = vld [vmem:[%s1994 + $0x28] sm:$0xf]
          %v2006 = vld [vmem:[%s1994 + $0x2c] sm:$0xf]
          %v2007 = vld [vmem:[%s1994 + $0x30] sm:$0xf]
          %v2008 = vld [vmem:[%s1994 + $0x34] sm:$0xf]
          %v2009 = vld [vmem:[%s1994 + $0x38] sm:$0xf]
          %v2010 = vld [vmem:[%s1994 + $0x3c] sm:$0xf]
          %v2027 = vunpack.c.l.b16 %v1995
          %v2028 = vunpack.c.l.b16 %v1996
          %v2029 = vunpack.c.l.b16 %v1997
          %v2030 = vunpack.c.l.b16 %v1998
          %v2031 = vunpack.c.l.b16 %v1999
          %v2032 = vunpack.c.l.b16 %v2000
          %v2033 = vunpack.c.l.b16 %v2001
          %v2034 = vunpack.c.l.b16 %v2002
          %v2035 = vunpack.c.l.b16 %v2003
          %v2036 = vunpack.c.l.b16 %v2004
          %v2037 = vunpack.c.l.b16 %v2005
          %v2038 = vunpack.c.l.b16 %v2006
          %v2039 = vunpack.c.l.b16 %v2007
          %v2040 = vunpack.c.l.b16 %v2008
          %v2041 = vunpack.c.l.b16 %v2009
          %v2042 = vunpack.c.l.b16 %v2010
          %v2043 = vpack.c.b16 %v2028, %v2027
          %v2044 = vpack.c.b16 %v2030, %v2029
          %v2045 = vpack.c.b16 %v2032, %v2031
          %v2046 = vpack.c.b16 %v2034, %v2033
          %v2047 = vpack.c.b16 %v2036, %v2035
          %v2048 = vpack.c.b16 %v2038, %v2037
          %v2049 = vpack.c.b16 %v2040, %v2039
          %v2050 = vpack.c.b16 %v2042, %v2041
          %2059 = vmatprep.subr.bf16.mxu0 0
          %2060 = vmatpush1.bf16.msra.mxu0 %v1063
          %2061 = vmatprep.subr.bf16.mxu0 0
          %2062 = vmatpush1.bf16.msra.mxu0 %v1064
          %2063 = vmatprep.subr.bf16.mxu0 0
          %2064 = vmatpush1.bf16.msra.mxu0 %v1065
          %2065 = vmatprep.subr.bf16.mxu0 0
          %2066 = vmatpush1.bf16.msra.mxu0 %v1066
          %2067 = vmatprep.subr.bf16.mxu0 0
          %2068 = vmatpush1.bf16.msra.mxu0 %v1067
          %2069 = vmatprep.subr.bf16.mxu0 0
          %2070 = vmatpush1.bf16.msra.mxu0 %v1068
          %2071 = vmatprep.subr.bf16.mxu0 0
          %2072 = vmatpush1.bf16.msra.mxu0 %v1069
          %2073 = vmatprep.subr.bf16.mxu0 0
          %2074 = vmatpush1.bf16.msra.mxu0 %v1070
          %2075 = vmatprep.subr.bf16.mxu0 0
          %2076 = vmatpush1.bf16.msra.mxu0 0
          %2077 = vmatprep.subr.bf16.mxu0 0
          %2078 = vmatpush1.bf16.msra.mxu0 0
          %2079 = vmatprep.subr.bf16.mxu0 0
          %2080 = vmatpush1.bf16.msra.mxu0 0
          %2081 = vmatprep.subr.bf16.mxu0 0
          %2082 = vmatpush1.bf16.msra.mxu0 0
          %2083 = vmatprep.subr.bf16.mxu0 0
          %2084 = vmatpush1.bf16.msra.mxu0 0
          %2085 = vmatprep.subr.bf16.mxu0 0
          %2086 = vmatpush1.bf16.msra.mxu0 0
          %2087 = vmatprep.subr.bf16.mxu0 0
          %2088 = vmatpush1.bf16.msra.mxu0 0
          %2089 = vmatprep.subr.bf16.mxu0 0
          %2090 = vmatpush1.bf16.msra.mxu0 0
          %2091 = vmatprep.mubr.bf16.mxu0 0
          %2092 = vmatmul.mubr.bf16.gmra.mrb[0].mxu0 %v2043
          %v2093 = vpop.f32.mrb[0].mxu0
          %v2094 = vadd.f32 0.0, %v2093
          %v2095 = vpop.f32.mrb[0].mxu0
          %v2096 = vpop.f32.mrb[0].mxu0
          %v2097 = vadd.f32 0.0, %v2096
          %v2098 = vpop.f32.mrb[0].mxu0
          %2099 = vmatprep.mubr.bf16.mxu0 0
          %2100 = vmatmul.mubr.bf16.gmra.mrb[0].mxu0 %v2044
          %v2101 = vpop.f32.mrb[0].mxu0
          %v2102 = vadd.f32 0.0, %v2101
          %v2103 = vpop.f32.mrb[0].mxu0
          %v2104 = vpop.f32.mrb[0].mxu0
          %v2105 = vadd.f32 0.0, %v2104
          %v2106 = vpop.f32.mrb[0].mxu0
          %2107 = vmatprep.mubr.bf16.mxu0 0
          %2108 = vmatmul.mubr.bf16.gmra.mrb[0].mxu0 %v2045
          %v2109 = vpop.f32.mrb[0].mxu0
          %v2110 = vadd.f32 0.0, %v2109
          %v2111 = vpop.f32.mrb[0].mxu0
          %v2112 = vpop.f32.mrb[0].mxu0
          %v2113 = vadd.f32 0.0, %v2112
          %v2114 = vpop.f32.mrb[0].mxu0
          %2115 = vmatprep.mubr.bf16.mxu0 0
          %2116 = vmatmul.mubr.bf16.gmra.mrb[0].mxu0 %v2046
          %v2117 = vpop.f32.mrb[0].mxu0
          %v2118 = vadd.f32 0.0, %v2117
          %v2119 = vpop.f32.mrb[0].mxu0
          %v2120 = vpop.f32.mrb[0].mxu0
          %v2121 = vadd.f32 0.0, %v2120
          %v2122 = vpop.f32.mrb[0].mxu0
          %2123 = vmatprep.mubr.bf16.mxu0 0
          %2124 = vmatmul.mubr.bf16.gmra.mrb[0].mxu0 %v2047
          %v2125 = vpop.f32.mrb[0].mxu0
          %v2126 = vadd.f32 0.0, %v2125
          %v2127 = vpop.f32.mrb[0].mxu0
          %v2128 = vpop.f32.mrb[0].mxu0
          %v2129 = vadd.f32 0.0, %v2128
          %v2130 = vpop.f32.mrb[0].mxu0
          %2131 = vmatprep.mubr.bf16.mxu0 0
          %2132 = vmatmul.mubr.bf16.gmra.mrb[0].mxu0 %v2048
          %v2133 = vpop.f32.mrb[0].mxu0
          %v2134 = vadd.f32 0.0, %v2133
          %v2135 = vpop.f32.mrb[0].mxu0
          %v2136 = vpop.f32.mrb[0].mxu0
          %v2137 = vadd.f32 0.0, %v2136
          %v2138 = vpop.f32.mrb[0].mxu0
          %2139 = vmatprep.mubr.bf16.mxu0 0
          %2140 = vmatmul.mubr.bf16.gmra.mrb[0].mxu0 %v2049
          %v2141 = vpop.f32.mrb[0].mxu0
          %v2142 = vadd.f32 0.0, %v2141
          %v2143 = vpop.f32.mrb[0].mxu0
          %v2144 = vpop.f32.mrb[0].mxu0
          %v2145 = vadd.f32 0.0, %v2144
          %v2146 = vpop.f32.mrb[0].mxu0
          %2147 = vmatprep.mubr.bf16.mxu0 0
          %2148 = vmatmul.mubr.bf16.gmra.mrb[0].mxu0 %v2050
          %v2149 = vpop.f32.mrb[0].mxu0
          %v2150 = vadd.f32 0.0, %v2149
          %v2151 = vpop.f32.mrb[0].mxu0
          %v2152 = vpop.f32.mrb[0].mxu0
          %v2153 = vadd.f32 0.0, %v2152
          %v2154 = vpop.f32.mrb[0].mxu0
          %2155 = vdwg.mxu0
          %s2156 = scalar_lea.vmem [#allocation15], 48
          %v2157 = vld [vmem:[%s2156] sm:$0xf]
          %v2158 = vld [vmem:[%s2156 + $0x4] sm:$0xf]
          %v2159 = vld [vmem:[%s2156 + $0x8] sm:$0xf]
          %v2160 = vld [vmem:[%s2156 + $0xc] sm:$0xf]
          %v2161 = vpack.c.bf16 %v2097, %v2094
          %v2162 = vpack.c.bf16 %v2105, %v2102
          %v2163 = vpack.c.bf16 %v2113, %v2110
          %v2164 = vpack.c.bf16 %v2121, %v2118
          %v2165 = vpack.c.bf16 %v2129, %v2126
          %v2166 = vpack.c.bf16 %v2137, %v2134
          %v2167 = vpack.c.bf16 %v2145, %v2142
          %v2168 = vpack.c.bf16 %v2153, %v2150
          %v2173 = vunpack.c.l.b16 %v2157
          %v2174 = vunpack.c.l.b16 %v2158
          %v2175 = vunpack.c.l.b16 %v2159
          %v2176 = vunpack.c.l.b16 %v2160
          %v2177 = vpack.c.b16 %v2174, %v2173
          %v2178 = vpack.c.b16 %v2176, %v2175
          %v2182 = vsel %vm1415, %v2161, 0
          %v2185 = vsel %vm1415, %v2162, 0
          %v2188 = vsel %vm1415, %v2163, 0
          %v2191 = vsel %vm1415, %v2164, 0
          %v2194 = vsel %vm1415, %v2165, 0
          %v2197 = vsel %vm1415, %v2166, 0
          %v2200 = vsel %vm1415, %v2167, 0
          %v2203 = vsel %vm1415, %v2168, 0
          %2205 = vmatprep.subr.bf16.mxu0 0
          %2206 = vmatpush1.bf16.msra.mxu0 %v2177
          %2207 = vmatprep.subr.bf16.mxu0 0
          %2208 = vmatpush1.bf16.msra.mxu0 %v2178
          %2209 = vmatprep.subr.bf16.mxu0 0
          %2210 = vmatpush1.bf16.msra.mxu0 0
          %2211 = vmatprep.subr.bf16.mxu0 0
          %2212 = vmatpush1.bf16.msra.mxu0 0
          %2213 = vmatprep.subr.bf16.mxu0 0
          %2214 = vmatpush1.bf16.msra.mxu0 0
          %2215 = vmatprep.subr.bf16.mxu0 0
          %2216 = vmatpush1.bf16.msra.mxu0 0
          %2217 = vmatprep.subr.bf16.mxu0 0
          %2218 = vmatpush1.bf16.msra.mxu0 0
          %2219 = vmatprep.subr.bf16.mxu0 0
          %2220 = vmatpush1.bf16.msra.mxu0 0
          %2221 = vmatprep.subr.bf16.mxu0 0
          %2222 = vmatpush1.bf16.msra.mxu0 0
          %2223 = vmatprep.subr.bf16.mxu0 0
          %2224 = vmatpush1.bf16.msra.mxu0 0
          %2225 = vmatprep.subr.bf16.mxu0 0
          %2226 = vmatpush1.bf16.msra.mxu0 0
          %2227 = vmatprep.subr.bf16.mxu0 0
          %2228 = vmatpush1.bf16.msra.mxu0 0
          %2229 = vmatprep.subr.bf16.mxu0 0
          %2230 = vmatpush1.bf16.msra.mxu0 0
          %2231 = vmatprep.subr.bf16.mxu0 0
          %2232 = vmatpush1.bf16.msra.mxu0 0
          %2233 = vmatprep.subr.bf16.mxu0 0
          %2234 = vmatpush1.bf16.msra.mxu0 0
          %2235 = vmatprep.subr.bf16.mxu0 0
          %2236 = vmatpush1.bf16.msra.mxu0 0
          %2237 = vmatprep.mubr.bf16.mxu0 0
          %2238 = vmatmul.mubr.bf16.gmra.mrb[0].mxu0 %v2182
          %v2239 = vpop.f32.mrb[0].mxu0
          %v2240 = vadd.f32 0.0, %v2239
          %v2241 = vpop.f32.mrb[0].mxu0
          %v2242 = vpop.f32.mrb[0].mxu0
          %v2243 = vadd.f32 0.0, %v2242
          %v2244 = vpop.f32.mrb[0].mxu0
          %2245 = vmatprep.mubr.bf16.mxu0 0
          %2246 = vmatmul.mubr.bf16.gmra.mrb[0].mxu0 %v2185
          %v2247 = vpop.f32.mrb[0].mxu0
          %v2248 = vadd.f32 0.0, %v2247
          %v2249 = vpop.f32.mrb[0].mxu0
          %v2250 = vpop.f32.mrb[0].mxu0
          %v2251 = vadd.f32 0.0, %v2250
          %v2252 = vpop.f32.mrb[0].mxu0
          %2253 = vmatprep.mubr.bf16.mxu0 0
          %2254 = vmatmul.mubr.bf16.gmra.mrb[0].mxu0 %v2188
          %v2255 = vpop.f32.mrb[0].mxu0
          %v2256 = vadd.f32 0.0, %v2255
          %v2257 = vpop.f32.mrb[0].mxu0
          %v2258 = vpop.f32.mrb[0].mxu0
          %v2259 = vadd.f32 0.0, %v2258
          %v2260 = vpop.f32.mrb[0].mxu0
          %2261 = vmatprep.mubr.bf16.mxu0 0
          %2262 = vmatmul.mubr.bf16.gmra.mrb[0].mxu0 %v2191
          %v2263 = vpop.f32.mrb[0].mxu0
          %v2264 = vadd.f32 0.0, %v2263
          %v2265 = vpop.f32.mrb[0].mxu0
          %v2266 = vpop.f32.mrb[0].mxu0
          %v2267 = vadd.f32 0.0, %v2266
          %v2268 = vpop.f32.mrb[0].mxu0
          %2269 = vmatprep.mubr.bf16.mxu0 0
          %2270 = vmatmul.mubr.bf16.gmra.mrb[0].mxu0 %v2194
          %v2271 = vpop.f32.mrb[0].mxu0
          %v2272 = vadd.f32 0.0, %v2271
          %v2273 = vpop.f32.mrb[0].mxu0
          %v2274 = vpop.f32.mrb[0].mxu0
          %v2275 = vadd.f32 0.0, %v2274
          %v2276 = vpop.f32.mrb[0].mxu0
          %2277 = vmatprep.mubr.bf16.mxu0 0
          %2278 = vmatmul.mubr.bf16.gmra.mrb[0].mxu0 %v2197
          %v2279 = vpop.f32.mrb[0].mxu0
          %v2280 = vadd.f32 0.0, %v2279
          %v2281 = vpop.f32.mrb[0].mxu0
          %v2282 = vpop.f32.mrb[0].mxu0
          %v2283 = vadd.f32 0.0, %v2282
          %v2284 = vpop.f32.mrb[0].mxu0
          %2285 = vmatprep.mubr.bf16.mxu0 0
          %2286 = vmatmul.mubr.bf16.gmra.mrb[0].mxu0 %v2200
          %v2287 = vpop.f32.mrb[0].mxu0
          %v2288 = vadd.f32 0.0, %v2287
          %v2289 = vpop.f32.mrb[0].mxu0
          %v2290 = vpop.f32.mrb[0].mxu0
          %v2291 = vadd.f32 0.0, %v2290
          %v2292 = vpop.f32.mrb[0].mxu0
          %2293 = vmatprep.mubr.bf16.mxu0 0
          %2294 = vmatmul.mubr.bf16.gmra.mrb[0].mxu0 %v2203
          %v2295 = vpop.f32.mrb[0].mxu0
          %v2296 = vadd.f32 0.0, %v2295
          %v2297 = vpop.f32.mrb[0].mxu0
          %v2298 = vpop.f32.mrb[0].mxu0
          %v2299 = vadd.f32 0.0, %v2298
          %v2300 = vpop.f32.mrb[0].mxu0
          %2301 = vdwg.mxu0
          %v2302 = vadd.f32 %v1978, %v2240
          %v2303 = vadd.f32 %v1979, %v2243
          %v2304 = vadd.f32 %v1980, %v2248
          %v2305 = vadd.f32 %v1981, %v2251
          %v2306 = vadd.f32 %v1982, %v2256
          %v2307 = vadd.f32 %v1983, %v2259
          %v2308 = vadd.f32 %v1984, %v2264
          %v2309 = vadd.f32 %v1985, %v2267
          %v2310 = vadd.f32 %v1986, %v2272
          %v2311 = vadd.f32 %v1987, %v2275
          %v2312 = vadd.f32 %v1988, %v2280
          %v2313 = vadd.f32 %v1989, %v2283
          %v2314 = vadd.f32 %v1990, %v2288
          %v2315 = vadd.f32 %v1991, %v2291
          %v2316 = vadd.f32 %v1992, %v2296
          %v2317 = vadd.f32 %v1993, %v2299
          %s2318 = scalar_lea.vmem [#allocation3], 256
          %v2319 = vld [vmem:[%s2318] sm:$0xf]
          %v2320 = vld [vmem:[%s2318 + $0x4] sm:$0xf]
          %v2321 = vld [vmem:[%s2318 + $0x8] sm:$0xf]
          %v2322 = vld [vmem:[%s2318 + $0xc] sm:$0xf]
          %v2323 = vld [vmem:[%s2318 + $0x10] sm:$0xf]
          %v2324 = vld [vmem:[%s2318 + $0x14] sm:$0xf]
          %v2325 = vld [vmem:[%s2318 + $0x18] sm:$0xf]
          %v2326 = vld [vmem:[%s2318 + $0x1c] sm:$0xf]
          %v2327 = vld [vmem:[%s2318 + $0x20] sm:$0xf]
          %v2328 = vld [vmem:[%s2318 + $0x24] sm:$0xf]
          %v2329 = vld [vmem:[%s2318 + $0x28] sm:$0xf]
          %v2330 = vld [vmem:[%s2318 + $0x2c] sm:$0xf]
          %v2331 = vld [vmem:[%s2318 + $0x30] sm:$0xf]
          %v2332 = vld [vmem:[%s2318 + $0x34] sm:$0xf]
          %v2333 = vld [vmem:[%s2318 + $0x38] sm:$0xf]
          %v2334 = vld [vmem:[%s2318 + $0x3c] sm:$0xf]
          %v2351 = vunpack.c.l.b16 %v2319
          %v2352 = vunpack.c.l.b16 %v2320
          %v2353 = vunpack.c.l.b16 %v2321
          %v2354 = vunpack.c.l.b16 %v2322
          %v2355 = vunpack.c.l.b16 %v2323
          %v2356 = vunpack.c.l.b16 %v2324
          %v2357 = vunpack.c.l.b16 %v2325
          %v2358 = vunpack.c.l.b16 %v2326
          %v2359 = vunpack.c.l.b16 %v2327
          %v2360 = vunpack.c.l.b16 %v2328
          %v2361 = vunpack.c.l.b16 %v2329
          %v2362 = vunpack.c.l.b16 %v2330
          %v2363 = vunpack.c.l.b16 %v2331
          %v2364 = vunpack.c.l.b16 %v2332
          %v2365 = vunpack.c.l.b16 %v2333
          %v2366 = vunpack.c.l.b16 %v2334
          %v2367 = vpack.c.b16 %v2352, %v2351
          %v2368 = vpack.c.b16 %v2354, %v2353
          %v2369 = vpack.c.b16 %v2356, %v2355
          %v2370 = vpack.c.b16 %v2358, %v2357
          %v2371 = vpack.c.b16 %v2360, %v2359
          %v2372 = vpack.c.b16 %v2362, %v2361
          %v2373 = vpack.c.b16 %v2364, %v2363
          %v2374 = vpack.c.b16 %v2366, %v2365
          %2383 = vmatprep.subr.bf16.mxu0 0
          %2384 = vmatpush1.bf16.msra.mxu0 %v1063
          %2385 = vmatprep.subr.bf16.mxu0 0
          %2386 = vmatpush1.bf16.msra.mxu0 %v1064
          %2387 = vmatprep.subr.bf16.mxu0 0
          %2388 = vmatpush1.bf16.msra.mxu0 %v1065
          %2389 = vmatprep.subr.bf16.mxu0 0
          %2390 = vmatpush1.bf16.msra.mxu0 %v1066
          %2391 = vmatprep.subr.bf16.mxu0 0
          %2392 = vmatpush1.bf16.msra.mxu0 %v1067
          %2393 = vmatprep.subr.bf16.mxu0 0
          %2394 = vmatpush1.bf16.msra.mxu0 %v1068
          %2395 = vmatprep.subr.bf16.mxu0 0
          %2396 = vmatpush1.bf16.msra.mxu0 %v1069
          %2397 = vmatprep.subr.bf16.mxu0 0
          %2398 = vmatpush1.bf16.msra.mxu0 %v1070
          %2399 = vmatprep.subr.bf16.mxu0 0
          %2400 = vmatpush1.bf16.msra.mxu0 0
          %2401 = vmatprep.subr.bf16.mxu0 0
          %2402 = vmatpush1.bf16.msra.mxu0 0
          %2403 = vmatprep.subr.bf16.mxu0 0
          %2404 = vmatpush1.bf16.msra.mxu0 0
          %2405 = vmatprep.subr.bf16.mxu0 0
          %2406 = vmatpush1.bf16.msra.mxu0 0
          %2407 = vmatprep.subr.bf16.mxu0 0
          %2408 = vmatpush1.bf16.msra.mxu0 0
          %2409 = vmatprep.subr.bf16.mxu0 0
          %2410 = vmatpush1.bf16.msra.mxu0 0
          %2411 = vmatprep.subr.bf16.mxu0 0
          %2412 = vmatpush1.bf16.msra.mxu0 0
          %2413 = vmatprep.subr.bf16.mxu0 0
          %2414 = vmatpush1.bf16.msra.mxu0 0
          %2415 = vmatprep.mubr.bf16.mxu0 0
          %2416 = vmatmul.mubr.bf16.gmra.mrb[0].mxu0 %v2367
          %v2417 = vpop.f32.mrb[0].mxu0
          %v2418 = vadd.f32 0.0, %v2417
          %v2419 = vpop.f32.mrb[0].mxu0
          %v2420 = vpop.f32.mrb[0].mxu0
          %v2421 = vadd.f32 0.0, %v2420
          %v2422 = vpop.f32.mrb[0].mxu0
          %2423 = vmatprep.mubr.bf16.mxu0 0
          %2424 = vmatmul.mubr.bf16.gmra.mrb[0].mxu0 %v2368
          %v2425 = vpop.f32.mrb[0].mxu0
          %v2426 = vadd.f32 0.0, %v2425
          %v2427 = vpop.f32.mrb[0].mxu0
          %v2428 = vpop.f32.mrb[0].mxu0
          %v2429 = vadd.f32 0.0, %v2428
          %v2430 = vpop.f32.mrb[0].mxu0
          %2431 = vmatprep.mubr.bf16.mxu0 0
          %2432 = vmatmul.mubr.bf16.gmra.mrb[0].mxu0 %v2369
          %v2433 = vpop.f32.mrb[0].mxu0
          %v2434 = vadd.f32 0.0, %v2433
          %v2435 = vpop.f32.mrb[0].mxu0
          %v2436 = vpop.f32.mrb[0].mxu0
          %v2437 = vadd.f32 0.0, %v2436
          %v2438 = vpop.f32.mrb[0].mxu0
          %2439 = vmatprep.mubr.bf16.mxu0 0
          %2440 = vmatmul.mubr.bf16.gmra.mrb[0].mxu0 %v2370
          %v2441 = vpop.f32.mrb[0].mxu0
          %v2442 = vadd.f32 0.0, %v2441
          %v2443 = vpop.f32.mrb[0].mxu0
          %v2444 = vpop.f32.mrb[0].mxu0
          %v2445 = vadd.f32 0.0, %v2444
          %v2446 = vpop.f32.mrb[0].mxu0
          %2447 = vmatprep.mubr.bf16.mxu0 0
          %2448 = vmatmul.mubr.bf16.gmra.mrb[0].mxu0 %v2371
          %v2449 = vpop.f32.mrb[0].mxu0
          %v2450 = vadd.f32 0.0, %v2449
          %v2451 = vpop.f32.mrb[0].mxu0
          %v2452 = vpop.f32.mrb[0].mxu0
          %v2453 = vadd.f32 0.0, %v2452
          %v2454 = vpop.f32.mrb[0].mxu0
          %2455 = vmatprep.mubr.bf16.mxu0 0
          %2456 = vmatmul.mubr.bf16.gmra.mrb[0].mxu0 %v2372
          %v2457 = vpop.f32.mrb[0].mxu0
          %v2458 = vadd.f32 0.0, %v2457
          %v2459 = vpop.f32.mrb[0].mxu0
          %v2460 = vpop.f32.mrb[0].mxu0
          %v2461 = vadd.f32 0.0, %v2460
          %v2462 = vpop.f32.mrb[0].mxu0
          %2463 = vmatprep.mubr.bf16.mxu0 0
          %2464 = vmatmul.mubr.bf16.gmra.mrb[0].mxu0 %v2373
          %v2465 = vpop.f32.mrb[0].mxu0
          %v2466 = vadd.f32 0.0, %v2465
          %v2467 = vpop.f32.mrb[0].mxu0
          %v2468 = vpop.f32.mrb[0].mxu0
          %v2469 = vadd.f32 0.0, %v2468
          %v2470 = vpop.f32.mrb[0].mxu0
          %2471 = vmatprep.mubr.bf16.mxu0 0
          %2472 = vmatmul.mubr.bf16.gmra.mrb[0].mxu0 %v2374
          %v2473 = vpop.f32.mrb[0].mxu0
          %v2474 = vadd.f32 0.0, %v2473
          %v2475 = vpop.f32.mrb[0].mxu0
          %v2476 = vpop.f32.mrb[0].mxu0
          %v2477 = vadd.f32 0.0, %v2476
          %v2478 = vpop.f32.mrb[0].mxu0
          %2479 = vdwg.mxu0
          %s2480 = scalar_lea.vmem [#allocation15], 64
          %v2481 = vld [vmem:[%s2480] sm:$0xf]
          %v2482 = vld [vmem:[%s2480 + $0x4] sm:$0xf]
          %v2483 = vld [vmem:[%s2480 + $0x8] sm:$0xf]
          %v2484 = vld [vmem:[%s2480 + $0xc] sm:$0xf]
          %v2485 = vpack.c.bf16 %v2421, %v2418
          %v2486 = vpack.c.bf16 %v2429, %v2426
          %v2487 = vpack.c.bf16 %v2437, %v2434
          %v2488 = vpack.c.bf16 %v2445, %v2442
          %v2489 = vpack.c.bf16 %v2453, %v2450
          %v2490 = vpack.c.bf16 %v2461, %v2458
          %v2491 = vpack.c.bf16 %v2469, %v2466
          %v2492 = vpack.c.bf16 %v2477, %v2474
          %v2497 = vunpack.c.l.b16 %v2481
          %v2498 = vunpack.c.l.b16 %v2482
          %v2499 = vunpack.c.l.b16 %v2483
          %v2500 = vunpack.c.l.b16 %v2484
          %v2501 = vpack.c.b16 %v2498, %v2497
          %v2502 = vpack.c.b16 %v2500, %v2499
          %v2506 = vsel %vm1415, %v2485, 0
          %v2509 = vsel %vm1415, %v2486, 0
          %v2512 = vsel %vm1415, %v2487, 0
          %v2515 = vsel %vm1415, %v2488, 0
          %v2518 = vsel %vm1415, %v2489, 0
          %v2521 = vsel %vm1415, %v2490, 0
          %v2524 = vsel %vm1415, %v2491, 0
          %v2527 = vsel %vm1415, %v2492, 0
          %2529 = vmatprep.subr.bf16.mxu0 0
          %2530 = vmatpush1.bf16.msra.mxu0 %v2501
          %2531 = vmatprep.subr.bf16.mxu0 0
          %2532 = vmatpush1.bf16.msra.mxu0 %v2502
          %2533 = vmatprep.subr.bf16.mxu0 0
          %2534 = vmatpush1.bf16.msra.mxu0 0
          %2535 = vmatprep.subr.bf16.mxu0 0
          %2536 = vmatpush1.bf16.msra.mxu0 0
          %2537 = vmatprep.subr.bf16.mxu0 0
          %2538 = vmatpush1.bf16.msra.mxu0 0
          %2539 = vmatprep.subr.bf16.mxu0 0
          %2540 = vmatpush1.bf16.msra.mxu0 0
          %2541 = vmatprep.subr.bf16.mxu0 0
          %2542 = vmatpush1.bf16.msra.mxu0 0
          %2543 = vmatprep.subr.bf16.mxu0 0
          %2544 = vmatpush1.bf16.msra.mxu0 0
          %2545 = vmatprep.subr.bf16.mxu0 0
          %2546 = vmatpush1.bf16.msra.mxu0 0
          %2547 = vmatprep.subr.bf16.mxu0 0
          %2548 = vmatpush1.bf16.msra.mxu0 0
          %2549 = vmatprep.subr.bf16.mxu0 0
          %2550 = vmatpush1.bf16.msra.mxu0 0
          %2551 = vmatprep.subr.bf16.mxu0 0
          %2552 = vmatpush1.bf16.msra.mxu0 0
          %2553 = vmatprep.subr.bf16.mxu0 0
          %2554 = vmatpush1.bf16.msra.mxu0 0
          %2555 = vmatprep.subr.bf16.mxu0 0
          %2556 = vmatpush1.bf16.msra.mxu0 0
          %2557 = vmatprep.subr.bf16.mxu0 0
          %2558 = vmatpush1.bf16.msra.mxu0 0
          %2559 = vmatprep.subr.bf16.mxu0 0
          %2560 = vmatpush1.bf16.msra.mxu0 0
          %2561 = vmatprep.mubr.bf16.mxu0 0
          %2562 = vmatmul.mubr.bf16.gmra.mrb[0].mxu0 %v2506
          %v2563 = vpop.f32.mrb[0].mxu0
          %v2564 = vadd.f32 0.0, %v2563
          %v2565 = vpop.f32.mrb[0].mxu0
          %v2566 = vpop.f32.mrb[0].mxu0
          %v2567 = vadd.f32 0.0, %v2566
          %v2568 = vpop.f32.mrb[0].mxu0
          %2569 = vmatprep.mubr.bf16.mxu0 0
          %2570 = vmatmul.mubr.bf16.gmra.mrb[0].mxu0 %v2509
          %v2571 = vpop.f32.mrb[0].mxu0
          %v2572 = vadd.f32 0.0, %v2571
          %v2573 = vpop.f32.mrb[0].mxu0
          %v2574 = vpop.f32.mrb[0].mxu0
          %v2575 = vadd.f32 0.0, %v2574
          %v2576 = vpop.f32.mrb[0].mxu0
          %2577 = vmatprep.mubr.bf16.mxu0 0
          %2578 = vmatmul.mubr.bf16.gmra.mrb[0].mxu0 %v2512
          %v2579 = vpop.f32.mrb[0].mxu0
          %v2580 = vadd.f32 0.0, %v2579
          %v2581 = vpop.f32.mrb[0].mxu0
          %v2582 = vpop.f32.mrb[0].mxu0
          %v2583 = vadd.f32 0.0, %v2582
          %v2584 = vpop.f32.mrb[0].mxu0
          %2585 = vmatprep.mubr.bf16.mxu0 0
          %2586 = vmatmul.mubr.bf16.gmra.mrb[0].mxu0 %v2515
          %v2587 = vpop.f32.mrb[0].mxu0
          %v2588 = vadd.f32 0.0, %v2587
          %v2589 = vpop.f32.mrb[0].mxu0
          %v2590 = vpop.f32.mrb[0].mxu0
          %v2591 = vadd.f32 0.0, %v2590
          %v2592 = vpop.f32.mrb[0].mxu0
          %2593 = vmatprep.mubr.bf16.mxu0 0
          %2594 = vmatmul.mubr.bf16.gmra.mrb[0].mxu0 %v2518
          %v2595 = vpop.f32.mrb[0].mxu0
          %v2596 = vadd.f32 0.0, %v2595
          %v2597 = vpop.f32.mrb[0].mxu0
          %v2598 = vpop.f32.mrb[0].mxu0
          %v2599 = vadd.f32 0.0, %v2598
          %v2600 = vpop.f32.mrb[0].mxu0
          %2601 = vmatprep.mubr.bf16.mxu0 0
          %2602 = vmatmul.mubr.bf16.gmra.mrb[0].mxu0 %v2521
          %v2603 = vpop.f32.mrb[0].mxu0
          %v2604 = vadd.f32 0.0, %v2603
          %v2605 = vpop.f32.mrb[0].mxu0
          %v2606 = vpop.f32.mrb[0].mxu0
          %v2607 = vadd.f32 0.0, %v2606
          %v2608 = vpop.f32.mrb[0].mxu0
          %2609 = vmatprep.mubr.bf16.mxu0 0
          %2610 = vmatmul.mubr.bf16.gmra.mrb[0].mxu0 %v2524
          %v2611 = vpop.f32.mrb[0].mxu0
          %v2612 = vadd.f32 0.0, %v2611
          %v2613 = vpop.f32.mrb[0].mxu0
          %v2614 = vpop.f32.mrb[0].mxu0
          %v2615 = vadd.f32 0.0, %v2614
          %v2616 = vpop.f32.mrb[0].mxu0
          %2617 = vmatprep.mubr.bf16.mxu0 0
          %2618 = vmatmul.mubr.bf16.gmra.mrb[0].mxu0 %v2527
          %v2619 = vpop.f32.mrb[0].mxu0
          %v2620 = vadd.f32 0.0, %v2619
          %v2621 = vpop.f32.mrb[0].mxu0
          %v2622 = vpop.f32.mrb[0].mxu0
          %v2623 = vadd.f32 0.0, %v2622
          %v2624 = vpop.f32.mrb[0].mxu0
          %2625 = vdwg.mxu0
          %v2626 = vadd.f32 %v2302, %v2564
          %v2627 = vadd.f32 %v2303, %v2567
          %v2628 = vadd.f32 %v2304, %v2572
          %v2629 = vadd.f32 %v2305, %v2575
          %v2630 = vadd.f32 %v2306, %v2580
          %v2631 = vadd.f32 %v2307, %v2583
          %v2632 = vadd.f32 %v2308, %v2588
          %v2633 = vadd.f32 %v2309, %v2591
          %v2634 = vadd.f32 %v2310, %v2596
          %v2635 = vadd.f32 %v2311, %v2599
          %v2636 = vadd.f32 %v2312, %v2604
          %v2637 = vadd.f32 %v2313, %v2607
          %v2638 = vadd.f32 %v2314, %v2612
          %v2639 = vadd.f32 %v2315, %v2615
          %v2640 = vadd.f32 %v2316, %v2620
          %v2641 = vadd.f32 %v2317, %v2623
          %s2642 = scalar_lea.vmem [#allocation3], 320
          %v2643 = vld [vmem:[%s2642] sm:$0xf]
          %v2644 = vld [vmem:[%s2642 + $0x4] sm:$0xf]
          %v2645 = vld [vmem:[%s2642 + $0x8] sm:$0xf]
          %v2646 = vld [vmem:[%s2642 + $0xc] sm:$0xf]
          %v2647 = vld [vmem:[%s2642 + $0x10] sm:$0xf]
          %v2648 = vld [vmem:[%s2642 + $0x14] sm:$0xf]
          %v2649 = vld [vmem:[%s2642 + $0x18] sm:$0xf]
          %v2650 = vld [vmem:[%s2642 + $0x1c] sm:$0xf]
          %v2651 = vld [vmem:[%s2642 + $0x20] sm:$0xf]
          %v2652 = vld [vmem:[%s2642 + $0x24] sm:$0xf]
          %v2653 = vld [vmem:[%s2642 + $0x28] sm:$0xf]
          %v2654 = vld [vmem:[%s2642 + $0x2c] sm:$0xf]
          %v2655 = vld [vmem:[%s2642 + $0x30] sm:$0xf]
          %v2656 = vld [vmem:[%s2642 + $0x34] sm:$0xf]
          %v2657 = vld [vmem:[%s2642 + $0x38] sm:$0xf]
          %v2658 = vld [vmem:[%s2642 + $0x3c] sm:$0xf]
          %v2675 = vunpack.c.l.b16 %v2643
          %v2676 = vunpack.c.l.b16 %v2644
          %v2677 = vunpack.c.l.b16 %v2645
          %v2678 = vunpack.c.l.b16 %v2646
          %v2679 = vunpack.c.l.b16 %v2647
          %v2680 = vunpack.c.l.b16 %v2648
          %v2681 = vunpack.c.l.b16 %v2649
          %v2682 = vunpack.c.l.b16 %v2650
          %v2683 = vunpack.c.l.b16 %v2651
          %v2684 = vunpack.c.l.b16 %v2652
          %v2685 = vunpack.c.l.b16 %v2653
          %v2686 = vunpack.c.l.b16 %v2654
          %v2687 = vunpack.c.l.b16 %v2655
          %v2688 = vunpack.c.l.b16 %v2656
          %v2689 = vunpack.c.l.b16 %v2657
          %v2690 = vunpack.c.l.b16 %v2658
          %v2691 = vpack.c.b16 %v2676, %v2675
          %v2692 = vpack.c.b16 %v2678, %v2677
          %v2693 = vpack.c.b16 %v2680, %v2679
          %v2694 = vpack.c.b16 %v2682, %v2681
          %v2695 = vpack.c.b16 %v2684, %v2683
          %v2696 = vpack.c.b16 %v2686, %v2685
          %v2697 = vpack.c.b16 %v2688, %v2687
          %v2698 = vpack.c.b16 %v2690, %v2689
          %2707 = vmatprep.subr.bf16.mxu0 0
          %2708 = vmatpush1.bf16.msra.mxu0 %v1063
          %2709 = vmatprep.subr.bf16.mxu0 0
          %2710 = vmatpush1.bf16.msra.mxu0 %v1064
          %2711 = vmatprep.subr.bf16.mxu0 0
          %2712 = vmatpush1.bf16.msra.mxu0 %v1065
          %2713 = vmatprep.subr.bf16.mxu0 0
          %2714 = vmatpush1.bf16.msra.mxu0 %v1066
          %2715 = vmatprep.subr.bf16.mxu0 0
          %2716 = vmatpush1.bf16.msra.mxu0 %v1067
          %2717 = vmatprep.subr.bf16.mxu0 0
          %2718 = vmatpush1.bf16.msra.mxu0 %v1068
          %2719 = vmatprep.subr.bf16.mxu0 0
          %2720 = vmatpush1.bf16.msra.mxu0 %v1069
          %2721 = vmatprep.subr.bf16.mxu0 0
          %2722 = vmatpush1.bf16.msra.mxu0 %v1070
          %2723 = vmatprep.subr.bf16.mxu0 0
          %2724 = vmatpush1.bf16.msra.mxu0 0
          %2725 = vmatprep.subr.bf16.mxu0 0
          %2726 = vmatpush1.bf16.msra.mxu0 0
          %2727 = vmatprep.subr.bf16.mxu0 0
          %2728 = vmatpush1.bf16.msra.mxu0 0
          %2729 = vmatprep.subr.bf16.mxu0 0
          %2730 = vmatpush1.bf16.msra.mxu0 0
          %2731 = vmatprep.subr.bf16.mxu0 0
          %2732 = vmatpush1.bf16.msra.mxu0 0
          %2733 = vmatprep.subr.bf16.mxu0 0
          %2734 = vmatpush1.bf16.msra.mxu0 0
          %2735 = vmatprep.subr.bf16.mxu0 0
          %2736 = vmatpush1.bf16.msra.mxu0 0
          %2737 = vmatprep.subr.bf16.mxu0 0
          %2738 = vmatpush1.bf16.msra.mxu0 0
          %2739 = vmatprep.mubr.bf16.mxu0 0
          %2740 = vmatmul.mubr.bf16.gmra.mrb[0].mxu0 %v2691
          %v2741 = vpop.f32.mrb[0].mxu0
          %v2742 = vadd.f32 0.0, %v2741
          %v2743 = vpop.f32.mrb[0].mxu0
          %v2744 = vpop.f32.mrb[0].mxu0
          %v2745 = vadd.f32 0.0, %v2744
          %v2746 = vpop.f32.mrb[0].mxu0
          %2747 = vmatprep.mubr.bf16.mxu0 0
          %2748 = vmatmul.mubr.bf16.gmra.mrb[0].mxu0 %v2692
          %v2749 = vpop.f32.mrb[0].mxu0
          %v2750 = vadd.f32 0.0, %v2749
          %v2751 = vpop.f32.mrb[0].mxu0
          %v2752 = vpop.f32.mrb[0].mxu0
          %v2753 = vadd.f32 0.0, %v2752
          %v2754 = vpop.f32.mrb[0].mxu0
          %2755 = vmatprep.mubr.bf16.mxu0 0
          %2756 = vmatmul.mubr.bf16.gmra.mrb[0].mxu0 %v2693
          %v2757 = vpop.f32.mrb[0].mxu0
          %v2758 = vadd.f32 0.0, %v2757
          %v2759 = vpop.f32.mrb[0].mxu0
          %v2760 = vpop.f32.mrb[0].mxu0
          %v2761 = vadd.f32 0.0, %v2760
          %v2762 = vpop.f32.mrb[0].mxu0
          %2763 = vmatprep.mubr.bf16.mxu0 0
          %2764 = vmatmul.mubr.bf16.gmra.mrb[0].mxu0 %v2694
          %v2765 = vpop.f32.mrb[0].mxu0
          %v2766 = vadd.f32 0.0, %v2765
          %v2767 = vpop.f32.mrb[0].mxu0
          %v2768 = vpop.f32.mrb[0].mxu0
          %v2769 = vadd.f32 0.0, %v2768
          %v2770 = vpop.f32.mrb[0].mxu0
          %2771 = vmatprep.mubr.bf16.mxu0 0
          %2772 = vmatmul.mubr.bf16.gmra.mrb[0].mxu0 %v2695
          %v2773 = vpop.f32.mrb[0].mxu0
          %v2774 = vadd.f32 0.0, %v2773
          %v2775 = vpop.f32.mrb[0].mxu0
          %v2776 = vpop.f32.mrb[0].mxu0
          %v2777 = vadd.f32 0.0, %v2776
          %v2778 = vpop.f32.mrb[0].mxu0
          %2779 = vmatprep.mubr.bf16.mxu0 0
          %2780 = vmatmul.mubr.bf16.gmra.mrb[0].mxu0 %v2696
          %v2781 = vpop.f32.mrb[0].mxu0
          %v2782 = vadd.f32 0.0, %v2781
          %v2783 = vpop.f32.mrb[0].mxu0
          %v2784 = vpop.f32.mrb[0].mxu0
          %v2785 = vadd.f32 0.0, %v2784
          %v2786 = vpop.f32.mrb[0].mxu0
          %2787 = vmatprep.mubr.bf16.mxu0 0
          %2788 = vmatmul.mubr.bf16.gmra.mrb[0].mxu0 %v2697
          %v2789 = vpop.f32.mrb[0].mxu0
          %v2790 = vadd.f32 0.0, %v2789
          %v2791 = vpop.f32.mrb[0].mxu0
          %v2792 = vpop.f32.mrb[0].mxu0
          %v2793 = vadd.f32 0.0, %v2792
          %v2794 = vpop.f32.mrb[0].mxu0
          %2795 = vmatprep.mubr.bf16.mxu0 0
          %2796 = vmatmul.mubr.bf16.gmra.mrb[0].mxu0 %v2698
          %v2797 = vpop.f32.mrb[0].mxu0
          %v2798 = vadd.f32 0.0, %v2797
          %v2799 = vpop.f32.mrb[0].mxu0
          %v2800 = vpop.f32.mrb[0].mxu0
          %v2801 = vadd.f32 0.0, %v2800
          %v2802 = vpop.f32.mrb[0].mxu0
          %2803 = vdwg.mxu0
          %s2804 = scalar_lea.vmem [#allocation15], 80
          %v2805 = vld [vmem:[%s2804] sm:$0xf]
          %v2806 = vld [vmem:[%s2804 + $0x4] sm:$0xf]
          %v2807 = vld [vmem:[%s2804 + $0x8] sm:$0xf]
          %v2808 = vld [vmem:[%s2804 + $0xc] sm:$0xf]
          %v2809 = vpack.c.bf16 %v2745, %v2742
          %v2810 = vpack.c.bf16 %v2753, %v2750
          %v2811 = vpack.c.bf16 %v2761, %v2758
          %v2812 = vpack.c.bf16 %v2769, %v2766
          %v2813 = vpack.c.bf16 %v2777, %v2774
          %v2814 = vpack.c.bf16 %v2785, %v2782
          %v2815 = vpack.c.bf16 %v2793, %v2790
          %v2816 = vpack.c.bf16 %v2801, %v2798
          %v2821 = vunpack.c.l.b16 %v2805
          %v2822 = vunpack.c.l.b16 %v2806
          %v2823 = vunpack.c.l.b16 %v2807
          %v2824 = vunpack.c.l.b16 %v2808
          %v2825 = vpack.c.b16 %v2822, %v2821
          %v2826 = vpack.c.b16 %v2824, %v2823
          %v2830 = vsel %vm1415, %v2809, 0
          %v2833 = vsel %vm1415, %v2810, 0
          %v2836 = vsel %vm1415, %v2811, 0
          %v2839 = vsel %vm1415, %v2812, 0
          %v2842 = vsel %vm1415, %v2813, 0
          %v2845 = vsel %vm1415, %v2814, 0
          %v2848 = vsel %vm1415, %v2815, 0
          %v2851 = vsel %vm1415, %v2816, 0
          %2853 = vmatprep.subr.bf16.mxu0 0
          %2854 = vmatpush1.bf16.msra.mxu0 %v2825
          %2855 = vmatprep.subr.bf16.mxu0 0
          %2856 = vmatpush1.bf16.msra.mxu0 %v2826
          %2857 = vmatprep.subr.bf16.mxu0 0
          %2858 = vmatpush1.bf16.msra.mxu0 0
          %2859 = vmatprep.subr.bf16.mxu0 0
          %2860 = vmatpush1.bf16.msra.mxu0 0
          %2861 = vmatprep.subr.bf16.mxu0 0
          %2862 = vmatpush1.bf16.msra.mxu0 0
          %2863 = vmatprep.subr.bf16.mxu0 0
          %2864 = vmatpush1.bf16.msra.mxu0 0
          %2865 = vmatprep.subr.bf16.mxu0 0
          %2866 = vmatpush1.bf16.msra.mxu0 0
          %2867 = vmatprep.subr.bf16.mxu0 0
          %2868 = vmatpush1.bf16.msra.mxu0 0
          %2869 = vmatprep.subr.bf16.mxu0 0
          %2870 = vmatpush1.bf16.msra.mxu0 0
          %2871 = vmatprep.subr.bf16.mxu0 0
          %2872 = vmatpush1.bf16.msra.mxu0 0
          %2873 = vmatprep.subr.bf16.mxu0 0
          %2874 = vmatpush1.bf16.msra.mxu0 0
          %2875 = vmatprep.subr.bf16.mxu0 0
          %2876 = vmatpush1.bf16.msra.mxu0 0
          %2877 = vmatprep.subr.bf16.mxu0 0
          %2878 = vmatpush1.bf16.msra.mxu0 0
          %2879 = vmatprep.subr.bf16.mxu0 0
          %2880 = vmatpush1.bf16.msra.mxu0 0
          %2881 = vmatprep.subr.bf16.mxu0 0
          %2882 = vmatpush1.bf16.msra.mxu0 0
          %2883 = vmatprep.subr.bf16.mxu0 0
          %2884 = vmatpush1.bf16.msra.mxu0 0
          %2885 = vmatprep.mubr.bf16.mxu0 0
          %2886 = vmatmul.mubr.bf16.gmra.mrb[0].mxu0 %v2830
          %v2887 = vpop.f32.mrb[0].mxu0
          %v2888 = vadd.f32 0.0, %v2887
          %v2889 = vpop.f32.mrb[0].mxu0
          %v2890 = vpop.f32.mrb[0].mxu0
          %v2891 = vadd.f32 0.0, %v2890
          %v2892 = vpop.f32.mrb[0].mxu0
          %2893 = vmatprep.mubr.bf16.mxu0 0
          %2894 = vmatmul.mubr.bf16.gmra.mrb[0].mxu0 %v2833
          %v2895 = vpop.f32.mrb[0].mxu0
          %v2896 = vadd.f32 0.0, %v2895
          %v2897 = vpop.f32.mrb[0].mxu0
          %v2898 = vpop.f32.mrb[0].mxu0
          %v2899 = vadd.f32 0.0, %v2898
          %v2900 = vpop.f32.mrb[0].mxu0
          %2901 = vmatprep.mubr.bf16.mxu0 0
          %2902 = vmatmul.mubr.bf16.gmra.mrb[0].mxu0 %v2836
          %v2903 = vpop.f32.mrb[0].mxu0
          %v2904 = vadd.f32 0.0, %v2903
          %v2905 = vpop.f32.mrb[0].mxu0
          %v2906 = vpop.f32.mrb[0].mxu0
          %v2907 = vadd.f32 0.0, %v2906
          %v2908 = vpop.f32.mrb[0].mxu0
          %2909 = vmatprep.mubr.bf16.mxu0 0
          %2910 = vmatmul.mubr.bf16.gmra.mrb[0].mxu0 %v2839
          %v2911 = vpop.f32.mrb[0].mxu0
          %v2912 = vadd.f32 0.0, %v2911
          %v2913 = vpop.f32.mrb[0].mxu0
          %v2914 = vpop.f32.mrb[0].mxu0
          %v2915 = vadd.f32 0.0, %v2914
          %v2916 = vpop.f32.mrb[0].mxu0
          %2917 = vmatprep.mubr.bf16.mxu0 0
          %2918 = vmatmul.mubr.bf16.gmra.mrb[0].mxu0 %v2842
          %v2919 = vpop.f32.mrb[0].mxu0
          %v2920 = vadd.f32 0.0, %v2919
          %v2921 = vpop.f32.mrb[0].mxu0
          %v2922 = vpop.f32.mrb[0].mxu0
          %v2923 = vadd.f32 0.0, %v2922
          %v2924 = vpop.f32.mrb[0].mxu0
          %2925 = vmatprep.mubr.bf16.mxu0 0
          %2926 = vmatmul.mubr.bf16.gmra.mrb[0].mxu0 %v2845
          %v2927 = vpop.f32.mrb[0].mxu0
          %v2928 = vadd.f32 0.0, %v2927
          %v2929 = vpop.f32.mrb[0].mxu0
          %v2930 = vpop.f32.mrb[0].mxu0
          %v2931 = vadd.f32 0.0, %v2930
          %v2932 = vpop.f32.mrb[0].mxu0
          %2933 = vmatprep.mubr.bf16.mxu0 0
          %2934 = vmatmul.mubr.bf16.gmra.mrb[0].mxu0 %v2848
          %v2935 = vpop.f32.mrb[0].mxu0
          %v2936 = vadd.f32 0.0, %v2935
          %v2937 = vpop.f32.mrb[0].mxu0
          %v2938 = vpop.f32.mrb[0].mxu0
          %v2939 = vadd.f32 0.0, %v2938
          %v2940 = vpop.f32.mrb[0].mxu0
          %2941 = vmatprep.mubr.bf16.mxu0 0
          %2942 = vmatmul.mubr.bf16.gmra.mrb[0].mxu0 %v2851
          %v2943 = vpop.f32.mrb[0].mxu0
          %v2944 = vadd.f32 0.0, %v2943
          %v2945 = vpop.f32.mrb[0].mxu0
          %v2946 = vpop.f32.mrb[0].mxu0
          %v2947 = vadd.f32 0.0, %v2946
          %v2948 = vpop.f32.mrb[0].mxu0
          %2949 = vdwg.mxu0
          %v2950 = vadd.f32 %v2626, %v2888
          %v2951 = vadd.f32 %v2627, %v2891
          %v2952 = vadd.f32 %v2628, %v2896
          %v2953 = vadd.f32 %v2629, %v2899
          %v2954 = vadd.f32 %v2630, %v2904
          %v2955 = vadd.f32 %v2631, %v2907
          %v2956 = vadd.f32 %v2632, %v2912
          %v2957 = vadd.f32 %v2633, %v2915
          %v2958 = vadd.f32 %v2634, %v2920
          %v2959 = vadd.f32 %v2635, %v2923
          %v2960 = vadd.f32 %v2636, %v2928
          %v2961 = vadd.f32 %v2637, %v2931
          %v2962 = vadd.f32 %v2638, %v2936
          %v2963 = vadd.f32 %v2639, %v2939
          %v2964 = vadd.f32 %v2640, %v2944
          %v2965 = vadd.f32 %v2641, %v2947
          %s2966 = scalar_lea.vmem [#allocation3], 384
          %v2967 = vld [vmem:[%s2966] sm:$0xf]
          %v2968 = vld [vmem:[%s2966 + $0x4] sm:$0xf]
          %v2969 = vld [vmem:[%s2966 + $0x8] sm:$0xf]
          %v2970 = vld [vmem:[%s2966 + $0xc] sm:$0xf]
          %v2971 = vld [vmem:[%s2966 + $0x10] sm:$0xf]
          %v2972 = vld [vmem:[%s2966 + $0x14] sm:$0xf]
          %v2973 = vld [vmem:[%s2966 + $0x18] sm:$0xf]
          %v2974 = vld [vmem:[%s2966 + $0x1c] sm:$0xf]
          %v2975 = vld [vmem:[%s2966 + $0x20] sm:$0xf]
          %v2976 = vld [vmem:[%s2966 + $0x24] sm:$0xf]
          %v2977 = vld [vmem:[%s2966 + $0x28] sm:$0xf]
          %v2978 = vld [vmem:[%s2966 + $0x2c] sm:$0xf]
          %v2979 = vld [vmem:[%s2966 + $0x30] sm:$0xf]
          %v2980 = vld [vmem:[%s2966 + $0x34] sm:$0xf]
          %v2981 = vld [vmem:[%s2966 + $0x38] sm:$0xf]
          %v2982 = vld [vmem:[%s2966 + $0x3c] sm:$0xf]
          %v2999 = vunpack.c.l.b16 %v2967
          %v3000 = vunpack.c.l.b16 %v2968
          %v3001 = vunpack.c.l.b16 %v2969
          %v3002 = vunpack.c.l.b16 %v2970
          %v3003 = vunpack.c.l.b16 %v2971
          %v3004 = vunpack.c.l.b16 %v2972
          %v3005 = vunpack.c.l.b16 %v2973
          %v3006 = vunpack.c.l.b16 %v2974
          %v3007 = vunpack.c.l.b16 %v2975
          %v3008 = vunpack.c.l.b16 %v2976
          %v3009 = vunpack.c.l.b16 %v2977
          %v3010 = vunpack.c.l.b16 %v2978
          %v3011 = vunpack.c.l.b16 %v2979
          %v3012 = vunpack.c.l.b16 %v2980
          %v3013 = vunpack.c.l.b16 %v2981
          %v3014 = vunpack.c.l.b16 %v2982
          %v3015 = vpack.c.b16 %v3000, %v2999
          %v3016 = vpack.c.b16 %v3002, %v3001
          %v3017 = vpack.c.b16 %v3004, %v3003
          %v3018 = vpack.c.b16 %v3006, %v3005
          %v3019 = vpack.c.b16 %v3008, %v3007
          %v3020 = vpack.c.b16 %v3010, %v3009
          %v3021 = vpack.c.b16 %v3012, %v3011
          %v3022 = vpack.c.b16 %v3014, %v3013
          %3031 = vmatprep.subr.bf16.mxu0 0
          %3032 = vmatpush1.bf16.msra.mxu0 %v1063
          %3033 = vmatprep.subr.bf16.mxu0 0
          %3034 = vmatpush1.bf16.msra.mxu0 %v1064
          %3035 = vmatprep.subr.bf16.mxu0 0
          %3036 = vmatpush1.bf16.msra.mxu0 %v1065
          %3037 = vmatprep.subr.bf16.mxu0 0
          %3038 = vmatpush1.bf16.msra.mxu0 %v1066
          %3039 = vmatprep.subr.bf16.mxu0 0
          %3040 = vmatpush1.bf16.msra.mxu0 %v1067
          %3041 = vmatprep.subr.bf16.mxu0 0
          %3042 = vmatpush1.bf16.msra.mxu0 %v1068
          %3043 = vmatprep.subr.bf16.mxu0 0
          %3044 = vmatpush1.bf16.msra.mxu0 %v1069
          %3045 = vmatprep.subr.bf16.mxu0 0
          %3046 = vmatpush1.bf16.msra.mxu0 %v1070
          %3047 = vmatprep.subr.bf16.mxu0 0
          %3048 = vmatpush1.bf16.msra.mxu0 0
          %3049 = vmatprep.subr.bf16.mxu0 0
          %3050 = vmatpush1.bf16.msra.mxu0 0
          %3051 = vmatprep.subr.bf16.mxu0 0
          %3052 = vmatpush1.bf16.msra.mxu0 0
          %3053 = vmatprep.subr.bf16.mxu0 0
          %3054 = vmatpush1.bf16.msra.mxu0 0
          %3055 = vmatprep.subr.bf16.mxu0 0
          %3056 = vmatpush1.bf16.msra.mxu0 0
          %3057 = vmatprep.subr.bf16.mxu0 0
          %3058 = vmatpush1.bf16.msra.mxu0 0
          %3059 = vmatprep.subr.bf16.mxu0 0
          %3060 = vmatpush1.bf16.msra.mxu0 0
          %3061 = vmatprep.subr.bf16.mxu0 0
          %3062 = vmatpush1.bf16.msra.mxu0 0
          %3063 = vmatprep.mubr.bf16.mxu0 0
          %3064 = vmatmul.mubr.bf16.gmra.mrb[0].mxu0 %v3015
          %v3065 = vpop.f32.mrb[0].mxu0
          %v3066 = vadd.f32 0.0, %v3065
          %v3067 = vpop.f32.mrb[0].mxu0
          %v3068 = vpop.f32.mrb[0].mxu0
          %v3069 = vadd.f32 0.0, %v3068
          %v3070 = vpop.f32.mrb[0].mxu0
          %3071 = vmatprep.mubr.bf16.mxu0 0
          %3072 = vmatmul.mubr.bf16.gmra.mrb[0].mxu0 %v3016
          %v3073 = vpop.f32.mrb[0].mxu0
          %v3074 = vadd.f32 0.0, %v3073
          %v3075 = vpop.f32.mrb[0].mxu0
          %v3076 = vpop.f32.mrb[0].mxu0
          %v3077 = vadd.f32 0.0, %v3076
          %v3078 = vpop.f32.mrb[0].mxu0
          %3079 = vmatprep.mubr.bf16.mxu0 0
          %3080 = vmatmul.mubr.bf16.gmra.mrb[0].mxu0 %v3017
          %v3081 = vpop.f32.mrb[0].mxu0
          %v3082 = vadd.f32 0.0, %v3081
          %v3083 = vpop.f32.mrb[0].mxu0
          %v3084 = vpop.f32.mrb[0].mxu0
          %v3085 = vadd.f32 0.0, %v3084
          %v3086 = vpop.f32.mrb[0].mxu0
          %3087 = vmatprep.mubr.bf16.mxu0 0
          %3088 = vmatmul.mubr.bf16.gmra.mrb[0].mxu0 %v3018
          %v3089 = vpop.f32.mrb[0].mxu0
          %v3090 = vadd.f32 0.0, %v3089
          %v3091 = vpop.f32.mrb[0].mxu0
          %v3092 = vpop.f32.mrb[0].mxu0
          %v3093 = vadd.f32 0.0, %v3092
          %v3094 = vpop.f32.mrb[0].mxu0
          %3095 = vmatprep.mubr.bf16.mxu0 0
          %3096 = vmatmul.mubr.bf16.gmra.mrb[0].mxu0 %v3019
          %v3097 = vpop.f32.mrb[0].mxu0
          %v3098 = vadd.f32 0.0, %v3097
          %v3099 = vpop.f32.mrb[0].mxu0
          %v3100 = vpop.f32.mrb[0].mxu0
          %v3101 = vadd.f32 0.0, %v3100
          %v3102 = vpop.f32.mrb[0].mxu0
          %3103 = vmatprep.mubr.bf16.mxu0 0
          %3104 = vmatmul.mubr.bf16.gmra.mrb[0].mxu0 %v3020
          %v3105 = vpop.f32.mrb[0].mxu0
          %v3106 = vadd.f32 0.0, %v3105
          %v3107 = vpop.f32.mrb[0].mxu0
          %v3108 = vpop.f32.mrb[0].mxu0
          %v3109 = vadd.f32 0.0, %v3108
          %v3110 = vpop.f32.mrb[0].mxu0
          %3111 = vmatprep.mubr.bf16.mxu0 0
          %3112 = vmatmul.mubr.bf16.gmra.mrb[0].mxu0 %v3021
          %v3113 = vpop.f32.mrb[0].mxu0
          %v3114 = vadd.f32 0.0, %v3113
          %v3115 = vpop.f32.mrb[0].mxu0
          %v3116 = vpop.f32.mrb[0].mxu0
          %v3117 = vadd.f32 0.0, %v3116
          %v3118 = vpop.f32.mrb[0].mxu0
          %3119 = vmatprep.mubr.bf16.mxu0 0
          %3120 = vmatmul.mubr.bf16.gmra.mrb[0].mxu0 %v3022
          %v3121 = vpop.f32.mrb[0].mxu0
          %v3122 = vadd.f32 0.0, %v3121
          %v3123 = vpop.f32.mrb[0].mxu0
          %v3124 = vpop.f32.mrb[0].mxu0
          %v3125 = vadd.f32 0.0, %v3124
          %v3126 = vpop.f32.mrb[0].mxu0
          %3127 = vdwg.mxu0
          %s3128 = scalar_lea.vmem [#allocation15], 96
          %v3129 = vld [vmem:[%s3128] sm:$0xf]
          %v3130 = vld [vmem:[%s3128 + $0x4] sm:$0xf]
          %v3131 = vld [vmem:[%s3128 + $0x8] sm:$0xf]
          %v3132 = vld [vmem:[%s3128 + $0xc] sm:$0xf]
          %v3133 = vpack.c.bf16 %v3069, %v3066
          %v3134 = vpack.c.bf16 %v3077, %v3074
          %v3135 = vpack.c.bf16 %v3085, %v3082
          %v3136 = vpack.c.bf16 %v3093, %v3090
          %v3137 = vpack.c.bf16 %v3101, %v3098
          %v3138 = vpack.c.bf16 %v3109, %v3106
          %v3139 = vpack.c.bf16 %v3117, %v3114
          %v3140 = vpack.c.bf16 %v3125, %v3122
          %v3145 = vunpack.c.l.b16 %v3129
          %v3146 = vunpack.c.l.b16 %v3130
          %v3147 = vunpack.c.l.b16 %v3131
          %v3148 = vunpack.c.l.b16 %v3132
          %v3149 = vpack.c.b16 %v3146, %v3145
          %v3150 = vpack.c.b16 %v3148, %v3147
          %v3154 = vsel %vm1415, %v3133, 0
          %v3157 = vsel %vm1415, %v3134, 0
          %v3160 = vsel %vm1415, %v3135, 0
          %v3163 = vsel %vm1415, %v3136, 0
          %v3166 = vsel %vm1415, %v3137, 0
          %v3169 = vsel %vm1415, %v3138, 0
          %v3172 = vsel %vm1415, %v3139, 0
          %v3175 = vsel %vm1415, %v3140, 0
          %3177 = vmatprep.subr.bf16.mxu0 0
          %3178 = vmatpush1.bf16.msra.mxu0 %v3149
          %3179 = vmatprep.subr.bf16.mxu0 0
          %3180 = vmatpush1.bf16.msra.mxu0 %v3150
          %3181 = vmatprep.subr.bf16.mxu0 0
          %3182 = vmatpush1.bf16.msra.mxu0 0
          %3183 = vmatprep.subr.bf16.mxu0 0
          %3184 = vmatpush1.bf16.msra.mxu0 0
          %3185 = vmatprep.subr.bf16.mxu0 0
          %3186 = vmatpush1.bf16.msra.mxu0 0
          %3187 = vmatprep.subr.bf16.mxu0 0
          %3188 = vmatpush1.bf16.msra.mxu0 0
          %3189 = vmatprep.subr.bf16.mxu0 0
          %3190 = vmatpush1.bf16.msra.mxu0 0
          %3191 = vmatprep.subr.bf16.mxu0 0
          %3192 = vmatpush1.bf16.msra.mxu0 0
          %3193 = vmatprep.subr.bf16.mxu0 0
          %3194 = vmatpush1.bf16.msra.mxu0 0
          %3195 = vmatprep.subr.bf16.mxu0 0
          %3196 = vmatpush1.bf16.msra.mxu0 0
          %3197 = vmatprep.subr.bf16.mxu0 0
          %3198 = vmatpush1.bf16.msra.mxu0 0
          %3199 = vmatprep.subr.bf16.mxu0 0
          %3200 = vmatpush1.bf16.msra.mxu0 0
          %3201 = vmatprep.subr.bf16.mxu0 0
          %3202 = vmatpush1.bf16.msra.mxu0 0
          %3203 = vmatprep.subr.bf16.mxu0 0
          %3204 = vmatpush1.bf16.msra.mxu0 0
          %3205 = vmatprep.subr.bf16.mxu0 0
          %3206 = vmatpush1.bf16.msra.mxu0 0
          %3207 = vmatprep.subr.bf16.mxu0 0
          %3208 = vmatpush1.bf16.msra.mxu0 0
          %3209 = vmatprep.mubr.bf16.mxu0 0
          %3210 = vmatmul.mubr.bf16.gmra.mrb[0].mxu0 %v3154
          %v3211 = vpop.f32.mrb[0].mxu0
          %v3212 = vadd.f32 0.0, %v3211
          %v3213 = vpop.f32.mrb[0].mxu0
          %v3214 = vpop.f32.mrb[0].mxu0
          %v3215 = vadd.f32 0.0, %v3214
          %v3216 = vpop.f32.mrb[0].mxu0
          %3217 = vmatprep.mubr.bf16.mxu0 0
          %3218 = vmatmul.mubr.bf16.gmra.mrb[0].mxu0 %v3157
          %v3219 = vpop.f32.mrb[0].mxu0
          %v3220 = vadd.f32 0.0, %v3219
          %v3221 = vpop.f32.mrb[0].mxu0
          %v3222 = vpop.f32.mrb[0].mxu0
          %v3223 = vadd.f32 0.0, %v3222
          %v3224 = vpop.f32.mrb[0].mxu0
          %3225 = vmatprep.mubr.bf16.mxu0 0
          %3226 = vmatmul.mubr.bf16.gmra.mrb[0].mxu0 %v3160
          %v3227 = vpop.f32.mrb[0].mxu0
          %v3228 = vadd.f32 0.0, %v3227
          %v3229 = vpop.f32.mrb[0].mxu0
          %v3230 = vpop.f32.mrb[0].mxu0
          %v3231 = vadd.f32 0.0, %v3230
          %v3232 = vpop.f32.mrb[0].mxu0
          %3233 = vmatprep.mubr.bf16.mxu0 0
          %3234 = vmatmul.mubr.bf16.gmra.mrb[0].mxu0 %v3163
          %v3235 = vpop.f32.mrb[0].mxu0
          %v3236 = vadd.f32 0.0, %v3235
          %v3237 = vpop.f32.mrb[0].mxu0
          %v3238 = vpop.f32.mrb[0].mxu0
          %v3239 = vadd.f32 0.0, %v3238
          %v3240 = vpop.f32.mrb[0].mxu0
          %3241 = vmatprep.mubr.bf16.mxu0 0
          %3242 = vmatmul.mubr.bf16.gmra.mrb[0].mxu0 %v3166
          %v3243 = vpop.f32.mrb[0].mxu0
          %v3244 = vadd.f32 0.0, %v3243
          %v3245 = vpop.f32.mrb[0].mxu0
          %v3246 = vpop.f32.mrb[0].mxu0
          %v3247 = vadd.f32 0.0, %v3246
          %v3248 = vpop.f32.mrb[0].mxu0
          %3249 = vmatprep.mubr.bf16.mxu0 0
          %3250 = vmatmul.mubr.bf16.gmra.mrb[0].mxu0 %v3169
          %v3251 = vpop.f32.mrb[0].mxu0
          %v3252 = vadd.f32 0.0, %v3251
          %v3253 = vpop.f32.mrb[0].mxu0
          %v3254 = vpop.f32.mrb[0].mxu0
          %v3255 = vadd.f32 0.0, %v3254
          %v3256 = vpop.f32.mrb[0].mxu0
          %3257 = vmatprep.mubr.bf16.mxu0 0
          %3258 = vmatmul.mubr.bf16.gmra.mrb[0].mxu0 %v3172
          %v3259 = vpop.f32.mrb[0].mxu0
          %v3260 = vadd.f32 0.0, %v3259
          %v3261 = vpop.f32.mrb[0].mxu0
          %v3262 = vpop.f32.mrb[0].mxu0
          %v3263 = vadd.f32 0.0, %v3262
          %v3264 = vpop.f32.mrb[0].mxu0
          %3265 = vmatprep.mubr.bf16.mxu0 0
          %3266 = vmatmul.mubr.bf16.gmra.mrb[0].mxu0 %v3175
          %v3267 = vpop.f32.mrb[0].mxu0
          %v3268 = vadd.f32 0.0, %v3267
          %v3269 = vpop.f32.mrb[0].mxu0
          %v3270 = vpop.f32.mrb[0].mxu0
          %v3271 = vadd.f32 0.0, %v3270
          %v3272 = vpop.f32.mrb[0].mxu0
          %3273 = vdwg.mxu0
          %v3274 = vadd.f32 %v2950, %v3212
          %v3275 = vadd.f32 %v2951, %v3215
          %v3276 = vadd.f32 %v2952, %v3220
          %v3277 = vadd.f32 %v2953, %v3223
          %v3278 = vadd.f32 %v2954, %v3228
          %v3279 = vadd.f32 %v2955, %v3231
          %v3280 = vadd.f32 %v2956, %v3236
          %v3281 = vadd.f32 %v2957, %v3239
          %v3282 = vadd.f32 %v2958, %v3244
          %v3283 = vadd.f32 %v2959, %v3247
          %v3284 = vadd.f32 %v2960, %v3252
          %v3285 = vadd.f32 %v2961, %v3255
          %v3286 = vadd.f32 %v2962, %v3260
          %v3287 = vadd.f32 %v2963, %v3263
          %v3288 = vadd.f32 %v2964, %v3268
          %v3289 = vadd.f32 %v2965, %v3271
          %s3290 = scalar_lea.vmem [#allocation3], 448
          %v3291 = vld [vmem:[%s3290] sm:$0xf]
          %v3292 = vld [vmem:[%s3290 + $0x4] sm:$0xf]
          %v3293 = vld [vmem:[%s3290 + $0x8] sm:$0xf]
          %v3294 = vld [vmem:[%s3290 + $0xc] sm:$0xf]
          %v3295 = vld [vmem:[%s3290 + $0x10] sm:$0xf]
          %v3296 = vld [vmem:[%s3290 + $0x14] sm:$0xf]
          %v3297 = vld [vmem:[%s3290 + $0x18] sm:$0xf]
          %v3298 = vld [vmem:[%s3290 + $0x1c] sm:$0xf]
          %v3299 = vld [vmem:[%s3290 + $0x20] sm:$0xf]
          %v3300 = vld [vmem:[%s3290 + $0x24] sm:$0xf]
          %v3301 = vld [vmem:[%s3290 + $0x28] sm:$0xf]
          %v3302 = vld [vmem:[%s3290 + $0x2c] sm:$0xf]
          %v3303 = vld [vmem:[%s3290 + $0x30] sm:$0xf]
          %v3304 = vld [vmem:[%s3290 + $0x34] sm:$0xf]
          %v3305 = vld [vmem:[%s3290 + $0x38] sm:$0xf]
          %v3306 = vld [vmem:[%s3290 + $0x3c] sm:$0xf]
          %v3323 = vunpack.c.l.b16 %v3291
          %v3324 = vunpack.c.l.b16 %v3292
          %v3325 = vunpack.c.l.b16 %v3293
          %v3326 = vunpack.c.l.b16 %v3294
          %v3327 = vunpack.c.l.b16 %v3295
          %v3328 = vunpack.c.l.b16 %v3296
          %v3329 = vunpack.c.l.b16 %v3297
          %v3330 = vunpack.c.l.b16 %v3298
          %v3331 = vunpack.c.l.b16 %v3299
          %v3332 = vunpack.c.l.b16 %v3300
          %v3333 = vunpack.c.l.b16 %v3301
          %v3334 = vunpack.c.l.b16 %v3302
          %v3335 = vunpack.c.l.b16 %v3303
          %v3336 = vunpack.c.l.b16 %v3304
          %v3337 = vunpack.c.l.b16 %v3305
          %v3338 = vunpack.c.l.b16 %v3306
          %v3339 = vpack.c.b16 %v3324, %v3323
          %v3340 = vpack.c.b16 %v3326, %v3325
          %v3341 = vpack.c.b16 %v3328, %v3327
          %v3342 = vpack.c.b16 %v3330, %v3329
          %v3343 = vpack.c.b16 %v3332, %v3331
          %v3344 = vpack.c.b16 %v3334, %v3333
          %v3345 = vpack.c.b16 %v3336, %v3335
          %v3346 = vpack.c.b16 %v3338, %v3337
          %3355 = vmatprep.subr.bf16.mxu0 0
          %3356 = vmatpush1.bf16.msra.mxu0 %v1063
          %3357 = vmatprep.subr.bf16.mxu0 0
          %3358 = vmatpush1.bf16.msra.mxu0 %v1064
          %3359 = vmatprep.subr.bf16.mxu0 0
          %3360 = vmatpush1.bf16.msra.mxu0 %v1065
          %3361 = vmatprep.subr.bf16.mxu0 0
          %3362 = vmatpush1.bf16.msra.mxu0 %v1066
          %3363 = vmatprep.subr.bf16.mxu0 0
          %3364 = vmatpush1.bf16.msra.mxu0 %v1067
          %3365 = vmatprep.subr.bf16.mxu0 0
          %3366 = vmatpush1.bf16.msra.mxu0 %v1068
          %3367 = vmatprep.subr.bf16.mxu0 0
          %3368 = vmatpush1.bf16.msra.mxu0 %v1069
          %3369 = vmatprep.subr.bf16.mxu0 0
          %3370 = vmatpush1.bf16.msra.mxu0 %v1070
          %3371 = vmatprep.subr.bf16.mxu0 0
          %3372 = vmatpush1.bf16.msra.mxu0 0
          %3373 = vmatprep.subr.bf16.mxu0 0
          %3374 = vmatpush1.bf16.msra.mxu0 0
          %3375 = vmatprep.subr.bf16.mxu0 0
          %3376 = vmatpush1.bf16.msra.mxu0 0
          %3377 = vmatprep.subr.bf16.mxu0 0
          %3378 = vmatpush1.bf16.msra.mxu0 0
          %3379 = vmatprep.subr.bf16.mxu0 0
          %3380 = vmatpush1.bf16.msra.mxu0 0
          %3381 = vmatprep.subr.bf16.mxu0 0
          %3382 = vmatpush1.bf16.msra.mxu0 0
          %3383 = vmatprep.subr.bf16.mxu0 0
          %3384 = vmatpush1.bf16.msra.mxu0 0
          %3385 = vmatprep.subr.bf16.mxu0 0
          %3386 = vmatpush1.bf16.msra.mxu0 0
          %3387 = vmatprep.mubr.bf16.mxu0 0
          %3388 = vmatmul.mubr.bf16.gmra.mrb[0].mxu0 %v3339
          %v3389 = vpop.f32.mrb[0].mxu0
          %v3390 = vadd.f32 0.0, %v3389
          %v3391 = vpop.f32.mrb[0].mxu0
          %v3392 = vpop.f32.mrb[0].mxu0
          %v3393 = vadd.f32 0.0, %v3392
          %v3394 = vpop.f32.mrb[0].mxu0
          %3395 = vmatprep.mubr.bf16.mxu0 0
          %3396 = vmatmul.mubr.bf16.gmra.mrb[0].mxu0 %v3340
          %v3397 = vpop.f32.mrb[0].mxu0
          %v3398 = vadd.f32 0.0, %v3397
          %v3399 = vpop.f32.mrb[0].mxu0
          %v3400 = vpop.f32.mrb[0].mxu0
          %v3401 = vadd.f32 0.0, %v3400
          %v3402 = vpop.f32.mrb[0].mxu0
          %3403 = vmatprep.mubr.bf16.mxu0 0
          %3404 = vmatmul.mubr.bf16.gmra.mrb[0].mxu0 %v3341
          %v3405 = vpop.f32.mrb[0].mxu0
          %v3406 = vadd.f32 0.0, %v3405
          %v3407 = vpop.f32.mrb[0].mxu0
          %v3408 = vpop.f32.mrb[0].mxu0
          %v3409 = vadd.f32 0.0, %v3408
          %v3410 = vpop.f32.mrb[0].mxu0
          %3411 = vmatprep.mubr.bf16.mxu0 0
          %3412 = vmatmul.mubr.bf16.gmra.mrb[0].mxu0 %v3342
          %v3413 = vpop.f32.mrb[0].mxu0
          %v3414 = vadd.f32 0.0, %v3413
          %v3415 = vpop.f32.mrb[0].mxu0
          %v3416 = vpop.f32.mrb[0].mxu0
          %v3417 = vadd.f32 0.0, %v3416
          %v3418 = vpop.f32.mrb[0].mxu0
          %3419 = vmatprep.mubr.bf16.mxu0 0
          %3420 = vmatmul.mubr.bf16.gmra.mrb[0].mxu0 %v3343
          %v3421 = vpop.f32.mrb[0].mxu0
          %v3422 = vadd.f32 0.0, %v3421
          %v3423 = vpop.f32.mrb[0].mxu0
          %v3424 = vpop.f32.mrb[0].mxu0
          %v3425 = vadd.f32 0.0, %v3424
          %v3426 = vpop.f32.mrb[0].mxu0
          %3427 = vmatprep.mubr.bf16.mxu0 0
          %3428 = vmatmul.mubr.bf16.gmra.mrb[0].mxu0 %v3344
          %v3429 = vpop.f32.mrb[0].mxu0
          %v3430 = vadd.f32 0.0, %v3429
          %v3431 = vpop.f32.mrb[0].mxu0
          %v3432 = vpop.f32.mrb[0].mxu0
          %v3433 = vadd.f32 0.0, %v3432
          %v3434 = vpop.f32.mrb[0].mxu0
          %3435 = vmatprep.mubr.bf16.mxu0 0
          %3436 = vmatmul.mubr.bf16.gmra.mrb[0].mxu0 %v3345
          %v3437 = vpop.f32.mrb[0].mxu0
          %v3438 = vadd.f32 0.0, %v3437
          %v3439 = vpop.f32.mrb[0].mxu0
          %v3440 = vpop.f32.mrb[0].mxu0
          %v3441 = vadd.f32 0.0, %v3440
          %v3442 = vpop.f32.mrb[0].mxu0
          %3443 = vmatprep.mubr.bf16.mxu0 0
          %3444 = vmatmul.mubr.bf16.gmra.mrb[0].mxu0 %v3346
          %v3445 = vpop.f32.mrb[0].mxu0
          %v3446 = vadd.f32 0.0, %v3445
          %v3447 = vpop.f32.mrb[0].mxu0
          %v3448 = vpop.f32.mrb[0].mxu0
          %v3449 = vadd.f32 0.0, %v3448
          %v3450 = vpop.f32.mrb[0].mxu0
          %3451 = vdwg.mxu0
          %s3452 = scalar_lea.vmem [#allocation15], 112
          %v3453 = vld [vmem:[%s3452] sm:$0xf]
          %v3454 = vld [vmem:[%s3452 + $0x4] sm:$0xf]
          %v3455 = vld [vmem:[%s3452 + $0x8] sm:$0xf]
          %v3456 = vld [vmem:[%s3452 + $0xc] sm:$0xf]
          %v3457 = vpack.c.bf16 %v3393, %v3390
          %v3458 = vpack.c.bf16 %v3401, %v3398
          %v3459 = vpack.c.bf16 %v3409, %v3406
          %v3460 = vpack.c.bf16 %v3417, %v3414
          %v3461 = vpack.c.bf16 %v3425, %v3422
          %v3462 = vpack.c.bf16 %v3433, %v3430
          %v3463 = vpack.c.bf16 %v3441, %v3438
          %v3464 = vpack.c.bf16 %v3449, %v3446
          %v3469 = vunpack.c.l.b16 %v3453
          %v3470 = vunpack.c.l.b16 %v3454
          %v3471 = vunpack.c.l.b16 %v3455
          %v3472 = vunpack.c.l.b16 %v3456
          %v3473 = vpack.c.b16 %v3470, %v3469
          %v3474 = vpack.c.b16 %v3472, %v3471
          %v3478 = vsel %vm1415, %v3457, 0
          %v3481 = vsel %vm1415, %v3458, 0
          %v3484 = vsel %vm1415, %v3459, 0
          %v3487 = vsel %vm1415, %v3460, 0
          %v3490 = vsel %vm1415, %v3461, 0
          %v3493 = vsel %vm1415, %v3462, 0
          %v3496 = vsel %vm1415, %v3463, 0
          %v3499 = vsel %vm1415, %v3464, 0
          %3501 = vmatprep.subr.bf16.mxu0 0
          %3502 = vmatpush1.bf16.msra.mxu0 %v3473
          %3503 = vmatprep.subr.bf16.mxu0 0
          %3504 = vmatpush1.bf16.msra.mxu0 %v3474
          %3505 = vmatprep.subr.bf16.mxu0 0
          %3506 = vmatpush1.bf16.msra.mxu0 0
          %3507 = vmatprep.subr.bf16.mxu0 0
          %3508 = vmatpush1.bf16.msra.mxu0 0
          %3509 = vmatprep.subr.bf16.mxu0 0
          %3510 = vmatpush1.bf16.msra.mxu0 0
          %3511 = vmatprep.subr.bf16.mxu0 0
          %3512 = vmatpush1.bf16.msra.mxu0 0
          %3513 = vmatprep.subr.bf16.mxu0 0
          %3514 = vmatpush1.bf16.msra.mxu0 0
          %3515 = vmatprep.subr.bf16.mxu0 0
          %3516 = vmatpush1.bf16.msra.mxu0 0
          %3517 = vmatprep.subr.bf16.mxu0 0
          %3518 = vmatpush1.bf16.msra.mxu0 0
          %3519 = vmatprep.subr.bf16.mxu0 0
          %3520 = vmatpush1.bf16.msra.mxu0 0
          %3521 = vmatprep.subr.bf16.mxu0 0
          %3522 = vmatpush1.bf16.msra.mxu0 0
          %3523 = vmatprep.subr.bf16.mxu0 0
          %3524 = vmatpush1.bf16.msra.mxu0 0
          %3525 = vmatprep.subr.bf16.mxu0 0
          %3526 = vmatpush1.bf16.msra.mxu0 0
          %3527 = vmatprep.subr.bf16.mxu0 0
          %3528 = vmatpush1.bf16.msra.mxu0 0
          %3529 = vmatprep.subr.bf16.mxu0 0
          %3530 = vmatpush1.bf16.msra.mxu0 0
          %3531 = vmatprep.subr.bf16.mxu0 0
          %3532 = vmatpush1.bf16.msra.mxu0 0
          %3533 = vmatprep.mubr.bf16.mxu0 0
          %3534 = vmatmul.mubr.bf16.gmra.mrb[0].mxu0 %v3478
          %v3535 = vpop.f32.mrb[0].mxu0
          %v3536 = vadd.f32 0.0, %v3535
          %v3537 = vpop.f32.mrb[0].mxu0
          %v3538 = vpop.f32.mrb[0].mxu0
          %v3539 = vadd.f32 0.0, %v3538
          %v3540 = vpop.f32.mrb[0].mxu0
          %3541 = vmatprep.mubr.bf16.mxu0 0
          %3542 = vmatmul.mubr.bf16.gmra.mrb[0].mxu0 %v3481
          %v3543 = vpop.f32.mrb[0].mxu0
          %v3544 = vadd.f32 0.0, %v3543
          %v3545 = vpop.f32.mrb[0].mxu0
          %v3546 = vpop.f32.mrb[0].mxu0
          %v3547 = vadd.f32 0.0, %v3546
          %v3548 = vpop.f32.mrb[0].mxu0
          %3549 = vmatprep.mubr.bf16.mxu0 0
          %3550 = vmatmul.mubr.bf16.gmra.mrb[0].mxu0 %v3484
          %v3551 = vpop.f32.mrb[0].mxu0
          %v3552 = vadd.f32 0.0, %v3551
          %v3553 = vpop.f32.mrb[0].mxu0
          %v3554 = vpop.f32.mrb[0].mxu0
          %v3555 = vadd.f32 0.0, %v3554
          %v3556 = vpop.f32.mrb[0].mxu0
          %3557 = vmatprep.mubr.bf16.mxu0 0
          %3558 = vmatmul.mubr.bf16.gmra.mrb[0].mxu0 %v3487
          %v3559 = vpop.f32.mrb[0].mxu0
          %v3560 = vadd.f32 0.0, %v3559
          %v3561 = vpop.f32.mrb[0].mxu0
          %v3562 = vpop.f32.mrb[0].mxu0
          %v3563 = vadd.f32 0.0, %v3562
          %v3564 = vpop.f32.mrb[0].mxu0
          %3565 = vmatprep.mubr.bf16.mxu0 0
          %3566 = vmatmul.mubr.bf16.gmra.mrb[0].mxu0 %v3490
          %v3567 = vpop.f32.mrb[0].mxu0
          %v3568 = vadd.f32 0.0, %v3567
          %v3569 = vpop.f32.mrb[0].mxu0
          %v3570 = vpop.f32.mrb[0].mxu0
          %v3571 = vadd.f32 0.0, %v3570
          %v3572 = vpop.f32.mrb[0].mxu0
          %3573 = vmatprep.mubr.bf16.mxu0 0
          %3574 = vmatmul.mubr.bf16.gmra.mrb[0].mxu0 %v3493
          %v3575 = vpop.f32.mrb[0].mxu0
          %v3576 = vadd.f32 0.0, %v3575
          %v3577 = vpop.f32.mrb[0].mxu0
          %v3578 = vpop.f32.mrb[0].mxu0
          %v3579 = vadd.f32 0.0, %v3578
          %v3580 = vpop.f32.mrb[0].mxu0
          %3581 = vmatprep.mubr.bf16.mxu0 0
          %3582 = vmatmul.mubr.bf16.gmra.mrb[0].mxu0 %v3496
          %v3583 = vpop.f32.mrb[0].mxu0
          %v3584 = vadd.f32 0.0, %v3583
          %v3585 = vpop.f32.mrb[0].mxu0
          %v3586 = vpop.f32.mrb[0].mxu0
          %v3587 = vadd.f32 0.0, %v3586
          %v3588 = vpop.f32.mrb[0].mxu0
          %3589 = vmatprep.mubr.bf16.mxu0 0
          %3590 = vmatmul.mubr.bf16.gmra.mrb[0].mxu0 %v3499
          %v3591 = vpop.f32.mrb[0].mxu0
          %v3592 = vadd.f32 0.0, %v3591
          %v3593 = vpop.f32.mrb[0].mxu0
          %v3594 = vpop.f32.mrb[0].mxu0
          %v3595 = vadd.f32 0.0, %v3594
          %v3596 = vpop.f32.mrb[0].mxu0
          %3597 = vdwg.mxu0
          %v3598 = vadd.f32 %v3274, %v3536
          %v3599 = vadd.f32 %v3275, %v3539
          %v3600 = vadd.f32 %v3276, %v3544
          %v3601 = vadd.f32 %v3277, %v3547
          %v3602 = vadd.f32 %v3278, %v3552
          %v3603 = vadd.f32 %v3279, %v3555
          %v3604 = vadd.f32 %v3280, %v3560
          %v3605 = vadd.f32 %v3281, %v3563
          %v3606 = vadd.f32 %v3282, %v3568
          %v3607 = vadd.f32 %v3283, %v3571
          %v3608 = vadd.f32 %v3284, %v3576
          %v3609 = vadd.f32 %v3285, %v3579
          %v3610 = vadd.f32 %v3286, %v3584
          %v3611 = vadd.f32 %v3287, %v3587
          %v3612 = vadd.f32 %v3288, %v3592
          %v3613 = vadd.f32 %v3289, %v3595
          %s3614 = scalar_lea.vmem [#allocation3], 512
          %v3615 = vld [vmem:[%s3614] sm:$0xf]
          %v3616 = vld [vmem:[%s3614 + $0x4] sm:$0xf]
          %v3617 = vld [vmem:[%s3614 + $0x8] sm:$0xf]
          %v3618 = vld [vmem:[%s3614 + $0xc] sm:$0xf]
          %v3619 = vld [vmem:[%s3614 + $0x10] sm:$0xf]
          %v3620 = vld [vmem:[%s3614 + $0x14] sm:$0xf]
          %v3621 = vld [vmem:[%s3614 + $0x18] sm:$0xf]
          %v3622 = vld [vmem:[%s3614 + $0x1c] sm:$0xf]
          %v3623 = vld [vmem:[%s3614 + $0x20] sm:$0xf]
          %v3624 = vld [vmem:[%s3614 + $0x24] sm:$0xf]
          %v3625 = vld [vmem:[%s3614 + $0x28] sm:$0xf]
          %v3626 = vld [vmem:[%s3614 + $0x2c] sm:$0xf]
          %v3627 = vld [vmem:[%s3614 + $0x30] sm:$0xf]
          %v3628 = vld [vmem:[%s3614 + $0x34] sm:$0xf]
          %v3629 = vld [vmem:[%s3614 + $0x38] sm:$0xf]
          %v3630 = vld [vmem:[%s3614 + $0x3c] sm:$0xf]
          %v3647 = vunpack.c.l.b16 %v3615
          %v3648 = vunpack.c.l.b16 %v3616
          %v3649 = vunpack.c.l.b16 %v3617
          %v3650 = vunpack.c.l.b16 %v3618
          %v3651 = vunpack.c.l.b16 %v3619
          %v3652 = vunpack.c.l.b16 %v3620
          %v3653 = vunpack.c.l.b16 %v3621
          %v3654 = vunpack.c.l.b16 %v3622
          %v3655 = vunpack.c.l.b16 %v3623
          %v3656 = vunpack.c.l.b16 %v3624
          %v3657 = vunpack.c.l.b16 %v3625
          %v3658 = vunpack.c.l.b16 %v3626
          %v3659 = vunpack.c.l.b16 %v3627
          %v3660 = vunpack.c.l.b16 %v3628
          %v3661 = vunpack.c.l.b16 %v3629
          %v3662 = vunpack.c.l.b16 %v3630
          %v3663 = vpack.c.b16 %v3648, %v3647
          %v3664 = vpack.c.b16 %v3650, %v3649
          %v3665 = vpack.c.b16 %v3652, %v3651
          %v3666 = vpack.c.b16 %v3654, %v3653
          %v3667 = vpack.c.b16 %v3656, %v3655
          %v3668 = vpack.c.b16 %v3658, %v3657
          %v3669 = vpack.c.b16 %v3660, %v3659
          %v3670 = vpack.c.b16 %v3662, %v3661
          %3679 = vmatprep.subr.bf16.mxu0 0
          %3680 = vmatpush1.bf16.msra.mxu0 %v1063
          %3681 = vmatprep.subr.bf16.mxu0 0
          %3682 = vmatpush1.bf16.msra.mxu0 %v1064
          %3683 = vmatprep.subr.bf16.mxu0 0
          %3684 = vmatpush1.bf16.msra.mxu0 %v1065
          %3685 = vmatprep.subr.bf16.mxu0 0
          %3686 = vmatpush1.bf16.msra.mxu0 %v1066
          %3687 = vmatprep.subr.bf16.mxu0 0
          %3688 = vmatpush1.bf16.msra.mxu0 %v1067
          %3689 = vmatprep.subr.bf16.mxu0 0
          %3690 = vmatpush1.bf16.msra.mxu0 %v1068
          %3691 = vmatprep.subr.bf16.mxu0 0
          %3692 = vmatpush1.bf16.msra.mxu0 %v1069
          %3693 = vmatprep.subr.bf16.mxu0 0
          %3694 = vmatpush1.bf16.msra.mxu0 %v1070
          %3695 = vmatprep.subr.bf16.mxu0 0
          %3696 = vmatpush1.bf16.msra.mxu0 0
          %3697 = vmatprep.subr.bf16.mxu0 0
          %3698 = vmatpush1.bf16.msra.mxu0 0
          %3699 = vmatprep.subr.bf16.mxu0 0
          %3700 = vmatpush1.bf16.msra.mxu0 0
          %3701 = vmatprep.subr.bf16.mxu0 0
          %3702 = vmatpush1.bf16.msra.mxu0 0
          %3703 = vmatprep.subr.bf16.mxu0 0
          %3704 = vmatpush1.bf16.msra.mxu0 0
          %3705 = vmatprep.subr.bf16.mxu0 0
          %3706 = vmatpush1.bf16.msra.mxu0 0
          %3707 = vmatprep.subr.bf16.mxu0 0
          %3708 = vmatpush1.bf16.msra.mxu0 0
          %3709 = vmatprep.subr.bf16.mxu0 0
          %3710 = vmatpush1.bf16.msra.mxu0 0
          %3711 = vmatprep.mubr.bf16.mxu0 0
          %3712 = vmatmul.mubr.bf16.gmra.mrb[0].mxu0 %v3663
          %v3713 = vpop.f32.mrb[0].mxu0
          %v3714 = vadd.f32 0.0, %v3713
          %v3715 = vpop.f32.mrb[0].mxu0
          %v3716 = vpop.f32.mrb[0].mxu0
          %v3717 = vadd.f32 0.0, %v3716
          %v3718 = vpop.f32.mrb[0].mxu0
          %3719 = vmatprep.mubr.bf16.mxu0 0
          %3720 = vmatmul.mubr.bf16.gmra.mrb[0].mxu0 %v3664
          %v3721 = vpop.f32.mrb[0].mxu0
          %v3722 = vadd.f32 0.0, %v3721
          %v3723 = vpop.f32.mrb[0].mxu0
          %v3724 = vpop.f32.mrb[0].mxu0
          %v3725 = vadd.f32 0.0, %v3724
          %v3726 = vpop.f32.mrb[0].mxu0
          %3727 = vmatprep.mubr.bf16.mxu0 0
          %3728 = vmatmul.mubr.bf16.gmra.mrb[0].mxu0 %v3665
          %v3729 = vpop.f32.mrb[0].mxu0
          %v3730 = vadd.f32 0.0, %v3729
          %v3731 = vpop.f32.mrb[0].mxu0
          %v3732 = vpop.f32.mrb[0].mxu0
          %v3733 = vadd.f32 0.0, %v3732
          %v3734 = vpop.f32.mrb[0].mxu0
          %3735 = vmatprep.mubr.bf16.mxu0 0
          %3736 = vmatmul.mubr.bf16.gmra.mrb[0].mxu0 %v3666
          %v3737 = vpop.f32.mrb[0].mxu0
          %v3738 = vadd.f32 0.0, %v3737
          %v3739 = vpop.f32.mrb[0].mxu0
          %v3740 = vpop.f32.mrb[0].mxu0
          %v3741 = vadd.f32 0.0, %v3740
          %v3742 = vpop.f32.mrb[0].mxu0
          %3743 = vmatprep.mubr.bf16.mxu0 0
          %3744 = vmatmul.mubr.bf16.gmra.mrb[0].mxu0 %v3667
          %v3745 = vpop.f32.mrb[0].mxu0
          %v3746 = vadd.f32 0.0, %v3745
          %v3747 = vpop.f32.mrb[0].mxu0
          %v3748 = vpop.f32.mrb[0].mxu0
          %v3749 = vadd.f32 0.0, %v3748
          %v3750 = vpop.f32.mrb[0].mxu0
          %3751 = vmatprep.mubr.bf16.mxu0 0
          %3752 = vmatmul.mubr.bf16.gmra.mrb[0].mxu0 %v3668
          %v3753 = vpop.f32.mrb[0].mxu0
          %v3754 = vadd.f32 0.0, %v3753
          %v3755 = vpop.f32.mrb[0].mxu0
          %v3756 = vpop.f32.mrb[0].mxu0
          %v3757 = vadd.f32 0.0, %v3756
          %v3758 = vpop.f32.mrb[0].mxu0
          %3759 = vmatprep.mubr.bf16.mxu0 0
          %3760 = vmatmul.mubr.bf16.gmra.mrb[0].mxu0 %v3669
          %v3761 = vpop.f32.mrb[0].mxu0
          %v3762 = vadd.f32 0.0, %v3761
          %v3763 = vpop.f32.mrb[0].mxu0
          %v3764 = vpop.f32.mrb[0].mxu0
          %v3765 = vadd.f32 0.0, %v3764
          %v3766 = vpop.f32.mrb[0].mxu0
          %3767 = vmatprep.mubr.bf16.mxu0 0
          %3768 = vmatmul.mubr.bf16.gmra.mrb[0].mxu0 %v3670
          %v3769 = vpop.f32.mrb[0].mxu0
          %v3770 = vadd.f32 0.0, %v3769
          %v3771 = vpop.f32.mrb[0].mxu0
          %v3772 = vpop.f32.mrb[0].mxu0
          %v3773 = vadd.f32 0.0, %v3772
          %v3774 = vpop.f32.mrb[0].mxu0
          %3775 = vdwg.mxu0
          %s3776 = scalar_lea.vmem [#allocation15], 128
          %v3777 = vld [vmem:[%s3776] sm:$0xf]
          %v3778 = vld [vmem:[%s3776 + $0x4] sm:$0xf]
          %v3779 = vld [vmem:[%s3776 + $0x8] sm:$0xf]
          %v3780 = vld [vmem:[%s3776 + $0xc] sm:$0xf]
          %v3781 = vpack.c.bf16 %v3717, %v3714
          %v3782 = vpack.c.bf16 %v3725, %v3722
          %v3783 = vpack.c.bf16 %v3733, %v3730
          %v3784 = vpack.c.bf16 %v3741, %v3738
          %v3785 = vpack.c.bf16 %v3749, %v3746
          %v3786 = vpack.c.bf16 %v3757, %v3754
          %v3787 = vpack.c.bf16 %v3765, %v3762
          %v3788 = vpack.c.bf16 %v3773, %v3770
          %v3793 = vunpack.c.l.b16 %v3777
          %v3794 = vunpack.c.l.b16 %v3778
          %v3795 = vunpack.c.l.b16 %v3779
          %v3796 = vunpack.c.l.b16 %v3780
          %v3797 = vpack.c.b16 %v3794, %v3793
          %v3798 = vpack.c.b16 %v3796, %v3795
          %v3802 = vsel %vm1415, %v3781, 0
          %v3805 = vsel %vm1415, %v3782, 0
          %v3808 = vsel %vm1415, %v3783, 0
          %v3811 = vsel %vm1415, %v3784, 0
          %v3814 = vsel %vm1415, %v3785, 0
          %v3817 = vsel %vm1415, %v3786, 0
          %v3820 = vsel %vm1415, %v3787, 0
          %v3823 = vsel %vm1415, %v3788, 0
          %3825 = vmatprep.subr.bf16.mxu0 0
          %3826 = vmatpush1.bf16.msra.mxu0 %v3797
          %3827 = vmatprep.subr.bf16.mxu0 0
          %3828 = vmatpush1.bf16.msra.mxu0 %v3798
          %3829 = vmatprep.subr.bf16.mxu0 0
          %3830 = vmatpush1.bf16.msra.mxu0 0
          %3831 = vmatprep.subr.bf16.mxu0 0
          %3832 = vmatpush1.bf16.msra.mxu0 0
          %3833 = vmatprep.subr.bf16.mxu0 0
          %3834 = vmatpush1.bf16.msra.mxu0 0
          %3835 = vmatprep.subr.bf16.mxu0 0
          %3836 = vmatpush1.bf16.msra.mxu0 0
          %3837 = vmatprep.subr.bf16.mxu0 0
          %3838 = vmatpush1.bf16.msra.mxu0 0
          %3839 = vmatprep.subr.bf16.mxu0 0
          %3840 = vmatpush1.bf16.msra.mxu0 0
          %3841 = vmatprep.subr.bf16.mxu0 0
          %3842 = vmatpush1.bf16.msra.mxu0 0
          %3843 = vmatprep.subr.bf16.mxu0 0
          %3844 = vmatpush1.bf16.msra.mxu0 0
          %3845 = vmatprep.subr.bf16.mxu0 0
          %3846 = vmatpush1.bf16.msra.mxu0 0
          %3847 = vmatprep.subr.bf16.mxu0 0
          %3848 = vmatpush1.bf16.msra.mxu0 0
          %3849 = vmatprep.subr.bf16.mxu0 0
          %3850 = vmatpush1.bf16.msra.mxu0 0
          %3851 = vmatprep.subr.bf16.mxu0 0
          %3852 = vmatpush1.bf16.msra.mxu0 0
          %3853 = vmatprep.subr.bf16.mxu0 0
          %3854 = vmatpush1.bf16.msra.mxu0 0
          %3855 = vmatprep.subr.bf16.mxu0 0
          %3856 = vmatpush1.bf16.msra.mxu0 0
          %3857 = vmatprep.mubr.bf16.mxu0 0
          %3858 = vmatmul.mubr.bf16.gmra.mrb[0].mxu0 %v3802
          %v3859 = vpop.f32.mrb[0].mxu0
          %v3860 = vadd.f32 0.0, %v3859
          %v3861 = vpop.f32.mrb[0].mxu0
          %v3862 = vpop.f32.mrb[0].mxu0
          %v3863 = vadd.f32 0.0, %v3862
          %v3864 = vpop.f32.mrb[0].mxu0
          %3865 = vmatprep.mubr.bf16.mxu0 0
          %3866 = vmatmul.mubr.bf16.gmra.mrb[0].mxu0 %v3805
          %v3867 = vpop.f32.mrb[0].mxu0
          %v3868 = vadd.f32 0.0, %v3867
          %v3869 = vpop.f32.mrb[0].mxu0
          %v3870 = vpop.f32.mrb[0].mxu0
          %v3871 = vadd.f32 0.0, %v3870
          %v3872 = vpop.f32.mrb[0].mxu0
          %3873 = vmatprep.mubr.bf16.mxu0 0
          %3874 = vmatmul.mubr.bf16.gmra.mrb[0].mxu0 %v3808
          %v3875 = vpop.f32.mrb[0].mxu0
          %v3876 = vadd.f32 0.0, %v3875
          %v3877 = vpop.f32.mrb[0].mxu0
          %v3878 = vpop.f32.mrb[0].mxu0
          %v3879 = vadd.f32 0.0, %v3878
          %v3880 = vpop.f32.mrb[0].mxu0
          %3881 = vmatprep.mubr.bf16.mxu0 0
          %3882 = vmatmul.mubr.bf16.gmra.mrb[0].mxu0 %v3811
          %v3883 = vpop.f32.mrb[0].mxu0
          %v3884 = vadd.f32 0.0, %v3883
          %v3885 = vpop.f32.mrb[0].mxu0
          %v3886 = vpop.f32.mrb[0].mxu0
          %v3887 = vadd.f32 0.0, %v3886
          %v3888 = vpop.f32.mrb[0].mxu0
          %3889 = vmatprep.mubr.bf16.mxu0 0
          %3890 = vmatmul.mubr.bf16.gmra.mrb[0].mxu0 %v3814
          %v3891 = vpop.f32.mrb[0].mxu0
          %v3892 = vadd.f32 0.0, %v3891
          %v3893 = vpop.f32.mrb[0].mxu0
          %v3894 = vpop.f32.mrb[0].mxu0
          %v3895 = vadd.f32 0.0, %v3894
          %v3896 = vpop.f32.mrb[0].mxu0
          %3897 = vmatprep.mubr.bf16.mxu0 0
          %3898 = vmatmul.mubr.bf16.gmra.mrb[0].mxu0 %v3817
          %v3899 = vpop.f32.mrb[0].mxu0
          %v3900 = vadd.f32 0.0, %v3899
          %v3901 = vpop.f32.mrb[0].mxu0
          %v3902 = vpop.f32.mrb[0].mxu0
          %v3903 = vadd.f32 0.0, %v3902
          %v3904 = vpop.f32.mrb[0].mxu0
          %3905 = vmatprep.mubr.bf16.mxu0 0
          %3906 = vmatmul.mubr.bf16.gmra.mrb[0].mxu0 %v3820
          %v3907 = vpop.f32.mrb[0].mxu0
          %v3908 = vadd.f32 0.0, %v3907
          %v3909 = vpop.f32.mrb[0].mxu0
          %v3910 = vpop.f32.mrb[0].mxu0
          %v3911 = vadd.f32 0.0, %v3910
          %v3912 = vpop.f32.mrb[0].mxu0
          %3913 = vmatprep.mubr.bf16.mxu0 0
          %3914 = vmatmul.mubr.bf16.gmra.mrb[0].mxu0 %v3823
          %v3915 = vpop.f32.mrb[0].mxu0
          %v3916 = vadd.f32 0.0, %v3915
          %v3917 = vpop.f32.mrb[0].mxu0
          %v3918 = vpop.f32.mrb[0].mxu0
          %v3919 = vadd.f32 0.0, %v3918
          %v3920 = vpop.f32.mrb[0].mxu0
          %3921 = vdwg.mxu0
          %v3922 = vadd.f32 %v3598, %v3860
          %v3923 = vadd.f32 %v3599, %v3863
          %v3924 = vadd.f32 %v3600, %v3868
          %v3925 = vadd.f32 %v3601, %v3871
          %v3926 = vadd.f32 %v3602, %v3876
          %v3927 = vadd.f32 %v3603, %v3879
          %v3928 = vadd.f32 %v3604, %v3884
          %v3929 = vadd.f32 %v3605, %v3887
          %v3930 = vadd.f32 %v3606, %v3892
          %v3931 = vadd.f32 %v3607, %v3895
          %v3932 = vadd.f32 %v3608, %v3900
          %v3933 = vadd.f32 %v3609, %v3903
          %v3934 = vadd.f32 %v3610, %v3908
          %v3935 = vadd.f32 %v3611, %v3911
          %v3936 = vadd.f32 %v3612, %v3916
          %v3937 = vadd.f32 %v3613, %v3919
          %v3938 = vld [vmem:[#allocation17] sm:$0x1]
          %v3940 = vlaneseq
          %v3941 = vshrl.u32 %v3940, 7
          %v3942 = vsub.s32 0, %v3941
          %v3943 = vrot.slane %v3938, %v3942
          %v3945 = vadd.f32 %v3922, %v3943
          %v3946 = vadd.f32 %v3923, %v3943
          %v3947 = vadd.f32 %v3924, %v3943
          %v3948 = vadd.f32 %v3925, %v3943
          %v3949 = vadd.f32 %v3926, %v3943
          %v3950 = vadd.f32 %v3927, %v3943
          %v3951 = vadd.f32 %v3928, %v3943
          %v3952 = vadd.f32 %v3929, %v3943
          %v3953 = vadd.f32 %v3930, %v3943
          %v3954 = vadd.f32 %v3931, %v3943
          %v3955 = vadd.f32 %v3932, %v3943
          %v3956 = vadd.f32 %v3933, %v3943
          %v3957 = vadd.f32 %v3934, %v3943
          %v3958 = vadd.f32 %v3935, %v3943
          %v3959 = vadd.f32 %v3936, %v3943
          %v3960 = vadd.f32 %v3937, %v3943
          %v3961 = vmax.f32 %v3945, 0.0
          %v3962 = vmax.f32 %v3946, 0.0
          %v3963 = vmax.f32 %v3947, 0.0
          %v3964 = vmax.f32 %v3948, 0.0
          %v3965 = vmax.f32 %v3949, 0.0
          %v3966 = vmax.f32 %v3950, 0.0
          %v3967 = vmax.f32 %v3951, 0.0
          %v3968 = vmax.f32 %v3952, 0.0
          %v3969 = vmax.f32 %v3953, 0.0
          %v3970 = vmax.f32 %v3954, 0.0
          %v3971 = vmax.f32 %v3955, 0.0
          %v3972 = vmax.f32 %v3956, 0.0
          %v3973 = vmax.f32 %v3957, 0.0
          %v3974 = vmax.f32 %v3958, 0.0
          %v3975 = vmax.f32 %v3959, 0.0
          %v3976 = vmax.f32 %v3960, 0.0
          %v3977 = vld [vmem:[#allocation6] sm:$0xf]
          %v3978 = vld [vmem:[#allocation6 + $0x4] sm:$0xf]
          %v3979 = vld [vmem:[#allocation6 + $0x8] sm:$0xf]
          %v3980 = vld [vmem:[#allocation6 + $0xc] sm:$0xf]
          %v3981 = vpack.c.bf16 %v3962, %v3961
          %v3982 = vpack.c.bf16 %v3964, %v3963
          %v3983 = vpack.c.bf16 %v3966, %v3965
          %v3984 = vpack.c.bf16 %v3968, %v3967
          %v3985 = vpack.c.bf16 %v3970, %v3969
          %v3986 = vpack.c.bf16 %v3972, %v3971
          %v3987 = vpack.c.bf16 %v3974, %v3973
          %v3988 = vpack.c.bf16 %v3976, %v3975
          %v3993 = vunpack.c.l.b16 %v3977
          %v3994 = vunpack.c.l.b16 %v3978
          %v3995 = vunpack.c.l.b16 %v3979
          %v3996 = vunpack.c.l.b16 %v3980
          %v3997 = vpack.c.b16 %v3994, %v3993
          %v3998 = vpack.c.b16 %v3996, %v3995
          %4001 = vmatprep.subr.bf16.mxu0 0
          %4002 = vmatpush1.bf16.msra.mxu0 %v3981
          %4003 = vmatprep.subr.bf16.mxu0 0
          %4004 = vmatpush1.bf16.msra.mxu0 %v3982
          %4005 = vmatprep.subr.bf16.mxu0 0
          %4006 = vmatpush1.bf16.msra.mxu0 %v3983
          %4007 = vmatprep.subr.bf16.mxu0 0
          %4008 = vmatpush1.bf16.msra.mxu0 %v3984
          %4009 = vmatprep.subr.bf16.mxu0 0
          %4010 = vmatpush1.bf16.msra.mxu0 %v3985
          %4011 = vmatprep.subr.bf16.mxu0 0
          %4012 = vmatpush1.bf16.msra.mxu0 %v3986
          %4013 = vmatprep.subr.bf16.mxu0 0
          %4014 = vmatpush1.bf16.msra.mxu0 %v3987
          %4015 = vmatprep.subr.bf16.mxu0 0
          %4016 = vmatpush1.bf16.msra.mxu0 %v3988
          %4017 = vmatprep.subr.bf16.mxu0 0
          %4018 = vmatpush1.bf16.msra.mxu0 0
          %4019 = vmatprep.subr.bf16.mxu0 0
          %4020 = vmatpush1.bf16.msra.mxu0 0
          %4021 = vmatprep.subr.bf16.mxu0 0
          %4022 = vmatpush1.bf16.msra.mxu0 0
          %4023 = vmatprep.subr.bf16.mxu0 0
          %4024 = vmatpush1.bf16.msra.mxu0 0
          %4025 = vmatprep.subr.bf16.mxu0 0
          %4026 = vmatpush1.bf16.msra.mxu0 0
          %4027 = vmatprep.subr.bf16.mxu0 0
          %4028 = vmatpush1.bf16.msra.mxu0 0
          %4029 = vmatprep.subr.bf16.mxu0 0
          %4030 = vmatpush1.bf16.msra.mxu0 0
          %4031 = vmatprep.subr.bf16.mxu0 0
          %4032 = vmatpush1.bf16.msra.mxu0 0
          %4033 = vmatprep.mubr.bf16.mxu0 0
          %4034 = vmatmul.mubr.bf16.gmra.mrb[0].mxu0 %v3997
          %v4035 = vpop.f32.mrb[0].mxu0
          %v4036 = vadd.f32 0.0, %v4035
          %v4037 = vpop.f32.mrb[0].mxu0
          %v4038 = vpop.f32.mrb[0].mxu0
          %v4039 = vadd.f32 0.0, %v4038
          %v4040 = vpop.f32.mrb[0].mxu0
          %4041 = vmatprep.mubr.bf16.mxu0 0
          %4042 = vmatmul.mubr.bf16.gmra.mrb[0].mxu0 %v3998
          %v4043 = vpop.f32.mrb[0].mxu0
          %v4044 = vadd.f32 0.0, %v4043
          %v4045 = vpop.f32.mrb[0].mxu0
          %v4046 = vpop.f32.mrb[0].mxu0
          %v4047 = vadd.f32 0.0, %v4046
          %v4048 = vpop.f32.mrb[0].mxu0
          %4049 = vdwg.mxu0
          %s4050 = scalar_lea.vmem [#allocation6], 16
          %v4051 = vld [vmem:[%s4050] sm:$0xf]
          %v4052 = vld [vmem:[%s4050 + $0x4] sm:$0xf]
          %v4053 = vld [vmem:[%s4050 + $0x8] sm:$0xf]
          %v4054 = vld [vmem:[%s4050 + $0xc] sm:$0xf]
          %v4059 = vunpack.c.l.b16 %v4051
          %v4060 = vunpack.c.l.b16 %v4052
          %v4061 = vunpack.c.l.b16 %v4053
          %v4062 = vunpack.c.l.b16 %v4054
          %v4063 = vpack.c.b16 %v4060, %v4059
          %v4064 = vpack.c.b16 %v4062, %v4061
          %4067 = vmatprep.subr.bf16.mxu0 0
          %4068 = vmatpush1.bf16.msra.mxu0 %v3981
          %4069 = vmatprep.subr.bf16.mxu0 0
          %4070 = vmatpush1.bf16.msra.mxu0 %v3982
          %4071 = vmatprep.subr.bf16.mxu0 0
          %4072 = vmatpush1.bf16.msra.mxu0 %v3983
          %4073 = vmatprep.subr.bf16.mxu0 0
          %4074 = vmatpush1.bf16.msra.mxu0 %v3984
          %4075 = vmatprep.subr.bf16.mxu0 0
          %4076 = vmatpush1.bf16.msra.mxu0 %v3985
          %4077 = vmatprep.subr.bf16.mxu0 0
          %4078 = vmatpush1.bf16.msra.mxu0 %v3986
          %4079 = vmatprep.subr.bf16.mxu0 0
          %4080 = vmatpush1.bf16.msra.mxu0 %v3987
          %4081 = vmatprep.subr.bf16.mxu0 0
          %4082 = vmatpush1.bf16.msra.mxu0 %v3988
          %4083 = vmatprep.subr.bf16.mxu0 0
          %4084 = vmatpush1.bf16.msra.mxu0 0
          %4085 = vmatprep.subr.bf16.mxu0 0
          %4086 = vmatpush1.bf16.msra.mxu0 0
          %4087 = vmatprep.subr.bf16.mxu0 0
          %4088 = vmatpush1.bf16.msra.mxu0 0
          %4089 = vmatprep.subr.bf16.mxu0 0
          %4090 = vmatpush1.bf16.msra.mxu0 0
          %4091 = vmatprep.subr.bf16.mxu0 0
          %4092 = vmatpush1.bf16.msra.mxu0 0
          %4093 = vmatprep.subr.bf16.mxu0 0
          %4094 = vmatpush1.bf16.msra.mxu0 0
          %4095 = vmatprep.subr.bf16.mxu0 0
          %4096 = vmatpush1.bf16.msra.mxu0 0
          %4097 = vmatprep.subr.bf16.mxu0 0
          %4098 = vmatpush1.bf16.msra.mxu0 0
          %4099 = vmatprep.mubr.bf16.mxu0 0
          %4100 = vmatmul.mubr.bf16.gmra.mrb[0].mxu0 %v4063
          %v4101 = vpop.f32.mrb[0].mxu0
          %v4102 = vadd.f32 0.0, %v4101
          %v4103 = vpop.f32.mrb[0].mxu0
          %v4104 = vpop.f32.mrb[0].mxu0
          %v4105 = vadd.f32 0.0, %v4104
          %v4106 = vpop.f32.mrb[0].mxu0
          %4107 = vmatprep.mubr.bf16.mxu0 0
          %4108 = vmatmul.mubr.bf16.gmra.mrb[0].mxu0 %v4064
          %v4109 = vpop.f32.mrb[0].mxu0
          %v4110 = vadd.f32 0.0, %v4109
          %v4111 = vpop.f32.mrb[0].mxu0
          %v4112 = vpop.f32.mrb[0].mxu0
          %v4113 = vadd.f32 0.0, %v4112
          %v4114 = vpop.f32.mrb[0].mxu0
          %4115 = vdwg.mxu0
          %v4116 = vmax.f32 %v4036, %v4102
          %v4117 = vmax.f32 %v4039, %v4105
          %v4118 = vmax.f32 %v4044, %v4110
          %v4119 = vmax.f32 %v4047, %v4113
          %s4120 = scalar_lea.vmem [#allocation6], 32
          %v4121 = vld [vmem:[%s4120] sm:$0xf]
          %v4122 = vld [vmem:[%s4120 + $0x4] sm:$0xf]
          %v4123 = vld [vmem:[%s4120 + $0x8] sm:$0xf]
          %v4124 = vld [vmem:[%s4120 + $0xc] sm:$0xf]
          %v4129 = vunpack.c.l.b16 %v4121
          %v4130 = vunpack.c.l.b16 %v4122
          %v4131 = vunpack.c.l.b16 %v4123
          %v4132 = vunpack.c.l.b16 %v4124
          %v4133 = vpack.c.b16 %v4130, %v4129
          %v4134 = vpack.c.b16 %v4132, %v4131
          %4137 = vmatprep.subr.bf16.mxu0 0
          %4138 = vmatpush1.bf16.msra.mxu0 %v3981
          %4139 = vmatprep.subr.bf16.mxu0 0
          %4140 = vmatpush1.bf16.msra.mxu0 %v3982
          %4141 = vmatprep.subr.bf16.mxu0 0
          %4142 = vmatpush1.bf16.msra.mxu0 %v3983
          %4143 = vmatprep.subr.bf16.mxu0 0
          %4144 = vmatpush1.bf16.msra.mxu0 %v3984
          %4145 = vmatprep.subr.bf16.mxu0 0
          %4146 = vmatpush1.bf16.msra.mxu0 %v3985
          %4147 = vmatprep.subr.bf16.mxu0 0
          %4148 = vmatpush1.bf16.msra.mxu0 %v3986
          %4149 = vmatprep.subr.bf16.mxu0 0
          %4150 = vmatpush1.bf16.msra.mxu0 %v3987
          %4151 = vmatprep.subr.bf16.mxu0 0
          %4152 = vmatpush1.bf16.msra.mxu0 %v3988
          %4153 = vmatprep.subr.bf16.mxu0 0
          %4154 = vmatpush1.bf16.msra.mxu0 0
          %4155 = vmatprep.subr.bf16.mxu0 0
          %4156 = vmatpush1.bf16.msra.mxu0 0
          %4157 = vmatprep.subr.bf16.mxu0 0
          %4158 = vmatpush1.bf16.msra.mxu0 0
          %4159 = vmatprep.subr.bf16.mxu0 0
          %4160 = vmatpush1.bf16.msra.mxu0 0
          %4161 = vmatprep.subr.bf16.mxu0 0
          %4162 = vmatpush1.bf16.msra.mxu0 0
          %4163 = vmatprep.subr.bf16.mxu0 0
          %4164 = vmatpush1.bf16.msra.mxu0 0
          %4165 = vmatprep.subr.bf16.mxu0 0
          %4166 = vmatpush1.bf16.msra.mxu0 0
          %4167 = vmatprep.subr.bf16.mxu0 0
          %4168 = vmatpush1.bf16.msra.mxu0 0
          %4169 = vmatprep.mubr.bf16.mxu0 0
          %4170 = vmatmul.mubr.bf16.gmra.mrb[0].mxu0 %v4133
          %v4171 = vpop.f32.mrb[0].mxu0
          %v4172 = vadd.f32 0.0, %v4171
          %v4173 = vpop.f32.mrb[0].mxu0
          %v4174 = vpop.f32.mrb[0].mxu0
          %v4175 = vadd.f32 0.0, %v4174
          %v4176 = vpop.f32.mrb[0].mxu0
          %4177 = vmatprep.mubr.bf16.mxu0 0
          %4178 = vmatmul.mubr.bf16.gmra.mrb[0].mxu0 %v4134
          %v4179 = vpop.f32.mrb[0].mxu0
          %v4180 = vadd.f32 0.0, %v4179
          %v4181 = vpop.f32.mrb[0].mxu0
          %v4182 = vpop.f32.mrb[0].mxu0
          %v4183 = vadd.f32 0.0, %v4182
          %v4184 = vpop.f32.mrb[0].mxu0
          %4185 = vdwg.mxu0
          %v4186 = vmax.f32 %v4116, %v4172
          %v4187 = vmax.f32 %v4117, %v4175
          %v4188 = vmax.f32 %v4118, %v4180
          %v4189 = vmax.f32 %v4119, %v4183
          %s4190 = scalar_lea.vmem [#allocation6], 48
          %v4191 = vld [vmem:[%s4190] sm:$0xf]
          %v4192 = vld [vmem:[%s4190 + $0x4] sm:$0xf]
          %v4193 = vld [vmem:[%s4190 + $0x8] sm:$0xf]
          %v4194 = vld [vmem:[%s4190 + $0xc] sm:$0xf]
          %v4199 = vunpack.c.l.b16 %v4191
          %v4200 = vunpack.c.l.b16 %v4192
          %v4201 = vunpack.c.l.b16 %v4193
          %v4202 = vunpack.c.l.b16 %v4194
          %v4203 = vpack.c.b16 %v4200, %v4199
          %v4204 = vpack.c.b16 %v4202, %v4201
          %4207 = vmatprep.subr.bf16.mxu0 0
          %4208 = vmatpush1.bf16.msra.mxu0 %v3981
          %4209 = vmatprep.subr.bf16.mxu0 0
          %4210 = vmatpush1.bf16.msra.mxu0 %v3982
          %4211 = vmatprep.subr.bf16.mxu0 0
          %4212 = vmatpush1.bf16.msra.mxu0 %v3983
          %4213 = vmatprep.subr.bf16.mxu0 0
          %4214 = vmatpush1.bf16.msra.mxu0 %v3984
          %4215 = vmatprep.subr.bf16.mxu0 0
          %4216 = vmatpush1.bf16.msra.mxu0 %v3985
          %4217 = vmatprep.subr.bf16.mxu0 0
          %4218 = vmatpush1.bf16.msra.mxu0 %v3986
          %4219 = vmatprep.subr.bf16.mxu0 0
          %4220 = vmatpush1.bf16.msra.mxu0 %v3987
          %4221 = vmatprep.subr.bf16.mxu0 0
          %4222 = vmatpush1.bf16.msra.mxu0 %v3988
          %4223 = vmatprep.subr.bf16.mxu0 0
          %4224 = vmatpush1.bf16.msra.mxu0 0
          %4225 = vmatprep.subr.bf16.mxu0 0
          %4226 = vmatpush1.bf16.msra.mxu0 0
          %4227 = vmatprep.subr.bf16.mxu0 0
          %4228 = vmatpush1.bf16.msra.mxu0 0
          %4229 = vmatprep.subr.bf16.mxu0 0
          %4230 = vmatpush1.bf16.msra.mxu0 0
          %4231 = vmatprep.subr.bf16.mxu0 0
          %4232 = vmatpush1.bf16.msra.mxu0 0
          %4233 = vmatprep.subr.bf16.mxu0 0
          %4234 = vmatpush1.bf16.msra.mxu0 0
          %4235 = vmatprep.subr.bf16.mxu0 0
          %4236 = vmatpush1.bf16.msra.mxu0 0
          %4237 = vmatprep.subr.bf16.mxu0 0
          %4238 = vmatpush1.bf16.msra.mxu0 0
          %4239 = vmatprep.mubr.bf16.mxu0 0
          %4240 = vmatmul.mubr.bf16.gmra.mrb[0].mxu0 %v4203
          %v4241 = vpop.f32.mrb[0].mxu0
          %v4242 = vadd.f32 0.0, %v4241
          %v4243 = vpop.f32.mrb[0].mxu0
          %v4244 = vpop.f32.mrb[0].mxu0
          %v4245 = vadd.f32 0.0, %v4244
          %v4246 = vpop.f32.mrb[0].mxu0
          %4247 = vmatprep.mubr.bf16.mxu0 0
          %4248 = vmatmul.mubr.bf16.gmra.mrb[0].mxu0 %v4204
          %v4249 = vpop.f32.mrb[0].mxu0
          %v4250 = vadd.f32 0.0, %v4249
          %v4251 = vpop.f32.mrb[0].mxu0
          %v4252 = vpop.f32.mrb[0].mxu0
          %v4253 = vadd.f32 0.0, %v4252
          %v4254 = vpop.f32.mrb[0].mxu0
          %4255 = vdwg.mxu0
          %v4256 = vmax.f32 %v4186, %v4242
          %v4257 = vmax.f32 %v4187, %v4245
          %v4258 = vmax.f32 %v4188, %v4250
          %v4259 = vmax.f32 %v4189, %v4253
          %v4260 = vld [vmem:[#allocation8] sm:$0xf]
          %v4261 = vld [vmem:[#allocation8 + $0x4] sm:$0xf]
          %v4262 = vld [vmem:[#allocation8 + $0x8] sm:$0xf]
          %v4263 = vld [vmem:[#allocation8 + $0xc] sm:$0xf]
          %v4264 = vpack.c.bf16 %v4257, %v4256
          %v4265 = vpack.c.bf16 %v4259, %v4258
          %v4270 = vunpack.c.l.b16 %v4260
          %v4271 = vunpack.c.l.b16 %v4261
          %v4272 = vunpack.c.l.b16 %v4262
          %v4273 = vunpack.c.l.b16 %v4263
          %v4274 = vpack.c.b16 %v4271, %v4270
          %v4275 = vpack.c.b16 %v4273, %v4272
          %v4277 = vsel %vm1415, %v4274, 0
          %v4280 = vsel %vm1415, %v4275, 0
          %4282 = vmatprep.subr.bf16.mxu0 0
          %4283 = vmatpush1.bf16.msra.mxu0 %v4264
          %4284 = vmatprep.subr.bf16.mxu0 0
          %4285 = vmatpush1.bf16.msra.mxu0 %v4265
          %4286 = vmatprep.subr.bf16.mxu0 0
          %4287 = vmatpush1.bf16.msra.mxu0 0
          %4288 = vmatprep.subr.bf16.mxu0 0
          %4289 = vmatpush1.bf16.msra.mxu0 0
          %4290 = vmatprep.subr.bf16.mxu0 0
          %4291 = vmatpush1.bf16.msra.mxu0 0
          %4292 = vmatprep.subr.bf16.mxu0 0
          %4293 = vmatpush1.bf16.msra.mxu0 0
          %4294 = vmatprep.subr.bf16.mxu0 0
          %4295 = vmatpush1.bf16.msra.mxu0 0
          %4296 = vmatprep.subr.bf16.mxu0 0
          %4297 = vmatpush1.bf16.msra.mxu0 0
          %4298 = vmatprep.subr.bf16.mxu0 0
          %4299 = vmatpush1.bf16.msra.mxu0 0
          %4300 = vmatprep.subr.bf16.mxu0 0
          %4301 = vmatpush1.bf16.msra.mxu0 0
          %4302 = vmatprep.subr.bf16.mxu0 0
          %4303 = vmatpush1.bf16.msra.mxu0 0
          %4304 = vmatprep.subr.bf16.mxu0 0
          %4305 = vmatpush1.bf16.msra.mxu0 0
          %4306 = vmatprep.subr.bf16.mxu0 0
          %4307 = vmatpush1.bf16.msra.mxu0 0
          %4308 = vmatprep.subr.bf16.mxu0 0
          %4309 = vmatpush1.bf16.msra.mxu0 0
          %4310 = vmatprep.subr.bf16.mxu0 0
          %4311 = vmatpush1.bf16.msra.mxu0 0
          %4312 = vmatprep.subr.bf16.mxu0 0
          %4313 = vmatpush1.bf16.msra.mxu0 0
          %4314 = vmatprep.mubr.bf16.mxu0 0
          %4315 = vmatmul.mubr.bf16.gmra.mrb[0].mxu0 %v4277
          %v4316 = vpop.f32.mrb[0].mxu0
          %v4317 = vadd.f32 0.0, %v4316
          %v4318 = vpop.f32.mrb[0].mxu0
          %v4319 = vpop.f32.mrb[0].mxu0
          %v4320 = vadd.f32 0.0, %v4319
          %v4321 = vpop.f32.mrb[0].mxu0
          %4322 = vmatprep.mubr.bf16.mxu0 0
          %4323 = vmatmul.mubr.bf16.gmra.mrb[0].mxu0 %v4280
          %v4324 = vpop.f32.mrb[0].mxu0
          %v4325 = vadd.f32 0.0, %v4324
          %v4326 = vpop.f32.mrb[0].mxu0
          %v4327 = vpop.f32.mrb[0].mxu0
          %v4328 = vadd.f32 0.0, %v4327
          %v4329 = vpop.f32.mrb[0].mxu0
          %4330 = vdwg.mxu0
          %v4331 = vld [vmem:[#allocation18] sm:$0xf]
          %v4332 = vld [vmem:[#allocation18 + $0x4] sm:$0xf]
          %v4333 = vld [vmem:[#allocation18 + $0x8] sm:$0xf]
          %v4334 = vld [vmem:[#allocation18 + $0xc] sm:$0xf]
          %v4335 = vld [vmem:[#allocation18 + $0x10] sm:$0xf]
          %v4336 = vld [vmem:[#allocation18 + $0x14] sm:$0xf]
          %v4337 = vld [vmem:[#allocation18 + $0x18] sm:$0xf]
          %v4338 = vld [vmem:[#allocation18 + $0x1c] sm:$0xf]
          %v4339 = vpack.c.bf16 %v4320, %v4317
          %v4340 = vpack.c.bf16 %v4328, %v4325
          %s4341 = scalar_lea.vmem [#allocation8], 16
          %v4342 = vld [vmem:[%s4341] sm:$0xf]
          %v4343 = vld [vmem:[%s4341 + $0x4] sm:$0xf]
          %v4344 = vld [vmem:[%s4341 + $0x8] sm:$0xf]
          %v4345 = vld [vmem:[%s4341 + $0xc] sm:$0xf]
          %v4350 = vunpack.c.l.b16 %v4342
          %v4351 = vunpack.c.l.b16 %v4343
          %v4352 = vunpack.c.l.b16 %v4344
          %v4353 = vunpack.c.l.b16 %v4345
          %v4354 = vpack.c.b16 %v4351, %v4350
          %v4355 = vpack.c.b16 %v4353, %v4352
          %v4357 = vsel %vm1415, %v4354, 0
          %v4360 = vsel %vm1415, %v4355, 0
          %4362 = vmatprep.subr.bf16.mxu0 0
          %4363 = vmatpush1.bf16.msra.mxu0 %v4264
          %4364 = vmatprep.subr.bf16.mxu0 0
          %4365 = vmatpush1.bf16.msra.mxu0 %v4265
          %4366 = vmatprep.subr.bf16.mxu0 0
          %4367 = vmatpush1.bf16.msra.mxu0 0
          %4368 = vmatprep.subr.bf16.mxu0 0
          %4369 = vmatpush1.bf16.msra.mxu0 0
          %4370 = vmatprep.subr.bf16.mxu0 0
          %4371 = vmatpush1.bf16.msra.mxu0 0
          %4372 = vmatprep.subr.bf16.mxu0 0
          %4373 = vmatpush1.bf16.msra.mxu0 0
          %4374 = vmatprep.subr.bf16.mxu0 0
          %4375 = vmatpush1.bf16.msra.mxu0 0
          %4376 = vmatprep.subr.bf16.mxu0 0
          %4377 = vmatpush1.bf16.msra.mxu0 0
          %4378 = vmatprep.subr.bf16.mxu0 0
          %4379 = vmatpush1.bf16.msra.mxu0 0
          %4380 = vmatprep.subr.bf16.mxu0 0
          %4381 = vmatpush1.bf16.msra.mxu0 0
          %4382 = vmatprep.subr.bf16.mxu0 0
          %4383 = vmatpush1.bf16.msra.mxu0 0
          %4384 = vmatprep.subr.bf16.mxu0 0
          %4385 = vmatpush1.bf16.msra.mxu0 0
          %4386 = vmatprep.subr.bf16.mxu0 0
          %4387 = vmatpush1.bf16.msra.mxu0 0
          %4388 = vmatprep.subr.bf16.mxu0 0
          %4389 = vmatpush1.bf16.msra.mxu0 0
          %4390 = vmatprep.subr.bf16.mxu0 0
          %4391 = vmatpush1.bf16.msra.mxu0 0
          %4392 = vmatprep.subr.bf16.mxu0 0
          %4393 = vmatpush1.bf16.msra.mxu0 0
          %4394 = vmatprep.mubr.bf16.mxu0 0
          %4395 = vmatmul.mubr.bf16.gmra.mrb[0].mxu0 %v4357
          %v4396 = vpop.f32.mrb[0].mxu0
          %v4397 = vadd.f32 0.0, %v4396
          %v4398 = vpop.f32.mrb[0].mxu0
          %v4399 = vpop.f32.mrb[0].mxu0
          %v4400 = vadd.f32 0.0, %v4399
          %v4401 = vpop.f32.mrb[0].mxu0
          %4402 = vmatprep.mubr.bf16.mxu0 0
          %4403 = vmatmul.mubr.bf16.gmra.mrb[0].mxu0 %v4360
          %v4404 = vpop.f32.mrb[0].mxu0
          %v4405 = vadd.f32 0.0, %v4404
          %v4406 = vpop.f32.mrb[0].mxu0
          %v4407 = vpop.f32.mrb[0].mxu0
          %v4408 = vadd.f32 0.0, %v4407
          %v4409 = vpop.f32.mrb[0].mxu0
          %4410 = vdwg.mxu0
          %s4411 = scalar_lea.vmem [#allocation18], 32
          %v4412 = vld [vmem:[%s4411] sm:$0xf]
          %v4413 = vld [vmem:[%s4411 + $0x4] sm:$0xf]
          %v4414 = vld [vmem:[%s4411 + $0x8] sm:$0xf]
          %v4415 = vld [vmem:[%s4411 + $0xc] sm:$0xf]
          %v4416 = vld [vmem:[%s4411 + $0x10] sm:$0xf]
          %v4417 = vld [vmem:[%s4411 + $0x14] sm:$0xf]
          %v4418 = vld [vmem:[%s4411 + $0x18] sm:$0xf]
          %v4419 = vld [vmem:[%s4411 + $0x1c] sm:$0xf]
          %v4420 = vpack.c.bf16 %v4400, %v4397
          %v4421 = vpack.c.bf16 %v4408, %v4405
          %v4430 = vunpack.c.l.b16 %v4412
          %v4431 = vunpack.c.l.b16 %v4413
          %v4432 = vunpack.c.l.b16 %v4414
          %v4433 = vunpack.c.l.b16 %v4415
          %v4434 = vunpack.c.l.b16 %v4416
          %v4435 = vunpack.c.l.b16 %v4417
          %v4436 = vunpack.c.l.b16 %v4418
          %v4437 = vunpack.c.l.b16 %v4419
          %v4438 = vpack.c.b16 %v4431, %v4430
          %v4439 = vpack.c.b16 %v4433, %v4432
          %v4440 = vpack.c.b16 %v4435, %v4434
          %v4441 = vpack.c.b16 %v4437, %v4436
          %vm4446 = vcmask 523264
          %v4448 = vsel %vm4446, %v4420, 0
          %v4451 = vsel %vm4446, %v4421, 0
          %4453 = vmatprep.subr.bf16.mxu0 0
          %4454 = vmatpush1.bf16.msra.mxu0 %v4438
          %4455 = vmatprep.subr.bf16.mxu0 0
          %4456 = vmatpush1.bf16.msra.mxu0 %v4439
          %4457 = vmatprep.subr.bf16.mxu0 0
          %4458 = vmatpush1.bf16.msra.mxu0 %v4440
          %4459 = vmatprep.subr.bf16.mxu0 0
          %4460 = vmatpush1.bf16.msra.mxu0 %v4441
          %4461 = vmatprep.subr.bf16.mxu0 0
          %4462 = vmatpush1.bf16.msra.mxu0 0
          %4463 = vmatprep.subr.bf16.mxu0 0
          %4464 = vmatpush1.bf16.msra.mxu0 0
          %4465 = vmatprep.subr.bf16.mxu0 0
          %4466 = vmatpush1.bf16.msra.mxu0 0
          %4467 = vmatprep.subr.bf16.mxu0 0
          %4468 = vmatpush1.bf16.msra.mxu0 0
          %4469 = vmatprep.subr.bf16.mxu0 0
          %4470 = vmatpush1.bf16.msra.mxu0 0
          %4471 = vmatprep.subr.bf16.mxu0 0
          %4472 = vmatpush1.bf16.msra.mxu0 0
          %4473 = vmatprep.subr.bf16.mxu0 0
          %4474 = vmatpush1.bf16.msra.mxu0 0
          %4475 = vmatprep.subr.bf16.mxu0 0
          %4476 = vmatpush1.bf16.msra.mxu0 0
          %4477 = vmatprep.subr.bf16.mxu0 0
          %4478 = vmatpush1.bf16.msra.mxu0 0
          %4479 = vmatprep.subr.bf16.mxu0 0
          %4480 = vmatpush1.bf16.msra.mxu0 0
          %4481 = vmatprep.subr.bf16.mxu0 0
          %4482 = vmatpush1.bf16.msra.mxu0 0
          %4483 = vmatprep.subr.bf16.mxu0 0
          %4484 = vmatpush1.bf16.msra.mxu0 0
          %4485 = vmatprep.mubr.bf16.mxu0 0
          %4486 = vmatmul.mubr.bf16.gmra.mrb[0].mxu0 %v4448
          %v4487 = vpop.f32.mrb[0].mxu0
          %v4488 = vadd.f32 0.0, %v4487
          %v4489 = vpop.f32.mrb[0].mxu0
          %v4490 = vpop.f32.mrb[0].mxu0
          %v4491 = vadd.f32 0.0, %v4490
          %v4492 = vpop.f32.mrb[0].mxu0
          %4493 = vmatprep.mubr.bf16.mxu0 0
          %4494 = vmatmul.mubr.bf16.gmra.mrb[0].mxu0 %v4451
          %v4495 = vpop.f32.mrb[0].mxu0
          %v4496 = vadd.f32 0.0, %v4495
          %v4497 = vpop.f32.mrb[0].mxu0
          %v4498 = vpop.f32.mrb[0].mxu0
          %v4499 = vadd.f32 0.0, %v4498
          %v4500 = vpop.f32.mrb[0].mxu0
          %4501 = vdwg.mxu0
          %v4510 = vunpack.c.l.b16 %v4331
          %v4511 = vunpack.c.l.b16 %v4332
          %v4512 = vunpack.c.l.b16 %v4333
          %v4513 = vunpack.c.l.b16 %v4334
          %v4514 = vunpack.c.l.b16 %v4335
          %v4515 = vunpack.c.l.b16 %v4336
          %v4516 = vunpack.c.l.b16 %v4337
          %v4517 = vunpack.c.l.b16 %v4338
          %v4518 = vpack.c.b16 %v4511, %v4510
          %v4519 = vpack.c.b16 %v4513, %v4512
          %v4520 = vpack.c.b16 %v4515, %v4514
          %v4521 = vpack.c.b16 %v4517, %v4516
          %v4527 = vsel %vm4446, %v4339, 0
          %v4530 = vsel %vm4446, %v4340, 0
          %4532 = vmatprep.subr.bf16.mxu0 0
          %4533 = vmatpush1.bf16.msra.mxu0 %v4518
          %4534 = vmatprep.subr.bf16.mxu0 0
          %4535 = vmatpush1.bf16.msra.mxu0 %v4519
          %4536 = vmatprep.subr.bf16.mxu0 0
          %4537 = vmatpush1.bf16.msra.mxu0 %v4520
          %4538 = vmatprep.subr.bf16.mxu0 0
          %4539 = vmatpush1.bf16.msra.mxu0 %v4521
          %4540 = vmatprep.subr.bf16.mxu0 0
          %4541 = vmatpush1.bf16.msra.mxu0 0
          %4542 = vmatprep.subr.bf16.mxu0 0
          %4543 = vmatpush1.bf16.msra.mxu0 0
          %4544 = vmatprep.subr.bf16.mxu0 0
          %4545 = vmatpush1.bf16.msra.mxu0 0
          %4546 = vmatprep.subr.bf16.mxu0 0
          %4547 = vmatpush1.bf16.msra.mxu0 0
          %4548 = vmatprep.subr.bf16.mxu0 0
          %4549 = vmatpush1.bf16.msra.mxu0 0
          %4550 = vmatprep.subr.bf16.mxu0 0
          %4551 = vmatpush1.bf16.msra.mxu0 0
          %4552 = vmatprep.subr.bf16.mxu0 0
          %4553 = vmatpush1.bf16.msra.mxu0 0
          %4554 = vmatprep.subr.bf16.mxu0 0
          %4555 = vmatpush1.bf16.msra.mxu0 0
          %4556 = vmatprep.subr.bf16.mxu0 0
          %4557 = vmatpush1.bf16.msra.mxu0 0
          %4558 = vmatprep.subr.bf16.mxu0 0
          %4559 = vmatpush1.bf16.msra.mxu0 0
          %4560 = vmatprep.subr.bf16.mxu0 0
          %4561 = vmatpush1.bf16.msra.mxu0 0
          %4562 = vmatprep.subr.bf16.mxu0 0
          %4563 = vmatpush1.bf16.msra.mxu0 0
          %4564 = vmatprep.mubr.bf16.mxu0 0
          %4565 = vmatmul.mubr.bf16.gmra.mrb[0].mxu0 %v4527
          %v4566 = vpop.f32.mrb[0].mxu0
          %v4567 = vadd.f32 %v4488, %v4566
          %v4568 = vpop.f32.mrb[0].mxu0
          %v4569 = vpop.f32.mrb[0].mxu0
          %v4570 = vadd.f32 %v4491, %v4569
          %v4571 = vpop.f32.mrb[0].mxu0
          %4572 = vmatprep.mubr.bf16.mxu0 0
          %4573 = vmatmul.mubr.bf16.gmra.mrb[0].mxu0 %v4530
          %v4574 = vpop.f32.mrb[0].mxu0
          %v4575 = vadd.f32 %v4496, %v4574
          %v4576 = vpop.f32.mrb[0].mxu0
          %v4577 = vpop.f32.mrb[0].mxu0
          %v4578 = vadd.f32 %v4499, %v4577
          %v4579 = vpop.f32.mrb[0].mxu0
          %4580 = vdwg.mxu0
          %s4581 = scalar_lea.vmem [#allocation8], 32
          %v4582 = vld [vmem:[%s4581] sm:$0xf]
          %v4583 = vld [vmem:[%s4581 + $0x4] sm:$0xf]
          %v4584 = vld [vmem:[%s4581 + $0x8] sm:$0xf]
          %v4585 = vld [vmem:[%s4581 + $0xc] sm:$0xf]
          %v4590 = vunpack.c.l.b16 %v4582
          %v4591 = vunpack.c.l.b16 %v4583
          %v4592 = vunpack.c.l.b16 %v4584
          %v4593 = vunpack.c.l.b16 %v4585
          %v4594 = vpack.c.b16 %v4591, %v4590
          %v4595 = vpack.c.b16 %v4593, %v4592
          %v4597 = vsel %vm1415, %v4594, 0
          %v4600 = vsel %vm1415, %v4595, 0
          %4602 = vmatprep.subr.bf16.mxu0 0
          %4603 = vmatpush1.bf16.msra.mxu0 %v4264
          %4604 = vmatprep.subr.bf16.mxu0 0
          %4605 = vmatpush1.bf16.msra.mxu0 %v4265
          %4606 = vmatprep.subr.bf16.mxu0 0
          %4607 = vmatpush1.bf16.msra.mxu0 0
          %4608 = vmatprep.subr.bf16.mxu0 0
          %4609 = vmatpush1.bf16.msra.mxu0 0
          %4610 = vmatprep.subr.bf16.mxu0 0
          %4611 = vmatpush1.bf16.msra.mxu0 0
          %4612 = vmatprep.subr.bf16.mxu0 0
          %4613 = vmatpush1.bf16.msra.mxu0 0
          %4614 = vmatprep.subr.bf16.mxu0 0
          %4615 = vmatpush1.bf16.msra.mxu0 0
          %4616 = vmatprep.subr.bf16.mxu0 0
          %4617 = vmatpush1.bf16.msra.mxu0 0
          %4618 = vmatprep.subr.bf16.mxu0 0
          %4619 = vmatpush1.bf16.msra.mxu0 0
          %4620 = vmatprep.subr.bf16.mxu0 0
          %4621 = vmatpush1.bf16.msra.mxu0 0
          %4622 = vmatprep.subr.bf16.mxu0 0
          %4623 = vmatpush1.bf16.msra.mxu0 0
          %4624 = vmatprep.subr.bf16.mxu0 0
          %4625 = vmatpush1.bf16.msra.mxu0 0
          %4626 = vmatprep.subr.bf16.mxu0 0
          %4627 = vmatpush1.bf16.msra.mxu0 0
          %4628 = vmatprep.subr.bf16.mxu0 0
          %4629 = vmatpush1.bf16.msra.mxu0 0
          %4630 = vmatprep.subr.bf16.mxu0 0
          %4631 = vmatpush1.bf16.msra.mxu0 0
          %4632 = vmatprep.subr.bf16.mxu0 0
          %4633 = vmatpush1.bf16.msra.mxu0 0
          %4634 = vmatprep.mubr.bf16.mxu0 0
          %4635 = vmatmul.mubr.bf16.gmra.mrb[0].mxu0 %v4597
          %v4636 = vpop.f32.mrb[0].mxu0
          %v4637 = vadd.f32 0.0, %v4636
          %v4638 = vpop.f32.mrb[0].mxu0
          %v4639 = vpop.f32.mrb[0].mxu0
          %v4640 = vadd.f32 0.0, %v4639
          %v4641 = vpop.f32.mrb[0].mxu0
          %4642 = vmatprep.mubr.bf16.mxu0 0
          %4643 = vmatmul.mubr.bf16.gmra.mrb[0].mxu0 %v4600
          %v4644 = vpop.f32.mrb[0].mxu0
          %v4645 = vadd.f32 0.0, %v4644
          %v4646 = vpop.f32.mrb[0].mxu0
          %v4647 = vpop.f32.mrb[0].mxu0
          %v4648 = vadd.f32 0.0, %v4647
          %v4649 = vpop.f32.mrb[0].mxu0
          %4650 = vdwg.mxu0
          %s4651 = scalar_lea.vmem [#allocation18], 64
          %v4652 = vld [vmem:[%s4651] sm:$0xf]
          %v4653 = vld [vmem:[%s4651 + $0x4] sm:$0xf]
          %v4654 = vld [vmem:[%s4651 + $0x8] sm:$0xf]
          %v4655 = vld [vmem:[%s4651 + $0xc] sm:$0xf]
          %v4656 = vld [vmem:[%s4651 + $0x10] sm:$0xf]
          %v4657 = vld [vmem:[%s4651 + $0x14] sm:$0xf]
          %v4658 = vld [vmem:[%s4651 + $0x18] sm:$0xf]
          %v4659 = vld [vmem:[%s4651 + $0x1c] sm:$0xf]
          %v4660 = vpack.c.bf16 %v4640, %v4637
          %v4661 = vpack.c.bf16 %v4648, %v4645
          %v4670 = vunpack.c.l.b16 %v4652
          %v4671 = vunpack.c.l.b16 %v4653
          %v4672 = vunpack.c.l.b16 %v4654
          %v4673 = vunpack.c.l.b16 %v4655
          %v4674 = vunpack.c.l.b16 %v4656
          %v4675 = vunpack.c.l.b16 %v4657
          %v4676 = vunpack.c.l.b16 %v4658
          %v4677 = vunpack.c.l.b16 %v4659
          %v4678 = vpack.c.b16 %v4671, %v4670
          %v4679 = vpack.c.b16 %v4673, %v4672
          %v4680 = vpack.c.b16 %v4675, %v4674
          %v4681 = vpack.c.b16 %v4677, %v4676
          %v4687 = vsel %vm4446, %v4660, 0
          %v4690 = vsel %vm4446, %v4661, 0
          %4692 = vmatprep.subr.bf16.mxu0 0
          %4693 = vmatpush1.bf16.msra.mxu0 %v4678
          %4694 = vmatprep.subr.bf16.mxu0 0
          %4695 = vmatpush1.bf16.msra.mxu0 %v4679
          %4696 = vmatprep.subr.bf16.mxu0 0
          %4697 = vmatpush1.bf16.msra.mxu0 %v4680
          %4698 = vmatprep.subr.bf16.mxu0 0
          %4699 = vmatpush1.bf16.msra.mxu0 %v4681
          %4700 = vmatprep.subr.bf16.mxu0 0
          %4701 = vmatpush1.bf16.msra.mxu0 0
          %4702 = vmatprep.subr.bf16.mxu0 0
          %4703 = vmatpush1.bf16.msra.mxu0 0
          %4704 = vmatprep.subr.bf16.mxu0 0
          %4705 = vmatpush1.bf16.msra.mxu0 0
          %4706 = vmatprep.subr.bf16.mxu0 0
          %4707 = vmatpush1.bf16.msra.mxu0 0
          %4708 = vmatprep.subr.bf16.mxu0 0
          %4709 = vmatpush1.bf16.msra.mxu0 0
          %4710 = vmatprep.subr.bf16.mxu0 0
          %4711 = vmatpush1.bf16.msra.mxu0 0
          %4712 = vmatprep.subr.bf16.mxu0 0
          %4713 = vmatpush1.bf16.msra.mxu0 0
          %4714 = vmatprep.subr.bf16.mxu0 0
          %4715 = vmatpush1.bf16.msra.mxu0 0
          %4716 = vmatprep.subr.bf16.mxu0 0
          %4717 = vmatpush1.bf16.msra.mxu0 0
          %4718 = vmatprep.subr.bf16.mxu0 0
          %4719 = vmatpush1.bf16.msra.mxu0 0
          %4720 = vmatprep.subr.bf16.mxu0 0
          %4721 = vmatpush1.bf16.msra.mxu0 0
          %4722 = vmatprep.subr.bf16.mxu0 0
          %4723 = vmatpush1.bf16.msra.mxu0 0
          %4724 = vmatprep.mubr.bf16.mxu0 0
          %4725 = vmatmul.mubr.bf16.gmra.mrb[0].mxu0 %v4687
          %v4726 = vpop.f32.mrb[0].mxu0
          %v4727 = vadd.f32 0.0, %v4726
          %v4728 = vpop.f32.mrb[0].mxu0
          %v4729 = vpop.f32.mrb[0].mxu0
          %v4730 = vadd.f32 0.0, %v4729
          %v4731 = vpop.f32.mrb[0].mxu0
          %4732 = vmatprep.mubr.bf16.mxu0 0
          %4733 = vmatmul.mubr.bf16.gmra.mrb[0].mxu0 %v4690
          %v4734 = vpop.f32.mrb[0].mxu0
          %v4735 = vadd.f32 0.0, %v4734
          %v4736 = vpop.f32.mrb[0].mxu0
          %v4737 = vpop.f32.mrb[0].mxu0
          %v4738 = vadd.f32 0.0, %v4737
          %v4739 = vpop.f32.mrb[0].mxu0
          %4740 = vdwg.mxu0
          %v4741 = vadd.f32 %v4567, %v4727
          %v4742 = vadd.f32 %v4570, %v4730
          %v4743 = vadd.f32 %v4575, %v4735
          %v4744 = vadd.f32 %v4578, %v4738
          %s4745 = scalar_lea.vmem [#allocation8], 48
          %v4746 = vld [vmem:[%s4745] sm:$0xf]
          %v4747 = vld [vmem:[%s4745 + $0x4] sm:$0xf]
          %v4748 = vld [vmem:[%s4745 + $0x8] sm:$0xf]
          %v4749 = vld [vmem:[%s4745 + $0xc] sm:$0xf]
          %v4754 = vunpack.c.l.b16 %v4746
          %v4755 = vunpack.c.l.b16 %v4747
          %v4756 = vunpack.c.l.b16 %v4748
          %v4757 = vunpack.c.l.b16 %v4749
          %v4758 = vpack.c.b16 %v4755, %v4754
          %v4759 = vpack.c.b16 %v4757, %v4756
          %v4761 = vsel %vm1415, %v4758, 0
          %v4764 = vsel %vm1415, %v4759, 0
          %4766 = vmatprep.subr.bf16.mxu0 0
          %4767 = vmatpush1.bf16.msra.mxu0 %v4264
          %4768 = vmatprep.subr.bf16.mxu0 0
          %4769 = vmatpush1.bf16.msra.mxu0 %v4265
          %4770 = vmatprep.subr.bf16.mxu0 0
          %4771 = vmatpush1.bf16.msra.mxu0 0
          %4772 = vmatprep.subr.bf16.mxu0 0
          %4773 = vmatpush1.bf16.msra.mxu0 0
          %4774 = vmatprep.subr.bf16.mxu0 0
          %4775 = vmatpush1.bf16.msra.mxu0 0
          %4776 = vmatprep.subr.bf16.mxu0 0
          %4777 = vmatpush1.bf16.msra.mxu0 0
          %4778 = vmatprep.subr.bf16.mxu0 0
          %4779 = vmatpush1.bf16.msra.mxu0 0
          %4780 = vmatprep.subr.bf16.mxu0 0
          %4781 = vmatpush1.bf16.msra.mxu0 0
          %4782 = vmatprep.subr.bf16.mxu0 0
          %4783 = vmatpush1.bf16.msra.mxu0 0
          %4784 = vmatprep.subr.bf16.mxu0 0
          %4785 = vmatpush1.bf16.msra.mxu0 0
          %4786 = vmatprep.subr.bf16.mxu0 0
          %4787 = vmatpush1.bf16.msra.mxu0 0
          %4788 = vmatprep.subr.bf16.mxu0 0
          %4789 = vmatpush1.bf16.msra.mxu0 0
          %4790 = vmatprep.subr.bf16.mxu0 0
          %4791 = vmatpush1.bf16.msra.mxu0 0
          %4792 = vmatprep.subr.bf16.mxu0 0
          %4793 = vmatpush1.bf16.msra.mxu0 0
          %4794 = vmatprep.subr.bf16.mxu0 0
          %4795 = vmatpush1.bf16.msra.mxu0 0
          %4796 = vmatprep.subr.bf16.mxu0 0
          %4797 = vmatpush1.bf16.msra.mxu0 0
          %4798 = vmatprep.mubr.bf16.mxu0 0
          %4799 = vmatmul.mubr.bf16.gmra.mrb[0].mxu0 %v4761
          %v4800 = vpop.f32.mrb[0].mxu0
          %v4801 = vadd.f32 0.0, %v4800
          %v4802 = vpop.f32.mrb[0].mxu0
          %v4803 = vpop.f32.mrb[0].mxu0
          %v4804 = vadd.f32 0.0, %v4803
          %v4805 = vpop.f32.mrb[0].mxu0
          %4806 = vmatprep.mubr.bf16.mxu0 0
          %4807 = vmatmul.mubr.bf16.gmra.mrb[0].mxu0 %v4764
          %v4808 = vpop.f32.mrb[0].mxu0
          %v4809 = vadd.f32 0.0, %v4808
          %v4810 = vpop.f32.mrb[0].mxu0
          %v4811 = vpop.f32.mrb[0].mxu0
          %v4812 = vadd.f32 0.0, %v4811
          %v4813 = vpop.f32.mrb[0].mxu0
          %4814 = vdwg.mxu0
          %s4815 = scalar_lea.vmem [#allocation18], 96
          %v4816 = vld [vmem:[%s4815] sm:$0xf]
          %v4817 = vld [vmem:[%s4815 + $0x4] sm:$0xf]
          %v4818 = vld [vmem:[%s4815 + $0x8] sm:$0xf]
          %v4819 = vld [vmem:[%s4815 + $0xc] sm:$0xf]
          %v4820 = vld [vmem:[%s4815 + $0x10] sm:$0xf]
          %v4821 = vld [vmem:[%s4815 + $0x14] sm:$0xf]
          %v4822 = vld [vmem:[%s4815 + $0x18] sm:$0xf]
          %v4823 = vld [vmem:[%s4815 + $0x1c] sm:$0xf]
          %v4824 = vpack.c.bf16 %v4804, %v4801
          %v4825 = vpack.c.bf16 %v4812, %v4809
          %v4834 = vunpack.c.l.b16 %v4816
          %v4835 = vunpack.c.l.b16 %v4817
          %v4836 = vunpack.c.l.b16 %v4818
          %v4837 = vunpack.c.l.b16 %v4819
          %v4838 = vunpack.c.l.b16 %v4820
          %v4839 = vunpack.c.l.b16 %v4821
          %v4840 = vunpack.c.l.b16 %v4822
          %v4841 = vunpack.c.l.b16 %v4823
          %v4842 = vpack.c.b16 %v4835, %v4834
          %v4843 = vpack.c.b16 %v4837, %v4836
          %v4844 = vpack.c.b16 %v4839, %v4838
          %v4845 = vpack.c.b16 %v4841, %v4840
          %v4851 = vsel %vm4446, %v4824, 0
          %v4854 = vsel %vm4446, %v4825, 0
          %4856 = vmatprep.subr.bf16.mxu0 0
          %4857 = vmatpush1.bf16.msra.mxu0 %v4842
          %4858 = vmatprep.subr.bf16.mxu0 0
          %4859 = vmatpush1.bf16.msra.mxu0 %v4843
          %4860 = vmatprep.subr.bf16.mxu0 0
          %4861 = vmatpush1.bf16.msra.mxu0 %v4844
          %4862 = vmatprep.subr.bf16.mxu0 0
          %4863 = vmatpush1.bf16.msra.mxu0 %v4845
          %4864 = vmatprep.subr.bf16.mxu0 0
          %4865 = vmatpush1.bf16.msra.mxu0 0
          %4866 = vmatprep.subr.bf16.mxu0 0
          %4867 = vmatpush1.bf16.msra.mxu0 0
          %4868 = vmatprep.subr.bf16.mxu0 0
          %4869 = vmatpush1.bf16.msra.mxu0 0
          %4870 = vmatprep.subr.bf16.mxu0 0
          %4871 = vmatpush1.bf16.msra.mxu0 0
          %4872 = vmatprep.subr.bf16.mxu0 0
          %4873 = vmatpush1.bf16.msra.mxu0 0
          %4874 = vmatprep.subr.bf16.mxu0 0
          %4875 = vmatpush1.bf16.msra.mxu0 0
          %4876 = vmatprep.subr.bf16.mxu0 0
          %4877 = vmatpush1.bf16.msra.mxu0 0
          %4878 = vmatprep.subr.bf16.mxu0 0
          %4879 = vmatpush1.bf16.msra.mxu0 0
          %4880 = vmatprep.subr.bf16.mxu0 0
          %4881 = vmatpush1.bf16.msra.mxu0 0
          %4882 = vmatprep.subr.bf16.mxu0 0
          %4883 = vmatpush1.bf16.msra.mxu0 0
          %4884 = vmatprep.subr.bf16.mxu0 0
          %4885 = vmatpush1.bf16.msra.mxu0 0
          %4886 = vmatprep.subr.bf16.mxu0 0
          %4887 = vmatpush1.bf16.msra.mxu0 0
          %4888 = vmatprep.mubr.bf16.mxu0 0
          %4889 = vmatmul.mubr.bf16.gmra.mrb[0].mxu0 %v4851
          %v4890 = vpop.f32.mrb[0].mxu0
          %v4891 = vadd.f32 0.0, %v4890
          %v4892 = vpop.f32.mrb[0].mxu0
          %v4893 = vpop.f32.mrb[0].mxu0
          %v4894 = vadd.f32 0.0, %v4893
          %v4895 = vpop.f32.mrb[0].mxu0
          %4896 = vmatprep.mubr.bf16.mxu0 0
          %4897 = vmatmul.mubr.bf16.gmra.mrb[0].mxu0 %v4854
          %v4898 = vpop.f32.mrb[0].mxu0
          %v4899 = vadd.f32 0.0, %v4898
          %v4900 = vpop.f32.mrb[0].mxu0
          %v4901 = vpop.f32.mrb[0].mxu0
          %v4902 = vadd.f32 0.0, %v4901
          %v4903 = vpop.f32.mrb[0].mxu0
          %4904 = vdwg.mxu0
          %v4905 = vadd.f32 %v4741, %v4891
          %v4906 = vadd.f32 %v4742, %v4894
          %v4907 = vadd.f32 %v4743, %v4899
          %v4908 = vadd.f32 %v4744, %v4902
          %s4909 = scalar_lea.vmem [#allocation8], 64
          %v4910 = vld [vmem:[%s4909] sm:$0xf]
          %v4911 = vld [vmem:[%s4909 + $0x4] sm:$0xf]
          %v4912 = vld [vmem:[%s4909 + $0x8] sm:$0xf]
          %v4913 = vld [vmem:[%s4909 + $0xc] sm:$0xf]
          %v4918 = vunpack.c.l.b16 %v4910
          %v4919 = vunpack.c.l.b16 %v4911
          %v4920 = vunpack.c.l.b16 %v4912
          %v4921 = vunpack.c.l.b16 %v4913
          %v4922 = vpack.c.b16 %v4919, %v4918
          %v4923 = vpack.c.b16 %v4921, %v4920
          %v4925 = vsel %vm1415, %v4922, 0
          %v4928 = vsel %vm1415, %v4923, 0
          %4930 = vmatprep.subr.bf16.mxu0 0
          %4931 = vmatpush1.bf16.msra.mxu0 %v4264
          %4932 = vmatprep.subr.bf16.mxu0 0
          %4933 = vmatpush1.bf16.msra.mxu0 %v4265
          %4934 = vmatprep.subr.bf16.mxu0 0
          %4935 = vmatpush1.bf16.msra.mxu0 0
          %4936 = vmatprep.subr.bf16.mxu0 0
          %4937 = vmatpush1.bf16.msra.mxu0 0
          %4938 = vmatprep.subr.bf16.mxu0 0
          %4939 = vmatpush1.bf16.msra.mxu0 0
          %4940 = vmatprep.subr.bf16.mxu0 0
          %4941 = vmatpush1.bf16.msra.mxu0 0
          %4942 = vmatprep.subr.bf16.mxu0 0
          %4943 = vmatpush1.bf16.msra.mxu0 0
          %4944 = vmatprep.subr.bf16.mxu0 0
          %4945 = vmatpush1.bf16.msra.mxu0 0
          %4946 = vmatprep.subr.bf16.mxu0 0
          %4947 = vmatpush1.bf16.msra.mxu0 0
          %4948 = vmatprep.subr.bf16.mxu0 0
          %4949 = vmatpush1.bf16.msra.mxu0 0
          %4950 = vmatprep.subr.bf16.mxu0 0
          %4951 = vmatpush1.bf16.msra.mxu0 0
          %4952 = vmatprep.subr.bf16.mxu0 0
          %4953 = vmatpush1.bf16.msra.mxu0 0
          %4954 = vmatprep.subr.bf16.mxu0 0
          %4955 = vmatpush1.bf16.msra.mxu0 0
          %4956 = vmatprep.subr.bf16.mxu0 0
          %4957 = vmatpush1.bf16.msra.mxu0 0
          %4958 = vmatprep.subr.bf16.mxu0 0
          %4959 = vmatpush1.bf16.msra.mxu0 0
          %4960 = vmatprep.subr.bf16.mxu0 0
          %4961 = vmatpush1.bf16.msra.mxu0 0
          %4962 = vmatprep.mubr.bf16.mxu0 0
          %4963 = vmatmul.mubr.bf16.gmra.mrb[0].mxu0 %v4925
          %v4964 = vpop.f32.mrb[0].mxu0
          %v4965 = vadd.f32 0.0, %v4964
          %v4966 = vpop.f32.mrb[0].mxu0
          %v4967 = vpop.f32.mrb[0].mxu0
          %v4968 = vadd.f32 0.0, %v4967
          %v4969 = vpop.f32.mrb[0].mxu0
          %4970 = vmatprep.mubr.bf16.mxu0 0
          %4971 = vmatmul.mubr.bf16.gmra.mrb[0].mxu0 %v4928
          %v4972 = vpop.f32.mrb[0].mxu0
          %v4973 = vadd.f32 0.0, %v4972
          %v4974 = vpop.f32.mrb[0].mxu0
          %v4975 = vpop.f32.mrb[0].mxu0
          %v4976 = vadd.f32 0.0, %v4975
          %v4977 = vpop.f32.mrb[0].mxu0
          %4978 = vdwg.mxu0
          %s4979 = scalar_lea.vmem [#allocation18], 128
          %v4980 = vld [vmem:[%s4979] sm:$0xf]
          %v4981 = vld [vmem:[%s4979 + $0x4] sm:$0xf]
          %v4982 = vld [vmem:[%s4979 + $0x8] sm:$0xf]
          %v4983 = vld [vmem:[%s4979 + $0xc] sm:$0xf]
          %v4984 = vld [vmem:[%s4979 + $0x10] sm:$0xf]
          %v4985 = vld [vmem:[%s4979 + $0x14] sm:$0xf]
          %v4986 = vld [vmem:[%s4979 + $0x18] sm:$0xf]
          %v4987 = vld [vmem:[%s4979 + $0x1c] sm:$0xf]
          %v4988 = vpack.c.bf16 %v4968, %v4965
          %v4989 = vpack.c.bf16 %v4976, %v4973
          %v4998 = vunpack.c.l.b16 %v4980
          %v4999 = vunpack.c.l.b16 %v4981
          %v5000 = vunpack.c.l.b16 %v4982
          %v5001 = vunpack.c.l.b16 %v4983
          %v5002 = vunpack.c.l.b16 %v4984
          %v5003 = vunpack.c.l.b16 %v4985
          %v5004 = vunpack.c.l.b16 %v4986
          %v5005 = vunpack.c.l.b16 %v4987
          %v5006 = vpack.c.b16 %v4999, %v4998
          %v5007 = vpack.c.b16 %v5001, %v5000
          %v5008 = vpack.c.b16 %v5003, %v5002
          %v5009 = vpack.c.b16 %v5005, %v5004
          %v5015 = vsel %vm4446, %v4988, 0
          %v5018 = vsel %vm4446, %v4989, 0
          %5020 = vmatprep.subr.bf16.mxu0 0
          %5021 = vmatpush1.bf16.msra.mxu0 %v5006
          %5022 = vmatprep.subr.bf16.mxu0 0
          %5023 = vmatpush1.bf16.msra.mxu0 %v5007
          %5024 = vmatprep.subr.bf16.mxu0 0
          %5025 = vmatpush1.bf16.msra.mxu0 %v5008
          %5026 = vmatprep.subr.bf16.mxu0 0
          %5027 = vmatpush1.bf16.msra.mxu0 %v5009
          %5028 = vmatprep.subr.bf16.mxu0 0
          %5029 = vmatpush1.bf16.msra.mxu0 0
          %5030 = vmatprep.subr.bf16.mxu0 0
          %5031 = vmatpush1.bf16.msra.mxu0 0
          %5032 = vmatprep.subr.bf16.mxu0 0
          %5033 = vmatpush1.bf16.msra.mxu0 0
          %5034 = vmatprep.subr.bf16.mxu0 0
          %5035 = vmatpush1.bf16.msra.mxu0 0
          %5036 = vmatprep.subr.bf16.mxu0 0
          %5037 = vmatpush1.bf16.msra.mxu0 0
          %5038 = vmatprep.subr.bf16.mxu0 0
          %5039 = vmatpush1.bf16.msra.mxu0 0
          %5040 = vmatprep.subr.bf16.mxu0 0
          %5041 = vmatpush1.bf16.msra.mxu0 0
          %5042 = vmatprep.subr.bf16.mxu0 0
          %5043 = vmatpush1.bf16.msra.mxu0 0
          %5044 = vmatprep.subr.bf16.mxu0 0
          %5045 = vmatpush1.bf16.msra.mxu0 0
          %5046 = vmatprep.subr.bf16.mxu0 0
          %5047 = vmatpush1.bf16.msra.mxu0 0
          %5048 = vmatprep.subr.bf16.mxu0 0
          %5049 = vmatpush1.bf16.msra.mxu0 0
          %5050 = vmatprep.subr.bf16.mxu0 0
          %5051 = vmatpush1.bf16.msra.mxu0 0
          %5052 = vmatprep.mubr.bf16.mxu0 0
          %5053 = vmatmul.mubr.bf16.gmra.mrb[0].mxu0 %v5015
          %v5054 = vpop.f32.mrb[0].mxu0
          %v5055 = vadd.f32 0.0, %v5054
          %v5056 = vpop.f32.mrb[0].mxu0
          %v5057 = vpop.f32.mrb[0].mxu0
          %v5058 = vadd.f32 0.0, %v5057
          %v5059 = vpop.f32.mrb[0].mxu0
          %5060 = vmatprep.mubr.bf16.mxu0 0
          %5061 = vmatmul.mubr.bf16.gmra.mrb[0].mxu0 %v5018
          %v5062 = vpop.f32.mrb[0].mxu0
          %v5063 = vadd.f32 0.0, %v5062
          %v5064 = vpop.f32.mrb[0].mxu0
          %v5065 = vpop.f32.mrb[0].mxu0
          %v5066 = vadd.f32 0.0, %v5065
          %v5067 = vpop.f32.mrb[0].mxu0
          %5068 = vdwg.mxu0
          %v5069 = vadd.f32 %v4905, %v5055
          %v5070 = vadd.f32 %v4906, %v5058
          %v5071 = vadd.f32 %v4907, %v5063
          %v5072 = vadd.f32 %v4908, %v5066
          %s5073 = scalar_lea.vmem [#allocation8], 80
          %v5074 = vld [vmem:[%s5073] sm:$0xf]
          %v5075 = vld [vmem:[%s5073 + $0x4] sm:$0xf]
          %v5076 = vld [vmem:[%s5073 + $0x8] sm:$0xf]
          %v5077 = vld [vmem:[%s5073 + $0xc] sm:$0xf]
          %v5082 = vunpack.c.l.b16 %v5074
          %v5083 = vunpack.c.l.b16 %v5075
          %v5084 = vunpack.c.l.b16 %v5076
          %v5085 = vunpack.c.l.b16 %v5077
          %v5086 = vpack.c.b16 %v5083, %v5082
          %v5087 = vpack.c.b16 %v5085, %v5084
          %v5089 = vsel %vm1415, %v5086, 0
          %v5092 = vsel %vm1415, %v5087, 0
          %5094 = vmatprep.subr.bf16.mxu0 0
          %5095 = vmatpush1.bf16.msra.mxu0 %v4264
          %5096 = vmatprep.subr.bf16.mxu0 0
          %5097 = vmatpush1.bf16.msra.mxu0 %v4265
          %5098 = vmatprep.subr.bf16.mxu0 0
          %5099 = vmatpush1.bf16.msra.mxu0 0
          %5100 = vmatprep.subr.bf16.mxu0 0
          %5101 = vmatpush1.bf16.msra.mxu0 0
          %5102 = vmatprep.subr.bf16.mxu0 0
          %5103 = vmatpush1.bf16.msra.mxu0 0
          %5104 = vmatprep.subr.bf16.mxu0 0
          %5105 = vmatpush1.bf16.msra.mxu0 0
          %5106 = vmatprep.subr.bf16.mxu0 0
          %5107 = vmatpush1.bf16.msra.mxu0 0
          %5108 = vmatprep.subr.bf16.mxu0 0
          %5109 = vmatpush1.bf16.msra.mxu0 0
          %5110 = vmatprep.subr.bf16.mxu0 0
          %5111 = vmatpush1.bf16.msra.mxu0 0
          %5112 = vmatprep.subr.bf16.mxu0 0
          %5113 = vmatpush1.bf16.msra.mxu0 0
          %5114 = vmatprep.subr.bf16.mxu0 0
          %5115 = vmatpush1.bf16.msra.mxu0 0
          %5116 = vmatprep.subr.bf16.mxu0 0
          %5117 = vmatpush1.bf16.msra.mxu0 0
          %5118 = vmatprep.subr.bf16.mxu0 0
          %5119 = vmatpush1.bf16.msra.mxu0 0
          %5120 = vmatprep.subr.bf16.mxu0 0
          %5121 = vmatpush1.bf16.msra.mxu0 0
          %5122 = vmatprep.subr.bf16.mxu0 0
          %5123 = vmatpush1.bf16.msra.mxu0 0
          %5124 = vmatprep.subr.bf16.mxu0 0
          %5125 = vmatpush1.bf16.msra.mxu0 0
          %5126 = vmatprep.mubr.bf16.mxu0 0
          %5127 = vmatmul.mubr.bf16.gmra.mrb[0].mxu0 %v5089
          %v5128 = vpop.f32.mrb[0].mxu0
          %v5129 = vadd.f32 0.0, %v5128
          %v5130 = vpop.f32.mrb[0].mxu0
          %v5131 = vpop.f32.mrb[0].mxu0
          %v5132 = vadd.f32 0.0, %v5131
          %v5133 = vpop.f32.mrb[0].mxu0
          %5134 = vmatprep.mubr.bf16.mxu0 0
          %5135 = vmatmul.mubr.bf16.gmra.mrb[0].mxu0 %v5092
          %v5136 = vpop.f32.mrb[0].mxu0
          %v5137 = vadd.f32 0.0, %v5136
          %v5138 = vpop.f32.mrb[0].mxu0
          %v5139 = vpop.f32.mrb[0].mxu0
          %v5140 = vadd.f32 0.0, %v5139
          %v5141 = vpop.f32.mrb[0].mxu0
          %5142 = vdwg.mxu0
          %s5143 = scalar_lea.vmem [#allocation18], 160
          %v5144 = vld [vmem:[%s5143] sm:$0xf]
          %v5145 = vld [vmem:[%s5143 + $0x4] sm:$0xf]
          %v5146 = vld [vmem:[%s5143 + $0x8] sm:$0xf]
          %v5147 = vld [vmem:[%s5143 + $0xc] sm:$0xf]
          %v5148 = vld [vmem:[%s5143 + $0x10] sm:$0xf]
          %v5149 = vld [vmem:[%s5143 + $0x14] sm:$0xf]
          %v5150 = vld [vmem:[%s5143 + $0x18] sm:$0xf]
          %v5151 = vld [vmem:[%s5143 + $0x1c] sm:$0xf]
          %v5152 = vpack.c.bf16 %v5132, %v5129
          %v5153 = vpack.c.bf16 %v5140, %v5137
          %v5162 = vunpack.c.l.b16 %v5144
          %v5163 = vunpack.c.l.b16 %v5145
          %v5164 = vunpack.c.l.b16 %v5146
          %v5165 = vunpack.c.l.b16 %v5147
          %v5166 = vunpack.c.l.b16 %v5148
          %v5167 = vunpack.c.l.b16 %v5149
          %v5168 = vunpack.c.l.b16 %v5150
          %v5169 = vunpack.c.l.b16 %v5151
          %v5170 = vpack.c.b16 %v5163, %v5162
          %v5171 = vpack.c.b16 %v5165, %v5164
          %v5172 = vpack.c.b16 %v5167, %v5166
          %v5173 = vpack.c.b16 %v5169, %v5168
          %v5179 = vsel %vm4446, %v5152, 0
          %v5182 = vsel %vm4446, %v5153, 0
          %5184 = vmatprep.subr.bf16.mxu0 0
          %5185 = vmatpush1.bf16.msra.mxu0 %v5170
          %5186 = vmatprep.subr.bf16.mxu0 0
          %5187 = vmatpush1.bf16.msra.mxu0 %v5171
          %5188 = vmatprep.subr.bf16.mxu0 0
          %5189 = vmatpush1.bf16.msra.mxu0 %v5172
          %5190 = vmatprep.subr.bf16.mxu0 0
          %5191 = vmatpush1.bf16.msra.mxu0 %v5173
          %5192 = vmatprep.subr.bf16.mxu0 0
          %5193 = vmatpush1.bf16.msra.mxu0 0
          %5194 = vmatprep.subr.bf16.mxu0 0
          %5195 = vmatpush1.bf16.msra.mxu0 0
          %5196 = vmatprep.subr.bf16.mxu0 0
          %5197 = vmatpush1.bf16.msra.mxu0 0
          %5198 = vmatprep.subr.bf16.mxu0 0
          %5199 = vmatpush1.bf16.msra.mxu0 0
          %5200 = vmatprep.subr.bf16.mxu0 0
          %5201 = vmatpush1.bf16.msra.mxu0 0
          %5202 = vmatprep.subr.bf16.mxu0 0
          %5203 = vmatpush1.bf16.msra.mxu0 0
          %5204 = vmatprep.subr.bf16.mxu0 0
          %5205 = vmatpush1.bf16.msra.mxu0 0
          %5206 = vmatprep.subr.bf16.mxu0 0
          %5207 = vmatpush1.bf16.msra.mxu0 0
          %5208 = vmatprep.subr.bf16.mxu0 0
          %5209 = vmatpush1.bf16.msra.mxu0 0
          %5210 = vmatprep.subr.bf16.mxu0 0
          %5211 = vmatpush1.bf16.msra.mxu0 0
          %5212 = vmatprep.subr.bf16.mxu0 0
          %5213 = vmatpush1.bf16.msra.mxu0 0
          %5214 = vmatprep.subr.bf16.mxu0 0
          %5215 = vmatpush1.bf16.msra.mxu0 0
          %5216 = vmatprep.mubr.bf16.mxu0 0
          %5217 = vmatmul.mubr.bf16.gmra.mrb[0].mxu0 %v5179
          %v5218 = vpop.f32.mrb[0].mxu0
          %v5219 = vadd.f32 0.0, %v5218
          %v5220 = vpop.f32.mrb[0].mxu0
          %v5221 = vpop.f32.mrb[0].mxu0
          %v5222 = vadd.f32 0.0, %v5221
          %v5223 = vpop.f32.mrb[0].mxu0
          %5224 = vmatprep.mubr.bf16.mxu0 0
          %5225 = vmatmul.mubr.bf16.gmra.mrb[0].mxu0 %v5182
          %v5226 = vpop.f32.mrb[0].mxu0
          %v5227 = vadd.f32 0.0, %v5226
          %v5228 = vpop.f32.mrb[0].mxu0
          %v5229 = vpop.f32.mrb[0].mxu0
          %v5230 = vadd.f32 0.0, %v5229
          %v5231 = vpop.f32.mrb[0].mxu0
          %5232 = vdwg.mxu0
          %v5233 = vadd.f32 %v5069, %v5219
          %v5234 = vadd.f32 %v5070, %v5222
          %v5235 = vadd.f32 %v5071, %v5227
          %v5236 = vadd.f32 %v5072, %v5230
          %s5237 = scalar_lea.vmem [#allocation8], 96
          %v5238 = vld [vmem:[%s5237] sm:$0xf]
          %v5239 = vld [vmem:[%s5237 + $0x4] sm:$0xf]
          %v5240 = vld [vmem:[%s5237 + $0x8] sm:$0xf]
          %v5241 = vld [vmem:[%s5237 + $0xc] sm:$0xf]
          %v5246 = vunpack.c.l.b16 %v5238
          %v5247 = vunpack.c.l.b16 %v5239
          %v5248 = vunpack.c.l.b16 %v5240
          %v5249 = vunpack.c.l.b16 %v5241
          %v5250 = vpack.c.b16 %v5247, %v5246
          %v5251 = vpack.c.b16 %v5249, %v5248
          %v5253 = vsel %vm1415, %v5250, 0
          %v5256 = vsel %vm1415, %v5251, 0
          %5258 = vmatprep.subr.bf16.mxu0 0
          %5259 = vmatpush1.bf16.msra.mxu0 %v4264
          %5260 = vmatprep.subr.bf16.mxu0 0
          %5261 = vmatpush1.bf16.msra.mxu0 %v4265
          %5262 = vmatprep.subr.bf16.mxu0 0
          %5263 = vmatpush1.bf16.msra.mxu0 0
          %5264 = vmatprep.subr.bf16.mxu0 0
          %5265 = vmatpush1.bf16.msra.mxu0 0
          %5266 = vmatprep.subr.bf16.mxu0 0
          %5267 = vmatpush1.bf16.msra.mxu0 0
          %5268 = vmatprep.subr.bf16.mxu0 0
          %5269 = vmatpush1.bf16.msra.mxu0 0
          %5270 = vmatprep.subr.bf16.mxu0 0
          %5271 = vmatpush1.bf16.msra.mxu0 0
          %5272 = vmatprep.subr.bf16.mxu0 0
          %5273 = vmatpush1.bf16.msra.mxu0 0
          %5274 = vmatprep.subr.bf16.mxu0 0
          %5275 = vmatpush1.bf16.msra.mxu0 0
          %5276 = vmatprep.subr.bf16.mxu0 0
          %5277 = vmatpush1.bf16.msra.mxu0 0
          %5278 = vmatprep.subr.bf16.mxu0 0
          %5279 = vmatpush1.bf16.msra.mxu0 0
          %5280 = vmatprep.subr.bf16.mxu0 0
          %5281 = vmatpush1.bf16.msra.mxu0 0
          %5282 = vmatprep.subr.bf16.mxu0 0
          %5283 = vmatpush1.bf16.msra.mxu0 0
          %5284 = vmatprep.subr.bf16.mxu0 0
          %5285 = vmatpush1.bf16.msra.mxu0 0
          %5286 = vmatprep.subr.bf16.mxu0 0
          %5287 = vmatpush1.bf16.msra.mxu0 0
          %5288 = vmatprep.subr.bf16.mxu0 0
          %5289 = vmatpush1.bf16.msra.mxu0 0
          %5290 = vmatprep.mubr.bf16.mxu0 0
          %5291 = vmatmul.mubr.bf16.gmra.mrb[0].mxu0 %v5253
          %v5292 = vpop.f32.mrb[0].mxu0
          %v5293 = vadd.f32 0.0, %v5292
          %v5294 = vpop.f32.mrb[0].mxu0
          %v5295 = vpop.f32.mrb[0].mxu0
          %v5296 = vadd.f32 0.0, %v5295
          %v5297 = vpop.f32.mrb[0].mxu0
          %5298 = vmatprep.mubr.bf16.mxu0 0
          %5299 = vmatmul.mubr.bf16.gmra.mrb[0].mxu0 %v5256
          %v5300 = vpop.f32.mrb[0].mxu0
          %v5301 = vadd.f32 0.0, %v5300
          %v5302 = vpop.f32.mrb[0].mxu0
          %v5303 = vpop.f32.mrb[0].mxu0
          %v5304 = vadd.f32 0.0, %v5303
          %v5305 = vpop.f32.mrb[0].mxu0
          %5306 = vdwg.mxu0
          %s5307 = scalar_lea.vmem [#allocation18], 192
          %v5308 = vld [vmem:[%s5307] sm:$0xf]
          %v5309 = vld [vmem:[%s5307 + $0x4] sm:$0xf]
          %v5310 = vld [vmem:[%s5307 + $0x8] sm:$0xf]
          %v5311 = vld [vmem:[%s5307 + $0xc] sm:$0xf]
          %v5312 = vld [vmem:[%s5307 + $0x10] sm:$0xf]
          %v5313 = vld [vmem:[%s5307 + $0x14] sm:$0xf]
          %v5314 = vld [vmem:[%s5307 + $0x18] sm:$0xf]
          %v5315 = vld [vmem:[%s5307 + $0x1c] sm:$0xf]
          %v5316 = vpack.c.bf16 %v5296, %v5293
          %v5317 = vpack.c.bf16 %v5304, %v5301
          %v5326 = vunpack.c.l.b16 %v5308
          %v5327 = vunpack.c.l.b16 %v5309
          %v5328 = vunpack.c.l.b16 %v5310
          %v5329 = vunpack.c.l.b16 %v5311
          %v5330 = vunpack.c.l.b16 %v5312
          %v5331 = vunpack.c.l.b16 %v5313
          %v5332 = vunpack.c.l.b16 %v5314
          %v5333 = vunpack.c.l.b16 %v5315
          %v5334 = vpack.c.b16 %v5327, %v5326
          %v5335 = vpack.c.b16 %v5329, %v5328
          %v5336 = vpack.c.b16 %v5331, %v5330
          %v5337 = vpack.c.b16 %v5333, %v5332
          %v5343 = vsel %vm4446, %v5316, 0
          %v5346 = vsel %vm4446, %v5317, 0
          %5348 = vmatprep.subr.bf16.mxu0 0
          %5349 = vmatpush1.bf16.msra.mxu0 %v5334
          %5350 = vmatprep.subr.bf16.mxu0 0
          %5351 = vmatpush1.bf16.msra.mxu0 %v5335
          %5352 = vmatprep.subr.bf16.mxu0 0
          %5353 = vmatpush1.bf16.msra.mxu0 %v5336
          %5354 = vmatprep.subr.bf16.mxu0 0
          %5355 = vmatpush1.bf16.msra.mxu0 %v5337
          %5356 = vmatprep.subr.bf16.mxu0 0
          %5357 = vmatpush1.bf16.msra.mxu0 0
          %5358 = vmatprep.subr.bf16.mxu0 0
          %5359 = vmatpush1.bf16.msra.mxu0 0
          %5360 = vmatprep.subr.bf16.mxu0 0
          %5361 = vmatpush1.bf16.msra.mxu0 0
          %5362 = vmatprep.subr.bf16.mxu0 0
          %5363 = vmatpush1.bf16.msra.mxu0 0
          %5364 = vmatprep.subr.bf16.mxu0 0
          %5365 = vmatpush1.bf16.msra.mxu0 0
          %5366 = vmatprep.subr.bf16.mxu0 0
          %5367 = vmatpush1.bf16.msra.mxu0 0
          %5368 = vmatprep.subr.bf16.mxu0 0
          %5369 = vmatpush1.bf16.msra.mxu0 0
          %5370 = vmatprep.subr.bf16.mxu0 0
          %5371 = vmatpush1.bf16.msra.mxu0 0
          %5372 = vmatprep.subr.bf16.mxu0 0
          %5373 = vmatpush1.bf16.msra.mxu0 0
          %5374 = vmatprep.subr.bf16.mxu0 0
          %5375 = vmatpush1.bf16.msra.mxu0 0
          %5376 = vmatprep.subr.bf16.mxu0 0
          %5377 = vmatpush1.bf16.msra.mxu0 0
          %5378 = vmatprep.subr.bf16.mxu0 0
          %5379 = vmatpush1.bf16.msra.mxu0 0
          %5380 = vmatprep.mubr.bf16.mxu0 0
          %5381 = vmatmul.mubr.bf16.gmra.mrb[0].mxu0 %v5343
          %v5382 = vpop.f32.mrb[0].mxu0
          %v5383 = vadd.f32 0.0, %v5382
          %v5384 = vpop.f32.mrb[0].mxu0
          %v5385 = vpop.f32.mrb[0].mxu0
          %v5386 = vadd.f32 0.0, %v5385
          %v5387 = vpop.f32.mrb[0].mxu0
          %5388 = vmatprep.mubr.bf16.mxu0 0
          %5389 = vmatmul.mubr.bf16.gmra.mrb[0].mxu0 %v5346
          %v5390 = vpop.f32.mrb[0].mxu0
          %v5391 = vadd.f32 0.0, %v5390
          %v5392 = vpop.f32.mrb[0].mxu0
          %v5393 = vpop.f32.mrb[0].mxu0
          %v5394 = vadd.f32 0.0, %v5393
          %v5395 = vpop.f32.mrb[0].mxu0
          %5396 = vdwg.mxu0
          %v5397 = vadd.f32 %v5233, %v5383
          %v5398 = vadd.f32 %v5234, %v5386
          %v5399 = vadd.f32 %v5235, %v5391
          %v5400 = vadd.f32 %v5236, %v5394
          %s5401 = scalar_lea.vmem [#allocation8], 112
          %v5402 = vld [vmem:[%s5401] sm:$0xf]
          %v5403 = vld [vmem:[%s5401 + $0x4] sm:$0xf]
          %v5404 = vld [vmem:[%s5401 + $0x8] sm:$0xf]
          %v5405 = vld [vmem:[%s5401 + $0xc] sm:$0xf]
          %v5410 = vunpack.c.l.b16 %v5402
          %v5411 = vunpack.c.l.b16 %v5403
          %v5412 = vunpack.c.l.b16 %v5404
          %v5413 = vunpack.c.l.b16 %v5405
          %v5414 = vpack.c.b16 %v5411, %v5410
          %v5415 = vpack.c.b16 %v5413, %v5412
          %v5417 = vsel %vm1415, %v5414, 0
          %v5420 = vsel %vm1415, %v5415, 0
          %5422 = vmatprep.subr.bf16.mxu0 0
          %5423 = vmatpush1.bf16.msra.mxu0 %v4264
          %5424 = vmatprep.subr.bf16.mxu0 0
          %5425 = vmatpush1.bf16.msra.mxu0 %v4265
          %5426 = vmatprep.subr.bf16.mxu0 0
          %5427 = vmatpush1.bf16.msra.mxu0 0
          %5428 = vmatprep.subr.bf16.mxu0 0
          %5429 = vmatpush1.bf16.msra.mxu0 0
          %5430 = vmatprep.subr.bf16.mxu0 0
          %5431 = vmatpush1.bf16.msra.mxu0 0
          %5432 = vmatprep.subr.bf16.mxu0 0
          %5433 = vmatpush1.bf16.msra.mxu0 0
          %5434 = vmatprep.subr.bf16.mxu0 0
          %5435 = vmatpush1.bf16.msra.mxu0 0
          %5436 = vmatprep.subr.bf16.mxu0 0
          %5437 = vmatpush1.bf16.msra.mxu0 0
          %5438 = vmatprep.subr.bf16.mxu0 0
          %5439 = vmatpush1.bf16.msra.mxu0 0
          %5440 = vmatprep.subr.bf16.mxu0 0
          %5441 = vmatpush1.bf16.msra.mxu0 0
          %5442 = vmatprep.subr.bf16.mxu0 0
          %5443 = vmatpush1.bf16.msra.mxu0 0
          %5444 = vmatprep.subr.bf16.mxu0 0
          %5445 = vmatpush1.bf16.msra.mxu0 0
          %5446 = vmatprep.subr.bf16.mxu0 0
          %5447 = vmatpush1.bf16.msra.mxu0 0
          %5448 = vmatprep.subr.bf16.mxu0 0
          %5449 = vmatpush1.bf16.msra.mxu0 0
          %5450 = vmatprep.subr.bf16.mxu0 0
          %5451 = vmatpush1.bf16.msra.mxu0 0
          %5452 = vmatprep.subr.bf16.mxu0 0
          %5453 = vmatpush1.bf16.msra.mxu0 0
          %5454 = vmatprep.mubr.bf16.mxu0 0
          %5455 = vmatmul.mubr.bf16.gmra.mrb[0].mxu0 %v5417
          %v5456 = vpop.f32.mrb[0].mxu0
          %v5457 = vadd.f32 0.0, %v5456
          %v5458 = vpop.f32.mrb[0].mxu0
          %v5459 = vpop.f32.mrb[0].mxu0
          %v5460 = vadd.f32 0.0, %v5459
          %v5461 = vpop.f32.mrb[0].mxu0
          %5462 = vmatprep.mubr.bf16.mxu0 0
          %5463 = vmatmul.mubr.bf16.gmra.mrb[0].mxu0 %v5420
          %v5464 = vpop.f32.mrb[0].mxu0
          %v5465 = vadd.f32 0.0, %v5464
          %v5466 = vpop.f32.mrb[0].mxu0
          %v5467 = vpop.f32.mrb[0].mxu0
          %v5468 = vadd.f32 0.0, %v5467
          %v5469 = vpop.f32.mrb[0].mxu0
          %5470 = vdwg.mxu0
          %s5471 = scalar_lea.vmem [#allocation18], 224
          %v5472 = vld [vmem:[%s5471] sm:$0xf]
          %v5473 = vld [vmem:[%s5471 + $0x4] sm:$0xf]
          %v5474 = vld [vmem:[%s5471 + $0x8] sm:$0xf]
          %v5475 = vld [vmem:[%s5471 + $0xc] sm:$0xf]
          %v5476 = vld [vmem:[%s5471 + $0x10] sm:$0xf]
          %v5477 = vld [vmem:[%s5471 + $0x14] sm:$0xf]
          %v5478 = vld [vmem:[%s5471 + $0x18] sm:$0xf]
          %v5479 = vld [vmem:[%s5471 + $0x1c] sm:$0xf]
          %v5480 = vpack.c.bf16 %v5460, %v5457
          %v5481 = vpack.c.bf16 %v5468, %v5465
          %v5490 = vunpack.c.l.b16 %v5472
          %v5491 = vunpack.c.l.b16 %v5473
          %v5492 = vunpack.c.l.b16 %v5474
          %v5493 = vunpack.c.l.b16 %v5475
          %v5494 = vunpack.c.l.b16 %v5476
          %v5495 = vunpack.c.l.b16 %v5477
          %v5496 = vunpack.c.l.b16 %v5478
          %v5497 = vunpack.c.l.b16 %v5479
          %v5498 = vpack.c.b16 %v5491, %v5490
          %v5499 = vpack.c.b16 %v5493, %v5492
          %v5500 = vpack.c.b16 %v5495, %v5494
          %v5501 = vpack.c.b16 %v5497, %v5496
          %v5507 = vsel %vm4446, %v5480, 0
          %v5510 = vsel %vm4446, %v5481, 0
          %5512 = vmatprep.subr.bf16.mxu0 0
          %5513 = vmatpush1.bf16.msra.mxu0 %v5498
          %5514 = vmatprep.subr.bf16.mxu0 0
          %5515 = vmatpush1.bf16.msra.mxu0 %v5499
          %5516 = vmatprep.subr.bf16.mxu0 0
          %5517 = vmatpush1.bf16.msra.mxu0 %v5500
          %5518 = vmatprep.subr.bf16.mxu0 0
          %5519 = vmatpush1.bf16.msra.mxu0 %v5501
          %5520 = vmatprep.subr.bf16.mxu0 0
          %5521 = vmatpush1.bf16.msra.mxu0 0
          %5522 = vmatprep.subr.bf16.mxu0 0
          %5523 = vmatpush1.bf16.msra.mxu0 0
          %5524 = vmatprep.subr.bf16.mxu0 0
          %5525 = vmatpush1.bf16.msra.mxu0 0
          %5526 = vmatprep.subr.bf16.mxu0 0
          %5527 = vmatpush1.bf16.msra.mxu0 0
          %5528 = vmatprep.subr.bf16.mxu0 0
          %5529 = vmatpush1.bf16.msra.mxu0 0
          %5530 = vmatprep.subr.bf16.mxu0 0
          %5531 = vmatpush1.bf16.msra.mxu0 0
          %5532 = vmatprep.subr.bf16.mxu0 0
          %5533 = vmatpush1.bf16.msra.mxu0 0
          %5534 = vmatprep.subr.bf16.mxu0 0
          %5535 = vmatpush1.bf16.msra.mxu0 0
          %5536 = vmatprep.subr.bf16.mxu0 0
          %5537 = vmatpush1.bf16.msra.mxu0 0
          %5538 = vmatprep.subr.bf16.mxu0 0
          %5539 = vmatpush1.bf16.msra.mxu0 0
          %5540 = vmatprep.subr.bf16.mxu0 0
          %5541 = vmatpush1.bf16.msra.mxu0 0
          %5542 = vmatprep.subr.bf16.mxu0 0
          %5543 = vmatpush1.bf16.msra.mxu0 0
          %5544 = vmatprep.mubr.bf16.mxu0 0
          %5545 = vmatmul.mubr.bf16.gmra.mrb[0].mxu0 %v5507
          %v5546 = vpop.f32.mrb[0].mxu0
          %v5547 = vadd.f32 0.0, %v5546
          %v5548 = vpop.f32.mrb[0].mxu0
          %v5549 = vpop.f32.mrb[0].mxu0
          %v5550 = vadd.f32 0.0, %v5549
          %v5551 = vpop.f32.mrb[0].mxu0
          %5552 = vmatprep.mubr.bf16.mxu0 0
          %5553 = vmatmul.mubr.bf16.gmra.mrb[0].mxu0 %v5510
          %v5554 = vpop.f32.mrb[0].mxu0
          %v5555 = vadd.f32 0.0, %v5554
          %v5556 = vpop.f32.mrb[0].mxu0
          %v5557 = vpop.f32.mrb[0].mxu0
          %v5558 = vadd.f32 0.0, %v5557
          %v5559 = vpop.f32.mrb[0].mxu0
          %5560 = vdwg.mxu0
          %v5561 = vadd.f32 %v5397, %v5547
          %v5562 = vadd.f32 %v5398, %v5550
          %v5563 = vadd.f32 %v5399, %v5555
          %v5564 = vadd.f32 %v5400, %v5558
          %s5565 = scalar_lea.vmem [#allocation8], 128
          %v5566 = vld [vmem:[%s5565] sm:$0xf]
          %v5567 = vld [vmem:[%s5565 + $0x4] sm:$0xf]
          %v5568 = vld [vmem:[%s5565 + $0x8] sm:$0xf]
          %v5569 = vld [vmem:[%s5565 + $0xc] sm:$0xf]
          %v5574 = vunpack.c.l.b16 %v5566
          %v5575 = vunpack.c.l.b16 %v5567
          %v5576 = vunpack.c.l.b16 %v5568
          %v5577 = vunpack.c.l.b16 %v5569
          %v5578 = vpack.c.b16 %v5575, %v5574
          %v5579 = vpack.c.b16 %v5577, %v5576
          %v5581 = vsel %vm1415, %v5578, 0
          %v5584 = vsel %vm1415, %v5579, 0
          %5586 = vmatprep.subr.bf16.mxu0 0
          %5587 = vmatpush1.bf16.msra.mxu0 %v4264
          %5588 = vmatprep.subr.bf16.mxu0 0
          %5589 = vmatpush1.bf16.msra.mxu0 %v4265
          %5590 = vmatprep.subr.bf16.mxu0 0
          %5591 = vmatpush1.bf16.msra.mxu0 0
          %5592 = vmatprep.subr.bf16.mxu0 0
          %5593 = vmatpush1.bf16.msra.mxu0 0
          %5594 = vmatprep.subr.bf16.mxu0 0
          %5595 = vmatpush1.bf16.msra.mxu0 0
          %5596 = vmatprep.subr.bf16.mxu0 0
          %5597 = vmatpush1.bf16.msra.mxu0 0
          %5598 = vmatprep.subr.bf16.mxu0 0
          %5599 = vmatpush1.bf16.msra.mxu0 0
          %5600 = vmatprep.subr.bf16.mxu0 0
          %5601 = vmatpush1.bf16.msra.mxu0 0
          %5602 = vmatprep.subr.bf16.mxu0 0
          %5603 = vmatpush1.bf16.msra.mxu0 0
          %5604 = vmatprep.subr.bf16.mxu0 0
          %5605 = vmatpush1.bf16.msra.mxu0 0
          %5606 = vmatprep.subr.bf16.mxu0 0
          %5607 = vmatpush1.bf16.msra.mxu0 0
          %5608 = vmatprep.subr.bf16.mxu0 0
          %5609 = vmatpush1.bf16.msra.mxu0 0
          %5610 = vmatprep.subr.bf16.mxu0 0
          %5611 = vmatpush1.bf16.msra.mxu0 0
          %5612 = vmatprep.subr.bf16.mxu0 0
          %5613 = vmatpush1.bf16.msra.mxu0 0
          %5614 = vmatprep.subr.bf16.mxu0 0
          %5615 = vmatpush1.bf16.msra.mxu0 0
          %5616 = vmatprep.subr.bf16.mxu0 0
          %5617 = vmatpush1.bf16.msra.mxu0 0
          %5618 = vmatprep.mubr.bf16.mxu0 0
          %5619 = vmatmul.mubr.bf16.gmra.mrb[0].mxu0 %v5581
          %v5620 = vpop.f32.mrb[0].mxu0
          %v5621 = vadd.f32 0.0, %v5620
          %v5622 = vpop.f32.mrb[0].mxu0
          %v5623 = vpop.f32.mrb[0].mxu0
          %v5624 = vadd.f32 0.0, %v5623
          %v5625 = vpop.f32.mrb[0].mxu0
          %5626 = vmatprep.mubr.bf16.mxu0 0
          %5627 = vmatmul.mubr.bf16.gmra.mrb[0].mxu0 %v5584
          %v5628 = vpop.f32.mrb[0].mxu0
          %v5629 = vadd.f32 0.0, %v5628
          %v5630 = vpop.f32.mrb[0].mxu0
          %v5631 = vpop.f32.mrb[0].mxu0
          %v5632 = vadd.f32 0.0, %v5631
          %v5633 = vpop.f32.mrb[0].mxu0
          %5634 = vdwg.mxu0
          %s5635 = scalar_lea.vmem [#allocation18], 256
          %v5636 = vld [vmem:[%s5635] sm:$0xf]
          %v5637 = vld [vmem:[%s5635 + $0x4] sm:$0xf]
          %v5638 = vld [vmem:[%s5635 + $0x8] sm:$0xf]
          %v5639 = vld [vmem:[%s5635 + $0xc] sm:$0xf]
          %v5640 = vld [vmem:[%s5635 + $0x10] sm:$0xf]
          %v5641 = vld [vmem:[%s5635 + $0x14] sm:$0xf]
          %v5642 = vld [vmem:[%s5635 + $0x18] sm:$0xf]
          %v5643 = vld [vmem:[%s5635 + $0x1c] sm:$0xf]
          %v5644 = vpack.c.bf16 %v5624, %v5621
          %v5645 = vpack.c.bf16 %v5632, %v5629
          %v5654 = vunpack.c.l.b16 %v5636
          %v5655 = vunpack.c.l.b16 %v5637
          %v5656 = vunpack.c.l.b16 %v5638
          %v5657 = vunpack.c.l.b16 %v5639
          %v5658 = vunpack.c.l.b16 %v5640
          %v5659 = vunpack.c.l.b16 %v5641
          %v5660 = vunpack.c.l.b16 %v5642
          %v5661 = vunpack.c.l.b16 %v5643
          %v5662 = vpack.c.b16 %v5655, %v5654
          %v5663 = vpack.c.b16 %v5657, %v5656
          %v5664 = vpack.c.b16 %v5659, %v5658
          %v5665 = vpack.c.b16 %v5661, %v5660
          %v5671 = vsel %vm4446, %v5644, 0
          %v5674 = vsel %vm4446, %v5645, 0
          %5676 = vmatprep.subr.bf16.mxu0 0
          %5677 = vmatpush1.bf16.msra.mxu0 %v5662
          %5678 = vmatprep.subr.bf16.mxu0 0
          %5679 = vmatpush1.bf16.msra.mxu0 %v5663
          %5680 = vmatprep.subr.bf16.mxu0 0
          %5681 = vmatpush1.bf16.msra.mxu0 %v5664
          %5682 = vmatprep.subr.bf16.mxu0 0
          %5683 = vmatpush1.bf16.msra.mxu0 %v5665
          %5684 = vmatprep.subr.bf16.mxu0 0
          %5685 = vmatpush1.bf16.msra.mxu0 0
          %5686 = vmatprep.subr.bf16.mxu0 0
          %5687 = vmatpush1.bf16.msra.mxu0 0
          %5688 = vmatprep.subr.bf16.mxu0 0
          %5689 = vmatpush1.bf16.msra.mxu0 0
          %5690 = vmatprep.subr.bf16.mxu0 0
          %5691 = vmatpush1.bf16.msra.mxu0 0
          %5692 = vmatprep.subr.bf16.mxu0 0
          %5693 = vmatpush1.bf16.msra.mxu0 0
          %5694 = vmatprep.subr.bf16.mxu0 0
          %5695 = vmatpush1.bf16.msra.mxu0 0
          %5696 = vmatprep.subr.bf16.mxu0 0
          %5697 = vmatpush1.bf16.msra.mxu0 0
          %5698 = vmatprep.subr.bf16.mxu0 0
          %5699 = vmatpush1.bf16.msra.mxu0 0
          %5700 = vmatprep.subr.bf16.mxu0 0
          %5701 = vmatpush1.bf16.msra.mxu0 0
          %5702 = vmatprep.subr.bf16.mxu0 0
          %5703 = vmatpush1.bf16.msra.mxu0 0
          %5704 = vmatprep.subr.bf16.mxu0 0
          %5705 = vmatpush1.bf16.msra.mxu0 0
          %5706 = vmatprep.subr.bf16.mxu0 0
          %5707 = vmatpush1.bf16.msra.mxu0 0
          %5708 = vmatprep.mubr.bf16.mxu0 0
          %5709 = vmatmul.mubr.bf16.gmra.mrb[0].mxu0 %v5671
          %v5710 = vpop.f32.mrb[0].mxu0
          %v5711 = vadd.f32 0.0, %v5710
          %v5712 = vpop.f32.mrb[0].mxu0
          %v5713 = vpop.f32.mrb[0].mxu0
          %v5714 = vadd.f32 0.0, %v5713
          %v5715 = vpop.f32.mrb[0].mxu0
          %5716 = vmatprep.mubr.bf16.mxu0 0
          %5717 = vmatmul.mubr.bf16.gmra.mrb[0].mxu0 %v5674
          %v5718 = vpop.f32.mrb[0].mxu0
          %v5719 = vadd.f32 0.0, %v5718
          %v5720 = vpop.f32.mrb[0].mxu0
          %v5721 = vpop.f32.mrb[0].mxu0
          %v5722 = vadd.f32 0.0, %v5721
          %v5723 = vpop.f32.mrb[0].mxu0
          %5724 = vdwg.mxu0
          %v5725 = vadd.f32 %v5561, %v5711
          %v5726 = vadd.f32 %v5562, %v5714
          %v5727 = vadd.f32 %v5563, %v5719
          %v5728 = vadd.f32 %v5564, %v5722
          %v5729 = vld [vmem:[#allocation20] sm:$0x1]
          %v5731 = vlaneseq
          %v5732 = vshrl.u32 %v5731, 7
          %v5733 = vsub.s32 0, %v5732
          %v5734 = vrot.slane %v5729, %v5733
          %v5736 = vadd.f32 %v5725, %v5734
          %v5737 = vadd.f32 %v5726, %v5734
          %v5738 = vadd.f32 %v5727, %v5734
          %v5739 = vadd.f32 %v5728, %v5734
          %v5740 = vmax.f32 %v5736, 0.0
          %v5741 = vmax.f32 %v5737, 0.0
          %v5742 = vmax.f32 %v5738, 0.0
          %v5743 = vmax.f32 %v5739, 0.0
          %v5744 = vld [vmem:[#allocation9] sm:$0xf]
          %v5745 = vpack.c.bf16 %v5741, %v5740
          %v5746 = vpack.c.bf16 %v5743, %v5742
          %v5748 = vsel %vm1415, %v5744, 0
          %5750 = vmatprep.subr.bf16.mxu0 0
          %5751 = vmatpush1.bf16.msra.mxu0 %v5745
          %5752 = vmatprep.subr.bf16.mxu0 0
          %5753 = vmatpush1.bf16.msra.mxu0 %v5746
          %5754 = vmatprep.subr.bf16.mxu0 0
          %5755 = vmatpush1.bf16.msra.mxu0 0
          %5756 = vmatprep.subr.bf16.mxu0 0
          %5757 = vmatpush1.bf16.msra.mxu0 0
          %5758 = vmatprep.subr.bf16.mxu0 0
          %5759 = vmatpush1.bf16.msra.mxu0 0
          %5760 = vmatprep.subr.bf16.mxu0 0
          %5761 = vmatpush1.bf16.msra.mxu0 0
          %5762 = vmatprep.subr.bf16.mxu0 0
          %5763 = vmatpush1.bf16.msra.mxu0 0
          %5764 = vmatprep.subr.bf16.mxu0 0
          %5765 = vmatpush1.bf16.msra.mxu0 0
          %5766 = vmatprep.subr.bf16.mxu0 0
          %5767 = vmatpush1.bf16.msra.mxu0 0
          %5768 = vmatprep.subr.bf16.mxu0 0
          %5769 = vmatpush1.bf16.msra.mxu0 0
          %5770 = vmatprep.subr.bf16.mxu0 0
          %5771 = vmatpush1.bf16.msra.mxu0 0
          %5772 = vmatprep.subr.bf16.mxu0 0
          %5773 = vmatpush1.bf16.msra.mxu0 0
          %5774 = vmatprep.subr.bf16.mxu0 0
          %5775 = vmatpush1.bf16.msra.mxu0 0
          %5776 = vmatprep.subr.bf16.mxu0 0
          %5777 = vmatpush1.bf16.msra.mxu0 0
          %5778 = vmatprep.subr.bf16.mxu0 0
          %5779 = vmatpush1.bf16.msra.mxu0 0
          %5780 = vmatprep.subr.bf16.mxu0 0
          %5781 = vmatpush1.bf16.msra.mxu0 0
          %5782 = vmatprep.mubr.bf16.mxu0 0
          %5783 = vmatmul.mubr.bf16.gmra.mrb[0].mxu0 %v5748
          %v5784 = vpop.f32.mrb[0].mxu0
          %v5785 = vadd.f32 0.0, %v5784
          %v5786 = vpop.f32.mrb[0].mxu0
          %v5787 = vpop.f32.mrb[0].mxu0
          %v5788 = vpop.f32.mrb[0].mxu0
          %5789 = vdwg.mxu0
          %s5790 = scalar_lea.vmem [#allocation9], 4
          %v5791 = vld [vmem:[%s5790] sm:$0xf]
          %v5793 = vsel %vm1415, %v5791, 0
          %5795 = vmatprep.subr.bf16.mxu0 0
          %5796 = vmatpush1.bf16.msra.mxu0 %v5745
          %5797 = vmatprep.subr.bf16.mxu0 0
          %5798 = vmatpush1.bf16.msra.mxu0 %v5746
          %5799 = vmatprep.subr.bf16.mxu0 0
          %5800 = vmatpush1.bf16.msra.mxu0 0
          %5801 = vmatprep.subr.bf16.mxu0 0
          %5802 = vmatpush1.bf16.msra.mxu0 0
          %5803 = vmatprep.subr.bf16.mxu0 0
          %5804 = vmatpush1.bf16.msra.mxu0 0
          %5805 = vmatprep.subr.bf16.mxu0 0
          %5806 = vmatpush1.bf16.msra.mxu0 0
          %5807 = vmatprep.subr.bf16.mxu0 0
          %5808 = vmatpush1.bf16.msra.mxu0 0
          %5809 = vmatprep.subr.bf16.mxu0 0
          %5810 = vmatpush1.bf16.msra.mxu0 0
          %5811 = vmatprep.subr.bf16.mxu0 0
          %5812 = vmatpush1.bf16.msra.mxu0 0
          %5813 = vmatprep.subr.bf16.mxu0 0
          %5814 = vmatpush1.bf16.msra.mxu0 0
          %5815 = vmatprep.subr.bf16.mxu0 0
          %5816 = vmatpush1.bf16.msra.mxu0 0
          %5817 = vmatprep.subr.bf16.mxu0 0
          %5818 = vmatpush1.bf16.msra.mxu0 0
          %5819 = vmatprep.subr.bf16.mxu0 0
          %5820 = vmatpush1.bf16.msra.mxu0 0
          %5821 = vmatprep.subr.bf16.mxu0 0
          %5822 = vmatpush1.bf16.msra.mxu0 0
          %5823 = vmatprep.subr.bf16.mxu0 0
          %5824 = vmatpush1.bf16.msra.mxu0 0
          %5825 = vmatprep.subr.bf16.mxu0 0
          %5826 = vmatpush1.bf16.msra.mxu0 0
          %5827 = vmatprep.mubr.bf16.mxu0 0
          %5828 = vmatmul.mubr.bf16.gmra.mrb[0].mxu0 %v5793
          %v5829 = vpop.f32.mrb[0].mxu0
          %v5830 = vadd.f32 0.0, %v5829
          %v5831 = vpop.f32.mrb[0].mxu0
          %v5832 = vpop.f32.mrb[0].mxu0
          %v5833 = vpop.f32.mrb[0].mxu0
          %5834 = vdwg.mxu0
          %v5835 = vmax.f32 %v5785, %v5830
          %s5836 = scalar_lea.vmem [#allocation9], 8
          %v5837 = vld [vmem:[%s5836] sm:$0xf]
          %v5839 = vsel %vm1415, %v5837, 0
          %5841 = vmatprep.subr.bf16.mxu0 0
          %5842 = vmatpush1.bf16.msra.mxu0 %v5745
          %5843 = vmatprep.subr.bf16.mxu0 0
          %5844 = vmatpush1.bf16.msra.mxu0 %v5746
          %5845 = vmatprep.subr.bf16.mxu0 0
          %5846 = vmatpush1.bf16.msra.mxu0 0
          %5847 = vmatprep.subr.bf16.mxu0 0
          %5848 = vmatpush1.bf16.msra.mxu0 0
          %5849 = vmatprep.subr.bf16.mxu0 0
          %5850 = vmatpush1.bf16.msra.mxu0 0
          %5851 = vmatprep.subr.bf16.mxu0 0
          %5852 = vmatpush1.bf16.msra.mxu0 0
          %5853 = vmatprep.subr.bf16.mxu0 0
          %5854 = vmatpush1.bf16.msra.mxu0 0
          %5855 = vmatprep.subr.bf16.mxu0 0
          %5856 = vmatpush1.bf16.msra.mxu0 0
          %5857 = vmatprep.subr.bf16.mxu0 0
          %5858 = vmatpush1.bf16.msra.mxu0 0
          %5859 = vmatprep.subr.bf16.mxu0 0
          %5860 = vmatpush1.bf16.msra.mxu0 0
          %5861 = vmatprep.subr.bf16.mxu0 0
          %5862 = vmatpush1.bf16.msra.mxu0 0
          %5863 = vmatprep.subr.bf16.mxu0 0
          %5864 = vmatpush1.bf16.msra.mxu0 0
          %5865 = vmatprep.subr.bf16.mxu0 0
          %5866 = vmatpush1.bf16.msra.mxu0 0
          %5867 = vmatprep.subr.bf16.mxu0 0
          %5868 = vmatpush1.bf16.msra.mxu0 0
          %5869 = vmatprep.subr.bf16.mxu0 0
          %5870 = vmatpush1.bf16.msra.mxu0 0
          %5871 = vmatprep.subr.bf16.mxu0 0
          %5872 = vmatpush1.bf16.msra.mxu0 0
          %5873 = vmatprep.mubr.bf16.mxu0 0
          %5874 = vmatmul.mubr.bf16.gmra.mrb[0].mxu0 %v5839
          %v5875 = vpop.f32.mrb[0].mxu0
          %v5876 = vadd.f32 0.0, %v5875
          %v5877 = vpop.f32.mrb[0].mxu0
          %v5878 = vpop.f32.mrb[0].mxu0
          %v5879 = vpop.f32.mrb[0].mxu0
          %5880 = vdwg.mxu0
          %v5881 = vmax.f32 %v5835, %v5876
          %s5882 = scalar_lea.vmem [#allocation9], 12
          %v5883 = vld [vmem:[%s5882] sm:$0xf]
          %v5885 = vsel %vm1415, %v5883, 0
          %5887 = vmatprep.subr.bf16.mxu0 0
          %5888 = vmatpush1.bf16.msra.mxu0 %v5745
          %5889 = vmatprep.subr.bf16.mxu0 0
          %5890 = vmatpush1.bf16.msra.mxu0 %v5746
          %5891 = vmatprep.subr.bf16.mxu0 0
          %5892 = vmatpush1.bf16.msra.mxu0 0
          %5893 = vmatprep.subr.bf16.mxu0 0
          %5894 = vmatpush1.bf16.msra.mxu0 0
          %5895 = vmatprep.subr.bf16.mxu0 0
          %5896 = vmatpush1.bf16.msra.mxu0 0
          %5897 = vmatprep.subr.bf16.mxu0 0
          %5898 = vmatpush1.bf16.msra.mxu0 0
          %5899 = vmatprep.subr.bf16.mxu0 0
          %5900 = vmatpush1.bf16.msra.mxu0 0
          %5901 = vmatprep.subr.bf16.mxu0 0
          %5902 = vmatpush1.bf16.msra.mxu0 0
          %5903 = vmatprep.subr.bf16.mxu0 0
          %5904 = vmatpush1.bf16.msra.mxu0 0
          %5905 = vmatprep.subr.bf16.mxu0 0
          %5906 = vmatpush1.bf16.msra.mxu0 0
          %5907 = vmatprep.subr.bf16.mxu0 0
          %5908 = vmatpush1.bf16.msra.mxu0 0
          %5909 = vmatprep.subr.bf16.mxu0 0
          %5910 = vmatpush1.bf16.msra.mxu0 0
          %5911 = vmatprep.subr.bf16.mxu0 0
          %5912 = vmatpush1.bf16.msra.mxu0 0
          %5913 = vmatprep.subr.bf16.mxu0 0
          %5914 = vmatpush1.bf16.msra.mxu0 0
          %5915 = vmatprep.subr.bf16.mxu0 0
          %5916 = vmatpush1.bf16.msra.mxu0 0
          %5917 = vmatprep.subr.bf16.mxu0 0
          %5918 = vmatpush1.bf16.msra.mxu0 0
          %5919 = vmatprep.mubr.bf16.mxu0 0
          %5920 = vmatmul.mubr.bf16.gmra.mrb[0].mxu0 %v5885
          %v5921 = vpop.f32.mrb[0].mxu0
          %v5922 = vadd.f32 0.0, %v5921
          %v5923 = vpop.f32.mrb[0].mxu0
          %v5924 = vpop.f32.mrb[0].mxu0
          %v5925 = vpop.f32.mrb[0].mxu0
          %5926 = vdwg.mxu0
          %v5927 = vmax.f32 %v5881, %v5922
          %v5928 = vld [vmem:[#allocation11] sm:$0x1]
          %v5929 = vpack.c.bf16 %v5927, %v5927
          %vm5930 = vcmask 64512
          %v5932 = vsel %vm5930, %v5928, 0
          %v5935 = vsel %vm927, %v5929, 0
          %5937 = vmatprep.subr.bf16.mxu0 0
          %5938 = vmatpush1.bf16.msra.mxu0 %v5935
          %5939 = vmatprep.subr.bf16.mxu0 0
          %5940 = vmatpush1.bf16.msra.mxu0 0
          %5941 = vmatprep.subr.bf16.mxu0 0
          %5942 = vmatpush1.bf16.msra.mxu0 0
          %5943 = vmatprep.subr.bf16.mxu0 0
          %5944 = vmatpush1.bf16.msra.mxu0 0
          %5945 = vmatprep.subr.bf16.mxu0 0
          %5946 = vmatpush1.bf16.msra.mxu0 0
          %5947 = vmatprep.subr.bf16.mxu0 0
          %5948 = vmatpush1.bf16.msra.mxu0 0
          %5949 = vmatprep.subr.bf16.mxu0 0
          %5950 = vmatpush1.bf16.msra.mxu0 0
          %5951 = vmatprep.subr.bf16.mxu0 0
          %5952 = vmatpush1.bf16.msra.mxu0 0
          %5953 = vmatprep.subr.bf16.mxu0 0
          %5954 = vmatpush1.bf16.msra.mxu0 0
          %5955 = vmatprep.subr.bf16.mxu0 0
          %5956 = vmatpush1.bf16.msra.mxu0 0
          %5957 = vmatprep.subr.bf16.mxu0 0
          %5958 = vmatpush1.bf16.msra.mxu0 0
          %5959 = vmatprep.subr.bf16.mxu0 0
          %5960 = vmatpush1.bf16.msra.mxu0 0
          %5961 = vmatprep.subr.bf16.mxu0 0
          %5962 = vmatpush1.bf16.msra.mxu0 0
          %5963 = vmatprep.subr.bf16.mxu0 0
          %5964 = vmatpush1.bf16.msra.mxu0 0
          %5965 = vmatprep.subr.bf16.mxu0 0
          %5966 = vmatpush1.bf16.msra.mxu0 0
          %5967 = vmatprep.subr.bf16.mxu0 0
          %5968 = vmatpush1.bf16.msra.mxu0 0
          %5969 = vmatprep.mubr.bf16.mxu0 0
          %5970 = vmatmul.mubr.bf16.gmra.mrb[0].mxu0 %v5932
          %v5971 = vpop.f32.mrb[0].mxu0
          %v5972 = vadd.f32 0.0, %v5971
          %v5973 = vpop.f32.mrb[0].mxu0
          %v5974 = vpop.f32.mrb[0].mxu0
          %v5975 = vpop.f32.mrb[0].mxu0
          %5976 = vdwg.mxu0
          %v5977 = vld [vmem:[#allocation21] sm:$0xff]
          %v5978 = vld [vmem:[#allocation21 + $0x8] sm:$0xff]
          %v5979 = vld [vmem:[#allocation21 + $0x10] sm:$0xff]
          %v5980 = vld [vmem:[#allocation21 + $0x18] sm:$0xff]
          %v5981 = vld [vmem:[#allocation21 + $0x20] sm:$0xff]
          %v5982 = vld [vmem:[#allocation21 + $0x28] sm:$0xff]
          %v5983 = vld [vmem:[#allocation21 + $0x30] sm:$0xff]
          %v5984 = vld [vmem:[#allocation21 + $0x38] sm:$0xff]
          %v5985 = vld [vmem:[#allocation21 + $0x40] sm:$0xff]
          %v5986 = vld [vmem:[#allocation21 + $0x48] sm:$0xff]
          %v5987 = vld [vmem:[#allocation21 + $0x50] sm:$0xff]
          %v5988 = vld [vmem:[#allocation21 + $0x58] sm:$0xff]
          %v5989 = vld [vmem:[#allocation21 + $0x60] sm:$0xff]
          %v5990 = vld [vmem:[#allocation21 + $0x68] sm:$0xff]
          %v5991 = vld [vmem:[#allocation21 + $0x70] sm:$0xff]
          %v5992 = vld [vmem:[#allocation21 + $0x78] sm:$0xff]
          %v5993 = vld [vmem:[#allocation21 + $0x80] sm:$0xff]
          %v5994 = vld [vmem:[#allocation21 + $0x88] sm:$0xff]
          %v5995 = vld [vmem:[#allocation21 + $0x90] sm:$0xff]
          %v5996 = vld [vmem:[#allocation21 + $0x98] sm:$0xff]
          %v5997 = vld [vmem:[#allocation21 + $0xa0] sm:$0xff]
          %v5998 = vld [vmem:[#allocation21 + $0xa8] sm:$0xff]
          %v5999 = vld [vmem:[#allocation21 + $0xb0] sm:$0xff]
          %v6000 = vld [vmem:[#allocation21 + $0xb8] sm:$0xff]
          %v6001 = vld [vmem:[#allocation21 + $0xc0] sm:$0xff]
          %v6002 = vld [vmem:[#allocation21 + $0xc8] sm:$0xff]
          %v6003 = vld [vmem:[#allocation21 + $0xd0] sm:$0xff]
          %v6004 = vld [vmem:[#allocation21 + $0xd8] sm:$0xff]
          %v6005 = vld [vmem:[#allocation21 + $0xe0] sm:$0xff]
          %v6006 = vld [vmem:[#allocation21 + $0xe8] sm:$0xff]
          %v6007 = vld [vmem:[#allocation21 + $0xf0] sm:$0xff]
          %v6008 = vld [vmem:[#allocation21 + $0xf8] sm:$0xff]
          %v6009 = vpack.c.bf16 %v5972, %v5972
          %s6010 = scalar_lea.vmem [#allocation11], 1
          %v6011 = vld [vmem:[%s6010] sm:$0x1]
          %v6013 = vsel %vm5930, %v6011, 0
          %6015 = vmatprep.subr.bf16.mxu0 0
          %6016 = vmatpush1.bf16.msra.mxu0 %v5935
          %6017 = vmatprep.subr.bf16.mxu0 0
          %6018 = vmatpush1.bf16.msra.mxu0 0
          %6019 = vmatprep.subr.bf16.mxu0 0
          %6020 = vmatpush1.bf16.msra.mxu0 0
          %6021 = vmatprep.subr.bf16.mxu0 0
          %6022 = vmatpush1.bf16.msra.mxu0 0
          %6023 = vmatprep.subr.bf16.mxu0 0
          %6024 = vmatpush1.bf16.msra.mxu0 0
          %6025 = vmatprep.subr.bf16.mxu0 0
          %6026 = vmatpush1.bf16.msra.mxu0 0
          %6027 = vmatprep.subr.bf16.mxu0 0
          %6028 = vmatpush1.bf16.msra.mxu0 0
          %6029 = vmatprep.subr.bf16.mxu0 0
          %6030 = vmatpush1.bf16.msra.mxu0 0
          %6031 = vmatprep.subr.bf16.mxu0 0
          %6032 = vmatpush1.bf16.msra.mxu0 0
          %6033 = vmatprep.subr.bf16.mxu0 0
          %6034 = vmatpush1.bf16.msra.mxu0 0
          %6035 = vmatprep.subr.bf16.mxu0 0
          %6036 = vmatpush1.bf16.msra.mxu0 0
          %6037 = vmatprep.subr.bf16.mxu0 0
          %6038 = vmatpush1.bf16.msra.mxu0 0
          %6039 = vmatprep.subr.bf16.mxu0 0
          %6040 = vmatpush1.bf16.msra.mxu0 0
          %6041 = vmatprep.subr.bf16.mxu0 0
          %6042 = vmatpush1.bf16.msra.mxu0 0
          %6043 = vmatprep.subr.bf16.mxu0 0
          %6044 = vmatpush1.bf16.msra.mxu0 0
          %6045 = vmatprep.subr.bf16.mxu0 0
          %6046 = vmatpush1.bf16.msra.mxu0 0
          %6047 = vmatprep.mubr.bf16.mxu0 0
          %6048 = vmatmul.mubr.bf16.gmra.mrb[0].mxu0 %v6013
          %v6049 = vpop.f32.mrb[0].mxu0
          %v6050 = vadd.f32 0.0, %v6049
          %v6051 = vpop.f32.mrb[0].mxu0
          %v6052 = vpop.f32.mrb[0].mxu0
          %v6053 = vpop.f32.mrb[0].mxu0
          %6054 = vdwg.mxu0
          %s6055 = scalar_lea.vmem [#allocation21], 256
          %v6056 = vld [vmem:[%s6055] sm:$0xff]
          %v6057 = vld [vmem:[%s6055 + $0x8] sm:$0xff]
          %v6058 = vld [vmem:[%s6055 + $0x10] sm:$0xff]
          %v6059 = vld [vmem:[%s6055 + $0x18] sm:$0xff]
          %v6060 = vld [vmem:[%s6055 + $0x20] sm:$0xff]
          %v6061 = vld [vmem:[%s6055 + $0x28] sm:$0xff]
          %v6062 = vld [vmem:[%s6055 + $0x30] sm:$0xff]
          %v6063 = vld [vmem:[%s6055 + $0x38] sm:$0xff]
          %v6064 = vld [vmem:[%s6055 + $0x40] sm:$0xff]
          %v6065 = vld [vmem:[%s6055 + $0x48] sm:$0xff]
          %v6066 = vld [vmem:[%s6055 + $0x50] sm:$0xff]
          %v6067 = vld [vmem:[%s6055 + $0x58] sm:$0xff]
          %v6068 = vld [vmem:[%s6055 + $0x60] sm:$0xff]
          %v6069 = vld [vmem:[%s6055 + $0x68] sm:$0xff]
          %v6070 = vld [vmem:[%s6055 + $0x70] sm:$0xff]
          %v6071 = vld [vmem:[%s6055 + $0x78] sm:$0xff]
          %v6072 = vld [vmem:[%s6055 + $0x80] sm:$0xff]
          %v6073 = vld [vmem:[%s6055 + $0x88] sm:$0xff]
          %v6074 = vld [vmem:[%s6055 + $0x90] sm:$0xff]
          %v6075 = vld [vmem:[%s6055 + $0x98] sm:$0xff]
          %v6076 = vld [vmem:[%s6055 + $0xa0] sm:$0xff]
          %v6077 = vld [vmem:[%s6055 + $0xa8] sm:$0xff]
          %v6078 = vld [vmem:[%s6055 + $0xb0] sm:$0xff]
          %v6079 = vld [vmem:[%s6055 + $0xb8] sm:$0xff]
          %v6080 = vld [vmem:[%s6055 + $0xc0] sm:$0xff]
          %v6081 = vld [vmem:[%s6055 + $0xc8] sm:$0xff]
          %v6082 = vld [vmem:[%s6055 + $0xd0] sm:$0xff]
          %v6083 = vld [vmem:[%s6055 + $0xd8] sm:$0xff]
          %v6084 = vld [vmem:[%s6055 + $0xe0] sm:$0xff]
          %v6085 = vld [vmem:[%s6055 + $0xe8] sm:$0xff]
          %v6086 = vld [vmem:[%s6055 + $0xf0] sm:$0xff]
          %v6087 = vld [vmem:[%s6055 + $0xf8] sm:$0xff]
          %v6088 = vpack.c.bf16 %v6050, %v6050
          %v6121 = vunpack.c.l.b16 %v6056
          %v6122 = vunpack.c.h.b16 %v6056
          %v6123 = vunpack.c.l.b16 %v6057
          %v6124 = vunpack.c.h.b16 %v6057
          %v6125 = vunpack.c.l.b16 %v6058
          %v6126 = vunpack.c.h.b16 %v6058
          %v6127 = vunpack.c.l.b16 %v6059
          %v6128 = vunpack.c.h.b16 %v6059
          %v6129 = vunpack.c.l.b16 %v6060
          %v6130 = vunpack.c.h.b16 %v6060
          %v6131 = vunpack.c.l.b16 %v6061
          %v6132 = vunpack.c.h.b16 %v6061
          %v6133 = vunpack.c.l.b16 %v6062
          %v6134 = vunpack.c.h.b16 %v6062
          %v6135 = vunpack.c.l.b16 %v6063
          %v6136 = vunpack.c.h.b16 %v6063
          %v6137 = vunpack.c.l.b16 %v6064
          %v6138 = vunpack.c.h.b16 %v6064
          %v6139 = vunpack.c.l.b16 %v6065
          %v6140 = vunpack.c.h.b16 %v6065
          %v6141 = vunpack.c.l.b16 %v6066
          %v6142 = vunpack.c.h.b16 %v6066
          %v6143 = vunpack.c.l.b16 %v6067
          %v6144 = vunpack.c.h.b16 %v6067
          %v6145 = vunpack.c.l.b16 %v6068
          %v6146 = vunpack.c.h.b16 %v6068
          %v6147 = vunpack.c.l.b16 %v6069
          %v6148 = vunpack.c.h.b16 %v6069
          %v6149 = vunpack.c.l.b16 %v6070
          %v6150 = vunpack.c.h.b16 %v6070
          %v6151 = vunpack.c.l.b16 %v6071
          %v6152 = vunpack.c.h.b16 %v6071
          %v6153 = vunpack.c.l.b16 %v6072
          %v6154 = vunpack.c.h.b16 %v6072
          %v6155 = vunpack.c.l.b16 %v6073
          %v6156 = vunpack.c.h.b16 %v6073
          %v6157 = vunpack.c.l.b16 %v6074
          %v6158 = vunpack.c.h.b16 %v6074
          %v6159 = vunpack.c.l.b16 %v6075
          %v6160 = vunpack.c.h.b16 %v6075
          %v6161 = vunpack.c.l.b16 %v6076
          %v6162 = vunpack.c.h.b16 %v6076
          %v6163 = vunpack.c.l.b16 %v6077
          %v6164 = vunpack.c.h.b16 %v6077
          %v6165 = vunpack.c.l.b16 %v6078
          %v6166 = vunpack.c.h.b16 %v6078
          %v6167 = vunpack.c.l.b16 %v6079
          %v6168 = vunpack.c.h.b16 %v6079
          %v6169 = vunpack.c.l.b16 %v6080
          %v6170 = vunpack.c.h.b16 %v6080
          %v6171 = vunpack.c.l.b16 %v6081
          %v6172 = vunpack.c.h.b16 %v6081
          %v6173 = vunpack.c.l.b16 %v6082
          %v6174 = vunpack.c.h.b16 %v6082
          %v6175 = vunpack.c.l.b16 %v6083
          %v6176 = vunpack.c.h.b16 %v6083
          %v6177 = vunpack.c.l.b16 %v6084
          %v6178 = vunpack.c.h.b16 %v6084
          %v6179 = vunpack.c.l.b16 %v6085
          %v6180 = vunpack.c.h.b16 %v6085
          %v6181 = vunpack.c.l.b16 %v6086
          %v6182 = vunpack.c.h.b16 %v6086
          %v6183 = vunpack.c.l.b16 %v6087
          %v6184 = vunpack.c.h.b16 %v6087
          %v6185 = vpack.c.b16 %v6125, %v6121
          %v6186 = vpack.c.b16 %v6126, %v6122
          %v6187 = vpack.c.b16 %v6127, %v6123
          %v6188 = vpack.c.b16 %v6128, %v6124
          %v6189 = vpack.c.b16 %v6133, %v6129
          %v6190 = vpack.c.b16 %v6134, %v6130
          %v6191 = vpack.c.b16 %v6135, %v6131
          %v6192 = vpack.c.b16 %v6136, %v6132
          %v6193 = vpack.c.b16 %v6141, %v6137
          %v6194 = vpack.c.b16 %v6142, %v6138
          %v6195 = vpack.c.b16 %v6143, %v6139
          %v6196 = vpack.c.b16 %v6144, %v6140
          %v6197 = vpack.c.b16 %v6149, %v6145
          %v6198 = vpack.c.b16 %v6150, %v6146
          %v6199 = vpack.c.b16 %v6151, %v6147
          %v6200 = vpack.c.b16 %v6152, %v6148
          %v6201 = vpack.c.b16 %v6157, %v6153
          %v6202 = vpack.c.b16 %v6158, %v6154
          %v6203 = vpack.c.b16 %v6159, %v6155
          %v6204 = vpack.c.b16 %v6160, %v6156
          %v6205 = vpack.c.b16 %v6165, %v6161
          %v6206 = vpack.c.b16 %v6166, %v6162
          %v6207 = vpack.c.b16 %v6167, %v6163
          %v6208 = vpack.c.b16 %v6168, %v6164
          %v6209 = vpack.c.b16 %v6173, %v6169
          %v6210 = vpack.c.b16 %v6174, %v6170
          %v6211 = vpack.c.b16 %v6175, %v6171
          %v6212 = vpack.c.b16 %v6176, %v6172
          %v6213 = vpack.c.b16 %v6181, %v6177
          %v6214 = vpack.c.b16 %v6182, %v6178
          %v6215 = vpack.c.b16 %v6183, %v6179
          %v6216 = vpack.c.b16 %v6184, %v6180
          %6249 = vmatprep.subr.bf16.mxu0 %v6186
          %6250 = vmatpush1.bf16.msra.mxu0 %v6185
          %6251 = vmatprep.subr.bf16.mxu0 %v6190
          %6252 = vmatpush1.bf16.msra.mxu0 %v6189
          %6253 = vmatprep.subr.bf16.mxu0 %v6194
          %6254 = vmatpush1.bf16.msra.mxu0 %v6193
          %6255 = vmatprep.subr.bf16.mxu0 %v6198
          %6256 = vmatpush1.bf16.msra.mxu0 %v6197
          %6257 = vmatprep.subr.bf16.mxu0 %v6202
          %6258 = vmatpush1.bf16.msra.mxu0 %v6201
          %6259 = vmatprep.subr.bf16.mxu0 %v6206
          %6260 = vmatpush1.bf16.msra.mxu0 %v6205
          %6261 = vmatprep.subr.bf16.mxu0 %v6210
          %6262 = vmatpush1.bf16.msra.mxu0 %v6209
          %6263 = vmatprep.subr.bf16.mxu0 %v6214
          %6264 = vmatpush1.bf16.msra.mxu0 %v6213
          %6265 = vmatprep.subr.bf16.mxu0 0
          %6266 = vmatpush1.bf16.msra.mxu0 0
          %6267 = vmatprep.subr.bf16.mxu0 0
          %6268 = vmatpush1.bf16.msra.mxu0 0
          %6269 = vmatprep.subr.bf16.mxu0 0
          %6270 = vmatpush1.bf16.msra.mxu0 0
          %6271 = vmatprep.subr.bf16.mxu0 0
          %6272 = vmatpush1.bf16.msra.mxu0 0
          %6273 = vmatprep.subr.bf16.mxu0 0
          %6274 = vmatpush1.bf16.msra.mxu0 0
          %6275 = vmatprep.subr.bf16.mxu0 0
          %6276 = vmatpush1.bf16.msra.mxu0 0
          %6277 = vmatprep.subr.bf16.mxu0 0
          %6278 = vmatpush1.bf16.msra.mxu0 0
          %6279 = vmatprep.subr.bf16.mxu0 0
          %6280 = vmatpush1.bf16.msra.mxu0 0
          %6281 = vmatprep.mubr.bf16.mxu0 0
          %6282 = vmatmul.mubr.bf16.gmra.mrb[0].mxu0 %v6088
          %v6283 = vpop.f32.mrb[0].mxu0
          %v6284 = vadd.f32 0.0, %v6283
          %v6285 = vpop.f32.mrb[0].mxu0
          %v6286 = vadd.f32 0.0, %v6285
          %v6287 = vpop.f32.mrb[0].mxu0
          %v6288 = vpop.f32.mrb[0].mxu0
          %6289 = vdwg.mxu0
          %6290 = vmatprep.subr.bf16.mxu0 %v6188
          %6291 = vmatpush1.bf16.msra.mxu0 %v6187
          %6292 = vmatprep.subr.bf16.mxu0 %v6192
          %6293 = vmatpush1.bf16.msra.mxu0 %v6191
          %6294 = vmatprep.subr.bf16.mxu0 %v6196
          %6295 = vmatpush1.bf16.msra.mxu0 %v6195
          %6296 = vmatprep.subr.bf16.mxu0 %v6200
          %6297 = vmatpush1.bf16.msra.mxu0 %v6199
          %6298 = vmatprep.subr.bf16.mxu0 %v6204
          %6299 = vmatpush1.bf16.msra.mxu0 %v6203
          %6300 = vmatprep.subr.bf16.mxu0 %v6208
          %6301 = vmatpush1.bf16.msra.mxu0 %v6207
          %6302 = vmatprep.subr.bf16.mxu0 %v6212
          %6303 = vmatpush1.bf16.msra.mxu0 %v6211
          %6304 = vmatprep.subr.bf16.mxu0 %v6216
          %6305 = vmatpush1.bf16.msra.mxu0 %v6215
          %6306 = vmatprep.subr.bf16.mxu0 0
          %6307 = vmatpush1.bf16.msra.mxu0 0
          %6308 = vmatprep.subr.bf16.mxu0 0
          %6309 = vmatpush1.bf16.msra.mxu0 0
          %6310 = vmatprep.subr.bf16.mxu0 0
          %6311 = vmatpush1.bf16.msra.mxu0 0
          %6312 = vmatprep.subr.bf16.mxu0 0
          %6313 = vmatpush1.bf16.msra.mxu0 0
          %6314 = vmatprep.subr.bf16.mxu0 0
          %6315 = vmatpush1.bf16.msra.mxu0 0
          %6316 = vmatprep.subr.bf16.mxu0 0
          %6317 = vmatpush1.bf16.msra.mxu0 0
          %6318 = vmatprep.subr.bf16.mxu0 0
          %6319 = vmatpush1.bf16.msra.mxu0 0
          %6320 = vmatprep.subr.bf16.mxu0 0
          %6321 = vmatpush1.bf16.msra.mxu0 0
          %6322 = vmatprep.mubr.bf16.mxu0 0
          %6323 = vmatmul.mubr.bf16.gmra.mrb[0].mxu0 %v6088
          %v6324 = vpop.f32.mrb[0].mxu0
          %v6325 = vadd.f32 0.0, %v6324
          %v6326 = vpop.f32.mrb[0].mxu0
          %v6327 = vadd.f32 0.0, %v6326
          %v6328 = vpop.f32.mrb[0].mxu0
          %v6329 = vpop.f32.mrb[0].mxu0
          %6330 = vdwg.mxu0
          %v6363 = vunpack.c.l.b16 %v5977
          %v6364 = vunpack.c.h.b16 %v5977
          %v6365 = vunpack.c.l.b16 %v5978
          %v6366 = vunpack.c.h.b16 %v5978
          %v6367 = vunpack.c.l.b16 %v5979
          %v6368 = vunpack.c.h.b16 %v5979
          %v6369 = vunpack.c.l.b16 %v5980
          %v6370 = vunpack.c.h.b16 %v5980
          %v6371 = vunpack.c.l.b16 %v5981
          %v6372 = vunpack.c.h.b16 %v5981
          %v6373 = vunpack.c.l.b16 %v5982
          %v6374 = vunpack.c.h.b16 %v5982
          %v6375 = vunpack.c.l.b16 %v5983
          %v6376 = vunpack.c.h.b16 %v5983
          %v6377 = vunpack.c.l.b16 %v5984
          %v6378 = vunpack.c.h.b16 %v5984
          %v6379 = vunpack.c.l.b16 %v5985
          %v6380 = vunpack.c.h.b16 %v5985
          %v6381 = vunpack.c.l.b16 %v5986
          %v6382 = vunpack.c.h.b16 %v5986
          %v6383 = vunpack.c.l.b16 %v5987
          %v6384 = vunpack.c.h.b16 %v5987
          %v6385 = vunpack.c.l.b16 %v5988
          %v6386 = vunpack.c.h.b16 %v5988
          %v6387 = vunpack.c.l.b16 %v5989
          %v6388 = vunpack.c.h.b16 %v5989
          %v6389 = vunpack.c.l.b16 %v5990
          %v6390 = vunpack.c.h.b16 %v5990
          %v6391 = vunpack.c.l.b16 %v5991
          %v6392 = vunpack.c.h.b16 %v5991
          %v6393 = vunpack.c.l.b16 %v5992
          %v6394 = vunpack.c.h.b16 %v5992
          %v6395 = vunpack.c.l.b16 %v5993
          %v6396 = vunpack.c.h.b16 %v5993
          %v6397 = vunpack.c.l.b16 %v5994
          %v6398 = vunpack.c.h.b16 %v5994
          %v6399 = vunpack.c.l.b16 %v5995
          %v6400 = vunpack.c.h.b16 %v5995
          %v6401 = vunpack.c.l.b16 %v5996
          %v6402 = vunpack.c.h.b16 %v5996
          %v6403 = vunpack.c.l.b16 %v5997
          %v6404 = vunpack.c.h.b16 %v5997
          %v6405 = vunpack.c.l.b16 %v5998
          %v6406 = vunpack.c.h.b16 %v5998
          %v6407 = vunpack.c.l.b16 %v5999
          %v6408 = vunpack.c.h.b16 %v5999
          %v6409 = vunpack.c.l.b16 %v6000
          %v6410 = vunpack.c.h.b16 %v6000
          %v6411 = vunpack.c.l.b16 %v6001
          %v6412 = vunpack.c.h.b16 %v6001
          %v6413 = vunpack.c.l.b16 %v6002
          %v6414 = vunpack.c.h.b16 %v6002
          %v6415 = vunpack.c.l.b16 %v6003
          %v6416 = vunpack.c.h.b16 %v6003
          %v6417 = vunpack.c.l.b16 %v6004
          %v6418 = vunpack.c.h.b16 %v6004
          %v6419 = vunpack.c.l.b16 %v6005
          %v6420 = vunpack.c.h.b16 %v6005
          %v6421 = vunpack.c.l.b16 %v6006
          %v6422 = vunpack.c.h.b16 %v6006
          %v6423 = vunpack.c.l.b16 %v6007
          %v6424 = vunpack.c.h.b16 %v6007
          %v6425 = vunpack.c.l.b16 %v6008
          %v6426 = vunpack.c.h.b16 %v6008
          %v6427 = vpack.c.b16 %v6367, %v6363
          %v6428 = vpack.c.b16 %v6368, %v6364
          %v6429 = vpack.c.b16 %v6369, %v6365
          %v6430 = vpack.c.b16 %v6370, %v6366
          %v6431 = vpack.c.b16 %v6375, %v6371
          %v6432 = vpack.c.b16 %v6376, %v6372
          %v6433 = vpack.c.b16 %v6377, %v6373
          %v6434 = vpack.c.b16 %v6378, %v6374
          %v6435 = vpack.c.b16 %v6383, %v6379
          %v6436 = vpack.c.b16 %v6384, %v6380
          %v6437 = vpack.c.b16 %v6385, %v6381
          %v6438 = vpack.c.b16 %v6386, %v6382
          %v6439 = vpack.c.b16 %v6391, %v6387
          %v6440 = vpack.c.b16 %v6392, %v6388
          %v6441 = vpack.c.b16 %v6393, %v6389
          %v6442 = vpack.c.b16 %v6394, %v6390
          %v6443 = vpack.c.b16 %v6399, %v6395
          %v6444 = vpack.c.b16 %v6400, %v6396
          %v6445 = vpack.c.b16 %v6401, %v6397
          %v6446 = vpack.c.b16 %v6402, %v6398
          %v6447 = vpack.c.b16 %v6407, %v6403
          %v6448 = vpack.c.b16 %v6408, %v6404
          %v6449 = vpack.c.b16 %v6409, %v6405
          %v6450 = vpack.c.b16 %v6410, %v6406
          %v6451 = vpack.c.b16 %v6415, %v6411
          %v6452 = vpack.c.b16 %v6416, %v6412
          %v6453 = vpack.c.b16 %v6417, %v6413
          %v6454 = vpack.c.b16 %v6418, %v6414
          %v6455 = vpack.c.b16 %v6423, %v6419
          %v6456 = vpack.c.b16 %v6424, %v6420
          %v6457 = vpack.c.b16 %v6425, %v6421
          %v6458 = vpack.c.b16 %v6426, %v6422
          %6491 = vmatprep.subr.bf16.mxu0 %v6428
          %6492 = vmatpush1.bf16.msra.mxu0 %v6427
          %6493 = vmatprep.subr.bf16.mxu0 %v6432
          %6494 = vmatpush1.bf16.msra.mxu0 %v6431
          %6495 = vmatprep.subr.bf16.mxu0 %v6436
          %6496 = vmatpush1.bf16.msra.mxu0 %v6435
          %6497 = vmatprep.subr.bf16.mxu0 %v6440
          %6498 = vmatpush1.bf16.msra.mxu0 %v6439
          %6499 = vmatprep.subr.bf16.mxu0 %v6444
          %6500 = vmatpush1.bf16.msra.mxu0 %v6443
          %6501 = vmatprep.subr.bf16.mxu0 %v6448
          %6502 = vmatpush1.bf16.msra.mxu0 %v6447
          %6503 = vmatprep.subr.bf16.mxu0 %v6452
          %6504 = vmatpush1.bf16.msra.mxu0 %v6451
          %6505 = vmatprep.subr.bf16.mxu0 %v6456
          %6506 = vmatpush1.bf16.msra.mxu0 %v6455
          %6507 = vmatprep.subr.bf16.mxu0 0
          %6508 = vmatpush1.bf16.msra.mxu0 0
          %6509 = vmatprep.subr.bf16.mxu0 0
          %6510 = vmatpush1.bf16.msra.mxu0 0
          %6511 = vmatprep.subr.bf16.mxu0 0
          %6512 = vmatpush1.bf16.msra.mxu0 0
          %6513 = vmatprep.subr.bf16.mxu0 0
          %6514 = vmatpush1.bf16.msra.mxu0 0
          %6515 = vmatprep.subr.bf16.mxu0 0
          %6516 = vmatpush1.bf16.msra.mxu0 0
          %6517 = vmatprep.subr.bf16.mxu0 0
          %6518 = vmatpush1.bf16.msra.mxu0 0
          %6519 = vmatprep.subr.bf16.mxu0 0
          %6520 = vmatpush1.bf16.msra.mxu0 0
          %6521 = vmatprep.subr.bf16.mxu0 0
          %6522 = vmatpush1.bf16.msra.mxu0 0
          %6523 = vmatprep.mubr.bf16.mxu0 0
          %6524 = vmatmul.mubr.bf16.gmra.mrb[0].mxu0 %v6009
          %v6525 = vpop.f32.mrb[0].mxu0
          %v6526 = vadd.f32 %v6284, %v6525
          %v6527 = vpop.f32.mrb[0].mxu0
          %v6528 = vadd.f32 %v6286, %v6527
          %v6529 = vpop.f32.mrb[0].mxu0
          %v6530 = vpop.f32.mrb[0].mxu0
          %6531 = vdwg.mxu0
          %6532 = vmatprep.subr.bf16.mxu0 %v6430
          %6533 = vmatpush1.bf16.msra.mxu0 %v6429
          %6534 = vmatprep.subr.bf16.mxu0 %v6434
          %6535 = vmatpush1.bf16.msra.mxu0 %v6433
          %6536 = vmatprep.subr.bf16.mxu0 %v6438
          %6537 = vmatpush1.bf16.msra.mxu0 %v6437
          %6538 = vmatprep.subr.bf16.mxu0 %v6442
          %6539 = vmatpush1.bf16.msra.mxu0 %v6441
          %6540 = vmatprep.subr.bf16.mxu0 %v6446
          %6541 = vmatpush1.bf16.msra.mxu0 %v6445
          %6542 = vmatprep.subr.bf16.mxu0 %v6450
          %6543 = vmatpush1.bf16.msra.mxu0 %v6449
          %6544 = vmatprep.subr.bf16.mxu0 %v6454
          %6545 = vmatpush1.bf16.msra.mxu0 %v6453
          %6546 = vmatprep.subr.bf16.mxu0 %v6458
          %6547 = vmatpush1.bf16.msra.mxu0 %v6457
          %6548 = vmatprep.subr.bf16.mxu0 0
          %6549 = vmatpush1.bf16.msra.mxu0 0
          %6550 = vmatprep.subr.bf16.mxu0 0
          %6551 = vmatpush1.bf16.msra.mxu0 0
          %6552 = vmatprep.subr.bf16.mxu0 0
          %6553 = vmatpush1.bf16.msra.mxu0 0
          %6554 = vmatprep.subr.bf16.mxu0 0
          %6555 = vmatpush1.bf16.msra.mxu0 0
          %6556 = vmatprep.subr.bf16.mxu0 0
          %6557 = vmatpush1.bf16.msra.mxu0 0
          %6558 = vmatprep.subr.bf16.mxu0 0
          %6559 = vmatpush1.bf16.msra.mxu0 0
          %6560 = vmatprep.subr.bf16.mxu0 0
          %6561 = vmatpush1.bf16.msra.mxu0 0
          %6562 = vmatprep.subr.bf16.mxu0 0
          %6563 = vmatpush1.bf16.msra.mxu0 0
          %6564 = vmatprep.mubr.bf16.mxu0 0
          %6565 = vmatmul.mubr.bf16.gmra.mrb[0].mxu0 %v6009
          %v6566 = vpop.f32.mrb[0].mxu0
          %v6567 = vadd.f32 %v6325, %v6566
          %v6568 = vpop.f32.mrb[0].mxu0
          %v6569 = vadd.f32 %v6327, %v6568
          %v6570 = vpop.f32.mrb[0].mxu0
          %v6571 = vpop.f32.mrb[0].mxu0
          %6572 = vdwg.mxu0
          %s6573 = scalar_lea.vmem [#allocation11], 2
          %v6574 = vld [vmem:[%s6573] sm:$0x1]
          %v6576 = vsel %vm5930, %v6574, 0
          %6578 = vmatprep.subr.bf16.mxu0 0
          %6579 = vmatpush1.bf16.msra.mxu0 %v5935
          %6580 = vmatprep.subr.bf16.mxu0 0
          %6581 = vmatpush1.bf16.msra.mxu0 0
          %6582 = vmatprep.subr.bf16.mxu0 0
          %6583 = vmatpush1.bf16.msra.mxu0 0
          %6584 = vmatprep.subr.bf16.mxu0 0
          %6585 = vmatpush1.bf16.msra.mxu0 0
          %6586 = vmatprep.subr.bf16.mxu0 0
          %6587 = vmatpush1.bf16.msra.mxu0 0
          %6588 = vmatprep.subr.bf16.mxu0 0
          %6589 = vmatpush1.bf16.msra.mxu0 0
          %6590 = vmatprep.subr.bf16.mxu0 0
          %6591 = vmatpush1.bf16.msra.mxu0 0
          %6592 = vmatprep.subr.bf16.mxu0 0
          %6593 = vmatpush1.bf16.msra.mxu0 0
          %6594 = vmatprep.subr.bf16.mxu0 0
          %6595 = vmatpush1.bf16.msra.mxu0 0
          %6596 = vmatprep.subr.bf16.mxu0 0
          %6597 = vmatpush1.bf16.msra.mxu0 0
          %6598 = vmatprep.subr.bf16.mxu0 0
          %6599 = vmatpush1.bf16.msra.mxu0 0
          %6600 = vmatprep.subr.bf16.mxu0 0
          %6601 = vmatpush1.bf16.msra.mxu0 0
          %6602 = vmatprep.subr.bf16.mxu0 0
          %6603 = vmatpush1.bf16.msra.mxu0 0
          %6604 = vmatprep.subr.bf16.mxu0 0
          %6605 = vmatpush1.bf16.msra.mxu0 0
          %6606 = vmatprep.subr.bf16.mxu0 0
          %6607 = vmatpush1.bf16.msra.mxu0 0
          %6608 = vmatprep.subr.bf16.mxu0 0
          %6609 = vmatpush1.bf16.msra.mxu0 0
          %6610 = vmatprep.mubr.bf16.mxu0 0
          %6611 = vmatmul.mubr.bf16.gmra.mrb[0].mxu0 %v6576
          %v6612 = vpop.f32.mrb[0].mxu0
          %v6613 = vadd.f32 0.0, %v6612
          %v6614 = vpop.f32.mrb[0].mxu0
          %v6615 = vpop.f32.mrb[0].mxu0
          %v6616 = vpop.f32.mrb[0].mxu0
          %6617 = vdwg.mxu0
          %s6618 = scalar_lea.vmem [#allocation21], 512
          %v6619 = vld [vmem:[%s6618] sm:$0xff]
          %v6620 = vld [vmem:[%s6618 + $0x8] sm:$0xff]
          %v6621 = vld [vmem:[%s6618 + $0x10] sm:$0xff]
          %v6622 = vld [vmem:[%s6618 + $0x18] sm:$0xff]
          %v6623 = vld [vmem:[%s6618 + $0x20] sm:$0xff]
          %v6624 = vld [vmem:[%s6618 + $0x28] sm:$0xff]
          %v6625 = vld [vmem:[%s6618 + $0x30] sm:$0xff]
          %v6626 = vld [vmem:[%s6618 + $0x38] sm:$0xff]
          %v6627 = vld [vmem:[%s6618 + $0x40] sm:$0xff]
          %v6628 = vld [vmem:[%s6618 + $0x48] sm:$0xff]
          %v6629 = vld [vmem:[%s6618 + $0x50] sm:$0xff]
          %v6630 = vld [vmem:[%s6618 + $0x58] sm:$0xff]
          %v6631 = vld [vmem:[%s6618 + $0x60] sm:$0xff]
          %v6632 = vld [vmem:[%s6618 + $0x68] sm:$0xff]
          %v6633 = vld [vmem:[%s6618 + $0x70] sm:$0xff]
          %v6634 = vld [vmem:[%s6618 + $0x78] sm:$0xff]
          %v6635 = vld [vmem:[%s6618 + $0x80] sm:$0xff]
          %v6636 = vld [vmem:[%s6618 + $0x88] sm:$0xff]
          %v6637 = vld [vmem:[%s6618 + $0x90] sm:$0xff]
          %v6638 = vld [vmem:[%s6618 + $0x98] sm:$0xff]
          %v6639 = vld [vmem:[%s6618 + $0xa0] sm:$0xff]
          %v6640 = vld [vmem:[%s6618 + $0xa8] sm:$0xff]
          %v6641 = vld [vmem:[%s6618 + $0xb0] sm:$0xff]
          %v6642 = vld [vmem:[%s6618 + $0xb8] sm:$0xff]
          %v6643 = vld [vmem:[%s6618 + $0xc0] sm:$0xff]
          %v6644 = vld [vmem:[%s6618 + $0xc8] sm:$0xff]
          %v6645 = vld [vmem:[%s6618 + $0xd0] sm:$0xff]
          %v6646 = vld [vmem:[%s6618 + $0xd8] sm:$0xff]
          %v6647 = vld [vmem:[%s6618 + $0xe0] sm:$0xff]
          %v6648 = vld [vmem:[%s6618 + $0xe8] sm:$0xff]
          %v6649 = vld [vmem:[%s6618 + $0xf0] sm:$0xff]
          %v6650 = vld [vmem:[%s6618 + $0xf8] sm:$0xff]
          %v6651 = vpack.c.bf16 %v6613, %v6613
          %v6684 = vunpack.c.l.b16 %v6619
          %v6685 = vunpack.c.h.b16 %v6619
          %v6686 = vunpack.c.l.b16 %v6620
          %v6687 = vunpack.c.h.b16 %v6620
          %v6688 = vunpack.c.l.b16 %v6621
          %v6689 = vunpack.c.h.b16 %v6621
          %v6690 = vunpack.c.l.b16 %v6622
          %v6691 = vunpack.c.h.b16 %v6622
          %v6692 = vunpack.c.l.b16 %v6623
          %v6693 = vunpack.c.h.b16 %v6623
          %v6694 = vunpack.c.l.b16 %v6624
          %v6695 = vunpack.c.h.b16 %v6624
          %v6696 = vunpack.c.l.b16 %v6625
          %v6697 = vunpack.c.h.b16 %v6625
          %v6698 = vunpack.c.l.b16 %v6626
          %v6699 = vunpack.c.h.b16 %v6626
          %v6700 = vunpack.c.l.b16 %v6627
          %v6701 = vunpack.c.h.b16 %v6627
          %v6702 = vunpack.c.l.b16 %v6628
          %v6703 = vunpack.c.h.b16 %v6628
          %v6704 = vunpack.c.l.b16 %v6629
          %v6705 = vunpack.c.h.b16 %v6629
          %v6706 = vunpack.c.l.b16 %v6630
          %v6707 = vunpack.c.h.b16 %v6630
          %v6708 = vunpack.c.l.b16 %v6631
          %v6709 = vunpack.c.h.b16 %v6631
          %v6710 = vunpack.c.l.b16 %v6632
          %v6711 = vunpack.c.h.b16 %v6632
          %v6712 = vunpack.c.l.b16 %v6633
          %v6713 = vunpack.c.h.b16 %v6633
          %v6714 = vunpack.c.l.b16 %v6634
          %v6715 = vunpack.c.h.b16 %v6634
          %v6716 = vunpack.c.l.b16 %v6635
          %v6717 = vunpack.c.h.b16 %v6635
          %v6718 = vunpack.c.l.b16 %v6636
          %v6719 = vunpack.c.h.b16 %v6636
          %v6720 = vunpack.c.l.b16 %v6637
          %v6721 = vunpack.c.h.b16 %v6637
          %v6722 = vunpack.c.l.b16 %v6638
          %v6723 = vunpack.c.h.b16 %v6638
          %v6724 = vunpack.c.l.b16 %v6639
          %v6725 = vunpack.c.h.b16 %v6639
          %v6726 = vunpack.c.l.b16 %v6640
          %v6727 = vunpack.c.h.b16 %v6640
          %v6728 = vunpack.c.l.b16 %v6641
          %v6729 = vunpack.c.h.b16 %v6641
          %v6730 = vunpack.c.l.b16 %v6642
          %v6731 = vunpack.c.h.b16 %v6642
          %v6732 = vunpack.c.l.b16 %v6643
          %v6733 = vunpack.c.h.b16 %v6643
          %v6734 = vunpack.c.l.b16 %v6644
          %v6735 = vunpack.c.h.b16 %v6644
          %v6736 = vunpack.c.l.b16 %v6645
          %v6737 = vunpack.c.h.b16 %v6645
          %v6738 = vunpack.c.l.b16 %v6646
          %v6739 = vunpack.c.h.b16 %v6646
          %v6740 = vunpack.c.l.b16 %v6647
          %v6741 = vunpack.c.h.b16 %v6647
          %v6742 = vunpack.c.l.b16 %v6648
          %v6743 = vunpack.c.h.b16 %v6648
          %v6744 = vunpack.c.l.b16 %v6649
          %v6745 = vunpack.c.h.b16 %v6649
          %v6746 = vunpack.c.l.b16 %v6650
          %v6747 = vunpack.c.h.b16 %v6650
          %v6748 = vpack.c.b16 %v6688, %v6684
          %v6749 = vpack.c.b16 %v6689, %v6685
          %v6750 = vpack.c.b16 %v6690, %v6686
          %v6751 = vpack.c.b16 %v6691, %v6687
          %v6752 = vpack.c.b16 %v6696, %v6692
          %v6753 = vpack.c.b16 %v6697, %v6693
          %v6754 = vpack.c.b16 %v6698, %v6694
          %v6755 = vpack.c.b16 %v6699, %v6695
          %v6756 = vpack.c.b16 %v6704, %v6700
          %v6757 = vpack.c.b16 %v6705, %v6701
          %v6758 = vpack.c.b16 %v6706, %v6702
          %v6759 = vpack.c.b16 %v6707, %v6703
          %v6760 = vpack.c.b16 %v6712, %v6708
          %v6761 = vpack.c.b16 %v6713, %v6709
          %v6762 = vpack.c.b16 %v6714, %v6710
          %v6763 = vpack.c.b16 %v6715, %v6711
          %v6764 = vpack.c.b16 %v6720, %v6716
          %v6765 = vpack.c.b16 %v6721, %v6717
          %v6766 = vpack.c.b16 %v6722, %v6718
          %v6767 = vpack.c.b16 %v6723, %v6719
          %v6768 = vpack.c.b16 %v6728, %v6724
          %v6769 = vpack.c.b16 %v6729, %v6725
          %v6770 = vpack.c.b16 %v6730, %v6726
          %v6771 = vpack.c.b16 %v6731, %v6727
          %v6772 = vpack.c.b16 %v6736, %v6732
          %v6773 = vpack.c.b16 %v6737, %v6733
          %v6774 = vpack.c.b16 %v6738, %v6734
          %v6775 = vpack.c.b16 %v6739, %v6735
          %v6776 = vpack.c.b16 %v6744, %v6740
          %v6777 = vpack.c.b16 %v6745, %v6741
          %v6778 = vpack.c.b16 %v6746, %v6742
          %v6779 = vpack.c.b16 %v6747, %v6743
          %6812 = vmatprep.subr.bf16.mxu0 %v6749
          %6813 = vmatpush1.bf16.msra.mxu0 %v6748
          %6814 = vmatprep.subr.bf16.mxu0 %v6753
          %6815 = vmatpush1.bf16.msra.mxu0 %v6752
          %6816 = vmatprep.subr.bf16.mxu0 %v6757
          %6817 = vmatpush1.bf16.msra.mxu0 %v6756
          %6818 = vmatprep.subr.bf16.mxu0 %v6761
          %6819 = vmatpush1.bf16.msra.mxu0 %v6760
          %6820 = vmatprep.subr.bf16.mxu0 %v6765
          %6821 = vmatpush1.bf16.msra.mxu0 %v6764
          %6822 = vmatprep.subr.bf16.mxu0 %v6769
          %6823 = vmatpush1.bf16.msra.mxu0 %v6768
          %6824 = vmatprep.subr.bf16.mxu0 %v6773
          %6825 = vmatpush1.bf16.msra.mxu0 %v6772
          %6826 = vmatprep.subr.bf16.mxu0 %v6777
          %6827 = vmatpush1.bf16.msra.mxu0 %v6776
          %6828 = vmatprep.subr.bf16.mxu0 0
          %6829 = vmatpush1.bf16.msra.mxu0 0
          %6830 = vmatprep.subr.bf16.mxu0 0
          %6831 = vmatpush1.bf16.msra.mxu0 0
          %6832 = vmatprep.subr.bf16.mxu0 0
          %6833 = vmatpush1.bf16.msra.mxu0 0
          %6834 = vmatprep.subr.bf16.mxu0 0
          %6835 = vmatpush1.bf16.msra.mxu0 0
          %6836 = vmatprep.subr.bf16.mxu0 0
          %6837 = vmatpush1.bf16.msra.mxu0 0
          %6838 = vmatprep.subr.bf16.mxu0 0
          %6839 = vmatpush1.bf16.msra.mxu0 0
          %6840 = vmatprep.subr.bf16.mxu0 0
          %6841 = vmatpush1.bf16.msra.mxu0 0
          %6842 = vmatprep.subr.bf16.mxu0 0
          %6843 = vmatpush1.bf16.msra.mxu0 0
          %6844 = vmatprep.mubr.bf16.mxu0 0
          %6845 = vmatmul.mubr.bf16.gmra.mrb[0].mxu0 %v6651
          %v6846 = vpop.f32.mrb[0].mxu0
          %v6847 = vadd.f32 0.0, %v6846
          %v6848 = vpop.f32.mrb[0].mxu0
          %v6849 = vadd.f32 0.0, %v6848
          %v6850 = vpop.f32.mrb[0].mxu0
          %v6851 = vpop.f32.mrb[0].mxu0
          %6852 = vdwg.mxu0
          %6853 = vmatprep.subr.bf16.mxu0 %v6751
          %6854 = vmatpush1.bf16.msra.mxu0 %v6750
          %6855 = vmatprep.subr.bf16.mxu0 %v6755
          %6856 = vmatpush1.bf16.msra.mxu0 %v6754
          %6857 = vmatprep.subr.bf16.mxu0 %v6759
          %6858 = vmatpush1.bf16.msra.mxu0 %v6758
          %6859 = vmatprep.subr.bf16.mxu0 %v6763
          %6860 = vmatpush1.bf16.msra.mxu0 %v6762
          %6861 = vmatprep.subr.bf16.mxu0 %v6767
          %6862 = vmatpush1.bf16.msra.mxu0 %v6766
          %6863 = vmatprep.subr.bf16.mxu0 %v6771
          %6864 = vmatpush1.bf16.msra.mxu0 %v6770
          %6865 = vmatprep.subr.bf16.mxu0 %v6775
          %6866 = vmatpush1.bf16.msra.mxu0 %v6774
          %6867 = vmatprep.subr.bf16.mxu0 %v6779
          %6868 = vmatpush1.bf16.msra.mxu0 %v6778
          %6869 = vmatprep.subr.bf16.mxu0 0
          %6870 = vmatpush1.bf16.msra.mxu0 0
          %6871 = vmatprep.subr.bf16.mxu0 0
          %6872 = vmatpush1.bf16.msra.mxu0 0
          %6873 = vmatprep.subr.bf16.mxu0 0
          %6874 = vmatpush1.bf16.msra.mxu0 0
          %6875 = vmatprep.subr.bf16.mxu0 0
          %6876 = vmatpush1.bf16.msra.mxu0 0
          %6877 = vmatprep.subr.bf16.mxu0 0
          %6878 = vmatpush1.bf16.msra.mxu0 0
          %6879 = vmatprep.subr.bf16.mxu0 0
          %6880 = vmatpush1.bf16.msra.mxu0 0
          %6881 = vmatprep.subr.bf16.mxu0 0
          %6882 = vmatpush1.bf16.msra.mxu0 0
          %6883 = vmatprep.subr.bf16.mxu0 0
          %6884 = vmatpush1.bf16.msra.mxu0 0
          %6885 = vmatprep.mubr.bf16.mxu0 0
          %6886 = vmatmul.mubr.bf16.gmra.mrb[0].mxu0 %v6651
          %v6887 = vpop.f32.mrb[0].mxu0
          %v6888 = vadd.f32 0.0, %v6887
          %v6889 = vpop.f32.mrb[0].mxu0
          %v6890 = vadd.f32 0.0, %v6889
          %v6891 = vpop.f32.mrb[0].mxu0
          %v6892 = vpop.f32.mrb[0].mxu0
          %6893 = vdwg.mxu0
          %v6894 = vadd.f32 %v6526, %v6847
          %v6895 = vadd.f32 %v6528, %v6849
          %v6896 = vadd.f32 %v6567, %v6888
          %v6897 = vadd.f32 %v6569, %v6890
          %s6898 = scalar_lea.vmem [#allocation11], 3
          %v6899 = vld [vmem:[%s6898] sm:$0x1]
          %v6901 = vsel %vm5930, %v6899, 0
          %6903 = vmatprep.subr.bf16.mxu0 0
          %6904 = vmatpush1.bf16.msra.mxu0 %v5935
          %6905 = vmatprep.subr.bf16.mxu0 0
          %6906 = vmatpush1.bf16.msra.mxu0 0
          %6907 = vmatprep.subr.bf16.mxu0 0
          %6908 = vmatpush1.bf16.msra.mxu0 0
          %6909 = vmatprep.subr.bf16.mxu0 0
          %6910 = vmatpush1.bf16.msra.mxu0 0
          %6911 = vmatprep.subr.bf16.mxu0 0
          %6912 = vmatpush1.bf16.msra.mxu0 0
          %6913 = vmatprep.subr.bf16.mxu0 0
          %6914 = vmatpush1.bf16.msra.mxu0 0
          %6915 = vmatprep.subr.bf16.mxu0 0
          %6916 = vmatpush1.bf16.msra.mxu0 0
          %6917 = vmatprep.subr.bf16.mxu0 0
          %6918 = vmatpush1.bf16.msra.mxu0 0
          %6919 = vmatprep.subr.bf16.mxu0 0
          %6920 = vmatpush1.bf16.msra.mxu0 0
          %6921 = vmatprep.subr.bf16.mxu0 0
          %6922 = vmatpush1.bf16.msra.mxu0 0
          %6923 = vmatprep.subr.bf16.mxu0 0
          %6924 = vmatpush1.bf16.msra.mxu0 0
          %6925 = vmatprep.subr.bf16.mxu0 0
          %6926 = vmatpush1.bf16.msra.mxu0 0
          %6927 = vmatprep.subr.bf16.mxu0 0
          %6928 = vmatpush1.bf16.msra.mxu0 0
          %6929 = vmatprep.subr.bf16.mxu0 0
          %6930 = vmatpush1.bf16.msra.mxu0 0
          %6931 = vmatprep.subr.bf16.mxu0 0
          %6932 = vmatpush1.bf16.msra.mxu0 0
          %6933 = vmatprep.subr.bf16.mxu0 0
          %6934 = vmatpush1.bf16.msra.mxu0 0
          %6935 = vmatprep.mubr.bf16.mxu0 0
          %6936 = vmatmul.mubr.bf16.gmra.mrb[0].mxu0 %v6901
          %v6937 = vpop.f32.mrb[0].mxu0
          %v6938 = vadd.f32 0.0, %v6937
          %v6939 = vpop.f32.mrb[0].mxu0
          %v6940 = vpop.f32.mrb[0].mxu0
          %v6941 = vpop.f32.mrb[0].mxu0
          %6942 = vdwg.mxu0
          %s6943 = scalar_lea.vmem [#allocation21], 768
          %v6944 = vld [vmem:[%s6943] sm:$0xff]
          %v6945 = vld [vmem:[%s6943 + $0x8] sm:$0xff]
          %v6946 = vld [vmem:[%s6943 + $0x10] sm:$0xff]
          %v6947 = vld [vmem:[%s6943 + $0x18] sm:$0xff]
          %v6948 = vld [vmem:[%s6943 + $0x20] sm:$0xff]
          %v6949 = vld [vmem:[%s6943 + $0x28] sm:$0xff]
          %v6950 = vld [vmem:[%s6943 + $0x30] sm:$0xff]
          %v6951 = vld [vmem:[%s6943 + $0x38] sm:$0xff]
          %v6952 = vld [vmem:[%s6943 + $0x40] sm:$0xff]
          %v6953 = vld [vmem:[%s6943 + $0x48] sm:$0xff]
          %v6954 = vld [vmem:[%s6943 + $0x50] sm:$0xff]
          %v6955 = vld [vmem:[%s6943 + $0x58] sm:$0xff]
          %v6956 = vld [vmem:[%s6943 + $0x60] sm:$0xff]
          %v6957 = vld [vmem:[%s6943 + $0x68] sm:$0xff]
          %v6958 = vld [vmem:[%s6943 + $0x70] sm:$0xff]
          %v6959 = vld [vmem:[%s6943 + $0x78] sm:$0xff]
          %v6960 = vld [vmem:[%s6943 + $0x80] sm:$0xff]
          %v6961 = vld [vmem:[%s6943 + $0x88] sm:$0xff]
          %v6962 = vld [vmem:[%s6943 + $0x90] sm:$0xff]
          %v6963 = vld [vmem:[%s6943 + $0x98] sm:$0xff]
          %v6964 = vld [vmem:[%s6943 + $0xa0] sm:$0xff]
          %v6965 = vld [vmem:[%s6943 + $0xa8] sm:$0xff]
          %v6966 = vld [vmem:[%s6943 + $0xb0] sm:$0xff]
          %v6967 = vld [vmem:[%s6943 + $0xb8] sm:$0xff]
          %v6968 = vld [vmem:[%s6943 + $0xc0] sm:$0xff]
          %v6969 = vld [vmem:[%s6943 + $0xc8] sm:$0xff]
          %v6970 = vld [vmem:[%s6943 + $0xd0] sm:$0xff]
          %v6971 = vld [vmem:[%s6943 + $0xd8] sm:$0xff]
          %v6972 = vld [vmem:[%s6943 + $0xe0] sm:$0xff]
          %v6973 = vld [vmem:[%s6943 + $0xe8] sm:$0xff]
          %v6974 = vld [vmem:[%s6943 + $0xf0] sm:$0xff]
          %v6975 = vld [vmem:[%s6943 + $0xf8] sm:$0xff]
          %v6976 = vpack.c.bf16 %v6938, %v6938
          %v7009 = vunpack.c.l.b16 %v6944
          %v7010 = vunpack.c.h.b16 %v6944
          %v7011 = vunpack.c.l.b16 %v6945
          %v7012 = vunpack.c.h.b16 %v6945
          %v7013 = vunpack.c.l.b16 %v6946
          %v7014 = vunpack.c.h.b16 %v6946
          %v7015 = vunpack.c.l.b16 %v6947
          %v7016 = vunpack.c.h.b16 %v6947
          %v7017 = vunpack.c.l.b16 %v6948
          %v7018 = vunpack.c.h.b16 %v6948
          %v7019 = vunpack.c.l.b16 %v6949
          %v7020 = vunpack.c.h.b16 %v6949
          %v7021 = vunpack.c.l.b16 %v6950
          %v7022 = vunpack.c.h.b16 %v6950
          %v7023 = vunpack.c.l.b16 %v6951
          %v7024 = vunpack.c.h.b16 %v6951
          %v7025 = vunpack.c.l.b16 %v6952
          %v7026 = vunpack.c.h.b16 %v6952
          %v7027 = vunpack.c.l.b16 %v6953
          %v7028 = vunpack.c.h.b16 %v6953
          %v7029 = vunpack.c.l.b16 %v6954
          %v7030 = vunpack.c.h.b16 %v6954
          %v7031 = vunpack.c.l.b16 %v6955
          %v7032 = vunpack.c.h.b16 %v6955
          %v7033 = vunpack.c.l.b16 %v6956
          %v7034 = vunpack.c.h.b16 %v6956
          %v7035 = vunpack.c.l.b16 %v6957
          %v7036 = vunpack.c.h.b16 %v6957
          %v7037 = vunpack.c.l.b16 %v6958
          %v7038 = vunpack.c.h.b16 %v6958
          %v7039 = vunpack.c.l.b16 %v6959
          %v7040 = vunpack.c.h.b16 %v6959
          %v7041 = vunpack.c.l.b16 %v6960
          %v7042 = vunpack.c.h.b16 %v6960
          %v7043 = vunpack.c.l.b16 %v6961
          %v7044 = vunpack.c.h.b16 %v6961
          %v7045 = vunpack.c.l.b16 %v6962
          %v7046 = vunpack.c.h.b16 %v6962
          %v7047 = vunpack.c.l.b16 %v6963
          %v7048 = vunpack.c.h.b16 %v6963
          %v7049 = vunpack.c.l.b16 %v6964
          %v7050 = vunpack.c.h.b16 %v6964
          %v7051 = vunpack.c.l.b16 %v6965
          %v7052 = vunpack.c.h.b16 %v6965
          %v7053 = vunpack.c.l.b16 %v6966
          %v7054 = vunpack.c.h.b16 %v6966
          %v7055 = vunpack.c.l.b16 %v6967
          %v7056 = vunpack.c.h.b16 %v6967
          %v7057 = vunpack.c.l.b16 %v6968
          %v7058 = vunpack.c.h.b16 %v6968
          %v7059 = vunpack.c.l.b16 %v6969
          %v7060 = vunpack.c.h.b16 %v6969
          %v7061 = vunpack.c.l.b16 %v6970
          %v7062 = vunpack.c.h.b16 %v6970
          %v7063 = vunpack.c.l.b16 %v6971
          %v7064 = vunpack.c.h.b16 %v6971
          %v7065 = vunpack.c.l.b16 %v6972
          %v7066 = vunpack.c.h.b16 %v6972
          %v7067 = vunpack.c.l.b16 %v6973
          %v7068 = vunpack.c.h.b16 %v6973
          %v7069 = vunpack.c.l.b16 %v6974
          %v7070 = vunpack.c.h.b16 %v6974
          %v7071 = vunpack.c.l.b16 %v6975
          %v7072 = vunpack.c.h.b16 %v6975
          %v7073 = vpack.c.b16 %v7013, %v7009
          %v7074 = vpack.c.b16 %v7014, %v7010
          %v7075 = vpack.c.b16 %v7015, %v7011
          %v7076 = vpack.c.b16 %v7016, %v7012
          %v7077 = vpack.c.b16 %v7021, %v7017
          %v7078 = vpack.c.b16 %v7022, %v7018
          %v7079 = vpack.c.b16 %v7023, %v7019
          %v7080 = vpack.c.b16 %v7024, %v7020
          %v7081 = vpack.c.b16 %v7029, %v7025
          %v7082 = vpack.c.b16 %v7030, %v7026
          %v7083 = vpack.c.b16 %v7031, %v7027
          %v7084 = vpack.c.b16 %v7032, %v7028
          %v7085 = vpack.c.b16 %v7037, %v7033
          %v7086 = vpack.c.b16 %v7038, %v7034
          %v7087 = vpack.c.b16 %v7039, %v7035
          %v7088 = vpack.c.b16 %v7040, %v7036
          %v7089 = vpack.c.b16 %v7045, %v7041
          %v7090 = vpack.c.b16 %v7046, %v7042
          %v7091 = vpack.c.b16 %v7047, %v7043
          %v7092 = vpack.c.b16 %v7048, %v7044
          %v7093 = vpack.c.b16 %v7053, %v7049
          %v7094 = vpack.c.b16 %v7054, %v7050
          %v7095 = vpack.c.b16 %v7055, %v7051
          %v7096 = vpack.c.b16 %v7056, %v7052
          %v7097 = vpack.c.b16 %v7061, %v7057
          %v7098 = vpack.c.b16 %v7062, %v7058
          %v7099 = vpack.c.b16 %v7063, %v7059
          %v7100 = vpack.c.b16 %v7064, %v7060
          %v7101 = vpack.c.b16 %v7069, %v7065
          %v7102 = vpack.c.b16 %v7070, %v7066
          %v7103 = vpack.c.b16 %v7071, %v7067
          %v7104 = vpack.c.b16 %v7072, %v7068
          %7137 = vmatprep.subr.bf16.mxu0 %v7074
          %7138 = vmatpush1.bf16.msra.mxu0 %v7073
          %7139 = vmatprep.subr.bf16.mxu0 %v7078
          %7140 = vmatpush1.bf16.msra.mxu0 %v7077
          %7141 = vmatprep.subr.bf16.mxu0 %v7082
          %7142 = vmatpush1.bf16.msra.mxu0 %v7081
          %7143 = vmatprep.subr.bf16.mxu0 %v7086
          %7144 = vmatpush1.bf16.msra.mxu0 %v7085
          %7145 = vmatprep.subr.bf16.mxu0 %v7090
          %7146 = vmatpush1.bf16.msra.mxu0 %v7089
          %7147 = vmatprep.subr.bf16.mxu0 %v7094
          %7148 = vmatpush1.bf16.msra.mxu0 %v7093
          %7149 = vmatprep.subr.bf16.mxu0 %v7098
          %7150 = vmatpush1.bf16.msra.mxu0 %v7097
          %7151 = vmatprep.subr.bf16.mxu0 %v7102
          %7152 = vmatpush1.bf16.msra.mxu0 %v7101
          %7153 = vmatprep.subr.bf16.mxu0 0
          %7154 = vmatpush1.bf16.msra.mxu0 0
          %7155 = vmatprep.subr.bf16.mxu0 0
          %7156 = vmatpush1.bf16.msra.mxu0 0
          %7157 = vmatprep.subr.bf16.mxu0 0
          %7158 = vmatpush1.bf16.msra.mxu0 0
          %7159 = vmatprep.subr.bf16.mxu0 0
          %7160 = vmatpush1.bf16.msra.mxu0 0
          %7161 = vmatprep.subr.bf16.mxu0 0
          %7162 = vmatpush1.bf16.msra.mxu0 0
          %7163 = vmatprep.subr.bf16.mxu0 0
          %7164 = vmatpush1.bf16.msra.mxu0 0
          %7165 = vmatprep.subr.bf16.mxu0 0
          %7166 = vmatpush1.bf16.msra.mxu0 0
          %7167 = vmatprep.subr.bf16.mxu0 0
          %7168 = vmatpush1.bf16.msra.mxu0 0
          %7169 = vmatprep.mubr.bf16.mxu0 0
          %7170 = vmatmul.mubr.bf16.gmra.mrb[0].mxu0 %v6976
          %v7171 = vpop.f32.mrb[0].mxu0
          %v7172 = vadd.f32 0.0, %v7171
          %v7173 = vpop.f32.mrb[0].mxu0
          %v7174 = vadd.f32 0.0, %v7173
          %v7175 = vpop.f32.mrb[0].mxu0
          %v7176 = vpop.f32.mrb[0].mxu0
          %7177 = vdwg.mxu0
          %7178 = vmatprep.subr.bf16.mxu0 %v7076
          %7179 = vmatpush1.bf16.msra.mxu0 %v7075
          %7180 = vmatprep.subr.bf16.mxu0 %v7080
          %7181 = vmatpush1.bf16.msra.mxu0 %v7079
          %7182 = vmatprep.subr.bf16.mxu0 %v7084
          %7183 = vmatpush1.bf16.msra.mxu0 %v7083
          %7184 = vmatprep.subr.bf16.mxu0 %v7088
          %7185 = vmatpush1.bf16.msra.mxu0 %v7087
          %7186 = vmatprep.subr.bf16.mxu0 %v7092
          %7187 = vmatpush1.bf16.msra.mxu0 %v7091
          %7188 = vmatprep.subr.bf16.mxu0 %v7096
          %7189 = vmatpush1.bf16.msra.mxu0 %v7095
          %7190 = vmatprep.subr.bf16.mxu0 %v7100
          %7191 = vmatpush1.bf16.msra.mxu0 %v7099
          %7192 = vmatprep.subr.bf16.mxu0 %v7104
          %7193 = vmatpush1.bf16.msra.mxu0 %v7103
          %7194 = vmatprep.subr.bf16.mxu0 0
          %7195 = vmatpush1.bf16.msra.mxu0 0
          %7196 = vmatprep.subr.bf16.mxu0 0
          %7197 = vmatpush1.bf16.msra.mxu0 0
          %7198 = vmatprep.subr.bf16.mxu0 0
          %7199 = vmatpush1.bf16.msra.mxu0 0
          %7200 = vmatprep.subr.bf16.mxu0 0
          %7201 = vmatpush1.bf16.msra.mxu0 0
          %7202 = vmatprep.subr.bf16.mxu0 0
          %7203 = vmatpush1.bf16.msra.mxu0 0
          %7204 = vmatprep.subr.bf16.mxu0 0
          %7205 = vmatpush1.bf16.msra.mxu0 0
          %7206 = vmatprep.subr.bf16.mxu0 0
          %7207 = vmatpush1.bf16.msra.mxu0 0
          %7208 = vmatprep.subr.bf16.mxu0 0
          %7209 = vmatpush1.bf16.msra.mxu0 0
          %7210 = vmatprep.mubr.bf16.mxu0 0
          %7211 = vmatmul.mubr.bf16.gmra.mrb[0].mxu0 %v6976
          %v7212 = vpop.f32.mrb[0].mxu0
          %v7213 = vadd.f32 0.0, %v7212
          %v7214 = vpop.f32.mrb[0].mxu0
          %v7215 = vadd.f32 0.0, %v7214
          %v7216 = vpop.f32.mrb[0].mxu0
          %v7217 = vpop.f32.mrb[0].mxu0
          %7218 = vdwg.mxu0
          %v7219 = vadd.f32 %v6894, %v7172
          %v7220 = vadd.f32 %v6895, %v7174
          %v7221 = vadd.f32 %v6896, %v7213
          %v7222 = vadd.f32 %v6897, %v7215
          %v7223 = vld [vmem:[#allocation23] sm:$0xf]
          %v7225 = vlaneseq
          %v7226 = vshrl.u32 %v7225, 7
          %v7227 = vsub.s32 0, %v7226
          %v7228 = vrot.slane %v7223, %v7227
          %v7229 = vlaneseq
          %v7230 = vshrl.u32 %v7229, 7
          %v7231 = vsub.s32 1, %v7230
          %v7232 = vrot.slane %v7223, %v7231
          %v7233 = vlaneseq
          %v7234 = vshrl.u32 %v7233, 7
          %v7235 = vsub.s32 2, %v7234
          %v7236 = vrot.slane %v7223, %v7235
          %v7237 = vlaneseq
          %v7238 = vshrl.u32 %v7237, 7
          %v7239 = vsub.s32 3, %v7238
          %v7240 = vrot.slane %v7223, %v7239
          %v7245 = vadd.f32 %v7219, %v7228
          %v7246 = vadd.f32 %v7220, %v7232
          %v7247 = vadd.f32 %v7221, %v7236
          %v7248 = vadd.f32 %v7222, %v7240
          %v7249 = vmax.f32 %v7245, 0.0
          %v7250 = vmax.f32 %v7246, 0.0
          %v7251 = vmax.f32 %v7247, 0.0
          %v7252 = vmax.f32 %v7248, 0.0
          %v7253 = vld [vmem:[#allocation24] sm:$0xff]
          %v7254 = vld [vmem:[#allocation24 + $0x8] sm:$0xff]
          %v7255 = vld [vmem:[#allocation24 + $0x10] sm:$0xff]
          %v7256 = vld [vmem:[#allocation24 + $0x18] sm:$0xff]
          %v7257 = vld [vmem:[#allocation24 + $0x20] sm:$0xff]
          %v7258 = vld [vmem:[#allocation24 + $0x28] sm:$0xff]
          %v7259 = vld [vmem:[#allocation24 + $0x30] sm:$0xff]
          %v7260 = vld [vmem:[#allocation24 + $0x38] sm:$0xff]
          %v7261 = vld [vmem:[#allocation24 + $0x40] sm:$0xff]
          %v7262 = vld [vmem:[#allocation24 + $0x48] sm:$0xff]
          %v7263 = vld [vmem:[#allocation24 + $0x50] sm:$0xff]
          %v7264 = vld [vmem:[#allocation24 + $0x58] sm:$0xff]
          %v7265 = vld [vmem:[#allocation24 + $0x60] sm:$0xff]
          %v7266 = vld [vmem:[#allocation24 + $0x68] sm:$0xff]
          %v7267 = vld [vmem:[#allocation24 + $0x70] sm:$0xff]
          %v7268 = vld [vmem:[#allocation24 + $0x78] sm:$0xff]
          %v7269 = vld [vmem:[#allocation24 + $0x80] sm:$0xff]
          %v7270 = vld [vmem:[#allocation24 + $0x88] sm:$0xff]
          %v7271 = vld [vmem:[#allocation24 + $0x90] sm:$0xff]
          %v7272 = vld [vmem:[#allocation24 + $0x98] sm:$0xff]
          %v7273 = vld [vmem:[#allocation24 + $0xa0] sm:$0xff]
          %v7274 = vld [vmem:[#allocation24 + $0xa8] sm:$0xff]
          %v7275 = vld [vmem:[#allocation24 + $0xb0] sm:$0xff]
          %v7276 = vld [vmem:[#allocation24 + $0xb8] sm:$0xff]
          %v7277 = vld [vmem:[#allocation24 + $0xc0] sm:$0xff]
          %v7278 = vld [vmem:[#allocation24 + $0xc8] sm:$0xff]
          %v7279 = vld [vmem:[#allocation24 + $0xd0] sm:$0xff]
          %v7280 = vld [vmem:[#allocation24 + $0xd8] sm:$0xff]
          %v7281 = vld [vmem:[#allocation24 + $0xe0] sm:$0xff]
          %v7282 = vld [vmem:[#allocation24 + $0xe8] sm:$0xff]
          %v7283 = vld [vmem:[#allocation24 + $0xf0] sm:$0xff]
          %v7284 = vld [vmem:[#allocation24 + $0xf8] sm:$0xff]
          %v7285 = vld [vmem:[#allocation24 + $0x100] sm:$0xff]
          %v7286 = vld [vmem:[#allocation24 + $0x108] sm:$0xff]
          %v7287 = vld [vmem:[#allocation24 + $0x110] sm:$0xff]
          %v7288 = vld [vmem:[#allocation24 + $0x118] sm:$0xff]
          %v7289 = vld [vmem:[#allocation24 + $0x120] sm:$0xff]
          %v7290 = vld [vmem:[#allocation24 + $0x128] sm:$0xff]
          %v7291 = vld [vmem:[#allocation24 + $0x130] sm:$0xff]
          %v7292 = vld [vmem:[#allocation24 + $0x138] sm:$0xff]
          %v7293 = vld [vmem:[#allocation24 + $0x140] sm:$0xff]
          %v7294 = vld [vmem:[#allocation24 + $0x148] sm:$0xff]
          %v7295 = vld [vmem:[#allocation24 + $0x150] sm:$0xff]
          %v7296 = vld [vmem:[#allocation24 + $0x158] sm:$0xff]
          %v7297 = vld [vmem:[#allocation24 + $0x160] sm:$0xff]
          %v7298 = vld [vmem:[#allocation24 + $0x168] sm:$0xff]
          %v7299 = vld [vmem:[#allocation24 + $0x170] sm:$0xff]
          %v7300 = vld [vmem:[#allocation24 + $0x178] sm:$0xff]
          %v7301 = vld [vmem:[#allocation24 + $0x180] sm:$0xff]
          %v7302 = vld [vmem:[#allocation24 + $0x188] sm:$0xff]
          %v7303 = vld [vmem:[#allocation24 + $0x190] sm:$0xff]
          %v7304 = vld [vmem:[#allocation24 + $0x198] sm:$0xff]
          %v7305 = vld [vmem:[#allocation24 + $0x1a0] sm:$0xff]
          %v7306 = vld [vmem:[#allocation24 + $0x1a8] sm:$0xff]
          %v7307 = vld [vmem:[#allocation24 + $0x1b0] sm:$0xff]
          %v7308 = vld [vmem:[#allocation24 + $0x1b8] sm:$0xff]
          %v7309 = vld [vmem:[#allocation24 + $0x1c0] sm:$0xff]
          %v7310 = vld [vmem:[#allocation24 + $0x1c8] sm:$0xff]
          %v7311 = vld [vmem:[#allocation24 + $0x1d0] sm:$0xff]
          %v7312 = vld [vmem:[#allocation24 + $0x1d8] sm:$0xff]
          %v7313 = vld [vmem:[#allocation24 + $0x1e0] sm:$0xff]
          %v7314 = vld [vmem:[#allocation24 + $0x1e8] sm:$0xff]
          %v7315 = vld [vmem:[#allocation24 + $0x1f0] sm:$0xff]
          %v7316 = vld [vmem:[#allocation24 + $0x1f8] sm:$0xff]
          %v7317 = vpack.c.bf16 %v7249, %v7249
          %v7318 = vpack.c.bf16 %v7250, %v7250
          %v7319 = vpack.c.bf16 %v7251, %v7251
          %v7320 = vpack.c.bf16 %v7252, %v7252
          %v7321 = vld [vmem:[#allocation26] sm:$0x3]
          %v7323 = vlaneseq
          %v7324 = vshrl.u32 %v7323, 7
          %v7325 = vsub.s32 0, %v7324
          %v7326 = vrot.slane %v7321, %v7325
          %v7327 = vlaneseq
          %v7328 = vshrl.u32 %v7327, 7
          %v7329 = vsub.s32 1, %v7328
          %v7330 = vrot.slane %v7321, %v7329
          %v7397 = vunpack.c.l.b16 %v7253
          %v7398 = vunpack.c.h.b16 %v7253
          %v7399 = vunpack.c.l.b16 %v7254
          %v7400 = vunpack.c.h.b16 %v7254
          %v7401 = vunpack.c.l.b16 %v7255
          %v7402 = vunpack.c.h.b16 %v7255
          %v7403 = vunpack.c.l.b16 %v7256
          %v7404 = vunpack.c.h.b16 %v7256
          %v7405 = vunpack.c.l.b16 %v7257
          %v7406 = vunpack.c.h.b16 %v7257
          %v7407 = vunpack.c.l.b16 %v7258
          %v7408 = vunpack.c.h.b16 %v7258
          %v7409 = vunpack.c.l.b16 %v7259
          %v7410 = vunpack.c.h.b16 %v7259
          %v7411 = vunpack.c.l.b16 %v7260
          %v7412 = vunpack.c.h.b16 %v7260
          %v7413 = vunpack.c.l.b16 %v7261
          %v7414 = vunpack.c.h.b16 %v7261
          %v7415 = vunpack.c.l.b16 %v7262
          %v7416 = vunpack.c.h.b16 %v7262
          %v7417 = vunpack.c.l.b16 %v7263
          %v7418 = vunpack.c.h.b16 %v7263
          %v7419 = vunpack.c.l.b16 %v7264
          %v7420 = vunpack.c.h.b16 %v7264
          %v7421 = vunpack.c.l.b16 %v7265
          %v7422 = vunpack.c.h.b16 %v7265
          %v7423 = vunpack.c.l.b16 %v7266
          %v7424 = vunpack.c.h.b16 %v7266
          %v7425 = vunpack.c.l.b16 %v7267
          %v7426 = vunpack.c.h.b16 %v7267
          %v7427 = vunpack.c.l.b16 %v7268
          %v7428 = vunpack.c.h.b16 %v7268
          %v7429 = vunpack.c.l.b16 %v7269
          %v7430 = vunpack.c.h.b16 %v7269
          %v7431 = vunpack.c.l.b16 %v7270
          %v7432 = vunpack.c.h.b16 %v7270
          %v7433 = vunpack.c.l.b16 %v7271
          %v7434 = vunpack.c.h.b16 %v7271
          %v7435 = vunpack.c.l.b16 %v7272
          %v7436 = vunpack.c.h.b16 %v7272
          %v7437 = vunpack.c.l.b16 %v7273
          %v7438 = vunpack.c.h.b16 %v7273
          %v7439 = vunpack.c.l.b16 %v7274
          %v7440 = vunpack.c.h.b16 %v7274
          %v7441 = vunpack.c.l.b16 %v7275
          %v7442 = vunpack.c.h.b16 %v7275
          %v7443 = vunpack.c.l.b16 %v7276
          %v7444 = vunpack.c.h.b16 %v7276
          %v7445 = vunpack.c.l.b16 %v7277
          %v7446 = vunpack.c.h.b16 %v7277
          %v7447 = vunpack.c.l.b16 %v7278
          %v7448 = vunpack.c.h.b16 %v7278
          %v7449 = vunpack.c.l.b16 %v7279
          %v7450 = vunpack.c.h.b16 %v7279
          %v7451 = vunpack.c.l.b16 %v7280
          %v7452 = vunpack.c.h.b16 %v7280
          %v7453 = vunpack.c.l.b16 %v7281
          %v7454 = vunpack.c.h.b16 %v7281
          %v7455 = vunpack.c.l.b16 %v7282
          %v7456 = vunpack.c.h.b16 %v7282
          %v7457 = vunpack.c.l.b16 %v7283
          %v7458 = vunpack.c.h.b16 %v7283
          %v7459 = vunpack.c.l.b16 %v7284
          %v7460 = vunpack.c.h.b16 %v7284
          %v7461 = vunpack.c.l.b16 %v7285
          %v7462 = vunpack.c.h.b16 %v7285
          %v7463 = vunpack.c.l.b16 %v7286
          %v7464 = vunpack.c.h.b16 %v7286
          %v7465 = vunpack.c.l.b16 %v7287
          %v7466 = vunpack.c.h.b16 %v7287
          %v7467 = vunpack.c.l.b16 %v7288
          %v7468 = vunpack.c.h.b16 %v7288
          %v7469 = vunpack.c.l.b16 %v7289
          %v7470 = vunpack.c.h.b16 %v7289
          %v7471 = vunpack.c.l.b16 %v7290
          %v7472 = vunpack.c.h.b16 %v7290
          %v7473 = vunpack.c.l.b16 %v7291
          %v7474 = vunpack.c.h.b16 %v7291
          %v7475 = vunpack.c.l.b16 %v7292
          %v7476 = vunpack.c.h.b16 %v7292
          %v7477 = vunpack.c.l.b16 %v7293
          %v7478 = vunpack.c.h.b16 %v7293
          %v7479 = vunpack.c.l.b16 %v7294
          %v7480 = vunpack.c.h.b16 %v7294
          %v7481 = vunpack.c.l.b16 %v7295
          %v7482 = vunpack.c.h.b16 %v7295
          %v7483 = vunpack.c.l.b16 %v7296
          %v7484 = vunpack.c.h.b16 %v7296
          %v7485 = vunpack.c.l.b16 %v7297
          %v7486 = vunpack.c.h.b16 %v7297
          %v7487 = vunpack.c.l.b16 %v7298
          %v7488 = vunpack.c.h.b16 %v7298
          %v7489 = vunpack.c.l.b16 %v7299
          %v7490 = vunpack.c.h.b16 %v7299
          %v7491 = vunpack.c.l.b16 %v7300
          %v7492 = vunpack.c.h.b16 %v7300
          %v7493 = vunpack.c.l.b16 %v7301
          %v7494 = vunpack.c.h.b16 %v7301
          %v7495 = vunpack.c.l.b16 %v7302
          %v7496 = vunpack.c.h.b16 %v7302
          %v7497 = vunpack.c.l.b16 %v7303
          %v7498 = vunpack.c.h.b16 %v7303
          %v7499 = vunpack.c.l.b16 %v7304
          %v7500 = vunpack.c.h.b16 %v7304
          %v7501 = vunpack.c.l.b16 %v7305
          %v7502 = vunpack.c.h.b16 %v7305
          %v7503 = vunpack.c.l.b16 %v7306
          %v7504 = vunpack.c.h.b16 %v7306
          %v7505 = vunpack.c.l.b16 %v7307
          %v7506 = vunpack.c.h.b16 %v7307
          %v7507 = vunpack.c.l.b16 %v7308
          %v7508 = vunpack.c.h.b16 %v7308
          %v7509 = vunpack.c.l.b16 %v7309
          %v7510 = vunpack.c.h.b16 %v7309
          %v7511 = vunpack.c.l.b16 %v7310
          %v7512 = vunpack.c.h.b16 %v7310
          %v7513 = vunpack.c.l.b16 %v7311
          %v7514 = vunpack.c.h.b16 %v7311
          %v7515 = vunpack.c.l.b16 %v7312
          %v7516 = vunpack.c.h.b16 %v7312
          %v7517 = vunpack.c.l.b16 %v7313
          %v7518 = vunpack.c.h.b16 %v7313
          %v7519 = vunpack.c.l.b16 %v7314
          %v7520 = vunpack.c.h.b16 %v7314
          %v7521 = vunpack.c.l.b16 %v7315
          %v7522 = vunpack.c.h.b16 %v7315
          %v7523 = vunpack.c.l.b16 %v7316
          %v7524 = vunpack.c.h.b16 %v7316
          %v7525 = vpack.c.b16 %v7399, %v7397
          %v7526 = vpack.c.b16 %v7400, %v7398
          %v7527 = vpack.c.b16 %v7403, %v7401
          %v7528 = vpack.c.b16 %v7404, %v7402
          %v7529 = vpack.c.b16 %v7407, %v7405
          %v7530 = vpack.c.b16 %v7408, %v7406
          %v7531 = vpack.c.b16 %v7411, %v7409
          %v7532 = vpack.c.b16 %v7412, %v7410
          %v7533 = vpack.c.b16 %v7415, %v7413
          %v7534 = vpack.c.b16 %v7416, %v7414
          %v7535 = vpack.c.b16 %v7419, %v7417
          %v7536 = vpack.c.b16 %v7420, %v7418
          %v7537 = vpack.c.b16 %v7423, %v7421
          %v7538 = vpack.c.b16 %v7424, %v7422
          %v7539 = vpack.c.b16 %v7427, %v7425
          %v7540 = vpack.c.b16 %v7428, %v7426
          %v7541 = vpack.c.b16 %v7431, %v7429
          %v7542 = vpack.c.b16 %v7432, %v7430
          %v7543 = vpack.c.b16 %v7435, %v7433
          %v7544 = vpack.c.b16 %v7436, %v7434
          %v7545 = vpack.c.b16 %v7439, %v7437
          %v7546 = vpack.c.b16 %v7440, %v7438
          %v7547 = vpack.c.b16 %v7443, %v7441
          %v7548 = vpack.c.b16 %v7444, %v7442
          %v7549 = vpack.c.b16 %v7447, %v7445
          %v7550 = vpack.c.b16 %v7448, %v7446
          %v7551 = vpack.c.b16 %v7451, %v7449
          %v7552 = vpack.c.b16 %v7452, %v7450
          %v7553 = vpack.c.b16 %v7455, %v7453
          %v7554 = vpack.c.b16 %v7456, %v7454
          %v7555 = vpack.c.b16 %v7459, %v7457
          %v7556 = vpack.c.b16 %v7460, %v7458
          %v7557 = vpack.c.b16 %v7463, %v7461
          %v7558 = vpack.c.b16 %v7464, %v7462
          %v7559 = vpack.c.b16 %v7467, %v7465
          %v7560 = vpack.c.b16 %v7468, %v7466
          %v7561 = vpack.c.b16 %v7471, %v7469
          %v7562 = vpack.c.b16 %v7472, %v7470
          %v7563 = vpack.c.b16 %v7475, %v7473
          %v7564 = vpack.c.b16 %v7476, %v7474
          %v7565 = vpack.c.b16 %v7479, %v7477
          %v7566 = vpack.c.b16 %v7480, %v7478
          %v7567 = vpack.c.b16 %v7483, %v7481
          %v7568 = vpack.c.b16 %v7484, %v7482
          %v7569 = vpack.c.b16 %v7487, %v7485
          %v7570 = vpack.c.b16 %v7488, %v7486
          %v7571 = vpack.c.b16 %v7491, %v7489
          %v7572 = vpack.c.b16 %v7492, %v7490
          %v7573 = vpack.c.b16 %v7495, %v7493
          %v7574 = vpack.c.b16 %v7496, %v7494
          %v7575 = vpack.c.b16 %v7499, %v7497
          %v7576 = vpack.c.b16 %v7500, %v7498
          %v7577 = vpack.c.b16 %v7503, %v7501
          %v7578 = vpack.c.b16 %v7504, %v7502
          %v7579 = vpack.c.b16 %v7507, %v7505
          %v7580 = vpack.c.b16 %v7508, %v7506
          %v7581 = vpack.c.b16 %v7511, %v7509
          %v7582 = vpack.c.b16 %v7512, %v7510
          %v7583 = vpack.c.b16 %v7515, %v7513
          %v7584 = vpack.c.b16 %v7516, %v7514
          %v7585 = vpack.c.b16 %v7519, %v7517
          %v7586 = vpack.c.b16 %v7520, %v7518
          %v7587 = vpack.c.b16 %v7523, %v7521
          %v7588 = vpack.c.b16 %v7524, %v7522
          %7653 = vmatprep.subr.bf16.mxu0 %v7526
          %7654 = vmatpush1.bf16.msra.mxu0 %v7525
          %7655 = vmatprep.subr.bf16.mxu0 %v7528
          %7656 = vmatpush1.bf16.msra.mxu0 %v7527
          %7657 = vmatprep.subr.bf16.mxu0 %v7530
          %7658 = vmatpush1.bf16.msra.mxu0 %v7529
          %7659 = vmatprep.subr.bf16.mxu0 %v7532
          %7660 = vmatpush1.bf16.msra.mxu0 %v7531
          %7661 = vmatprep.subr.bf16.mxu0 %v7534
          %7662 = vmatpush1.bf16.msra.mxu0 %v7533
          %7663 = vmatprep.subr.bf16.mxu0 %v7536
          %7664 = vmatpush1.bf16.msra.mxu0 %v7535
          %7665 = vmatprep.subr.bf16.mxu0 %v7538
          %7666 = vmatpush1.bf16.msra.mxu0 %v7537
          %7667 = vmatprep.subr.bf16.mxu0 %v7540
          %7668 = vmatpush1.bf16.msra.mxu0 %v7539
          %7669 = vmatprep.subr.bf16.mxu0 %v7542
          %7670 = vmatpush1.bf16.msra.mxu0 %v7541
          %7671 = vmatprep.subr.bf16.mxu0 %v7544
          %7672 = vmatpush1.bf16.msra.mxu0 %v7543
          %7673 = vmatprep.subr.bf16.mxu0 %v7546
          %7674 = vmatpush1.bf16.msra.mxu0 %v7545
          %7675 = vmatprep.subr.bf16.mxu0 %v7548
          %7676 = vmatpush1.bf16.msra.mxu0 %v7547
          %7677 = vmatprep.subr.bf16.mxu0 %v7550
          %7678 = vmatpush1.bf16.msra.mxu0 %v7549
          %7679 = vmatprep.subr.bf16.mxu0 %v7552
          %7680 = vmatpush1.bf16.msra.mxu0 %v7551
          %7681 = vmatprep.subr.bf16.mxu0 %v7554
          %7682 = vmatpush1.bf16.msra.mxu0 %v7553
          %7683 = vmatprep.subr.bf16.mxu0 %v7556
          %7684 = vmatpush1.bf16.msra.mxu0 %v7555
          %7685 = vmatprep.mubr.bf16.mxu0 %v7318
          %7686 = vmatmul.mubr.bf16.gmra.mrb[0].mxu0 %v7317
          %v7687 = vpop.f32.mrb[0].mxu0
          %v7688 = vadd.f32 %v7326, %v7687
          %v7689 = vpop.f32.mrb[0].mxu0
          %v7690 = vadd.f32 %v7330, %v7689
          %v7691 = vpop.f32.mrb[0].mxu0
          %v7692 = vpop.f32.mrb[0].mxu0
          %7693 = vdwg.mxu0
          %7694 = vmatprep.subr.bf16.mxu0 %v7558
          %7695 = vmatpush1.bf16.msra.mxu0 %v7557
          %7696 = vmatprep.subr.bf16.mxu0 %v7560
          %7697 = vmatpush1.bf16.msra.mxu0 %v7559
          %7698 = vmatprep.subr.bf16.mxu0 %v7562
          %7699 = vmatpush1.bf16.msra.mxu0 %v7561
          %7700 = vmatprep.subr.bf16.mxu0 %v7564
          %7701 = vmatpush1.bf16.msra.mxu0 %v7563
          %7702 = vmatprep.subr.bf16.mxu0 %v7566
          %7703 = vmatpush1.bf16.msra.mxu0 %v7565
          %7704 = vmatprep.subr.bf16.mxu0 %v7568
          %7705 = vmatpush1.bf16.msra.mxu0 %v7567
          %7706 = vmatprep.subr.bf16.mxu0 %v7570
          %7707 = vmatpush1.bf16.msra.mxu0 %v7569
          %7708 = vmatprep.subr.bf16.mxu0 %v7572
          %7709 = vmatpush1.bf16.msra.mxu0 %v7571
          %7710 = vmatprep.subr.bf16.mxu0 %v7574
          %7711 = vmatpush1.bf16.msra.mxu0 %v7573
          %7712 = vmatprep.subr.bf16.mxu0 %v7576
          %7713 = vmatpush1.bf16.msra.mxu0 %v7575
          %7714 = vmatprep.subr.bf16.mxu0 %v7578
          %7715 = vmatpush1.bf16.msra.mxu0 %v7577
          %7716 = vmatprep.subr.bf16.mxu0 %v7580
          %7717 = vmatpush1.bf16.msra.mxu0 %v7579
          %7718 = vmatprep.subr.bf16.mxu0 %v7582
          %7719 = vmatpush1.bf16.msra.mxu0 %v7581
          %7720 = vmatprep.subr.bf16.mxu0 %v7584
          %7721 = vmatpush1.bf16.msra.mxu0 %v7583
          %7722 = vmatprep.subr.bf16.mxu0 %v7586
          %7723 = vmatpush1.bf16.msra.mxu0 %v7585
          %7724 = vmatprep.subr.bf16.mxu0 %v7588
          %7725 = vmatpush1.bf16.msra.mxu0 %v7587
          %7726 = vmatprep.mubr.bf16.mxu0 %v7320
          %7727 = vmatmul.mubr.bf16.gmra.mrb[0].mxu0 %v7319
          %v7728 = vpop.f32.mrb[0].mxu0
          %v7729 = vadd.f32 %v7688, %v7728
          %v7730 = vpop.f32.mrb[0].mxu0
          %v7731 = vadd.f32 %v7690, %v7730
          %v7732 = vpop.f32.mrb[0].mxu0
          %v7733 = vpop.f32.mrb[0].mxu0
          %7734 = vdwg.mxu0
          %v7735 = vmax.f32 %v7729, 0.0
          %v7736 = vmax.f32 %v7731, 0.0
          %v7737 = vpack.c.bf16 %v7735, %v7735
          %v7738 = vpack.c.bf16 %v7736, %v7736
          %v7741 = vcombine.low %v7737, %v7738
          %v7743 = vunpack.c.l.s4 1966171168
          %v7744 = vunpack.c.0.s8 %v7743
          %v7745 = vlaneseq
          %v7746 = vshrl.u32 %v7745, 7
          %v7747 = vsub.s32 %v7744, %v7746
          %v7748 = vrot.slane %v7741, %v7747
          %v7750 = vunpack.c.l.s4 1966171168
          %v7751 = vunpack.c.0.s8 %v7750
          %v7752 = vlaneseq
          %v7753 = vshrl.u32 %v7752, 7
          %v7754 = vsub.s32 %v7751, %v7753
          %v7755 = vrot.slane %v7748, %v7754
          %7757 = vst [vmem:[#allocation2] sm:$0x3] %v7755
        $region164: #{forward.1} parent=91 // pred_fallthru
          _
        %v7758 = vld [vmem:[#allocation2] sm:$0x3]
        %v7759 = vld [vmem:[%s763] sm:$0xff]
        %v7760 = vld [vmem:[%s763 + $0x8] sm:$0xff]
        %v7761 = vld [vmem:[%s763 + $0x10] sm:$0xff]
        %v7762 = vld [vmem:[%s763 + $0x18] sm:$0xff]
        %v7763 = vld [vmem:[%s763 + $0x20] sm:$0xff]
        %v7764 = vld [vmem:[%s763 + $0x28] sm:$0xff]
        %v7765 = vld [vmem:[%s763 + $0x30] sm:$0xff]
        %v7766 = vld [vmem:[%s763 + $0x38] sm:$0xff]
        %v7767 = vld [vmem:[%s763 + $0x40] sm:$0xff]
        %v7768 = vld [vmem:[%s763 + $0x48] sm:$0xff]
        %v7769 = vld [vmem:[%s763 + $0x50] sm:$0xff]
        %v7770 = vld [vmem:[%s763 + $0x58] sm:$0xff]
        %v7771 = vld [vmem:[%s763 + $0x60] sm:$0xff]
        %v7772 = vld [vmem:[%s763 + $0x68] sm:$0xff]
        %v7773 = vld [vmem:[%s763 + $0x70] sm:$0xff]
        %v7774 = vld [vmem:[%s763 + $0x78] sm:$0xff]
        %v7775 = vld [vmem:[%s763 + $0x80] sm:$0xff]
        %v7776 = vld [vmem:[%s763 + $0x88] sm:$0xff]
        %v7777 = vld [vmem:[%s763 + $0x90] sm:$0xff]
        %v7778 = vld [vmem:[%s763 + $0x98] sm:$0xff]
        %v7779 = vld [vmem:[%s763 + $0xa0] sm:$0xff]
        %v7780 = vld [vmem:[%s763 + $0xa8] sm:$0xff]
        %v7781 = vld [vmem:[%s763 + $0xb0] sm:$0xff]
        %v7782 = vld [vmem:[%s763 + $0xb8] sm:$0xff]
        %v7783 = vld [vmem:[%s763 + $0xc0] sm:$0xff]
        %v7784 = vld [vmem:[%s763 + $0xc8] sm:$0xff]
        %v7785 = vld [vmem:[%s763 + $0xd0] sm:$0xff]
        %v7786 = vld [vmem:[%s763 + $0xd8] sm:$0xff]
        %v7787 = vld [vmem:[%s763 + $0xe0] sm:$0xff]
        %v7788 = vld [vmem:[%s763 + $0xe8] sm:$0xff]
        %v7789 = vld [vmem:[%s763 + $0xf0] sm:$0xff]
        %v7790 = vld [vmem:[%s763 + $0xf8] sm:$0xff]
        %v7791 = vld [vmem:[%s763 + $0x100] sm:$0xff]
        %v7792 = vld [vmem:[%s763 + $0x108] sm:$0xff]
        %v7793 = vld [vmem:[%s763 + $0x110] sm:$0xff]
        %v7794 = vld [vmem:[%s763 + $0x118] sm:$0xff]
        %v7795 = vld [vmem:[%s763 + $0x120] sm:$0xff]
        %v7796 = vld [vmem:[%s763 + $0x128] sm:$0xff]
        %v7797 = vld [vmem:[%s763 + $0x130] sm:$0xff]
        %v7798 = vld [vmem:[%s763 + $0x138] sm:$0xff]
        %v7799 = vld [vmem:[%s763 + $0x140] sm:$0xff]
        %v7800 = vld [vmem:[%s763 + $0x148] sm:$0xff]
        %v7801 = vld [vmem:[%s763 + $0x150] sm:$0xff]
        %v7802 = vld [vmem:[%s763 + $0x158] sm:$0xff]
        %v7803 = vld [vmem:[%s763 + $0x160] sm:$0xff]
        %v7804 = vld [vmem:[%s763 + $0x168] sm:$0xff]
        %v7805 = vld [vmem:[%s763 + $0x170] sm:$0xff]
        %v7806 = vld [vmem:[%s763 + $0x178] sm:$0xff]
        %v7807 = vld [vmem:[%s763 + $0x180] sm:$0xff]
        %v7808 = vld [vmem:[%s763 + $0x188] sm:$0xff]
        %v7809 = vld [vmem:[%s763 + $0x190] sm:$0xff]
        %v7810 = vld [vmem:[%s763 + $0x198] sm:$0xff]
        %v7811 = vld [vmem:[%s763 + $0x1a0] sm:$0xff]
        %v7812 = vld [vmem:[%s763 + $0x1a8] sm:$0xff]
        %v7813 = vld [vmem:[%s763 + $0x1b0] sm:$0xff]
        %v7814 = vld [vmem:[%s763 + $0x1b8] sm:$0xff]
        %v7815 = vld [vmem:[%s763 + $0x1c0] sm:$0xff]
        %v7816 = vld [vmem:[%s763 + $0x1c8] sm:$0xff]
        %v7817 = vld [vmem:[%s763 + $0x1d0] sm:$0xff]
        %v7818 = vld [vmem:[%s763 + $0x1d8] sm:$0xff]
        %v7819 = vld [vmem:[%s763 + $0x1e0] sm:$0xff]
        %v7820 = vld [vmem:[%s763 + $0x1e8] sm:$0xff]
        %v7821 = vld [vmem:[%s763 + $0x1f0] sm:$0xff]
        %v7822 = vld [vmem:[%s763 + $0x1f8] sm:$0xff]
        %v7823 = vld [vmem:[%s763 + $0x200] sm:$0xff]
        %v7824 = vld [vmem:[%s763 + $0x208] sm:$0xff]
        %v7825 = vld [vmem:[%s763 + $0x210] sm:$0xff]
        %v7826 = vld [vmem:[%s763 + $0x218] sm:$0xff]
        %v7827 = vld [vmem:[%s763 + $0x220] sm:$0xff]
        %v7828 = vld [vmem:[%s763 + $0x228] sm:$0xff]
        %v7829 = vld [vmem:[%s763 + $0x230] sm:$0xff]
        %v7830 = vld [vmem:[%s763 + $0x238] sm:$0xff]
        %v7831 = vld [vmem:[%s763 + $0x240] sm:$0xff]
        %v7832 = vld [vmem:[%s763 + $0x248] sm:$0xff]
        %v7833 = vld [vmem:[%s763 + $0x250] sm:$0xff]
        %v7834 = vld [vmem:[%s763 + $0x258] sm:$0xff]
        %v7835 = vld [vmem:[%s763 + $0x260] sm:$0xff]
        %v7836 = vld [vmem:[%s763 + $0x268] sm:$0xff]
        %v7837 = vld [vmem:[%s763 + $0x270] sm:$0xff]
        %v7838 = vld [vmem:[%s763 + $0x278] sm:$0xff]
        %v7839 = vld [vmem:[%s763 + $0x280] sm:$0xff]
        %v7840 = vld [vmem:[%s763 + $0x288] sm:$0xff]
        %v7841 = vld [vmem:[%s763 + $0x290] sm:$0xff]
        %v7842 = vld [vmem:[%s763 + $0x298] sm:$0xff]
        %v7843 = vld [vmem:[%s763 + $0x2a0] sm:$0xff]
        %v7844 = vld [vmem:[%s763 + $0x2a8] sm:$0xff]
        %v7845 = vld [vmem:[%s763 + $0x2b0] sm:$0xff]
        %v7846 = vld [vmem:[%s763 + $0x2b8] sm:$0xff]
        %v7847 = vld [vmem:[%s763 + $0x2c0] sm:$0xff]
        %v7848 = vld [vmem:[%s763 + $0x2c8] sm:$0xff]
        %v7849 = vld [vmem:[%s763 + $0x2d0] sm:$0xff]
        %v7850 = vld [vmem:[%s763 + $0x2d8] sm:$0xff]
        %v7851 = vld [vmem:[%s763 + $0x2e0] sm:$0xff]
        %v7852 = vld [vmem:[%s763 + $0x2e8] sm:$0xff]
        %v7853 = vld [vmem:[%s763 + $0x2f0] sm:$0xff]
        %v7854 = vld [vmem:[%s763 + $0x2f8] sm:$0xff]
        %v7855 = vld [vmem:[%s763 + $0x300] sm:$0xff]
        %v7856 = vld [vmem:[%s763 + $0x308] sm:$0xff]
        %v7857 = vld [vmem:[%s763 + $0x310] sm:$0xff]
        %v7858 = vld [vmem:[%s763 + $0x318] sm:$0xff]
        %v7859 = vld [vmem:[%s763 + $0x320] sm:$0xff]
        %v7860 = vld [vmem:[%s763 + $0x328] sm:$0xff]
        %v7861 = vld [vmem:[%s763 + $0x330] sm:$0xff]
        %v7862 = vld [vmem:[%s763 + $0x338] sm:$0xff]
        %v7863 = vld [vmem:[%s763 + $0x340] sm:$0xff]
        %v7864 = vld [vmem:[%s763 + $0x348] sm:$0xff]
        %v7865 = vld [vmem:[%s763 + $0x350] sm:$0xff]
        %v7866 = vld [vmem:[%s763 + $0x358] sm:$0xff]
        %v7867 = vld [vmem:[%s763 + $0x360] sm:$0xff]
        %v7868 = vld [vmem:[%s763 + $0x368] sm:$0xff]
        %v7869 = vld [vmem:[%s763 + $0x370] sm:$0xff]
        %v7870 = vld [vmem:[%s763 + $0x378] sm:$0xff]
        %v7871 = vld [vmem:[%s763 + $0x380] sm:$0xff]
        %v7872 = vld [vmem:[%s763 + $0x388] sm:$0xff]
        %v7873 = vld [vmem:[%s763 + $0x390] sm:$0xff]
        %v7874 = vld [vmem:[%s763 + $0x398] sm:$0xff]
        %v7875 = vld [vmem:[%s763 + $0x3a0] sm:$0xff]
        %v7876 = vld [vmem:[%s763 + $0x3a8] sm:$0xff]
        %v7877 = vld [vmem:[%s763 + $0x3b0] sm:$0xff]
        %v7878 = vld [vmem:[%s763 + $0x3b8] sm:$0xff]
        %v7879 = vld [vmem:[%s763 + $0x3c0] sm:$0xff]
        %v7880 = vld [vmem:[%s763 + $0x3c8] sm:$0xff]
        %v7881 = vld [vmem:[%s763 + $0x3d0] sm:$0xff]
        %v7882 = vld [vmem:[%s763 + $0x3d8] sm:$0xff]
        %v7883 = vld [vmem:[%s763 + $0x3e0] sm:$0xff]
        %v7884 = vld [vmem:[%s763 + $0x3e8] sm:$0xff]
        %v7885 = vld [vmem:[%s763 + $0x3f0] sm:$0xff]
        %v7886 = vld [vmem:[%s763 + $0x3f8] sm:$0xff]
        %v7887 = vld [vmem:[%s763 + $0x400] sm:$0xff]
        %v7888 = vld [vmem:[%s763 + $0x408] sm:$0xff]
        %v7889 = vld [vmem:[%s763 + $0x410] sm:$0xff]
        %v7890 = vld [vmem:[%s763 + $0x418] sm:$0xff]
        %v7891 = vld [vmem:[%s763 + $0x420] sm:$0xff]
        %v7892 = vld [vmem:[%s763 + $0x428] sm:$0xff]
        %v7893 = vld [vmem:[%s763 + $0x430] sm:$0xff]
        %v7894 = vld [vmem:[%s763 + $0x438] sm:$0xff]
        %v7895 = vld [vmem:[%s763 + $0x440] sm:$0xff]
        %v7896 = vld [vmem:[%s763 + $0x448] sm:$0xff]
        %v7897 = vld [vmem:[%s763 + $0x450] sm:$0xff]
        %v7898 = vld [vmem:[%s763 + $0x458] sm:$0xff]
        %v7899 = vld [vmem:[%s763 + $0x460] sm:$0xff]
        %v7900 = vld [vmem:[%s763 + $0x468] sm:$0xff]
        %v7901 = vld [vmem:[%s763 + $0x470] sm:$0xff]
        %v7902 = vld [vmem:[%s763 + $0x478] sm:$0xff]
        %v7903 = vld [vmem:[%s763 + $0x480] sm:$0xff]
        %v7904 = vld [vmem:[%s763 + $0x488] sm:$0xff]
        %v7905 = vld [vmem:[%s763 + $0x490] sm:$0xff]
        %v7906 = vld [vmem:[%s763 + $0x498] sm:$0xff]
        %v7907 = vld [vmem:[%s763 + $0x4a0] sm:$0xff]
        %v7908 = vld [vmem:[%s763 + $0x4a8] sm:$0xff]
        %v7909 = vld [vmem:[%s763 + $0x4b0] sm:$0xff]
        %v7910 = vld [vmem:[%s763 + $0x4b8] sm:$0xff]
        %v7911 = vld [vmem:[%s763 + $0x4c0] sm:$0xff]
        %v7912 = vld [vmem:[%s763 + $0x4c8] sm:$0xff]
        %v7913 = vld [vmem:[%s763 + $0x4d0] sm:$0xff]
        %v7914 = vld [vmem:[%s763 + $0x4d8] sm:$0xff]
        %v7915 = vld [vmem:[%s763 + $0x4e0] sm:$0xff]
        %v7916 = vld [vmem:[%s763 + $0x4e8] sm:$0xff]
        %v7917 = vld [vmem:[%s763 + $0x4f0] sm:$0xff]
        %v7918 = vld [vmem:[%s763 + $0x4f8] sm:$0xff]
        %v7919 = vld [vmem:[%s763 + $0x500] sm:$0xff]
        %v7920 = vld [vmem:[%s763 + $0x508] sm:$0xff]
        %v7921 = vld [vmem:[%s763 + $0x510] sm:$0xff]
        %v7922 = vld [vmem:[%s763 + $0x518] sm:$0xff]
        %v7923 = vld [vmem:[%s763 + $0x520] sm:$0xff]
        %v7924 = vld [vmem:[%s763 + $0x528] sm:$0xff]
        %v7925 = vld [vmem:[%s763 + $0x530] sm:$0xff]
        %v7926 = vld [vmem:[%s763 + $0x538] sm:$0xff]
        %v7927 = vld [vmem:[%s763 + $0x540] sm:$0xff]
        %v7928 = vld [vmem:[%s763 + $0x548] sm:$0xff]
        %v7929 = vld [vmem:[%s763 + $0x550] sm:$0xff]
        %v7930 = vld [vmem:[%s763 + $0x558] sm:$0xff]
        %v7931 = vld [vmem:[%s763 + $0x560] sm:$0xff]
        %v7932 = vld [vmem:[%s763 + $0x568] sm:$0xff]
        %v7933 = vld [vmem:[%s763 + $0x570] sm:$0xff]
        %v7934 = vld [vmem:[%s763 + $0x578] sm:$0xff]
        %v7935 = vld [vmem:[%s763 + $0x580] sm:$0xff]
        %v7936 = vld [vmem:[%s763 + $0x588] sm:$0xff]
        %v7937 = vld [vmem:[%s763 + $0x590] sm:$0xff]
        %v7938 = vld [vmem:[%s763 + $0x598] sm:$0xff]
        %v7939 = vld [vmem:[%s763 + $0x5a0] sm:$0xff]
        %v7940 = vld [vmem:[%s763 + $0x5a8] sm:$0xff]
        %v7941 = vld [vmem:[%s763 + $0x5b0] sm:$0xff]
        %v7942 = vld [vmem:[%s763 + $0x5b8] sm:$0xff]
        %v7943 = vld [vmem:[%s763 + $0x5c0] sm:$0xff]
        %v7944 = vld [vmem:[%s763 + $0x5c8] sm:$0xff]
        %v7945 = vld [vmem:[%s763 + $0x5d0] sm:$0xff]
        %v7946 = vld [vmem:[%s763 + $0x5d8] sm:$0xff]
        %v7947 = vld [vmem:[%s763 + $0x5e0] sm:$0xff]
        %v7948 = vld [vmem:[%s763 + $0x5e8] sm:$0xff]
        %v7949 = vld [vmem:[%s763 + $0x5f0] sm:$0xff]
        %v7950 = vld [vmem:[%s763 + $0x5f8] sm:$0xff]
        %v7951 = vld [vmem:[%s763 + $0x600] sm:$0xff]
        %v7952 = vld [vmem:[%s763 + $0x608] sm:$0xff]
        %v7953 = vld [vmem:[%s763 + $0x610] sm:$0xff]
        %v7954 = vld [vmem:[%s763 + $0x618] sm:$0xff]
        %v7955 = vld [vmem:[%s763 + $0x620] sm:$0xff]
        %v7956 = vld [vmem:[%s763 + $0x628] sm:$0xff]
        %v7957 = vld [vmem:[%s763 + $0x630] sm:$0xff]
        %v7958 = vld [vmem:[%s763 + $0x638] sm:$0xff]
        %v7959 = vld [vmem:[%s763 + $0x640] sm:$0xff]
        %v7960 = vld [vmem:[%s763 + $0x648] sm:$0xff]
        %v7961 = vld [vmem:[%s763 + $0x650] sm:$0xff]
        %v7962 = vld [vmem:[%s763 + $0x658] sm:$0xff]
        %v7963 = vld [vmem:[%s763 + $0x660] sm:$0xff]
        %v7964 = vld [vmem:[%s763 + $0x668] sm:$0xff]
        %v7965 = vld [vmem:[%s763 + $0x670] sm:$0xff]
        %v7966 = vld [vmem:[%s763 + $0x678] sm:$0xff]
        %v7967 = vld [vmem:[%s763 + $0x680] sm:$0xff]
        %v7968 = vld [vmem:[%s763 + $0x688] sm:$0xff]
        %v7969 = vld [vmem:[%s763 + $0x690] sm:$0xff]
        %v7970 = vld [vmem:[%s763 + $0x698] sm:$0xff]
        %v7971 = vld [vmem:[%s763 + $0x6a0] sm:$0xff]
        %v7972 = vld [vmem:[%s763 + $0x6a8] sm:$0xff]
        %v7973 = vld [vmem:[%s763 + $0x6b0] sm:$0xff]
        %v7974 = vld [vmem:[%s763 + $0x6b8] sm:$0xff]
        %v7975 = vld [vmem:[%s763 + $0x6c0] sm:$0xff]
        %v7976 = vld [vmem:[%s763 + $0x6c8] sm:$0xff]
        %v7977 = vld [vmem:[%s763 + $0x6d0] sm:$0xff]
        %v7978 = vld [vmem:[%s763 + $0x6d8] sm:$0xff]
        %v7979 = vld [vmem:[%s763 + $0x6e0] sm:$0xff]
        %v7980 = vld [vmem:[%s763 + $0x6e8] sm:$0xff]
        %v7981 = vld [vmem:[%s763 + $0x6f0] sm:$0xff]
        %v7982 = vld [vmem:[%s763 + $0x6f8] sm:$0xff]
        %v7983 = vld [vmem:[%s763 + $0x700] sm:$0xff]
        %v7984 = vld [vmem:[%s763 + $0x708] sm:$0xff]
        %v7985 = vld [vmem:[%s763 + $0x710] sm:$0xff]
        %v7986 = vld [vmem:[%s763 + $0x718] sm:$0xff]
        %v7987 = vld [vmem:[%s763 + $0x720] sm:$0xff]
        %v7988 = vld [vmem:[%s763 + $0x728] sm:$0xff]
        %v7989 = vld [vmem:[%s763 + $0x730] sm:$0xff]
        %v7990 = vld [vmem:[%s763 + $0x738] sm:$0xff]
        %v7991 = vld [vmem:[%s763 + $0x740] sm:$0xff]
        %v7992 = vld [vmem:[%s763 + $0x748] sm:$0xff]
        %v7993 = vld [vmem:[%s763 + $0x750] sm:$0xff]
        %v7994 = vld [vmem:[%s763 + $0x758] sm:$0xff]
        %v7995 = vld [vmem:[%s763 + $0x760] sm:$0xff]
        %v7996 = vld [vmem:[%s763 + $0x768] sm:$0xff]
        %v7997 = vld [vmem:[%s763 + $0x770] sm:$0xff]
        %v7998 = vld [vmem:[%s763 + $0x778] sm:$0xff]
        %v7999 = vld [vmem:[%s763 + $0x780] sm:$0xff]
        %v8000 = vld [vmem:[%s763 + $0x788] sm:$0xff]
        %v8001 = vld [vmem:[%s763 + $0x790] sm:$0xff]
        %v8002 = vld [vmem:[%s763 + $0x798] sm:$0xff]
        %v8003 = vld [vmem:[%s763 + $0x7a0] sm:$0xff]
        %v8004 = vld [vmem:[%s763 + $0x7a8] sm:$0xff]
        %v8005 = vld [vmem:[%s763 + $0x7b0] sm:$0xff]
        %v8006 = vld [vmem:[%s763 + $0x7b8] sm:$0xff]
        %v8007 = vld [vmem:[%s763 + $0x7c0] sm:$0xff]
        %v8008 = vld [vmem:[%s763 + $0x7c8] sm:$0xff]
        %v8009 = vld [vmem:[%s763 + $0x7d0] sm:$0xff]
        %v8010 = vld [vmem:[%s763 + $0x7d8] sm:$0xff]
        %v8011 = vld [vmem:[%s763 + $0x7e0] sm:$0xff]
        %v8012 = vld [vmem:[%s763 + $0x7e8] sm:$0xff]
        %v8013 = vld [vmem:[%s763 + $0x7f0] sm:$0xff]
        %v8014 = vld [vmem:[%s763 + $0x7f8] sm:$0xff]
        %v8015 = vld [vmem:[%s772] sm:$0xff]
        %v8016 = vld [vmem:[%s772 + $0x8] sm:$0xff]
        %v8019 = vlaneseq
        %v8020 = vshrl.u32 %v8019, 7
        %v8021 = vsub.s32 0, %v8020
        %v8022 = vrot.slane %v8015, %v8021
        %v8023 = vlaneseq
        %v8024 = vshrl.u32 %v8023, 7
        %v8025 = vsub.s32 1, %v8024
        %v8026 = vrot.slane %v8015, %v8025
        %v8027 = vlaneseq
        %v8028 = vshrl.u32 %v8027, 7
        %v8029 = vsub.s32 2, %v8028
        %v8030 = vrot.slane %v8015, %v8029
        %v8031 = vlaneseq
        %v8032 = vshrl.u32 %v8031, 7
        %v8033 = vsub.s32 3, %v8032
        %v8034 = vrot.slane %v8015, %v8033
        %v8035 = vlaneseq
        %v8036 = vshrl.u32 %v8035, 7
        %v8037 = vsub.s32 4, %v8036
        %v8038 = vrot.slane %v8015, %v8037
        %v8039 = vlaneseq
        %v8040 = vshrl.u32 %v8039, 7
        %v8041 = vsub.s32 5, %v8040
        %v8042 = vrot.slane %v8015, %v8041
        %v8043 = vlaneseq
        %v8044 = vshrl.u32 %v8043, 7
        %v8045 = vsub.s32 6, %v8044
        %v8046 = vrot.slane %v8015, %v8045
        %v8047 = vlaneseq
        %v8048 = vshrl.u32 %v8047, 7
        %v8049 = vsub.s32 7, %v8048
        %v8050 = vrot.slane %v8015, %v8049
        %v8051 = vlaneseq
        %v8052 = vshrl.u32 %v8051, 7
        %v8053 = vsub.s32 0, %v8052
        %v8054 = vrot.slane %v8016, %v8053
        %v8055 = vlaneseq
        %v8056 = vshrl.u32 %v8055, 7
        %v8057 = vsub.s32 1, %v8056
        %v8058 = vrot.slane %v8016, %v8057
        %v8059 = vlaneseq
        %v8060 = vshrl.u32 %v8059, 7
        %v8061 = vsub.s32 2, %v8060
        %v8062 = vrot.slane %v8016, %v8061
        %v8063 = vlaneseq
        %v8064 = vshrl.u32 %v8063, 7
        %v8065 = vsub.s32 3, %v8064
        %v8066 = vrot.slane %v8016, %v8065
        %v8067 = vlaneseq
        %v8068 = vshrl.u32 %v8067, 7
        %v8069 = vsub.s32 4, %v8068
        %v8070 = vrot.slane %v8016, %v8069
        %v8071 = vlaneseq
        %v8072 = vshrl.u32 %v8071, 7
        %v8073 = vsub.s32 5, %v8072
        %v8074 = vrot.slane %v8016, %v8073
        %v8075 = vlaneseq
        %v8076 = vshrl.u32 %v8075, 7
        %v8077 = vsub.s32 6, %v8076
        %v8078 = vrot.slane %v8016, %v8077
        %v8079 = vlaneseq
        %v8080 = vshrl.u32 %v8079, 7
        %v8081 = vsub.s32 7, %v8080
        %v8082 = vrot.slane %v8016, %v8081
        %v8101 = vunpack.c.l.s4 1966171168
        %v8102 = vunpack.c.0.s8 %v8101
        %v8103 = vlaneseq
        %v8104 = vshrl.u32 %v8103, 7
        %v8105 = vsub.s32 %v8102, %v8104
        %v8106 = vrot.slane %v7758, %v8105
        %v8107 = vcombine.high %v8106, %v8106
        %v8109 = vunpack.c.l.s4 1966171168
        %v8110 = vunpack.c.0.s8 %v8109
        %v8111 = vlaneseq
        %v8112 = vshrl.u32 %v8111, 7
        %v8113 = vsub.s32 %v8110, %v8112
        %v8114 = vrot.slane %v8106, %v8113
        %v8116 = vunpack.c.l.s4 1966171168
        %v8117 = vunpack.c.0.s8 %v8116
        %v8118 = vlaneseq
        %v8119 = vshrl.u32 %v8118, 7
        %v8120 = vsub.s32 %v8117, %v8119
        %v8121 = vrot.slane %v8107, %v8120
        %v8380 = vunpack.c.l.b16 %v7759
        %v8381 = vunpack.c.h.b16 %v7759
        %v8382 = vunpack.c.l.b16 %v7760
        %v8383 = vunpack.c.h.b16 %v7760
        %v8384 = vunpack.c.l.b16 %v7761
        %v8385 = vunpack.c.h.b16 %v7761
        %v8386 = vunpack.c.l.b16 %v7762
        %v8387 = vunpack.c.h.b16 %v7762
        %v8388 = vunpack.c.l.b16 %v7763
        %v8389 = vunpack.c.h.b16 %v7763
        %v8390 = vunpack.c.l.b16 %v7764
        %v8391 = vunpack.c.h.b16 %v7764
        %v8392 = vunpack.c.l.b16 %v7765
        %v8393 = vunpack.c.h.b16 %v7765
        %v8394 = vunpack.c.l.b16 %v7766
        %v8395 = vunpack.c.h.b16 %v7766
        %v8396 = vunpack.c.l.b16 %v7767
        %v8397 = vunpack.c.h.b16 %v7767
        %v8398 = vunpack.c.l.b16 %v7768
        %v8399 = vunpack.c.h.b16 %v7768
        %v8400 = vunpack.c.l.b16 %v7769
        %v8401 = vunpack.c.h.b16 %v7769
        %v8402 = vunpack.c.l.b16 %v7770
        %v8403 = vunpack.c.h.b16 %v7770
        %v8404 = vunpack.c.l.b16 %v7771
        %v8405 = vunpack.c.h.b16 %v7771
        %v8406 = vunpack.c.l.b16 %v7772
        %v8407 = vunpack.c.h.b16 %v7772
        %v8408 = vunpack.c.l.b16 %v7773
        %v8409 = vunpack.c.h.b16 %v7773
        %v8410 = vunpack.c.l.b16 %v7774
        %v8411 = vunpack.c.h.b16 %v7774
        %v8412 = vunpack.c.l.b16 %v7775
        %v8413 = vunpack.c.h.b16 %v7775
        %v8414 = vunpack.c.l.b16 %v7776
        %v8415 = vunpack.c.h.b16 %v7776
        %v8416 = vunpack.c.l.b16 %v7777
        %v8417 = vunpack.c.h.b16 %v7777
        %v8418 = vunpack.c.l.b16 %v7778
        %v8419 = vunpack.c.h.b16 %v7778
        %v8420 = vunpack.c.l.b16 %v7779
        %v8421 = vunpack.c.h.b16 %v7779
        %v8422 = vunpack.c.l.b16 %v7780
        %v8423 = vunpack.c.h.b16 %v7780
        %v8424 = vunpack.c.l.b16 %v7781
        %v8425 = vunpack.c.h.b16 %v7781
        %v8426 = vunpack.c.l.b16 %v7782
        %v8427 = vunpack.c.h.b16 %v7782
        %v8428 = vunpack.c.l.b16 %v7783
        %v8429 = vunpack.c.h.b16 %v7783
        %v8430 = vunpack.c.l.b16 %v7784
        %v8431 = vunpack.c.h.b16 %v7784
        %v8432 = vunpack.c.l.b16 %v7785
        %v8433 = vunpack.c.h.b16 %v7785
        %v8434 = vunpack.c.l.b16 %v7786
        %v8435 = vunpack.c.h.b16 %v7786
        %v8436 = vunpack.c.l.b16 %v7787
        %v8437 = vunpack.c.h.b16 %v7787
        %v8438 = vunpack.c.l.b16 %v7788
        %v8439 = vunpack.c.h.b16 %v7788
        %v8440 = vunpack.c.l.b16 %v7789
        %v8441 = vunpack.c.h.b16 %v7789
        %v8442 = vunpack.c.l.b16 %v7790
        %v8443 = vunpack.c.h.b16 %v7790
        %v8444 = vunpack.c.l.b16 %v7791
        %v8445 = vunpack.c.h.b16 %v7791
        %v8446 = vunpack.c.l.b16 %v7792
        %v8447 = vunpack.c.h.b16 %v7792
        %v8448 = vunpack.c.l.b16 %v7793
        %v8449 = vunpack.c.h.b16 %v7793
        %v8450 = vunpack.c.l.b16 %v7794
        %v8451 = vunpack.c.h.b16 %v7794
        %v8452 = vunpack.c.l.b16 %v7795
        %v8453 = vunpack.c.h.b16 %v7795
        %v8454 = vunpack.c.l.b16 %v7796
        %v8455 = vunpack.c.h.b16 %v7796
        %v8456 = vunpack.c.l.b16 %v7797
        %v8457 = vunpack.c.h.b16 %v7797
        %v8458 = vunpack.c.l.b16 %v7798
        %v8459 = vunpack.c.h.b16 %v7798
        %v8460 = vunpack.c.l.b16 %v7799
        %v8461 = vunpack.c.h.b16 %v7799
        %v8462 = vunpack.c.l.b16 %v7800
        %v8463 = vunpack.c.h.b16 %v7800
        %v8464 = vunpack.c.l.b16 %v7801
        %v8465 = vunpack.c.h.b16 %v7801
        %v8466 = vunpack.c.l.b16 %v7802
        %v8467 = vunpack.c.h.b16 %v7802
        %v8468 = vunpack.c.l.b16 %v7803
        %v8469 = vunpack.c.h.b16 %v7803
        %v8470 = vunpack.c.l.b16 %v7804
        %v8471 = vunpack.c.h.b16 %v7804
        %v8472 = vunpack.c.l.b16 %v7805
        %v8473 = vunpack.c.h.b16 %v7805
        %v8474 = vunpack.c.l.b16 %v7806
        %v8475 = vunpack.c.h.b16 %v7806
        %v8476 = vunpack.c.l.b16 %v7807
        %v8477 = vunpack.c.h.b16 %v7807
        %v8478 = vunpack.c.l.b16 %v7808
        %v8479 = vunpack.c.h.b16 %v7808
        %v8480 = vunpack.c.l.b16 %v7809
        %v8481 = vunpack.c.h.b16 %v7809
        %v8482 = vunpack.c.l.b16 %v7810
        %v8483 = vunpack.c.h.b16 %v7810
        %v8484 = vunpack.c.l.b16 %v7811
        %v8485 = vunpack.c.h.b16 %v7811
        %v8486 = vunpack.c.l.b16 %v7812
        %v8487 = vunpack.c.h.b16 %v7812
        %v8488 = vunpack.c.l.b16 %v7813
        %v8489 = vunpack.c.h.b16 %v7813
        %v8490 = vunpack.c.l.b16 %v7814
        %v8491 = vunpack.c.h.b16 %v7814
        %v8492 = vunpack.c.l.b16 %v7815
        %v8493 = vunpack.c.h.b16 %v7815
        %v8494 = vunpack.c.l.b16 %v7816
        %v8495 = vunpack.c.h.b16 %v7816
        %v8496 = vunpack.c.l.b16 %v7817
        %v8497 = vunpack.c.h.b16 %v7817
        %v8498 = vunpack.c.l.b16 %v7818
        %v8499 = vunpack.c.h.b16 %v7818
        %v8500 = vunpack.c.l.b16 %v7819
        %v8501 = vunpack.c.h.b16 %v7819
        %v8502 = vunpack.c.l.b16 %v7820
        %v8503 = vunpack.c.h.b16 %v7820
        %v8504 = vunpack.c.l.b16 %v7821
        %v8505 = vunpack.c.h.b16 %v7821
        %v8506 = vunpack.c.l.b16 %v7822
        %v8507 = vunpack.c.h.b16 %v7822
        %v8508 = vunpack.c.l.b16 %v7823
        %v8509 = vunpack.c.h.b16 %v7823
        %v8510 = vunpack.c.l.b16 %v7824
        %v8511 = vunpack.c.h.b16 %v7824
        %v8512 = vunpack.c.l.b16 %v7825
        %v8513 = vunpack.c.h.b16 %v7825
        %v8514 = vunpack.c.l.b16 %v7826
        %v8515 = vunpack.c.h.b16 %v7826
        %v8516 = vunpack.c.l.b16 %v7827
        %v8517 = vunpack.c.h.b16 %v7827
        %v8518 = vunpack.c.l.b16 %v7828
        %v8519 = vunpack.c.h.b16 %v7828
        %v8520 = vunpack.c.l.b16 %v7829
        %v8521 = vunpack.c.h.b16 %v7829
        %v8522 = vunpack.c.l.b16 %v7830
        %v8523 = vunpack.c.h.b16 %v7830
        %v8524 = vunpack.c.l.b16 %v7831
        %v8525 = vunpack.c.h.b16 %v7831
        %v8526 = vunpack.c.l.b16 %v7832
        %v8527 = vunpack.c.h.b16 %v7832
        %v8528 = vunpack.c.l.b16 %v7833
        %v8529 = vunpack.c.h.b16 %v7833
        %v8530 = vunpack.c.l.b16 %v7834
        %v8531 = vunpack.c.h.b16 %v7834
        %v8532 = vunpack.c.l.b16 %v7835
        %v8533 = vunpack.c.h.b16 %v7835
        %v8534 = vunpack.c.l.b16 %v7836
        %v8535 = vunpack.c.h.b16 %v7836
        %v8536 = vunpack.c.l.b16 %v7837
        %v8537 = vunpack.c.h.b16 %v7837
        %v8538 = vunpack.c.l.b16 %v7838
        %v8539 = vunpack.c.h.b16 %v7838
        %v8540 = vunpack.c.l.b16 %v7839
        %v8541 = vunpack.c.h.b16 %v7839
        %v8542 = vunpack.c.l.b16 %v7840
        %v8543 = vunpack.c.h.b16 %v7840
        %v8544 = vunpack.c.l.b16 %v7841
        %v8545 = vunpack.c.h.b16 %v7841
        %v8546 = vunpack.c.l.b16 %v7842
        %v8547 = vunpack.c.h.b16 %v7842
        %v8548 = vunpack.c.l.b16 %v7843
        %v8549 = vunpack.c.h.b16 %v7843
        %v8550 = vunpack.c.l.b16 %v7844
        %v8551 = vunpack.c.h.b16 %v7844
        %v8552 = vunpack.c.l.b16 %v7845
        %v8553 = vunpack.c.h.b16 %v7845
        %v8554 = vunpack.c.l.b16 %v7846
        %v8555 = vunpack.c.h.b16 %v7846
        %v8556 = vunpack.c.l.b16 %v7847
        %v8557 = vunpack.c.h.b16 %v7847
        %v8558 = vunpack.c.l.b16 %v7848
        %v8559 = vunpack.c.h.b16 %v7848
        %v8560 = vunpack.c.l.b16 %v7849
        %v8561 = vunpack.c.h.b16 %v7849
        %v8562 = vunpack.c.l.b16 %v7850
        %v8563 = vunpack.c.h.b16 %v7850
        %v8564 = vunpack.c.l.b16 %v7851
        %v8565 = vunpack.c.h.b16 %v7851
        %v8566 = vunpack.c.l.b16 %v7852
        %v8567 = vunpack.c.h.b16 %v7852
        %v8568 = vunpack.c.l.b16 %v7853
        %v8569 = vunpack.c.h.b16 %v7853
        %v8570 = vunpack.c.l.b16 %v7854
        %v8571 = vunpack.c.h.b16 %v7854
        %v8572 = vunpack.c.l.b16 %v7855
        %v8573 = vunpack.c.h.b16 %v7855
        %v8574 = vunpack.c.l.b16 %v7856
        %v8575 = vunpack.c.h.b16 %v7856
        %v8576 = vunpack.c.l.b16 %v7857
        %v8577 = vunpack.c.h.b16 %v7857
        %v8578 = vunpack.c.l.b16 %v7858
        %v8579 = vunpack.c.h.b16 %v7858
        %v8580 = vunpack.c.l.b16 %v7859
        %v8581 = vunpack.c.h.b16 %v7859
        %v8582 = vunpack.c.l.b16 %v7860
        %v8583 = vunpack.c.h.b16 %v7860
        %v8584 = vunpack.c.l.b16 %v7861
        %v8585 = vunpack.c.h.b16 %v7861
        %v8586 = vunpack.c.l.b16 %v7862
        %v8587 = vunpack.c.h.b16 %v7862
        %v8588 = vunpack.c.l.b16 %v7863
        %v8589 = vunpack.c.h.b16 %v7863
        %v8590 = vunpack.c.l.b16 %v7864
        %v8591 = vunpack.c.h.b16 %v7864
        %v8592 = vunpack.c.l.b16 %v7865
        %v8593 = vunpack.c.h.b16 %v7865
        %v8594 = vunpack.c.l.b16 %v7866
        %v8595 = vunpack.c.h.b16 %v7866
        %v8596 = vunpack.c.l.b16 %v7867
        %v8597 = vunpack.c.h.b16 %v7867
        %v8598 = vunpack.c.l.b16 %v7868
        %v8599 = vunpack.c.h.b16 %v7868
        %v8600 = vunpack.c.l.b16 %v7869
        %v8601 = vunpack.c.h.b16 %v7869
        %v8602 = vunpack.c.l.b16 %v7870
        %v8603 = vunpack.c.h.b16 %v7870
        %v8604 = vunpack.c.l.b16 %v7871
        %v8605 = vunpack.c.h.b16 %v7871
        %v8606 = vunpack.c.l.b16 %v7872
        %v8607 = vunpack.c.h.b16 %v7872
        %v8608 = vunpack.c.l.b16 %v7873
        %v8609 = vunpack.c.h.b16 %v7873
        %v8610 = vunpack.c.l.b16 %v7874
        %v8611 = vunpack.c.h.b16 %v7874
        %v8612 = vunpack.c.l.b16 %v7875
        %v8613 = vunpack.c.h.b16 %v7875
        %v8614 = vunpack.c.l.b16 %v7876
        %v8615 = vunpack.c.h.b16 %v7876
        %v8616 = vunpack.c.l.b16 %v7877
        %v8617 = vunpack.c.h.b16 %v7877
        %v8618 = vunpack.c.l.b16 %v7878
        %v8619 = vunpack.c.h.b16 %v7878
        %v8620 = vunpack.c.l.b16 %v7879
        %v8621 = vunpack.c.h.b16 %v7879
        %v8622 = vunpack.c.l.b16 %v7880
        %v8623 = vunpack.c.h.b16 %v7880
        %v8624 = vunpack.c.l.b16 %v7881
        %v8625 = vunpack.c.h.b16 %v7881
        %v8626 = vunpack.c.l.b16 %v7882
        %v8627 = vunpack.c.h.b16 %v7882
        %v8628 = vunpack.c.l.b16 %v7883
        %v8629 = vunpack.c.h.b16 %v7883
        %v8630 = vunpack.c.l.b16 %v7884
        %v8631 = vunpack.c.h.b16 %v7884
        %v8632 = vunpack.c.l.b16 %v7885
        %v8633 = vunpack.c.h.b16 %v7885
        %v8634 = vunpack.c.l.b16 %v7886
        %v8635 = vunpack.c.h.b16 %v7886
        %v8636 = vunpack.c.l.b16 %v7887
        %v8637 = vunpack.c.h.b16 %v7887
        %v8638 = vunpack.c.l.b16 %v7888
        %v8639 = vunpack.c.h.b16 %v7888
        %v8640 = vunpack.c.l.b16 %v7889
        %v8641 = vunpack.c.h.b16 %v7889
        %v8642 = vunpack.c.l.b16 %v7890
        %v8643 = vunpack.c.h.b16 %v7890
        %v8644 = vunpack.c.l.b16 %v7891
        %v8645 = vunpack.c.h.b16 %v7891
        %v8646 = vunpack.c.l.b16 %v7892
        %v8647 = vunpack.c.h.b16 %v7892
        %v8648 = vunpack.c.l.b16 %v7893
        %v8649 = vunpack.c.h.b16 %v7893
        %v8650 = vunpack.c.l.b16 %v7894
        %v8651 = vunpack.c.h.b16 %v7894
        %v8652 = vunpack.c.l.b16 %v7895
        %v8653 = vunpack.c.h.b16 %v7895
        %v8654 = vunpack.c.l.b16 %v7896
        %v8655 = vunpack.c.h.b16 %v7896
        %v8656 = vunpack.c.l.b16 %v7897
        %v8657 = vunpack.c.h.b16 %v7897
        %v8658 = vunpack.c.l.b16 %v7898
        %v8659 = vunpack.c.h.b16 %v7898
        %v8660 = vunpack.c.l.b16 %v7899
        %v8661 = vunpack.c.h.b16 %v7899
        %v8662 = vunpack.c.l.b16 %v7900
        %v8663 = vunpack.c.h.b16 %v7900
        %v8664 = vunpack.c.l.b16 %v7901
        %v8665 = vunpack.c.h.b16 %v7901
        %v8666 = vunpack.c.l.b16 %v7902
        %v8667 = vunpack.c.h.b16 %v7902
        %v8668 = vunpack.c.l.b16 %v7903
        %v8669 = vunpack.c.h.b16 %v7903
        %v8670 = vunpack.c.l.b16 %v7904
        %v8671 = vunpack.c.h.b16 %v7904
        %v8672 = vunpack.c.l.b16 %v7905
        %v8673 = vunpack.c.h.b16 %v7905
        %v8674 = vunpack.c.l.b16 %v7906
        %v8675 = vunpack.c.h.b16 %v7906
        %v8676 = vunpack.c.l.b16 %v7907
        %v8677 = vunpack.c.h.b16 %v7907
        %v8678 = vunpack.c.l.b16 %v7908
        %v8679 = vunpack.c.h.b16 %v7908
        %v8680 = vunpack.c.l.b16 %v7909
        %v8681 = vunpack.c.h.b16 %v7909
        %v8682 = vunpack.c.l.b16 %v7910
        %v8683 = vunpack.c.h.b16 %v7910
        %v8684 = vunpack.c.l.b16 %v7911
        %v8685 = vunpack.c.h.b16 %v7911
        %v8686 = vunpack.c.l.b16 %v7912
        %v8687 = vunpack.c.h.b16 %v7912
        %v8688 = vunpack.c.l.b16 %v7913
        %v8689 = vunpack.c.h.b16 %v7913
        %v8690 = vunpack.c.l.b16 %v7914
        %v8691 = vunpack.c.h.b16 %v7914
        %v8692 = vunpack.c.l.b16 %v7915
        %v8693 = vunpack.c.h.b16 %v7915
        %v8694 = vunpack.c.l.b16 %v7916
        %v8695 = vunpack.c.h.b16 %v7916
        %v8696 = vunpack.c.l.b16 %v7917
        %v8697 = vunpack.c.h.b16 %v7917
        %v8698 = vunpack.c.l.b16 %v7918
        %v8699 = vunpack.c.h.b16 %v7918
        %v8700 = vunpack.c.l.b16 %v7919
        %v8701 = vunpack.c.h.b16 %v7919
        %v8702 = vunpack.c.l.b16 %v7920
        %v8703 = vunpack.c.h.b16 %v7920
        %v8704 = vunpack.c.l.b16 %v7921
        %v8705 = vunpack.c.h.b16 %v7921
        %v8706 = vunpack.c.l.b16 %v7922
        %v8707 = vunpack.c.h.b16 %v7922
        %v8708 = vunpack.c.l.b16 %v7923
        %v8709 = vunpack.c.h.b16 %v7923
        %v8710 = vunpack.c.l.b16 %v7924
        %v8711 = vunpack.c.h.b16 %v7924
        %v8712 = vunpack.c.l.b16 %v7925
        %v8713 = vunpack.c.h.b16 %v7925
        %v8714 = vunpack.c.l.b16 %v7926
        %v8715 = vunpack.c.h.b16 %v7926
        %v8716 = vunpack.c.l.b16 %v7927
        %v8717 = vunpack.c.h.b16 %v7927
        %v8718 = vunpack.c.l.b16 %v7928
        %v8719 = vunpack.c.h.b16 %v7928
        %v8720 = vunpack.c.l.b16 %v7929
        %v8721 = vunpack.c.h.b16 %v7929
        %v8722 = vunpack.c.l.b16 %v7930
        %v8723 = vunpack.c.h.b16 %v7930
        %v8724 = vunpack.c.l.b16 %v7931
        %v8725 = vunpack.c.h.b16 %v7931
        %v8726 = vunpack.c.l.b16 %v7932
        %v8727 = vunpack.c.h.b16 %v7932
        %v8728 = vunpack.c.l.b16 %v7933
        %v8729 = vunpack.c.h.b16 %v7933
        %v8730 = vunpack.c.l.b16 %v7934
        %v8731 = vunpack.c.h.b16 %v7934
        %v8732 = vunpack.c.l.b16 %v7935
        %v8733 = vunpack.c.h.b16 %v7935
        %v8734 = vunpack.c.l.b16 %v7936
        %v8735 = vunpack.c.h.b16 %v7936
        %v8736 = vunpack.c.l.b16 %v7937
        %v8737 = vunpack.c.h.b16 %v7937
        %v8738 = vunpack.c.l.b16 %v7938
        %v8739 = vunpack.c.h.b16 %v7938
        %v8740 = vunpack.c.l.b16 %v7939
        %v8741 = vunpack.c.h.b16 %v7939
        %v8742 = vunpack.c.l.b16 %v7940
        %v8743 = vunpack.c.h.b16 %v7940
        %v8744 = vunpack.c.l.b16 %v7941
        %v8745 = vunpack.c.h.b16 %v7941
        %v8746 = vunpack.c.l.b16 %v7942
        %v8747 = vunpack.c.h.b16 %v7942
        %v8748 = vunpack.c.l.b16 %v7943
        %v8749 = vunpack.c.h.b16 %v7943
        %v8750 = vunpack.c.l.b16 %v7944
        %v8751 = vunpack.c.h.b16 %v7944
        %v8752 = vunpack.c.l.b16 %v7945
        %v8753 = vunpack.c.h.b16 %v7945
        %v8754 = vunpack.c.l.b16 %v7946
        %v8755 = vunpack.c.h.b16 %v7946
        %v8756 = vunpack.c.l.b16 %v7947
        %v8757 = vunpack.c.h.b16 %v7947
        %v8758 = vunpack.c.l.b16 %v7948
        %v8759 = vunpack.c.h.b16 %v7948
        %v8760 = vunpack.c.l.b16 %v7949
        %v8761 = vunpack.c.h.b16 %v7949
        %v8762 = vunpack.c.l.b16 %v7950
        %v8763 = vunpack.c.h.b16 %v7950
        %v8764 = vunpack.c.l.b16 %v7951
        %v8765 = vunpack.c.h.b16 %v7951
        %v8766 = vunpack.c.l.b16 %v7952
        %v8767 = vunpack.c.h.b16 %v7952
        %v8768 = vunpack.c.l.b16 %v7953
        %v8769 = vunpack.c.h.b16 %v7953
        %v8770 = vunpack.c.l.b16 %v7954
        %v8771 = vunpack.c.h.b16 %v7954
        %v8772 = vunpack.c.l.b16 %v7955
        %v8773 = vunpack.c.h.b16 %v7955
        %v8774 = vunpack.c.l.b16 %v7956
        %v8775 = vunpack.c.h.b16 %v7956
        %v8776 = vunpack.c.l.b16 %v7957
        %v8777 = vunpack.c.h.b16 %v7957
        %v8778 = vunpack.c.l.b16 %v7958
        %v8779 = vunpack.c.h.b16 %v7958
        %v8780 = vunpack.c.l.b16 %v7959
        %v8781 = vunpack.c.h.b16 %v7959
        %v8782 = vunpack.c.l.b16 %v7960
        %v8783 = vunpack.c.h.b16 %v7960
        %v8784 = vunpack.c.l.b16 %v7961
        %v8785 = vunpack.c.h.b16 %v7961
        %v8786 = vunpack.c.l.b16 %v7962
        %v8787 = vunpack.c.h.b16 %v7962
        %v8788 = vunpack.c.l.b16 %v7963
        %v8789 = vunpack.c.h.b16 %v7963
        %v8790 = vunpack.c.l.b16 %v7964
        %v8791 = vunpack.c.h.b16 %v7964
        %v8792 = vunpack.c.l.b16 %v7965
        %v8793 = vunpack.c.h.b16 %v7965
        %v8794 = vunpack.c.l.b16 %v7966
        %v8795 = vunpack.c.h.b16 %v7966
        %v8796 = vunpack.c.l.b16 %v7967
        %v8797 = vunpack.c.h.b16 %v7967
        %v8798 = vunpack.c.l.b16 %v7968
        %v8799 = vunpack.c.h.b16 %v7968
        %v8800 = vunpack.c.l.b16 %v7969
        %v8801 = vunpack.c.h.b16 %v7969
        %v8802 = vunpack.c.l.b16 %v7970
        %v8803 = vunpack.c.h.b16 %v7970
        %v8804 = vunpack.c.l.b16 %v7971
        %v8805 = vunpack.c.h.b16 %v7971
        %v8806 = vunpack.c.l.b16 %v7972
        %v8807 = vunpack.c.h.b16 %v7972
        %v8808 = vunpack.c.l.b16 %v7973
        %v8809 = vunpack.c.h.b16 %v7973
        %v8810 = vunpack.c.l.b16 %v7974
        %v8811 = vunpack.c.h.b16 %v7974
        %v8812 = vunpack.c.l.b16 %v7975
        %v8813 = vunpack.c.h.b16 %v7975
        %v8814 = vunpack.c.l.b16 %v7976
        %v8815 = vunpack.c.h.b16 %v7976
        %v8816 = vunpack.c.l.b16 %v7977
        %v8817 = vunpack.c.h.b16 %v7977
        %v8818 = vunpack.c.l.b16 %v7978
        %v8819 = vunpack.c.h.b16 %v7978
        %v8820 = vunpack.c.l.b16 %v7979
        %v8821 = vunpack.c.h.b16 %v7979
        %v8822 = vunpack.c.l.b16 %v7980
        %v8823 = vunpack.c.h.b16 %v7980
        %v8824 = vunpack.c.l.b16 %v7981
        %v8825 = vunpack.c.h.b16 %v7981
        %v8826 = vunpack.c.l.b16 %v7982
        %v8827 = vunpack.c.h.b16 %v7982
        %v8828 = vunpack.c.l.b16 %v7983
        %v8829 = vunpack.c.h.b16 %v7983
        %v8830 = vunpack.c.l.b16 %v7984
        %v8831 = vunpack.c.h.b16 %v7984
        %v8832 = vunpack.c.l.b16 %v7985
        %v8833 = vunpack.c.h.b16 %v7985
        %v8834 = vunpack.c.l.b16 %v7986
        %v8835 = vunpack.c.h.b16 %v7986
        %v8836 = vunpack.c.l.b16 %v7987
        %v8837 = vunpack.c.h.b16 %v7987
        %v8838 = vunpack.c.l.b16 %v7988
        %v8839 = vunpack.c.h.b16 %v7988
        %v8840 = vunpack.c.l.b16 %v7989
        %v8841 = vunpack.c.h.b16 %v7989
        %v8842 = vunpack.c.l.b16 %v7990
        %v8843 = vunpack.c.h.b16 %v7990
        %v8844 = vunpack.c.l.b16 %v7991
        %v8845 = vunpack.c.h.b16 %v7991
        %v8846 = vunpack.c.l.b16 %v7992
        %v8847 = vunpack.c.h.b16 %v7992
        %v8848 = vunpack.c.l.b16 %v7993
        %v8849 = vunpack.c.h.b16 %v7993
        %v8850 = vunpack.c.l.b16 %v7994
        %v8851 = vunpack.c.h.b16 %v7994
        %v8852 = vunpack.c.l.b16 %v7995
        %v8853 = vunpack.c.h.b16 %v7995
        %v8854 = vunpack.c.l.b16 %v7996
        %v8855 = vunpack.c.h.b16 %v7996
        %v8856 = vunpack.c.l.b16 %v7997
        %v8857 = vunpack.c.h.b16 %v7997
        %v8858 = vunpack.c.l.b16 %v7998
        %v8859 = vunpack.c.h.b16 %v7998
        %v8860 = vunpack.c.l.b16 %v7999
        %v8861 = vunpack.c.h.b16 %v7999
        %v8862 = vunpack.c.l.b16 %v8000
        %v8863 = vunpack.c.h.b16 %v8000
        %v8864 = vunpack.c.l.b16 %v8001
        %v8865 = vunpack.c.h.b16 %v8001
        %v8866 = vunpack.c.l.b16 %v8002
        %v8867 = vunpack.c.h.b16 %v8002
        %v8868 = vunpack.c.l.b16 %v8003
        %v8869 = vunpack.c.h.b16 %v8003
        %v8870 = vunpack.c.l.b16 %v8004
        %v8871 = vunpack.c.h.b16 %v8004
        %v8872 = vunpack.c.l.b16 %v8005
        %v8873 = vunpack.c.h.b16 %v8005
        %v8874 = vunpack.c.l.b16 %v8006
        %v8875 = vunpack.c.h.b16 %v8006
        %v8876 = vunpack.c.l.b16 %v8007
        %v8877 = vunpack.c.h.b16 %v8007
        %v8878 = vunpack.c.l.b16 %v8008
        %v8879 = vunpack.c.h.b16 %v8008
        %v8880 = vunpack.c.l.b16 %v8009
        %v8881 = vunpack.c.h.b16 %v8009
        %v8882 = vunpack.c.l.b16 %v8010
        %v8883 = vunpack.c.h.b16 %v8010
        %v8884 = vunpack.c.l.b16 %v8011
        %v8885 = vunpack.c.h.b16 %v8011
        %v8886 = vunpack.c.l.b16 %v8012
        %v8887 = vunpack.c.h.b16 %v8012
        %v8888 = vunpack.c.l.b16 %v8013
        %v8889 = vunpack.c.h.b16 %v8013
        %v8890 = vunpack.c.l.b16 %v8014
        %v8891 = vunpack.c.h.b16 %v8014
        %v8892 = vpack.c.b16 %v8396, %v8380
        %v8893 = vpack.c.b16 %v8397, %v8381
        %v8894 = vpack.c.b16 %v8398, %v8382
        %v8895 = vpack.c.b16 %v8399, %v8383
        %v8896 = vpack.c.b16 %v8400, %v8384
        %v8897 = vpack.c.b16 %v8401, %v8385
        %v8898 = vpack.c.b16 %v8402, %v8386
        %v8899 = vpack.c.b16 %v8403, %v8387
        %v8900 = vpack.c.b16 %v8404, %v8388
        %v8901 = vpack.c.b16 %v8405, %v8389
        %v8902 = vpack.c.b16 %v8406, %v8390
        %v8903 = vpack.c.b16 %v8407, %v8391
        %v8904 = vpack.c.b16 %v8408, %v8392
        %v8905 = vpack.c.b16 %v8409, %v8393
        %v8906 = vpack.c.b16 %v8410, %v8394
        %v8907 = vpack.c.b16 %v8411, %v8395
        %v8908 = vpack.c.b16 %v8428, %v8412
        %v8909 = vpack.c.b16 %v8429, %v8413
        %v8910 = vpack.c.b16 %v8430, %v8414
        %v8911 = vpack.c.b16 %v8431, %v8415
        %v8912 = vpack.c.b16 %v8432, %v8416
        %v8913 = vpack.c.b16 %v8433, %v8417
        %v8914 = vpack.c.b16 %v8434, %v8418
        %v8915 = vpack.c.b16 %v8435, %v8419
        %v8916 = vpack.c.b16 %v8436, %v8420
        %v8917 = vpack.c.b16 %v8437, %v8421
        %v8918 = vpack.c.b16 %v8438, %v8422
        %v8919 = vpack.c.b16 %v8439, %v8423
        %v8920 = vpack.c.b16 %v8440, %v8424
        %v8921 = vpack.c.b16 %v8441, %v8425
        %v8922 = vpack.c.b16 %v8442, %v8426
        %v8923 = vpack.c.b16 %v8443, %v8427
        %v8924 = vpack.c.b16 %v8460, %v8444
        %v8925 = vpack.c.b16 %v8461, %v8445
        %v8926 = vpack.c.b16 %v8462, %v8446
        %v8927 = vpack.c.b16 %v8463, %v8447
        %v8928 = vpack.c.b16 %v8464, %v8448
        %v8929 = vpack.c.b16 %v8465, %v8449
        %v8930 = vpack.c.b16 %v8466, %v8450
        %v8931 = vpack.c.b16 %v8467, %v8451
        %v8932 = vpack.c.b16 %v8468, %v8452
        %v8933 = vpack.c.b16 %v8469, %v8453
        %v8934 = vpack.c.b16 %v8470, %v8454
        %v8935 = vpack.c.b16 %v8471, %v8455
        %v8936 = vpack.c.b16 %v8472, %v8456
        %v8937 = vpack.c.b16 %v8473, %v8457
        %v8938 = vpack.c.b16 %v8474, %v8458
        %v8939 = vpack.c.b16 %v8475, %v8459
        %v8940 = vpack.c.b16 %v8492, %v8476
        %v8941 = vpack.c.b16 %v8493, %v8477
        %v8942 = vpack.c.b16 %v8494, %v8478
        %v8943 = vpack.c.b16 %v8495, %v8479
        %v8944 = vpack.c.b16 %v8496, %v8480
        %v8945 = vpack.c.b16 %v8497, %v8481
        %v8946 = vpack.c.b16 %v8498, %v8482
        %v8947 = vpack.c.b16 %v8499, %v8483
        %v8948 = vpack.c.b16 %v8500, %v8484
        %v8949 = vpack.c.b16 %v8501, %v8485
        %v8950 = vpack.c.b16 %v8502, %v8486
        %v8951 = vpack.c.b16 %v8503, %v8487
        %v8952 = vpack.c.b16 %v8504, %v8488
        %v8953 = vpack.c.b16 %v8505, %v8489
        %v8954 = vpack.c.b16 %v8506, %v8490
        %v8955 = vpack.c.b16 %v8507, %v8491
        %v8956 = vpack.c.b16 %v8524, %v8508
        %v8957 = vpack.c.b16 %v8525, %v8509
        %v8958 = vpack.c.b16 %v8526, %v8510
        %v8959 = vpack.c.b16 %v8527, %v8511
        %v8960 = vpack.c.b16 %v8528, %v8512
        %v8961 = vpack.c.b16 %v8529, %v8513
        %v8962 = vpack.c.b16 %v8530, %v8514
        %v8963 = vpack.c.b16 %v8531, %v8515
        %v8964 = vpack.c.b16 %v8532, %v8516
        %v8965 = vpack.c.b16 %v8533, %v8517
        %v8966 = vpack.c.b16 %v8534, %v8518
        %v8967 = vpack.c.b16 %v8535, %v8519
        %v8968 = vpack.c.b16 %v8536, %v8520
        %v8969 = vpack.c.b16 %v8537, %v8521
        %v8970 = vpack.c.b16 %v8538, %v8522
        %v8971 = vpack.c.b16 %v8539, %v8523
        %v8972 = vpack.c.b16 %v8556, %v8540
        %v8973 = vpack.c.b16 %v8557, %v8541
        %v8974 = vpack.c.b16 %v8558, %v8542
        %v8975 = vpack.c.b16 %v8559, %v8543
        %v8976 = vpack.c.b16 %v8560, %v8544
        %v8977 = vpack.c.b16 %v8561, %v8545
        %v8978 = vpack.c.b16 %v8562, %v8546
        %v8979 = vpack.c.b16 %v8563, %v8547
        %v8980 = vpack.c.b16 %v8564, %v8548
        %v8981 = vpack.c.b16 %v8565, %v8549
        %v8982 = vpack.c.b16 %v8566, %v8550
        %v8983 = vpack.c.b16 %v8567, %v8551
        %v8984 = vpack.c.b16 %v8568, %v8552
        %v8985 = vpack.c.b16 %v8569, %v8553
        %v8986 = vpack.c.b16 %v8570, %v8554
        %v8987 = vpack.c.b16 %v8571, %v8555
        %v8988 = vpack.c.b16 %v8588, %v8572
        %v8989 = vpack.c.b16 %v8589, %v8573
        %v8990 = vpack.c.b16 %v8590, %v8574
        %v8991 = vpack.c.b16 %v8591, %v8575
        %v8992 = vpack.c.b16 %v8592, %v8576
        %v8993 = vpack.c.b16 %v8593, %v8577
        %v8994 = vpack.c.b16 %v8594, %v8578
        %v8995 = vpack.c.b16 %v8595, %v8579
        %v8996 = vpack.c.b16 %v8596, %v8580
        %v8997 = vpack.c.b16 %v8597, %v8581
        %v8998 = vpack.c.b16 %v8598, %v8582
        %v8999 = vpack.c.b16 %v8599, %v8583
        %v9000 = vpack.c.b16 %v8600, %v8584
        %v9001 = vpack.c.b16 %v8601, %v8585
        %v9002 = vpack.c.b16 %v8602, %v8586
        %v9003 = vpack.c.b16 %v8603, %v8587
        %v9004 = vpack.c.b16 %v8620, %v8604
        %v9005 = vpack.c.b16 %v8621, %v8605
        %v9006 = vpack.c.b16 %v8622, %v8606
        %v9007 = vpack.c.b16 %v8623, %v8607
        %v9008 = vpack.c.b16 %v8624, %v8608
        %v9009 = vpack.c.b16 %v8625, %v8609
        %v9010 = vpack.c.b16 %v8626, %v8610
        %v9011 = vpack.c.b16 %v8627, %v8611
        %v9012 = vpack.c.b16 %v8628, %v8612
        %v9013 = vpack.c.b16 %v8629, %v8613
        %v9014 = vpack.c.b16 %v8630, %v8614
        %v9015 = vpack.c.b16 %v8631, %v8615
        %v9016 = vpack.c.b16 %v8632, %v8616
        %v9017 = vpack.c.b16 %v8633, %v8617
        %v9018 = vpack.c.b16 %v8634, %v8618
        %v9019 = vpack.c.b16 %v8635, %v8619
        %v9020 = vpack.c.b16 %v8652, %v8636
        %v9021 = vpack.c.b16 %v8653, %v8637
        %v9022 = vpack.c.b16 %v8654, %v8638
        %v9023 = vpack.c.b16 %v8655, %v8639
        %v9024 = vpack.c.b16 %v8656, %v8640
        %v9025 = vpack.c.b16 %v8657, %v8641
        %v9026 = vpack.c.b16 %v8658, %v8642
        %v9027 = vpack.c.b16 %v8659, %v8643
        %v9028 = vpack.c.b16 %v8660, %v8644
        %v9029 = vpack.c.b16 %v8661, %v8645
        %v9030 = vpack.c.b16 %v8662, %v8646
        %v9031 = vpack.c.b16 %v8663, %v8647
        %v9032 = vpack.c.b16 %v8664, %v8648
        %v9033 = vpack.c.b16 %v8665, %v8649
        %v9034 = vpack.c.b16 %v8666, %v8650
        %v9035 = vpack.c.b16 %v8667, %v8651
        %v9036 = vpack.c.b16 %v8684, %v8668
        %v9037 = vpack.c.b16 %v8685, %v8669
        %v9038 = vpack.c.b16 %v8686, %v8670
        %v9039 = vpack.c.b16 %v8687, %v8671
        %v9040 = vpack.c.b16 %v8688, %v8672
        %v9041 = vpack.c.b16 %v8689, %v8673
        %v9042 = vpack.c.b16 %v8690, %v8674
        %v9043 = vpack.c.b16 %v8691, %v8675
        %v9044 = vpack.c.b16 %v8692, %v8676
        %v9045 = vpack.c.b16 %v8693, %v8677
        %v9046 = vpack.c.b16 %v8694, %v8678
        %v9047 = vpack.c.b16 %v8695, %v8679
        %v9048 = vpack.c.b16 %v8696, %v8680
        %v9049 = vpack.c.b16 %v8697, %v8681
        %v9050 = vpack.c.b16 %v8698, %v8682
        %v9051 = vpack.c.b16 %v8699, %v8683
        %v9052 = vpack.c.b16 %v8716, %v8700
        %v9053 = vpack.c.b16 %v8717, %v8701
        %v9054 = vpack.c.b16 %v8718, %v8702
        %v9055 = vpack.c.b16 %v8719, %v8703
        %v9056 = vpack.c.b16 %v8720, %v8704
        %v9057 = vpack.c.b16 %v8721, %v8705
        %v9058 = vpack.c.b16 %v8722, %v8706
        %v9059 = vpack.c.b16 %v8723, %v8707
        %v9060 = vpack.c.b16 %v8724, %v8708
        %v9061 = vpack.c.b16 %v8725, %v8709
        %v9062 = vpack.c.b16 %v8726, %v8710
        %v9063 = vpack.c.b16 %v8727, %v8711
        %v9064 = vpack.c.b16 %v8728, %v8712
        %v9065 = vpack.c.b16 %v8729, %v8713
        %v9066 = vpack.c.b16 %v8730, %v8714
        %v9067 = vpack.c.b16 %v8731, %v8715
        %v9068 = vpack.c.b16 %v8748, %v8732
        %v9069 = vpack.c.b16 %v8749, %v8733
        %v9070 = vpack.c.b16 %v8750, %v8734
        %v9071 = vpack.c.b16 %v8751, %v8735
        %v9072 = vpack.c.b16 %v8752, %v8736
        %v9073 = vpack.c.b16 %v8753, %v8737
        %v9074 = vpack.c.b16 %v8754, %v8738
        %v9075 = vpack.c.b16 %v8755, %v8739
        %v9076 = vpack.c.b16 %v8756, %v8740
        %v9077 = vpack.c.b16 %v8757, %v8741
        %v9078 = vpack.c.b16 %v8758, %v8742
        %v9079 = vpack.c.b16 %v8759, %v8743
        %v9080 = vpack.c.b16 %v8760, %v8744
        %v9081 = vpack.c.b16 %v8761, %v8745
        %v9082 = vpack.c.b16 %v8762, %v8746
        %v9083 = vpack.c.b16 %v8763, %v8747
        %v9084 = vpack.c.b16 %v8780, %v8764
        %v9085 = vpack.c.b16 %v8781, %v8765
        %v9086 = vpack.c.b16 %v8782, %v8766
        %v9087 = vpack.c.b16 %v8783, %v8767
        %v9088 = vpack.c.b16 %v8784, %v8768
        %v9089 = vpack.c.b16 %v8785, %v8769
        %v9090 = vpack.c.b16 %v8786, %v8770
        %v9091 = vpack.c.b16 %v8787, %v8771
        %v9092 = vpack.c.b16 %v8788, %v8772
        %v9093 = vpack.c.b16 %v8789, %v8773
        %v9094 = vpack.c.b16 %v8790, %v8774
        %v9095 = vpack.c.b16 %v8791, %v8775
        %v9096 = vpack.c.b16 %v8792, %v8776
        %v9097 = vpack.c.b16 %v8793, %v8777
        %v9098 = vpack.c.b16 %v8794, %v8778
        %v9099 = vpack.c.b16 %v8795, %v8779
        %v9100 = vpack.c.b16 %v8812, %v8796
        %v9101 = vpack.c.b16 %v8813, %v8797
        %v9102 = vpack.c.b16 %v8814, %v8798
        %v9103 = vpack.c.b16 %v8815, %v8799
        %v9104 = vpack.c.b16 %v8816, %v8800
        %v9105 = vpack.c.b16 %v8817, %v8801
        %v9106 = vpack.c.b16 %v8818, %v8802
        %v9107 = vpack.c.b16 %v8819, %v8803
        %v9108 = vpack.c.b16 %v8820, %v8804
        %v9109 = vpack.c.b16 %v8821, %v8805
        %v9110 = vpack.c.b16 %v8822, %v8806
        %v9111 = vpack.c.b16 %v8823, %v8807
        %v9112 = vpack.c.b16 %v8824, %v8808
        %v9113 = vpack.c.b16 %v8825, %v8809
        %v9114 = vpack.c.b16 %v8826, %v8810
        %v9115 = vpack.c.b16 %v8827, %v8811
        %v9116 = vpack.c.b16 %v8844, %v8828
        %v9117 = vpack.c.b16 %v8845, %v8829
        %v9118 = vpack.c.b16 %v8846, %v8830
        %v9119 = vpack.c.b16 %v8847, %v8831
        %v9120 = vpack.c.b16 %v8848, %v8832
        %v9121 = vpack.c.b16 %v8849, %v8833
        %v9122 = vpack.c.b16 %v8850, %v8834
        %v9123 = vpack.c.b16 %v8851, %v8835
        %v9124 = vpack.c.b16 %v8852, %v8836
        %v9125 = vpack.c.b16 %v8853, %v8837
        %v9126 = vpack.c.b16 %v8854, %v8838
        %v9127 = vpack.c.b16 %v8855, %v8839
        %v9128 = vpack.c.b16 %v8856, %v8840
        %v9129 = vpack.c.b16 %v8857, %v8841
        %v9130 = vpack.c.b16 %v8858, %v8842
        %v9131 = vpack.c.b16 %v8859, %v8843
        %v9132 = vpack.c.b16 %v8876, %v8860
        %v9133 = vpack.c.b16 %v8877, %v8861
        %v9134 = vpack.c.b16 %v8878, %v8862
        %v9135 = vpack.c.b16 %v8879, %v8863
        %v9136 = vpack.c.b16 %v8880, %v8864
        %v9137 = vpack.c.b16 %v8881, %v8865
        %v9138 = vpack.c.b16 %v8882, %v8866
        %v9139 = vpack.c.b16 %v8883, %v8867
        %v9140 = vpack.c.b16 %v8884, %v8868
        %v9141 = vpack.c.b16 %v8885, %v8869
        %v9142 = vpack.c.b16 %v8886, %v8870
        %v9143 = vpack.c.b16 %v8887, %v8871
        %v9144 = vpack.c.b16 %v8888, %v8872
        %v9145 = vpack.c.b16 %v8889, %v8873
        %v9146 = vpack.c.b16 %v8890, %v8874
        %v9147 = vpack.c.b16 %v8891, %v8875
        %9404 = vmatprep.subr.bf16.mxu0 %v8893
        %9405 = vmatpush1.bf16.msra.mxu0 %v8892
        %9406 = vmatprep.subr.bf16.mxu0 %v8909
        %9407 = vmatpush1.bf16.msra.mxu0 %v8908
        %9408 = vmatprep.subr.bf16.mxu0 %v8925
        %9409 = vmatpush1.bf16.msra.mxu0 %v8924
        %9410 = vmatprep.subr.bf16.mxu0 %v8941
        %9411 = vmatpush1.bf16.msra.mxu0 %v8940
        %9412 = vmatprep.subr.bf16.mxu0 %v8957
        %9413 = vmatpush1.bf16.msra.mxu0 %v8956
        %9414 = vmatprep.subr.bf16.mxu0 %v8973
        %9415 = vmatpush1.bf16.msra.mxu0 %v8972
        %9416 = vmatprep.subr.bf16.mxu0 %v8989
        %9417 = vmatpush1.bf16.msra.mxu0 %v8988
        %9418 = vmatprep.subr.bf16.mxu0 %v9005
        %9419 = vmatpush1.bf16.msra.mxu0 %v9004
        %9420 = vmatprep.subr.bf16.mxu0 %v9021
        %9421 = vmatpush1.bf16.msra.mxu0 %v9020
        %9422 = vmatprep.subr.bf16.mxu0 %v9037
        %9423 = vmatpush1.bf16.msra.mxu0 %v9036
        %9424 = vmatprep.subr.bf16.mxu0 %v9053
        %9425 = vmatpush1.bf16.msra.mxu0 %v9052
        %9426 = vmatprep.subr.bf16.mxu0 %v9069
        %9427 = vmatpush1.bf16.msra.mxu0 %v9068
        %9428 = vmatprep.subr.bf16.mxu0 %v9085
        %9429 = vmatpush1.bf16.msra.mxu0 %v9084
        %9430 = vmatprep.subr.bf16.mxu0 %v9101
        %9431 = vmatpush1.bf16.msra.mxu0 %v9100
        %9432 = vmatprep.subr.bf16.mxu0 %v9117
        %9433 = vmatpush1.bf16.msra.mxu0 %v9116
        %9434 = vmatprep.subr.bf16.mxu0 %v9133
        %9435 = vmatpush1.bf16.msra.mxu0 %v9132
        %9436 = vmatprep.mubr.bf16.mxu0 %v8121
        %9437 = vmatmul.mubr.bf16.gmra.mrb[0].mxu0 %v8114
        %v9438 = vpop.f32.mrb[0].mxu0
        %v9439 = vadd.f32 %v8022, %v9438
        %v9440 = vpop.f32.mrb[0].mxu0
        %v9441 = vadd.f32 %v8026, %v9440
        %v9442 = vpop.f32.mrb[0].mxu0
        %v9443 = vpop.f32.mrb[0].mxu0
        %9444 = vdwg.mxu0
        %9445 = vmatprep.subr.bf16.mxu0 %v8895
        %9446 = vmatpush1.bf16.msra.mxu0 %v8894
        %9447 = vmatprep.subr.bf16.mxu0 %v8911
        %9448 = vmatpush1.bf16.msra.mxu0 %v8910
        %9449 = vmatprep.subr.bf16.mxu0 %v8927
        %9450 = vmatpush1.bf16.msra.mxu0 %v8926
        %9451 = vmatprep.subr.bf16.mxu0 %v8943
        %9452 = vmatpush1.bf16.msra.mxu0 %v8942
        %9453 = vmatprep.subr.bf16.mxu0 %v8959
        %9454 = vmatpush1.bf16.msra.mxu0 %v8958
        %9455 = vmatprep.subr.bf16.mxu0 %v8975
        %9456 = vmatpush1.bf16.msra.mxu0 %v8974
        %9457 = vmatprep.subr.bf16.mxu0 %v8991
        %9458 = vmatpush1.bf16.msra.mxu0 %v8990
        %9459 = vmatprep.subr.bf16.mxu0 %v9007
        %9460 = vmatpush1.bf16.msra.mxu0 %v9006
        %9461 = vmatprep.subr.bf16.mxu0 %v9023
        %9462 = vmatpush1.bf16.msra.mxu0 %v9022
        %9463 = vmatprep.subr.bf16.mxu0 %v9039
        %9464 = vmatpush1.bf16.msra.mxu0 %v9038
        %9465 = vmatprep.subr.bf16.mxu0 %v9055
        %9466 = vmatpush1.bf16.msra.mxu0 %v9054
        %9467 = vmatprep.subr.bf16.mxu0 %v9071
        %9468 = vmatpush1.bf16.msra.mxu0 %v9070
        %9469 = vmatprep.subr.bf16.mxu0 %v9087
        %9470 = vmatpush1.bf16.msra.mxu0 %v9086
        %9471 = vmatprep.subr.bf16.mxu0 %v9103
        %9472 = vmatpush1.bf16.msra.mxu0 %v9102
        %9473 = vmatprep.subr.bf16.mxu0 %v9119
        %9474 = vmatpush1.bf16.msra.mxu0 %v9118
        %9475 = vmatprep.subr.bf16.mxu0 %v9135
        %9476 = vmatpush1.bf16.msra.mxu0 %v9134
        %9477 = vmatprep.mubr.bf16.mxu0 %v8121
        %9478 = vmatmul.mubr.bf16.gmra.mrb[0].mxu0 %v8114
        %v9479 = vpop.f32.mrb[0].mxu0
        %v9480 = vadd.f32 %v8030, %v9479
        %v9481 = vpop.f32.mrb[0].mxu0
        %v9482 = vadd.f32 %v8034, %v9481
        %v9483 = vpop.f32.mrb[0].mxu0
        %v9484 = vpop.f32.mrb[0].mxu0
        %9485 = vdwg.mxu0
        %9486 = vmatprep.subr.bf16.mxu0 %v8897
        %9487 = vmatpush1.bf16.msra.mxu0 %v8896
        %9488 = vmatprep.subr.bf16.mxu0 %v8913
        %9489 = vmatpush1.bf16.msra.mxu0 %v8912
        %9490 = vmatprep.subr.bf16.mxu0 %v8929
        %9491 = vmatpush1.bf16.msra.mxu0 %v8928
        %9492 = vmatprep.subr.bf16.mxu0 %v8945
        %9493 = vmatpush1.bf16.msra.mxu0 %v8944
        %9494 = vmatprep.subr.bf16.mxu0 %v8961
        %9495 = vmatpush1.bf16.msra.mxu0 %v8960
        %9496 = vmatprep.subr.bf16.mxu0 %v8977
        %9497 = vmatpush1.bf16.msra.mxu0 %v8976
        %9498 = vmatprep.subr.bf16.mxu0 %v8993
        %9499 = vmatpush1.bf16.msra.mxu0 %v8992
        %9500 = vmatprep.subr.bf16.mxu0 %v9009
        %9501 = vmatpush1.bf16.msra.mxu0 %v9008
        %9502 = vmatprep.subr.bf16.mxu0 %v9025
        %9503 = vmatpush1.bf16.msra.mxu0 %v9024
        %9504 = vmatprep.subr.bf16.mxu0 %v9041
        %9505 = vmatpush1.bf16.msra.mxu0 %v9040
        %9506 = vmatprep.subr.bf16.mxu0 %v9057
        %9507 = vmatpush1.bf16.msra.mxu0 %v9056
        %9508 = vmatprep.subr.bf16.mxu0 %v9073
        %9509 = vmatpush1.bf16.msra.mxu0 %v9072
        %9510 = vmatprep.subr.bf16.mxu0 %v9089
        %9511 = vmatpush1.bf16.msra.mxu0 %v9088
        %9512 = vmatprep.subr.bf16.mxu0 %v9105
        %9513 = vmatpush1.bf16.msra.mxu0 %v9104
        %9514 = vmatprep.subr.bf16.mxu0 %v9121
        %9515 = vmatpush1.bf16.msra.mxu0 %v9120
        %9516 = vmatprep.subr.bf16.mxu0 %v9137
        %9517 = vmatpush1.bf16.msra.mxu0 %v9136
        %9518 = vmatprep.mubr.bf16.mxu0 %v8121
        %9519 = vmatmul.mubr.bf16.gmra.mrb[0].mxu0 %v8114
        %v9520 = vpop.f32.mrb[0].mxu0
        %v9521 = vadd.f32 %v8038, %v9520
        %v9522 = vpop.f32.mrb[0].mxu0
        %v9523 = vadd.f32 %v8042, %v9522
        %v9524 = vpop.f32.mrb[0].mxu0
        %v9525 = vpop.f32.mrb[0].mxu0
        %9526 = vdwg.mxu0
        %9527 = vmatprep.subr.bf16.mxu0 %v8899
        %9528 = vmatpush1.bf16.msra.mxu0 %v8898
        %9529 = vmatprep.subr.bf16.mxu0 %v8915
        %9530 = vmatpush1.bf16.msra.mxu0 %v8914
        %9531 = vmatprep.subr.bf16.mxu0 %v8931
        %9532 = vmatpush1.bf16.msra.mxu0 %v8930
        %9533 = vmatprep.subr.bf16.mxu0 %v8947
        %9534 = vmatpush1.bf16.msra.mxu0 %v8946
        %9535 = vmatprep.subr.bf16.mxu0 %v8963
        %9536 = vmatpush1.bf16.msra.mxu0 %v8962
        %9537 = vmatprep.subr.bf16.mxu0 %v8979
        %9538 = vmatpush1.bf16.msra.mxu0 %v8978
        %9539 = vmatprep.subr.bf16.mxu0 %v8995
        %9540 = vmatpush1.bf16.msra.mxu0 %v8994
        %9541 = vmatprep.subr.bf16.mxu0 %v9011
        %9542 = vmatpush1.bf16.msra.mxu0 %v9010
        %9543 = vmatprep.subr.bf16.mxu0 %v9027
        %9544 = vmatpush1.bf16.msra.mxu0 %v9026
        %9545 = vmatprep.subr.bf16.mxu0 %v9043
        %9546 = vmatpush1.bf16.msra.mxu0 %v9042
        %9547 = vmatprep.subr.bf16.mxu0 %v9059
        %9548 = vmatpush1.bf16.msra.mxu0 %v9058
        %9549 = vmatprep.subr.bf16.mxu0 %v9075
        %9550 = vmatpush1.bf16.msra.mxu0 %v9074
        %9551 = vmatprep.subr.bf16.mxu0 %v9091
        %9552 = vmatpush1.bf16.msra.mxu0 %v9090
        %9553 = vmatprep.subr.bf16.mxu0 %v9107
        %9554 = vmatpush1.bf16.msra.mxu0 %v9106
        %9555 = vmatprep.subr.bf16.mxu0 %v9123
        %9556 = vmatpush1.bf16.msra.mxu0 %v9122
        %9557 = vmatprep.subr.bf16.mxu0 %v9139
        %9558 = vmatpush1.bf16.msra.mxu0 %v9138
        %9559 = vmatprep.mubr.bf16.mxu0 %v8121
        %9560 = vmatmul.mubr.bf16.gmra.mrb[0].mxu0 %v8114
        %v9561 = vpop.f32.mrb[0].mxu0
        %v9562 = vadd.f32 %v8046, %v9561
        %v9563 = vpop.f32.mrb[0].mxu0
        %v9564 = vadd.f32 %v8050, %v9563
        %v9565 = vpop.f32.mrb[0].mxu0
        %v9566 = vpop.f32.mrb[0].mxu0
        %9567 = vdwg.mxu0
        %9568 = vmatprep.subr.bf16.mxu0 %v8901
        %9569 = vmatpush1.bf16.msra.mxu0 %v8900
        %9570 = vmatprep.subr.bf16.mxu0 %v8917
        %9571 = vmatpush1.bf16.msra.mxu0 %v8916
        %9572 = vmatprep.subr.bf16.mxu0 %v8933
        %9573 = vmatpush1.bf16.msra.mxu0 %v8932
        %9574 = vmatprep.subr.bf16.mxu0 %v8949
        %9575 = vmatpush1.bf16.msra.mxu0 %v8948
        %9576 = vmatprep.subr.bf16.mxu0 %v8965
        %9577 = vmatpush1.bf16.msra.mxu0 %v8964
        %9578 = vmatprep.subr.bf16.mxu0 %v8981
        %9579 = vmatpush1.bf16.msra.mxu0 %v8980
        %9580 = vmatprep.subr.bf16.mxu0 %v8997
        %9581 = vmatpush1.bf16.msra.mxu0 %v8996
        %9582 = vmatprep.subr.bf16.mxu0 %v9013
        %9583 = vmatpush1.bf16.msra.mxu0 %v9012
        %9584 = vmatprep.subr.bf16.mxu0 %v9029
        %9585 = vmatpush1.bf16.msra.mxu0 %v9028
        %9586 = vmatprep.subr.bf16.mxu0 %v9045
        %9587 = vmatpush1.bf16.msra.mxu0 %v9044
        %9588 = vmatprep.subr.bf16.mxu0 %v9061
        %9589 = vmatpush1.bf16.msra.mxu0 %v9060
        %9590 = vmatprep.subr.bf16.mxu0 %v9077
        %9591 = vmatpush1.bf16.msra.mxu0 %v9076
        %9592 = vmatprep.subr.bf16.mxu0 %v9093
        %9593 = vmatpush1.bf16.msra.mxu0 %v9092
        %9594 = vmatprep.subr.bf16.mxu0 %v9109
        %9595 = vmatpush1.bf16.msra.mxu0 %v9108
        %9596 = vmatprep.subr.bf16.mxu0 %v9125
        %9597 = vmatpush1.bf16.msra.mxu0 %v9124
        %9598 = vmatprep.subr.bf16.mxu0 %v9141
        %9599 = vmatpush1.bf16.msra.mxu0 %v9140
        %9600 = vmatprep.mubr.bf16.mxu0 %v8121
        %9601 = vmatmul.mubr.bf16.gmra.mrb[0].mxu0 %v8114
        %v9602 = vpop.f32.mrb[0].mxu0
        %v9603 = vadd.f32 %v8054, %v9602
        %v9604 = vpop.f32.mrb[0].mxu0
        %v9605 = vadd.f32 %v8058, %v9604
        %v9606 = vpop.f32.mrb[0].mxu0
        %v9607 = vpop.f32.mrb[0].mxu0
        %9608 = vdwg.mxu0
        %9609 = vmatprep.subr.bf16.mxu0 %v8903
        %9610 = vmatpush1.bf16.msra.mxu0 %v8902
        %9611 = vmatprep.subr.bf16.mxu0 %v8919
        %9612 = vmatpush1.bf16.msra.mxu0 %v8918
        %9613 = vmatprep.subr.bf16.mxu0 %v8935
        %9614 = vmatpush1.bf16.msra.mxu0 %v8934
        %9615 = vmatprep.subr.bf16.mxu0 %v8951
        %9616 = vmatpush1.bf16.msra.mxu0 %v8950
        %9617 = vmatprep.subr.bf16.mxu0 %v8967
        %9618 = vmatpush1.bf16.msra.mxu0 %v8966
        %9619 = vmatprep.subr.bf16.mxu0 %v8983
        %9620 = vmatpush1.bf16.msra.mxu0 %v8982
        %9621 = vmatprep.subr.bf16.mxu0 %v8999
        %9622 = vmatpush1.bf16.msra.mxu0 %v8998
        %9623 = vmatprep.subr.bf16.mxu0 %v9015
        %9624 = vmatpush1.bf16.msra.mxu0 %v9014
        %9625 = vmatprep.subr.bf16.mxu0 %v9031
        %9626 = vmatpush1.bf16.msra.mxu0 %v9030
        %9627 = vmatprep.subr.bf16.mxu0 %v9047
        %9628 = vmatpush1.bf16.msra.mxu0 %v9046
        %9629 = vmatprep.subr.bf16.mxu0 %v9063
        %9630 = vmatpush1.bf16.msra.mxu0 %v9062
        %9631 = vmatprep.subr.bf16.mxu0 %v9079
        %9632 = vmatpush1.bf16.msra.mxu0 %v9078
        %9633 = vmatprep.subr.bf16.mxu0 %v9095
        %9634 = vmatpush1.bf16.msra.mxu0 %v9094
        %9635 = vmatprep.subr.bf16.mxu0 %v9111
        %9636 = vmatpush1.bf16.msra.mxu0 %v9110
        %9637 = vmatprep.subr.bf16.mxu0 %v9127
        %9638 = vmatpush1.bf16.msra.mxu0 %v9126
        %9639 = vmatprep.subr.bf16.mxu0 %v9143
        %9640 = vmatpush1.bf16.msra.mxu0 %v9142
        %9641 = vmatprep.mubr.bf16.mxu0 %v8121
        %9642 = vmatmul.mubr.bf16.gmra.mrb[0].mxu0 %v8114
        %v9643 = vpop.f32.mrb[0].mxu0
        %v9644 = vadd.f32 %v8062, %v9643
        %v9645 = vpop.f32.mrb[0].mxu0
        %v9646 = vadd.f32 %v8066, %v9645
        %v9647 = vpop.f32.mrb[0].mxu0
        %v9648 = vpop.f32.mrb[0].mxu0
        %9649 = vdwg.mxu0
        %9650 = vmatprep.subr.bf16.mxu0 %v8905
        %9651 = vmatpush1.bf16.msra.mxu0 %v8904
        %9652 = vmatprep.subr.bf16.mxu0 %v8921
        %9653 = vmatpush1.bf16.msra.mxu0 %v8920
        %9654 = vmatprep.subr.bf16.mxu0 %v8937
        %9655 = vmatpush1.bf16.msra.mxu0 %v8936
        %9656 = vmatprep.subr.bf16.mxu0 %v8953
        %9657 = vmatpush1.bf16.msra.mxu0 %v8952
        %9658 = vmatprep.subr.bf16.mxu0 %v8969
        %9659 = vmatpush1.bf16.msra.mxu0 %v8968
        %9660 = vmatprep.subr.bf16.mxu0 %v8985
        %9661 = vmatpush1.bf16.msra.mxu0 %v8984
        %9662 = vmatprep.subr.bf16.mxu0 %v9001
        %9663 = vmatpush1.bf16.msra.mxu0 %v9000
        %9664 = vmatprep.subr.bf16.mxu0 %v9017
        %9665 = vmatpush1.bf16.msra.mxu0 %v9016
        %9666 = vmatprep.subr.bf16.mxu0 %v9033
        %9667 = vmatpush1.bf16.msra.mxu0 %v9032
        %9668 = vmatprep.subr.bf16.mxu0 %v9049
        %9669 = vmatpush1.bf16.msra.mxu0 %v9048
        %9670 = vmatprep.subr.bf16.mxu0 %v9065
        %9671 = vmatpush1.bf16.msra.mxu0 %v9064
        %9672 = vmatprep.subr.bf16.mxu0 %v9081
        %9673 = vmatpush1.bf16.msra.mxu0 %v9080
        %9674 = vmatprep.subr.bf16.mxu0 %v9097
        %9675 = vmatpush1.bf16.msra.mxu0 %v9096
        %9676 = vmatprep.subr.bf16.mxu0 %v9113
        %9677 = vmatpush1.bf16.msra.mxu0 %v9112
        %9678 = vmatprep.subr.bf16.mxu0 %v9129
        %9679 = vmatpush1.bf16.msra.mxu0 %v9128
        %9680 = vmatprep.subr.bf16.mxu0 %v9145
        %9681 = vmatpush1.bf16.msra.mxu0 %v9144
        %9682 = vmatprep.mubr.bf16.mxu0 %v8121
        %9683 = vmatmul.mubr.bf16.gmra.mrb[0].mxu0 %v8114
        %v9684 = vpop.f32.mrb[0].mxu0
        %v9685 = vadd.f32 %v8070, %v9684
        %v9686 = vpop.f32.mrb[0].mxu0
        %v9687 = vadd.f32 %v8074, %v9686
        %v9688 = vpop.f32.mrb[0].mxu0
        %v9689 = vpop.f32.mrb[0].mxu0
        %9690 = vdwg.mxu0
        %9691 = vmatprep.subr.bf16.mxu0 %v8907
        %9692 = vmatpush1.bf16.msra.mxu0 %v8906
        %9693 = vmatprep.subr.bf16.mxu0 %v8923
        %9694 = vmatpush1.bf16.msra.mxu0 %v8922
        %9695 = vmatprep.subr.bf16.mxu0 %v8939
        %9696 = vmatpush1.bf16.msra.mxu0 %v8938
        %9697 = vmatprep.subr.bf16.mxu0 %v8955
        %9698 = vmatpush1.bf16.msra.mxu0 %v8954
        %9699 = vmatprep.subr.bf16.mxu0 %v8971
        %9700 = vmatpush1.bf16.msra.mxu0 %v8970
        %9701 = vmatprep.subr.bf16.mxu0 %v8987
        %9702 = vmatpush1.bf16.msra.mxu0 %v8986
        %9703 = vmatprep.subr.bf16.mxu0 %v9003
        %9704 = vmatpush1.bf16.msra.mxu0 %v9002
        %9705 = vmatprep.subr.bf16.mxu0 %v9019
        %9706 = vmatpush1.bf16.msra.mxu0 %v9018
        %9707 = vmatprep.subr.bf16.mxu0 %v9035
        %9708 = vmatpush1.bf16.msra.mxu0 %v9034
        %9709 = vmatprep.subr.bf16.mxu0 %v9051
        %9710 = vmatpush1.bf16.msra.mxu0 %v9050
        %9711 = vmatprep.subr.bf16.mxu0 %v9067
        %9712 = vmatpush1.bf16.msra.mxu0 %v9066
        %9713 = vmatprep.subr.bf16.mxu0 %v9083
        %9714 = vmatpush1.bf16.msra.mxu0 %v9082
        %9715 = vmatprep.subr.bf16.mxu0 %v9099
        %9716 = vmatpush1.bf16.msra.mxu0 %v9098
        %9717 = vmatprep.subr.bf16.mxu0 %v9115
        %9718 = vmatpush1.bf16.msra.mxu0 %v9114
        %9719 = vmatprep.subr.bf16.mxu0 %v9131
        %9720 = vmatpush1.bf16.msra.mxu0 %v9130
        %9721 = vmatprep.subr.bf16.mxu0 %v9147
        %9722 = vmatpush1.bf16.msra.mxu0 %v9146
        %9723 = vmatprep.mubr.bf16.mxu0 %v8121
        %9724 = vmatmul.mubr.bf16.gmra.mrb[0].mxu0 %v8114
        %v9725 = vpop.f32.mrb[0].mxu0
        %v9726 = vadd.f32 %v8078, %v9725
        %v9727 = vpop.f32.mrb[0].mxu0
        %v9728 = vadd.f32 %v8082, %v9727
        %v9729 = vpop.f32.mrb[0].mxu0
        %v9730 = vpop.f32.mrb[0].mxu0
        %9731 = vdwg.mxu0
        // Predicated region
        $region165: #{forward.1} parent=91 // pred_check
          %p9732 = pneg %p828
        $region166: #{forward.1} parent=91 // pred_check_branch
          %9734 = sbr.rel (%p9732) target = $region168
        $region167: #{forward.1} parent=91 // pred_region
          %v9751 = vcombine.low %v9439, %v9441
          %v9752 = vcombine.low %v9480, %v9482
          %v9754 = vunpack.c.l.s4 1983009808
          %v9755 = vunpack.c.0.s8 %v9754
          %v9756 = vlaneseq
          %v9757 = vshrl.u32 %v9756, 7
          %v9758 = vsub.s32 %v9755, %v9757
          %v9759 = vrot.slane %v9751, %v9758
          %v9761 = vunpack.c.l.s4 1983009808
          %v9762 = vunpack.c.0.s8 %v9761
          %v9763 = vlaneseq
          %v9764 = vshrl.u32 %v9763, 7
          %v9765 = vsub.s32 %v9762, %v9764
          %v9766 = vrot.slane %v9752, %v9765
          %v9767 = vcombine.low %v9759, %v9766
          %v9768 = vcombine.low %v9521, %v9523
          %v9769 = vcombine.low %v9562, %v9564
          %v9771 = vunpack.c.l.s4 1983009808
          %v9772 = vunpack.c.0.s8 %v9771
          %v9773 = vlaneseq
          %v9774 = vshrl.u32 %v9773, 7
          %v9775 = vsub.s32 %v9772, %v9774
          %v9776 = vrot.slane %v9768, %v9775
          %v9778 = vunpack.c.l.s4 1983009808
          %v9779 = vunpack.c.0.s8 %v9778
          %v9780 = vlaneseq
          %v9781 = vshrl.u32 %v9780, 7
          %v9782 = vsub.s32 %v9779, %v9781
          %v9783 = vrot.slane %v9769, %v9782
          %v9784 = vcombine.low %v9776, %v9783
          %v9785 = vcombine.low %v9603, %v9605
          %v9786 = vcombine.low %v9644, %v9646
          %v9788 = vunpack.c.l.s4 1983009808
          %v9789 = vunpack.c.0.s8 %v9788
          %v9790 = vlaneseq
          %v9791 = vshrl.u32 %v9790, 7
          %v9792 = vsub.s32 %v9789, %v9791
          %v9793 = vrot.slane %v9785, %v9792
          %v9795 = vunpack.c.l.s4 1983009808
          %v9796 = vunpack.c.0.s8 %v9795
          %v9797 = vlaneseq
          %v9798 = vshrl.u32 %v9797, 7
          %v9799 = vsub.s32 %v9796, %v9798
          %v9800 = vrot.slane %v9786, %v9799
          %v9801 = vcombine.low %v9793, %v9800
          %v9802 = vcombine.low %v9685, %v9687
          %v9803 = vcombine.low %v9726, %v9728
          %v9805 = vunpack.c.l.s4 1983009808
          %v9806 = vunpack.c.0.s8 %v9805
          %v9807 = vlaneseq
          %v9808 = vshrl.u32 %v9807, 7
          %v9809 = vsub.s32 %v9806, %v9808
          %v9810 = vrot.slane %v9802, %v9809
          %v9812 = vunpack.c.l.s4 1983009808
          %v9813 = vunpack.c.0.s8 %v9812
          %v9814 = vlaneseq
          %v9815 = vshrl.u32 %v9814, 7
          %v9816 = vsub.s32 %v9813, %v9815
          %v9817 = vrot.slane %v9803, %v9816
          %v9818 = vcombine.low %v9810, %v9817
          %9823 = vst [vmem:[#allocation30] sm:$0xff] %v9767
          %9824 = vst [vmem:[#allocation30 + $0x8] sm:$0xff] %v9784
          %9825 = vst [vmem:[#allocation30 + $0x10] sm:$0xff] %v9801
          %9826 = vst [vmem:[#allocation30 + $0x18] sm:$0xff] %v9818
        $region168: #{forward.1} parent=91 // pred_fallthru
          _
        %p9827 = scmp.eq.s32.totalorder %s41, 1
        // Predicated region
        $region169: #{forward.1} parent=91 // pred_check
          %p9828 = pneg %p9827
        $region170: #{forward.1} parent=91 // pred_check_branch
          %9830 = sbr.rel (%p9828) target = $region172
        $region171: #{forward.1} parent=91 // pred_region
          %v9847 = vcombine.low %v9439, %v9441
          %v9848 = vcombine.low %v9480, %v9482
          %v9850 = vunpack.c.l.s4 1983009808
          %v9851 = vunpack.c.0.s8 %v9850
          %v9852 = vlaneseq
          %v9853 = vshrl.u32 %v9852, 7
          %v9854 = vsub.s32 %v9851, %v9853
          %v9855 = vrot.slane %v9847, %v9854
          %v9857 = vunpack.c.l.s4 1983009808
          %v9858 = vunpack.c.0.s8 %v9857
          %v9859 = vlaneseq
          %v9860 = vshrl.u32 %v9859, 7
          %v9861 = vsub.s32 %v9858, %v9860
          %v9862 = vrot.slane %v9848, %v9861
          %v9863 = vcombine.low %v9855, %v9862
          %v9864 = vcombine.low %v9521, %v9523
          %v9865 = vcombine.low %v9562, %v9564
          %v9867 = vunpack.c.l.s4 1983009808
          %v9868 = vunpack.c.0.s8 %v9867
          %v9869 = vlaneseq
          %v9870 = vshrl.u32 %v9869, 7
          %v9871 = vsub.s32 %v9868, %v9870
          %v9872 = vrot.slane %v9864, %v9871
          %v9874 = vunpack.c.l.s4 1983009808
          %v9875 = vunpack.c.0.s8 %v9874
          %v9876 = vlaneseq
          %v9877 = vshrl.u32 %v9876, 7
          %v9878 = vsub.s32 %v9875, %v9877
          %v9879 = vrot.slane %v9865, %v9878
          %v9880 = vcombine.low %v9872, %v9879
          %v9881 = vcombine.low %v9603, %v9605
          %v9882 = vcombine.low %v9644, %v9646
          %v9884 = vunpack.c.l.s4 1983009808
          %v9885 = vunpack.c.0.s8 %v9884
          %v9886 = vlaneseq
          %v9887 = vshrl.u32 %v9886, 7
          %v9888 = vsub.s32 %v9885, %v9887
          %v9889 = vrot.slane %v9881, %v9888
          %v9891 = vunpack.c.l.s4 1983009808
          %v9892 = vunpack.c.0.s8 %v9891
          %v9893 = vlaneseq
          %v9894 = vshrl.u32 %v9893, 7
          %v9895 = vsub.s32 %v9892, %v9894
          %v9896 = vrot.slane %v9882, %v9895
          %v9897 = vcombine.low %v9889, %v9896
          %v9898 = vcombine.low %v9685, %v9687
          %v9899 = vcombine.low %v9726, %v9728
          %v9901 = vunpack.c.l.s4 1983009808
          %v9902 = vunpack.c.0.s8 %v9901
          %v9903 = vlaneseq
          %v9904 = vshrl.u32 %v9903, 7
          %v9905 = vsub.s32 %v9902, %v9904
          %v9906 = vrot.slane %v9898, %v9905
          %v9908 = vunpack.c.l.s4 1983009808
          %v9909 = vunpack.c.0.s8 %v9908
          %v9910 = vlaneseq
          %v9911 = vshrl.u32 %v9910, 7
          %v9912 = vsub.s32 %v9909, %v9911
          %v9913 = vrot.slane %v9899, %v9912
          %v9914 = vcombine.low %v9906, %v9913
          %9919 = vst [vmem:[#allocation30 + $0x20] sm:$0xff] %v9863
          %9920 = vst [vmem:[#allocation30 + $0x28] sm:$0xff] %v9880
          %9921 = vst [vmem:[#allocation30 + $0x30] sm:$0xff] %v9897
          %9922 = vst [vmem:[#allocation30 + $0x38] sm:$0xff] %v9914
          %v9923 = vld [vmem:[#allocation30] sm:$0xff]
          %v9924 = vld [vmem:[#allocation30 + $0x8] sm:$0xff]
          %v9925 = vld [vmem:[#allocation30 + $0x10] sm:$0xff]
          %v9926 = vld [vmem:[#allocation30 + $0x18] sm:$0xff]
          %v9927 = vld [vmem:[#allocation30 + $0x20] sm:$0xff]
          %v9928 = vld [vmem:[#allocation30 + $0x28] sm:$0xff]
          %v9929 = vld [vmem:[#allocation30 + $0x30] sm:$0xff]
          %v9930 = vld [vmem:[#allocation30 + $0x38] sm:$0xff]
          %v9939 = vcombine.high %v9923, %v9923
          %v9941 = vunpack.c.l.s4 1983009808
          %v9942 = vunpack.c.0.s8 %v9941
          %v9943 = vlaneseq
          %v9944 = vshrl.u32 %v9943, 7
          %v9945 = vsub.s32 %v9942, %v9944
          %v9946 = vrot.slane %v9923, %v9945
          %v9948 = vunpack.c.l.s4 1983009808
          %v9949 = vunpack.c.0.s8 %v9948
          %v9950 = vlaneseq
          %v9951 = vshrl.u32 %v9950, 7
          %v9952 = vsub.s32 %v9949, %v9951
          %v9953 = vrot.slane %v9939, %v9952
          %v9954 = vcombine.high %v9946, %v9946
          %v9955 = vcombine.high %v9953, %v9953
          %v9956 = vcombine.high %v9924, %v9924
          %v9958 = vunpack.c.l.s4 1983009808
          %v9959 = vunpack.c.0.s8 %v9958
          %v9960 = vlaneseq
          %v9961 = vshrl.u32 %v9960, 7
          %v9962 = vsub.s32 %v9959, %v9961
          %v9963 = vrot.slane %v9924, %v9962
          %v9965 = vunpack.c.l.s4 1983009808
          %v9966 = vunpack.c.0.s8 %v9965
          %v9967 = vlaneseq
          %v9968 = vshrl.u32 %v9967, 7
          %v9969 = vsub.s32 %v9966, %v9968
          %v9970 = vrot.slane %v9956, %v9969
          %v9971 = vcombine.high %v9963, %v9963
          %v9972 = vcombine.high %v9970, %v9970
          %v9973 = vcombine.high %v9925, %v9925
          %v9975 = vunpack.c.l.s4 1983009808
          %v9976 = vunpack.c.0.s8 %v9975
          %v9977 = vlaneseq
          %v9978 = vshrl.u32 %v9977, 7
          %v9979 = vsub.s32 %v9976, %v9978
          %v9980 = vrot.slane %v9925, %v9979
          %v9982 = vunpack.c.l.s4 1983009808
          %v9983 = vunpack.c.0.s8 %v9982
          %v9984 = vlaneseq
          %v9985 = vshrl.u32 %v9984, 7
          %v9986 = vsub.s32 %v9983, %v9985
          %v9987 = vrot.slane %v9973, %v9986
          %v9988 = vcombine.high %v9980, %v9980
          %v9989 = vcombine.high %v9987, %v9987
          %v9990 = vcombine.high %v9926, %v9926
          %v9992 = vunpack.c.l.s4 1983009808
          %v9993 = vunpack.c.0.s8 %v9992
          %v9994 = vlaneseq
          %v9995 = vshrl.u32 %v9994, 7
          %v9996 = vsub.s32 %v9993, %v9995
          %v9997 = vrot.slane %v9926, %v9996
          %v9999 = vunpack.c.l.s4 1983009808
          %v10000 = vunpack.c.0.s8 %v9999
          %v10001 = vlaneseq
          %v10002 = vshrl.u32 %v10001, 7
          %v10003 = vsub.s32 %v10000, %v10002
          %v10004 = vrot.slane %v9990, %v10003
          %v10005 = vcombine.high %v9997, %v9997
          %v10006 = vcombine.high %v10004, %v10004
          %v10007 = vcombine.high %v9927, %v9927
          %v10009 = vunpack.c.l.s4 1983009808
          %v10010 = vunpack.c.0.s8 %v10009
          %v10011 = vlaneseq
          %v10012 = vshrl.u32 %v10011, 7
          %v10013 = vsub.s32 %v10010, %v10012
          %v10014 = vrot.slane %v9927, %v10013
          %v10016 = vunpack.c.l.s4 1983009808
          %v10017 = vunpack.c.0.s8 %v10016
          %v10018 = vlaneseq
          %v10019 = vshrl.u32 %v10018, 7
          %v10020 = vsub.s32 %v10017, %v10019
          %v10021 = vrot.slane %v10007, %v10020
          %v10022 = vcombine.high %v10014, %v10014
          %v10023 = vcombine.high %v10021, %v10021
          %v10024 = vcombine.high %v9928, %v9928
          %v10026 = vunpack.c.l.s4 1983009808
          %v10027 = vunpack.c.0.s8 %v10026
          %v10028 = vlaneseq
          %v10029 = vshrl.u32 %v10028, 7
          %v10030 = vsub.s32 %v10027, %v10029
          %v10031 = vrot.slane %v9928, %v10030
          %v10033 = vunpack.c.l.s4 1983009808
          %v10034 = vunpack.c.0.s8 %v10033
          %v10035 = vlaneseq
          %v10036 = vshrl.u32 %v10035, 7
          %v10037 = vsub.s32 %v10034, %v10036
          %v10038 = vrot.slane %v10024, %v10037
          %v10039 = vcombine.high %v10031, %v10031
          %v10040 = vcombine.high %v10038, %v10038
          %v10041 = vcombine.high %v9929, %v9929
          %v10043 = vunpack.c.l.s4 1983009808
          %v10044 = vunpack.c.0.s8 %v10043
          %v10045 = vlaneseq
          %v10046 = vshrl.u32 %v10045, 7
          %v10047 = vsub.s32 %v10044, %v10046
          %v10048 = vrot.slane %v9929, %v10047
          %v10050 = vunpack.c.l.s4 1983009808
          %v10051 = vunpack.c.0.s8 %v10050
          %v10052 = vlaneseq
          %v10053 = vshrl.u32 %v10052, 7
          %v10054 = vsub.s32 %v10051, %v10053
          %v10055 = vrot.slane %v10041, %v10054
          %v10056 = vcombine.high %v10048, %v10048
          %v10057 = vcombine.high %v10055, %v10055
          %v10058 = vcombine.high %v9930, %v9930
          %v10060 = vunpack.c.l.s4 1983009808
          %v10061 = vunpack.c.0.s8 %v10060
          %v10062 = vlaneseq
          %v10063 = vshrl.u32 %v10062, 7
          %v10064 = vsub.s32 %v10061, %v10063
          %v10065 = vrot.slane %v9930, %v10064
          %v10067 = vunpack.c.l.s4 1983009808
          %v10068 = vunpack.c.0.s8 %v10067
          %v10069 = vlaneseq
          %v10070 = vshrl.u32 %v10069, 7
          %v10071 = vsub.s32 %v10068, %v10070
          %v10072 = vrot.slane %v10058, %v10071
          %v10073 = vcombine.high %v10065, %v10065
          %v10074 = vcombine.high %v10072, %v10072
          %vm10107 = vcmask 1041408
          %v10108 = vsel %vm10107, %v9946, -inf
          %v10109 = vsel %vm10107, %v9954, -inf
          %v10110 = vsel %vm10107, %v9953, -inf
          %v10111 = vsel %vm10107, %v9955, -inf
          %v10112 = vsel %vm10107, %v9963, -inf
          %v10113 = vmax.f32 %v10108, %v10112
          %v10114 = vsel %vm10107, %v9971, -inf
          %v10115 = vmax.f32 %v10109, %v10114
          %v10116 = vsel %vm10107, %v9970, -inf
          %v10117 = vmax.f32 %v10110, %v10116
          %v10118 = vsel %vm10107, %v9972, -inf
          %v10119 = vmax.f32 %v10111, %v10118
          %v10120 = vsel %vm10107, %v9980, -inf
          %v10121 = vmax.f32 %v10113, %v10120
          %v10122 = vsel %vm10107, %v9988, -inf
          %v10123 = vmax.f32 %v10115, %v10122
          %v10124 = vsel %vm10107, %v9987, -inf
          %v10125 = vmax.f32 %v10117, %v10124
          %v10126 = vsel %vm10107, %v9989, -inf
          %v10127 = vmax.f32 %v10119, %v10126
          %v10128 = vsel %vm10107, %v9997, -inf
          %v10129 = vmax.f32 %v10121, %v10128
          %v10130 = vsel %vm10107, %v10005, -inf
          %v10131 = vmax.f32 %v10123, %v10130
          %v10132 = vsel %vm10107, %v10004, -inf
          %v10133 = vmax.f32 %v10125, %v10132
          %v10134 = vsel %vm10107, %v10006, -inf
          %v10135 = vmax.f32 %v10127, %v10134
          %v10136 = vsel %vm10107, %v10014, -inf
          %v10137 = vmax.f32 %v10129, %v10136
          %v10138 = vsel %vm10107, %v10022, -inf
          %v10139 = vmax.f32 %v10131, %v10138
          %v10140 = vsel %vm10107, %v10021, -inf
          %v10141 = vmax.f32 %v10133, %v10140
          %v10142 = vsel %vm10107, %v10023, -inf
          %v10143 = vmax.f32 %v10135, %v10142
          %v10144 = vsel %vm10107, %v10031, -inf
          %v10145 = vmax.f32 %v10137, %v10144
          %v10146 = vsel %vm10107, %v10039, -inf
          %v10147 = vmax.f32 %v10139, %v10146
          %v10148 = vsel %vm10107, %v10038, -inf
          %v10149 = vmax.f32 %v10141, %v10148
          %v10150 = vsel %vm10107, %v10040, -inf
          %v10151 = vmax.f32 %v10143, %v10150
          %v10152 = vsel %vm10107, %v10048, -inf
          %v10153 = vmax.f32 %v10145, %v10152
          %v10154 = vsel %vm10107, %v10056, -inf
          %v10155 = vmax.f32 %v10147, %v10154
          %v10156 = vsel %vm10107, %v10055, -inf
          %v10157 = vmax.f32 %v10149, %v10156
          %v10158 = vsel %vm10107, %v10057, -inf
          %v10159 = vmax.f32 %v10151, %v10158
          %v10160 = vsel %vm10107, %v10065, -inf
          %v10161 = vmax.f32 %v10153, %v10160
          %v10162 = vsel %vm10107, %v10073, -inf
          %v10163 = vmax.f32 %v10155, %v10162
          %v10164 = vsel %vm10107, %v10072, -inf
          %v10165 = vmax.f32 %v10157, %v10164
          %v10166 = vsel %vm10107, %v10074, -inf
          %v10167 = vmax.f32 %v10159, %v10166
          %v10168 = vmax.f32 %v10161, %v10163
          %v10169 = vmax.f32 %v10165, %v10167
          %v10170 = vmax.f32 %v10168, %v10169
          %10171 = vmax.xlane.f32.xlu0 %v10170
          %v10172 = vpop.xlane.xlu0 %10171
          %v10175 = vunpack.c.l.s4 269488144
          %v10176 = vunpack.c.0.s8 %v10175
          %v10177 = vlaneseq
          %v10178 = vshrl.u32 %v10177, 7
          %v10179 = vsub.s32 %v10176, %v10178
          %v10180 = vrot.slane %v10172, %v10179
          %v10182 = vsub.f32 %v9923, %v10180
          %v10183 = vsub.f32 %v9924, %v10180
          %v10184 = vsub.f32 %v9925, %v10180
          %v10185 = vsub.f32 %v9926, %v10180
          %v10186 = vsub.f32 %v9927, %v10180
          %v10187 = vsub.f32 %v9928, %v10180
          %v10188 = vsub.f32 %v9929, %v10180
          %v10189 = vsub.f32 %v9930, %v10180
          %v10190 = vmul.f32 %v10182, 1.442695
          %v10191 = vpow.pop %v10190
          %v10192 = vmul.f32 %v10183, 1.442695
          %v10193 = vpow.pop %v10192
          %v10194 = vmul.f32 %v10184, 1.442695
          %v10195 = vpow.pop %v10194
          %v10196 = vmul.f32 %v10185, 1.442695
          %v10197 = vpow.pop %v10196
          %v10198 = vmul.f32 %v10186, 1.442695
          %v10199 = vpow.pop %v10198
          %v10200 = vmul.f32 %v10187, 1.442695
          %v10201 = vpow.pop %v10200
          %v10202 = vmul.f32 %v10188, 1.442695
          %v10203 = vpow.pop %v10202
          %v10204 = vmul.f32 %v10189, 1.442695
          %v10205 = vpow.pop %v10204
          %v10214 = vcombine.high %v10191, %v10191
          %v10216 = vunpack.c.l.s4 1983009808
          %v10217 = vunpack.c.0.s8 %v10216
          %v10218 = vlaneseq
          %v10219 = vshrl.u32 %v10218, 7
          %v10220 = vsub.s32 %v10217, %v10219
          %v10221 = vrot.slane %v10191, %v10220
          %v10223 = vunpack.c.l.s4 1983009808
          %v10224 = vunpack.c.0.s8 %v10223
          %v10225 = vlaneseq
          %v10226 = vshrl.u32 %v10225, 7
          %v10227 = vsub.s32 %v10224, %v10226
          %v10228 = vrot.slane %v10214, %v10227
          %v10229 = vcombine.high %v10221, %v10221
          %v10230 = vcombine.high %v10228, %v10228
          %v10231 = vcombine.high %v10193, %v10193
          %v10233 = vunpack.c.l.s4 1983009808
          %v10234 = vunpack.c.0.s8 %v10233
          %v10235 = vlaneseq
          %v10236 = vshrl.u32 %v10235, 7
          %v10237 = vsub.s32 %v10234, %v10236
          %v10238 = vrot.slane %v10193, %v10237
          %v10240 = vunpack.c.l.s4 1983009808
          %v10241 = vunpack.c.0.s8 %v10240
          %v10242 = vlaneseq
          %v10243 = vshrl.u32 %v10242, 7
          %v10244 = vsub.s32 %v10241, %v10243
          %v10245 = vrot.slane %v10231, %v10244
          %v10246 = vcombine.high %v10238, %v10238
          %v10247 = vcombine.high %v10245, %v10245
          %v10248 = vcombine.high %v10195, %v10195
          %v10250 = vunpack.c.l.s4 1983009808
          %v10251 = vunpack.c.0.s8 %v10250
          %v10252 = vlaneseq
          %v10253 = vshrl.u32 %v10252, 7
          %v10254 = vsub.s32 %v10251, %v10253
          %v10255 = vrot.slane %v10195, %v10254
          %v10257 = vunpack.c.l.s4 1983009808
          %v10258 = vunpack.c.0.s8 %v10257
          %v10259 = vlaneseq
          %v10260 = vshrl.u32 %v10259, 7
          %v10261 = vsub.s32 %v10258, %v10260
          %v10262 = vrot.slane %v10248, %v10261
          %v10263 = vcombine.high %v10255, %v10255
          %v10264 = vcombine.high %v10262, %v10262
          %v10265 = vcombine.high %v10197, %v10197
          %v10267 = vunpack.c.l.s4 1983009808
          %v10268 = vunpack.c.0.s8 %v10267
          %v10269 = vlaneseq
          %v10270 = vshrl.u32 %v10269, 7
          %v10271 = vsub.s32 %v10268, %v10270
          %v10272 = vrot.slane %v10197, %v10271
          %v10274 = vunpack.c.l.s4 1983009808
          %v10275 = vunpack.c.0.s8 %v10274
          %v10276 = vlaneseq
          %v10277 = vshrl.u32 %v10276, 7
          %v10278 = vsub.s32 %v10275, %v10277
          %v10279 = vrot.slane %v10265, %v10278
          %v10280 = vcombine.high %v10272, %v10272
          %v10281 = vcombine.high %v10279, %v10279
          %v10282 = vcombine.high %v10199, %v10199
          %v10284 = vunpack.c.l.s4 1983009808
          %v10285 = vunpack.c.0.s8 %v10284
          %v10286 = vlaneseq
          %v10287 = vshrl.u32 %v10286, 7
          %v10288 = vsub.s32 %v10285, %v10287
          %v10289 = vrot.slane %v10199, %v10288
          %v10291 = vunpack.c.l.s4 1983009808
          %v10292 = vunpack.c.0.s8 %v10291
          %v10293 = vlaneseq
          %v10294 = vshrl.u32 %v10293, 7
          %v10295 = vsub.s32 %v10292, %v10294
          %v10296 = vrot.slane %v10282, %v10295
          %v10297 = vcombine.high %v10289, %v10289
          %v10298 = vcombine.high %v10296, %v10296
          %v10299 = vcombine.high %v10201, %v10201
          %v10301 = vunpack.c.l.s4 1983009808
          %v10302 = vunpack.c.0.s8 %v10301
          %v10303 = vlaneseq
          %v10304 = vshrl.u32 %v10303, 7
          %v10305 = vsub.s32 %v10302, %v10304
          %v10306 = vrot.slane %v10201, %v10305
          %v10308 = vunpack.c.l.s4 1983009808
          %v10309 = vunpack.c.0.s8 %v10308
          %v10310 = vlaneseq
          %v10311 = vshrl.u32 %v10310, 7
          %v10312 = vsub.s32 %v10309, %v10311
          %v10313 = vrot.slane %v10299, %v10312
          %v10314 = vcombine.high %v10306, %v10306
          %v10315 = vcombine.high %v10313, %v10313
          %v10316 = vcombine.high %v10203, %v10203
          %v10318 = vunpack.c.l.s4 1983009808
          %v10319 = vunpack.c.0.s8 %v10318
          %v10320 = vlaneseq
          %v10321 = vshrl.u32 %v10320, 7
          %v10322 = vsub.s32 %v10319, %v10321
          %v10323 = vrot.slane %v10203, %v10322
          %v10325 = vunpack.c.l.s4 1983009808
          %v10326 = vunpack.c.0.s8 %v10325
          %v10327 = vlaneseq
          %v10328 = vshrl.u32 %v10327, 7
          %v10329 = vsub.s32 %v10326, %v10328
          %v10330 = vrot.slane %v10316, %v10329
          %v10331 = vcombine.high %v10323, %v10323
          %v10332 = vcombine.high %v10330, %v10330
          %v10333 = vcombine.high %v10205, %v10205
          %v10335 = vunpack.c.l.s4 1983009808
          %v10336 = vunpack.c.0.s8 %v10335
          %v10337 = vlaneseq
          %v10338 = vshrl.u32 %v10337, 7
          %v10339 = vsub.s32 %v10336, %v10338
          %v10340 = vrot.slane %v10205, %v10339
          %v10342 = vunpack.c.l.s4 1983009808
          %v10343 = vunpack.c.0.s8 %v10342
          %v10344 = vlaneseq
          %v10345 = vshrl.u32 %v10344, 7
          %v10346 = vsub.s32 %v10343, %v10345
          %v10347 = vrot.slane %v10333, %v10346
          %v10348 = vcombine.high %v10340, %v10340
          %v10349 = vcombine.high %v10347, %v10347
          %v10382 = vsel %vm10107, %v10221, 0.0
          %v10383 = vsel %vm10107, %v10229, 0.0
          %v10384 = vadd.f32 %v10382, %v10383
          %v10385 = vsel %vm10107, %v10228, 0.0
          %v10386 = vadd.f32 %v10384, %v10385
          %v10387 = vsel %vm10107, %v10230, 0.0
          %v10388 = vadd.f32 %v10386, %v10387
          %v10389 = vsel %vm10107, %v10238, 0.0
          %v10390 = vadd.f32 %v10388, %v10389
          %v10391 = vsel %vm10107, %v10246, 0.0
          %v10392 = vadd.f32 %v10390, %v10391
          %v10393 = vsel %vm10107, %v10245, 0.0
          %v10394 = vadd.f32 %v10392, %v10393
          %v10395 = vsel %vm10107, %v10247, 0.0
          %v10396 = vadd.f32 %v10394, %v10395
          %v10397 = vsel %vm10107, %v10255, 0.0
          %v10398 = vadd.f32 %v10396, %v10397
          %v10399 = vsel %vm10107, %v10263, 0.0
          %v10400 = vadd.f32 %v10398, %v10399
          %v10401 = vsel %vm10107, %v10262, 0.0
          %v10402 = vadd.f32 %v10400, %v10401
          %v10403 = vsel %vm10107, %v10264, 0.0
          %v10404 = vadd.f32 %v10402, %v10403
          %v10405 = vsel %vm10107, %v10272, 0.0
          %v10406 = vadd.f32 %v10404, %v10405
          %v10407 = vsel %vm10107, %v10280, 0.0
          %v10408 = vadd.f32 %v10406, %v10407
          %v10409 = vsel %vm10107, %v10279, 0.0
          %v10410 = vadd.f32 %v10408, %v10409
          %v10411 = vsel %vm10107, %v10281, 0.0
          %v10412 = vadd.f32 %v10410, %v10411
          %v10413 = vsel %vm10107, %v10289, 0.0
          %v10414 = vadd.f32 %v10412, %v10413
          %v10415 = vsel %vm10107, %v10297, 0.0
          %v10416 = vadd.f32 %v10414, %v10415
          %v10417 = vsel %vm10107, %v10296, 0.0
          %v10418 = vadd.f32 %v10416, %v10417
          %v10419 = vsel %vm10107, %v10298, 0.0
          %v10420 = vadd.f32 %v10418, %v10419
          %v10421 = vsel %vm10107, %v10306, 0.0
          %v10422 = vadd.f32 %v10420, %v10421
          %v10423 = vsel %vm10107, %v10314, 0.0
          %v10424 = vadd.f32 %v10422, %v10423
          %v10425 = vsel %vm10107, %v10313, 0.0
          %v10426 = vadd.f32 %v10424, %v10425
          %v10427 = vsel %vm10107, %v10315, 0.0
          %v10428 = vadd.f32 %v10426, %v10427
          %v10429 = vsel %vm10107, %v10323, 0.0
          %v10430 = vadd.f32 %v10428, %v10429
          %v10431 = vsel %vm10107, %v10331, 0.0
          %v10432 = vadd.f32 %v10430, %v10431
          %v10433 = vsel %vm10107, %v10330, 0.0
          %v10434 = vadd.f32 %v10432, %v10433
          %v10435 = vsel %vm10107, %v10332, 0.0
          %v10436 = vadd.f32 %v10434, %v10435
          %v10437 = vsel %vm10107, %v10340, 0.0
          %v10438 = vadd.f32 %v10436, %v10437
          %v10439 = vsel %vm10107, %v10348, 0.0
          %v10440 = vadd.f32 %v10438, %v10439
          %v10441 = vsel %vm10107, %v10347, 0.0
          %v10442 = vadd.f32 %v10440, %v10441
          %v10443 = vsel %vm10107, %v10349, 0.0
          %v10444 = vadd.f32 %v10442, %v10443
          %10445 = vadd.xlane.f32.xlu0 %v10444
          %v10446 = vpop.xlane.xlu0 %10445
          %v10449 = vunpack.c.l.s4 269488144
          %v10450 = vunpack.c.0.s8 %v10449
          %v10451 = vlaneseq
          %v10452 = vshrl.u32 %v10451, 7
          %v10453 = vsub.s32 %v10450, %v10452
          %v10454 = vrot.slane %v10446, %v10453
          %v10456 = vrcp.pop %v10454
          %v10457 = vmul.f32 %v10191, %v10456
          %v10458 = vmul.f32 %v10193, %v10456
          %v10459 = vmul.f32 %v10195, %v10456
          %v10460 = vmul.f32 %v10197, %v10456
          %v10461 = vmul.f32 %v10199, %v10456
          %v10462 = vmul.f32 %v10201, %v10456
          %v10463 = vmul.f32 %v10203, %v10456
          %v10464 = vmul.f32 %v10205, %v10456
          %10465 = vst [vmem:[#allocation30] sm:$0xff] %v10457
          %10466 = vst [vmem:[#allocation30 + $0x8] sm:$0xff] %v10458
          %10467 = vst [vmem:[#allocation30 + $0x10] sm:$0xff] %v10459
          %10468 = vst [vmem:[#allocation30 + $0x18] sm:$0xff] %v10460
          %10469 = vst [vmem:[#allocation30 + $0x20] sm:$0xff] %v10461
          %10470 = vst [vmem:[#allocation30 + $0x28] sm:$0xff] %v10462
          %10471 = vst [vmem:[#allocation30 + $0x30] sm:$0xff] %v10463
          %10472 = vst [vmem:[#allocation30 + $0x38] sm:$0xff] %v10464
        $region172: #{forward.1} parent=91 // pred_fallthru
          _
        // Predicated region
        $region173: #{forward.1} parent=91 // pred_check
          %p10473 = pneg %p442
        $region174: #{forward.1} parent=91 // pred_check_branch
          %10475 = sbr.rel (%p10473) target = $region176
        $region175: #{forward.1} parent=91 // pred_region
          %s10477 = ssub.s32 1024, 1024
          %10478 = vsyncadd [#allocation5], %s10477
          %s10480 = sshll.u32 [#allocation30], 4
          %s10481 = int_to_ptr.vmem [resolvable:$true] %s10480
          %10483 = dma.vmem_to_hbm [thread:$0]  %s10481, 1024, %s18, [#allocation5]
        $region176: #{forward.1} parent=91 // pred_fallthru
          _
        // Predicated region
        $region177: #{forward.1} parent=91 // pred_check
          %p10484 = pneg %p442
        $region178: #{forward.1} parent=91 // pred_check_branch
          %10486 = sbr.rel (%p10484) target = $region180
        $region179: #{forward.1} parent=91 // pred_region
          %10487 = dma.done [#allocation5], 1024
        $region180: #{forward.1} parent=91 // pred_fallthru
          _
      $region92: #{forward.1} parent=5 // pred_fallthru
        _
      %p10488 = scmp.le.s32.totalorder 2, %s36
      // Predicated region
      $region181: #{forward.1} parent=5 // pred_check
        %p10489 = pneg %p10488
      $region182: #{forward.1} parent=5 // pred_check_branch
        %10491 = sbr.rel (%p10489) target = $region184
      $region183: #{forward.1} parent=5 // pred_region
        %s10492 = ssub.s32 %s36, 2
      $region184: #{forward.1} parent=5 // pred_fallthru
        _
    $region6: #{forward.1} parent=1 // loop_footer
      %s40 = sadd.s32 1, %s36
    $region7: #{forward.1} parent=1 // loop_footer_branch
      %35 = sbr.rel target = $region3
    $region8: #{forward.1} parent=1 // loop_exit
      _
    %10493 = vsyncpa [#allocation4], 1
    %s10494 = scalar_lea.sflag [#allocation4], 1
    %10495 = vsyncpa %s10494, 1
    %10496 = vsyncpa [#allocation7], 1
    %10497 = vsyncpa [#allocation10], 1
    %10498 = vsyncpa [#allocation13], 1
    %10499 = vsyncpa [#allocation16], 1
    %10500 = vsyncpa [#allocation19], 1
    %10501 = vsyncpa [#allocation22], 1
    %10502 = vsyncpa [#allocation25], 1
    %10503 = vsyncpa [#allocation28], 1
    %s10504 = scalar_lea.sflag [#allocation28], 1
    %10505 = vsyncpa %s10504, 1
    %10506 = vsyncpa [#allocation5], 1
    %s10507 = scalar_lea.sflag [#allocation5], 1
    %10508 = vsyncpa %s10507, 1

</llo_original>
